<compile_context>
chip_gen: v7x
topology: tpu7x:2x2x1
jax: 0.10.0
libtpu: 0.0.40
codegen_flags: <defaults>
</compile_context>

<pallas_src>
import jax
import jax.numpy as jnp
from jax.experimental import pallas as pl
from jax.experimental.pallas import tpu as pltpu

IN1 = 32       # 2**5 amplitudes for the 5-qubit RealAmplitude encoder of q1
OUT1 = 3       # q1 measured outputs (then x.reshape(3))
OUT2 = 2       # q2 measured outputs
H_LANES = 8    # lane padding of the q1 output / q2 input (lanes 3..7 are zeros)
P2_ROWS = 8    # sublane padding of the packed [W2 rows ; b2 row] block

BM_MAX = 4096    # max batch rows per grid step (amortizes ~0.35 us/step overhead)
SPLIT_MIN = 512  # below this, a single full-extent tile is cheapest


def model1_kernel(x_ref, w1_ref, b1_ref, p2_ref, o_ref):
    # q1 surrogate: (BM, 32) @ (32, 8) on the MXU; bias + tanh on VPU/EUP.
    # W1/b1 lanes 3..7 are zero, so h there is exactly tanh(0) = 0 (and unused below).
    h = jnp.tanh(
        jnp.dot(
            x_ref[...],
            w1_ref[...],
            preferred_element_type=jnp.float32,
            precision=jax.lax.Precision.HIGHEST,
        )
        + b1_ref[...]
    )
    # (x.reshape(3) of the original forward is implicit: valid values are h[:, :3].)
    #
    # q2 surrogate: 3x2 affine + tanh as 3 broadcast FMAs on the VPU (no MXU push).
    # p2 rows 0..2 = W2 rows, row 3 = b2, rows 4..7 = zero padding.
    acc = p2_ref[OUT1:OUT1 + 1, :]                 # b2 row, broadcasts over BM rows
    for k in range(OUT1):
        acc = acc + h[:, k:k + 1] * p2_ref[k:k + 1, :]
    o_ref[...] = jnp.tanh(acc)                     # compact (BM, 2) store


def prepare_params(w1, b1, w2, b2):
    """One-time parameter prep (outside the per-call path): pad into small TPU tiles."""
    f32 = jnp.float32
    w1_pad = jnp.zeros((IN1, H_LANES), f32).at[:, :OUT1].set(w1.astype(f32))
    b1_pad = jnp.zeros((1, H_LANES), f32).at[0, :OUT1].set(b1.astype(f32))
    p2 = (
        jnp.zeros((P2_ROWS, OUT2), f32)
        .at[:OUT1, :].set(w2.astype(f32))
        .at[OUT1, :].set(b2.astype(f32))
    )
    return w1_pad, b1_pad, p2


def _pick_bm(B):
    """Rows per grid step.

    Small batches (< SPLIT_MIN) use one full-extent tile (no shape constraints,
    minimal step overhead).  Larger batches use >= 2 tiles so the "parallel" batch
    axis can be sharded across both v7x TensorCores, each tile as large as possible
    (<= BM_MAX, multiple of 8 per the BlockSpec (8, 128) divisibility rule)."""
    if B < SPLIT_MIN:
        return B
    half = (B + 1) // 2
    return min(BM_MAX, ((half + 7) // 8) * 8)


@jax.jit
def model1_forward_batched(x, w1_pad, b1_pad, p2):
    """x: (B, 32) f32 -> (B, 2) f32.  Each row runs the Model1 forward independently."""
    x = x.astype(jnp.float32)
    B = x.shape[0]
    bm = _pick_bm(B)
    # Ragged final tile (when bm doesn't divide B) is handled by Pallas boundary
    # masking: out-of-bounds rows are never written back -> no jnp.pad of x needed.
    grid = (pl.cdiv(B, bm),)

    return pl.pallas_call(
        model1_kernel,
        out_shape=jax.ShapeDtypeStruct((B, OUT2), jnp.float32),   # compact output
        grid=grid,
        in_specs=[
            pl.BlockSpec((bm, IN1), lambda i: (i, 0)),        # x tile (M = batch rows)
            pl.BlockSpec((IN1, H_LANES), lambda i: (0, 0)),   # W1 (resident, no re-DMA)
            pl.BlockSpec((1, H_LANES), lambda i: (0, 0)),     # b1
            pl.BlockSpec((P2_ROWS, OUT2), lambda i: (0, 0)),  # [W2 rows ; b2 row]
        ],
        out_specs=pl.BlockSpec((bm, OUT2), lambda i: (i, 0)), # compact (B, 2) output
        compiler_params=pltpu.CompilerParams(
            dimension_semantics=("parallel",),   # batch axis -> both TCs on v7x
        ),
    )(x, w1_pad, b1_pad, p2)


def model1_forward(x, w1_pad, b1_pad, p2):
    """Original Model1.forward semantics: single x of shape (32,) -> (2,)."""
    # Fill one sublane (8 identical rows) to avoid an M=1 matmul corner case; row 0
    # is the answer.  Cost is negligible (8 x 32 floats).
    x8 = jnp.broadcast_to(x[None, :].astype(jnp.float32), (8, IN1))
    return model1_forward_batched(x8, w1_pad, b1_pad, p2)[0]


def reference_forward(x, w1, b1, w2, b2):
    """Pure-JAX per-sample reference of the surrogate forward."""
    h = jnp.tanh(jnp.dot(x, w1, precision=jax.lax.Precision.HIGHEST) + b1)  # q1 -> (3,)
    h = h.reshape(OUT1)                                                     # x.reshape(3)
    return jnp.tanh(jnp.dot(h, w2, precision=jax.lax.Precision.HIGHEST) + b2)  # q2 -> (2,)


if __name__ == "__main__":
    key = jax.random.PRNGKey(0)
    k_x, k_w1, k_b1, k_w2, k_b2 = jax.random.split(key, 5)

    # Deterministic "circuit parameter" surrogates.
    w1 = 0.3 * jax.random.normal(k_w1, (IN1, OUT1), dtype=jnp.float32)
    b1 = 0.1 * jax.random.normal(k_b1, (OUT1,), dtype=jnp.float32)
    w2 = 0.3 * jax.random.normal(k_w2, (OUT1, OUT2), dtype=jnp.float32)
    b2 = 0.1 * jax.random.normal(k_b2, (OUT2,), dtype=jnp.float32)

    # One-time parameter prep (weights padded once, not per call).
    w1_pad, b1_pad, p2 = prepare_params(w1, b1, w2, b2)

    ref_batched = jax.jit(jax.vmap(lambda xi: reference_forward(xi, w1, b1, w2, b2)))

    # 1) Batched path, 2 "parallel" grid steps (megacore on v7x), exact tiling.
    B = 2048
    x = jax.random.normal(k_x, (B, IN1), dtype=jnp.float32)
    y = model1_forward_batched(x, w1_pad, b1_pad, p2)
    jax.block_until_ready(y)
    y_ref = ref_batched(x)
    assert y.shape == (B, OUT2)
    assert jnp.allclose(y, y_ref, atol=1e-5, rtol=1e-5), (y[:2], y_ref[:2])

    # 2) Small batch, single full-extent tile (B not a multiple of 8).
    xs = x[:37]
    ys = model1_forward_batched(xs, w1_pad, b1_pad, p2)
    jax.block_until_ready(ys)
    ys_ref = ref_batched(xs)
    assert ys.shape == (37, OUT2)
    assert jnp.allclose(ys, ys_ref, atol=1e-5, rtol=1e-5), (ys[:2], ys_ref[:2])

    # 3) Original Model1.forward arity: (32,) -> (2,).
    y0 = model1_forward(x[0], w1_pad, b1_pad, p2)
    jax.block_until_ready(y0)
    assert y0.shape == (OUT2,)
    assert jnp.allclose(y0, y_ref[0], atol=1e-5, rtol=1e-5), (y0, y_ref[0])

    print("KERNEL_OK")
</pallas_src>

<mosaic_0001>
module attributes {stable_mosaic.version = 11 : i64} {
  func.func @model1_kernel(%arg0: i32, %arg1: memref<1024x32xf32, #tpu.memory_space<vmem>>, %arg2: memref<32x8xf32, #tpu.memory_space<vmem>>, %arg3: memref<1x8xf32, #tpu.memory_space<vmem>>, %arg4: memref<8x2xf32, #tpu.memory_space<vmem>>, %arg5: memref<1024x2xf32, #tpu.memory_space<vmem>>) attributes {dimension_semantics = [#tpu.dimension_semantics<parallel>], iteration_bounds = array<i64: 2>, scalar_prefetch = 0 : i64, scratch_operands = 0 : i64, tpu.core_type = #tpu.core_type<tc>, window_params = [{transform_indices = @transform_0, window_bounds = array<i64: 1024, 32>}, {pipeline_mode = #tpu.pipeline_mode<synchronous>, transform_indices = @transform_1, window_bounds = array<i64: 32, 8>}, {pipeline_mode = #tpu.pipeline_mode<synchronous>, transform_indices = @transform_2, window_bounds = array<i64: 1, 8>}, {pipeline_mode = #tpu.pipeline_mode<synchronous>, transform_indices = @transform_3, window_bounds = array<i64: 8, 2>}, {transform_indices = @transform_4, window_bounds = array<i64: 1024, 2>}]} {
    %c0 = arith.constant 0 : index
    %c0_0 = arith.constant 0 : index
    %0 = vector.load %arg1[%c0, %c0_0] : memref<1024x32xf32, #tpu.memory_space<vmem>>, vector<1024x32xf32>
    %c0_1 = arith.constant 0 : index
    %c0_2 = arith.constant 0 : index
    %1 = vector.load %arg2[%c0_1, %c0_2] : memref<32x8xf32, #tpu.memory_space<vmem>>, vector<32x8xf32>
    %cst = arith.constant dense<0.000000e+00> : vector<1024x8xf32>
    %2 = tpu.matmul %0, %1, %cst {dimension_numbers = #tpu.dot_dimension_numbers<[1], [0], [0], [1], [0, 0, 1, 1], [], []>, precision = #tpu.contract_precision<fp32>} : vector<1024x32xf32>, vector<32x8xf32>, vector<1024x8xf32> -> vector<1024x8xf32>
    %c0_3 = arith.constant 0 : index
    %c0_4 = arith.constant 0 : index
    %3 = vector.load %arg3[%c0_3, %c0_4] : memref<1x8xf32, #tpu.memory_space<vmem>>, vector<1x8xf32>
    %4 = vector.broadcast %3 : vector<1x8xf32> to vector<1024x8xf32>
    %5 = arith.addf %2, %4 : vector<1024x8xf32>
    %6 = math.tanh %5 : vector<1024x8xf32>
    %c3 = arith.constant 3 : index
    %c0_5 = arith.constant 0 : index
    %7 = vector.load %arg4[%c3, %c0_5] : memref<8x2xf32, #tpu.memory_space<vmem>>, vector<1x2xf32>
    %8 = vector.extract_strided_slice %6 {offsets = [0, 0], sizes = [1024, 1], strides = [1, 1]} : vector<1024x8xf32> to vector<1024x1xf32>
    %c0_6 = arith.constant 0 : index
    %c0_7 = arith.constant 0 : index
    %9 = vector.load %arg4[%c0_6, %c0_7] : memref<8x2xf32, #tpu.memory_space<vmem>>, vector<1x2xf32>
    %10 = vector.broadcast %8 : vector<1024x1xf32> to vector<1024x2xf32>
    %11 = vector.broadcast %9 : vector<1x2xf32> to vector<1024x2xf32>
    %12 = arith.mulf %10, %11 : vector<1024x2xf32>
    %13 = vector.broadcast %7 : vector<1x2xf32> to vector<1024x2xf32>
    %14 = arith.addf %13, %12 : vector<1024x2xf32>
    %15 = vector.extract_strided_slice %6 {offsets = [0, 1], sizes = [1024, 1], strides = [1, 1]} : vector<1024x8xf32> to vector<1024x1xf32>
    %c1 = arith.constant 1 : index
    %c0_8 = arith.constant 0 : index
    %16 = vector.load %arg4[%c1, %c0_8] : memref<8x2xf32, #tpu.memory_space<vmem>>, vector<1x2xf32>
    %17 = vector.broadcast %15 : vector<1024x1xf32> to vector<1024x2xf32>
    %18 = vector.broadcast %16 : vector<1x2xf32> to vector<1024x2xf32>
    %19 = arith.mulf %17, %18 : vector<1024x2xf32>
    %20 = arith.addf %14, %19 : vector<1024x2xf32>
    %21 = vector.extract_strided_slice %6 {offsets = [0, 2], sizes = [1024, 1], strides = [1, 1]} : vector<1024x8xf32> to vector<1024x1xf32>
    %c2 = arith.constant 2 : index
    %c0_9 = arith.constant 0 : index
    %22 = vector.load %arg4[%c2, %c0_9] : memref<8x2xf32, #tpu.memory_space<vmem>>, vector<1x2xf32>
    %23 = vector.broadcast %21 : vector<1024x1xf32> to vector<1024x2xf32>
    %24 = vector.broadcast %22 : vector<1x2xf32> to vector<1024x2xf32>
    %25 = arith.mulf %23, %24 : vector<1024x2xf32>
    %26 = arith.addf %20, %25 : vector<1024x2xf32>
    %27 = math.tanh %26 : vector<1024x2xf32>
    %c0_10 = arith.constant 0 : index
    %c0_11 = arith.constant 0 : index
    %28 = vector.load %arg5[%c0_10, %c0_11] : memref<1024x2xf32, #tpu.memory_space<vmem>>, vector<1024x2xf32>
    tpu.vector_store %arg5[%c0_10, %c0_11], %27 {strides = array<i32>} : memref<1024x2xf32, #tpu.memory_space<vmem>>, vector<1024x2xf32>,
    return
  }
  func.func @transform_0(%arg0: i32) -> (i32, i32) {
    %c0_i32 = arith.constant 0 : i32
    %c0_i32_0 = arith.constant 0 : i32
    return %arg0, %c0_i32 : i32, i32
  }
  func.func @transform_1(%arg0: i32) -> (i32, i32) {
    %c0_i32 = arith.constant 0 : i32
    %c0_i32_0 = arith.constant 0 : i32
    %c0_i32_1 = arith.constant 0 : i32
    return %c0_i32, %c0_i32_0 : i32, i32
  }
  func.func @transform_2(%arg0: i32) -> (i32, i32) {
    %c0_i32 = arith.constant 0 : i32
    %c0_i32_0 = arith.constant 0 : i32
    %c0_i32_1 = arith.constant 0 : i32
    return %c0_i32, %c0_i32_0 : i32, i32
  }
  func.func @transform_3(%arg0: i32) -> (i32, i32) {
    %c0_i32 = arith.constant 0 : i32
    %c0_i32_0 = arith.constant 0 : i32
    %c0_i32_1 = arith.constant 0 : i32
    return %c0_i32, %c0_i32_0 : i32, i32
  }
  func.func @transform_4(%arg0: i32) -> (i32, i32) {
    %c0_i32 = arith.constant 0 : i32
    %c0_i32_0 = arith.constant 0 : i32
    return %arg0, %c0_i32 : i32, i32
  }
}

</mosaic_0001>

<llo_original>
// kernel: model1_forward_batched.1
$region0: #{model1_forward_batched.1}
  #allocation0 [shape = 'u32[]', space=smem, size = 0x4, offset = 0x4, fixed_abs, tag = 'smem constant byte address 0x4 - core index']
  #allocation1 [shape = 'u32[144,128]{1,0:T(1,128)}', space=vmem, size = 0x12000, scoped, tag = 'internal scratch']
  %s0 = inlined_call_operand.vmem [shape: f32[2048,32], index: 0, kind: input, shape index: {}]
  %s1 = inlined_call_operand.vmem [shape: f32[32,8], index: 1, kind: input, shape index: {}]
  %s2 = inlined_call_operand.vmem [shape: f32[1,8], index: 2, kind: input, shape index: {}]
  %s3 = inlined_call_operand.vmem [shape: f32[8,2], index: 3, kind: input, shape index: {}]
  %s4 = inlined_call_operand.vmem [shape: f32[2048,2], index: 4, kind: output, shape index: {}]
  %s5 = sld [smem:[#allocation0]]
  $region49: #{model1_forward_batched.1} parent=0
    _
  %s7 = ssub.s32 1, %s5
  %s8 = scalar_select 0, %s7, %s5
  loop: start=0, step=1, limit=4
  $region2: #{model1_forward_batched.1} parent=0 // loop_pre_header
    _
  $region3: #{model1_forward_batched.1} parent=0 // loop_header
    %s10 = sphi 0, %s14
    %p11 = scmp.ge.s32.totalorder %s10, 4
    %s20 = sphi 0, %s22
    %s23 = sphi 0, %s20
    %s24 = sphi 0, %s23
    %s40 = sphi 0, %s24
    %s44 = sphi 0, %s44
    %s46 = sphi 0, %s44
    %s47 = sphi 0, %s46
    %s61 = sphi 0, %s47
    %s65 = sphi 0, %s65
    %s67 = sphi 0, %s65
    %s68 = sphi 0, %s67
    %s82 = sphi 0, %s68
    %s86 = sphi 0, %s86
    %s88 = sphi 0, %s86
    %s89 = sphi 0, %s88
    %s103 = sphi 0, %s89
    %s109 = sphi 0, %s111
    %s112 = sphi 0, %s109
    %s113 = sphi 0, %s112
    %s129 = sphi 0, %s113
  $region4: #{model1_forward_batched.1} parent=0 // loop_header_branch
    %13 = sbr.rel (%p11) target = $region8
  $region5: #{model1_forward_batched.1} parent=0 // loop_body
    %s15 = ssub.s32 %s10, 1
    %s16 = ssub.s32 %s10, 2
    %s17 = sadd.s32 %s10, 1
    %s18 = ssub.s32 %s10, %s17
    %p19 = scmp.eq.s32.totalorder %s18, 0
    %s21 = sadd.s32 %s20, 1
    %s22 = scalar_select %p19, %s20, %s21
    %p25 = pneg %p19
    %p26 = scmp.eq.s32.totalorder %s10, 1
    %p27 = por %p25, %p26
    %p28 = scmp.ne.s32.totalorder %s20, %s23
    %p29 = scmp.eq.s32.totalorder %s10, 0
    %p30 = por %p28, %p29
    %p31 = scmp.ne.s32.totalorder %s20, %s23
    %p32 = scmp.eq.s32.totalorder %s15, 1
    %p33 = por %p31, %p32
    %p34 = scmp.ne.s32.totalorder %s23, %s24
    %p35 = scmp.eq.s32.totalorder %s15, 0
    %p36 = por %p34, %p35
    %p37 = scmp.ne.s32.totalorder %s23, %s24
    %p38 = scmp.eq.s32.totalorder %s16, 1
    %p39 = por %p37, %p38
    %p41 = scmp.ne.s32.totalorder %s24, %s40
    %p42 = scmp.eq.s32.totalorder %s16, 0
    %p43 = por %p41, %p42
    %s45 = sadd.s32 %s44, 1
    %p48 = scmp.eq.s32.totalorder %s10, 1
    %p49 = scmp.ne.s32.totalorder %s44, %s46
    %p50 = scmp.eq.s32.totalorder %s10, 0
    %p51 = por %p49, %p50
    %p52 = scmp.ne.s32.totalorder %s44, %s46
    %p53 = scmp.eq.s32.totalorder %s15, 1
    %p54 = por %p52, %p53
    %p55 = scmp.ne.s32.totalorder %s46, %s47
    %p56 = scmp.eq.s32.totalorder %s15, 0
    %p57 = por %p55, %p56
    %p58 = scmp.ne.s32.totalorder %s46, %s47
    %p59 = scmp.eq.s32.totalorder %s16, 1
    %p60 = por %p58, %p59
    %p62 = scmp.ne.s32.totalorder %s47, %s61
    %p63 = scmp.eq.s32.totalorder %s16, 0
    %p64 = por %p62, %p63
    %s66 = sadd.s32 %s65, 1
    %p69 = scmp.eq.s32.totalorder %s10, 1
    %p70 = scmp.ne.s32.totalorder %s65, %s67
    %p71 = scmp.eq.s32.totalorder %s10, 0
    %p72 = por %p70, %p71
    %p73 = scmp.ne.s32.totalorder %s65, %s67
    %p74 = scmp.eq.s32.totalorder %s15, 1
    %p75 = por %p73, %p74
    %p76 = scmp.ne.s32.totalorder %s67, %s68
    %p77 = scmp.eq.s32.totalorder %s15, 0
    %p78 = por %p76, %p77
    %p79 = scmp.ne.s32.totalorder %s67, %s68
    %p80 = scmp.eq.s32.totalorder %s16, 1
    %p81 = por %p79, %p80
    %p83 = scmp.ne.s32.totalorder %s68, %s82
    %p84 = scmp.eq.s32.totalorder %s16, 0
    %p85 = por %p83, %p84
    %s87 = sadd.s32 %s86, 1
    %p90 = scmp.eq.s32.totalorder %s10, 1
    %p91 = scmp.ne.s32.totalorder %s86, %s88
    %p92 = scmp.eq.s32.totalorder %s10, 0
    %p93 = por %p91, %p92
    %p94 = scmp.ne.s32.totalorder %s86, %s88
    %p95 = scmp.eq.s32.totalorder %s15, 1
    %p96 = por %p94, %p95
    %p97 = scmp.ne.s32.totalorder %s88, %s89
    %p98 = scmp.eq.s32.totalorder %s15, 0
    %p99 = por %p97, %p98
    %p100 = scmp.ne.s32.totalorder %s88, %s89
    %p101 = scmp.eq.s32.totalorder %s16, 1
    %p102 = por %p100, %p101
    %p104 = scmp.ne.s32.totalorder %s89, %s103
    %p105 = scmp.eq.s32.totalorder %s16, 0
    %p106 = por %p104, %p105
    %s107 = ssub.s32 %s10, %s17
    %p108 = scmp.eq.s32.totalorder %s107, 0
    %s110 = sadd.s32 %s109, 1
    %s111 = scalar_select %p108, %s109, %s110
    %p114 = pneg %p108
    %p115 = scmp.eq.s32.totalorder %s10, 1
    %p116 = por %p114, %p115
    %p117 = scmp.ne.s32.totalorder %s109, %s112
    %p118 = scmp.eq.s32.totalorder %s10, 0
    %p119 = por %p117, %p118
    %p120 = scmp.ne.s32.totalorder %s109, %s112
    %p121 = scmp.eq.s32.totalorder %s15, 1
    %p122 = por %p120, %p121
    %p123 = scmp.ne.s32.totalorder %s112, %s113
    %p124 = scmp.eq.s32.totalorder %s15, 0
    %p125 = por %p123, %p124
    %p126 = scmp.ne.s32.totalorder %s112, %s113
    %p127 = scmp.eq.s32.totalorder %s16, 1
    %p128 = por %p126, %p127
    %p130 = scmp.ne.s32.totalorder %s113, %s129
    %p131 = scmp.eq.s32.totalorder %s16, 0
    %p132 = por %p130, %p131
    %p133 = scmp.le.s32.totalorder 1, %s10
    %p134 = scmp.lt.s32.totalorder %s10, 3
    %p135 = pnand %p133, %p134
    %p136 = pneg %p135
    // Predicated region
    $region9: #{model1_forward_batched.1} parent=5 // pred_check
      _
    $region10: #{model1_forward_batched.1} parent=5 // pred_check_branch
      %138 = sbr.rel (%p135) target = $region12
    $region11: #{model1_forward_batched.1} parent=5 // pred_region
      %s139 = ssub.s32 %s10, 1
      // Predicated region
      $region13: #{model1_forward_batched.1} parent=11 // pred_check
        %p140 = pneg %p57
      $region14: #{model1_forward_batched.1} parent=11 // pred_check_branch
        %142 = sbr.rel (%p140) target = $region16
      $region15: #{model1_forward_batched.1} parent=11 // pred_region
        _
      $region16: #{model1_forward_batched.1} parent=11 // pred_fallthru
        _
      // Predicated region
      $region17: #{model1_forward_batched.1} parent=11 // pred_check
        %p143 = pneg %p78
      $region18: #{model1_forward_batched.1} parent=11 // pred_check_branch
        %145 = sbr.rel (%p143) target = $region20
      $region19: #{model1_forward_batched.1} parent=11 // pred_region
        _
      $region20: #{model1_forward_batched.1} parent=11 // pred_fallthru
        _
      // Predicated region
      $region21: #{model1_forward_batched.1} parent=11 // pred_check
        %p146 = pneg %p99
      $region22: #{model1_forward_batched.1} parent=11 // pred_check_branch
        %148 = sbr.rel (%p146) target = $region24
      $region23: #{model1_forward_batched.1} parent=11 // pred_region
        _
      $region24: #{model1_forward_batched.1} parent=11 // pred_fallthru
        _
    $region12: #{model1_forward_batched.1} parent=5 // pred_fallthru
      _
    %p149 = scmp.lt.s32.totalorder %s10, 2
    // Predicated region
    $region25: #{model1_forward_batched.1} parent=5 // pred_check
      %p150 = pneg %p149
    $region26: #{model1_forward_batched.1} parent=5 // pred_check_branch
      %152 = sbr.rel (%p150) target = $region28
    $region27: #{model1_forward_batched.1} parent=5 // pred_region
      // Predicated region
      $region29: #{model1_forward_batched.1} parent=27 // pred_check
        %p153 = pneg %p30
      $region30: #{model1_forward_batched.1} parent=27 // pred_check_branch
        %155 = sbr.rel (%p153) target = $region32
      $region31: #{model1_forward_batched.1} parent=27 // pred_region
        %s156 = smul.u32 128, %s10
        %p157 = scmp.lt.s32.totalorder %s156, 255
        %s158 = scalar_select %p157, %s156, 255
        %s159 = smul.addr %s158, 8
        %s160 = scalar_lea.vmem %s0, %s159
        %s161 = smul.u32 128, %s10
      $region32: #{model1_forward_batched.1} parent=27 // pred_fallthru
        _
    $region28: #{model1_forward_batched.1} parent=5 // pred_fallthru
      _
    %p162 = scmp.le.s32.totalorder 1, %s10
    %p163 = scmp.lt.s32.totalorder %s10, 3
    %p164 = pnand %p162, %p163
    %p165 = pneg %p164
    // Predicated region
    $region33: #{model1_forward_batched.1} parent=5 // pred_check
      _
    $region34: #{model1_forward_batched.1} parent=5 // pred_check_branch
      %167 = sbr.rel (%p164) target = $region36
    $region35: #{model1_forward_batched.1} parent=5 // pred_region
      %s168 = ssub.s32 %s10, 1
      %s169 = smul.u32 128, %s15
      %p170 = scmp.lt.s32.totalorder %s169, 255
      %s171 = scalar_select %p170, %s169, 255
      %s172 = smul.addr %s171, 8
      %s173 = scalar_lea.vmem %s0, %s172
      %p174 = pneg %p36
      %p175 = pneg %p33
      %p176 = pneg %p57
      %p177 = pneg %p54
      %p178 = pneg %p78
      %p179 = pneg %p75
      %p180 = pneg %p99
      %p181 = pneg %p96
      %p182 = pneg %p125
      %p183 = pneg %p122
      %s184 = smul.u32 128, %s15
      %p185 = scmp.lt.s32.totalorder %s184, 255
      %s186 = scalar_select %p185, %s184, 255
      %s187 = smul.addr %s186, 8
      %s188 = scalar_lea.vmem %s4, %s187
      %s189 = smul.u32 128, %s15
      %p190 = scmp.lt.s32.totalorder %s189, 255
      %s191 = scalar_select %p190, %s189, 255
      %s192 = smul.addr %s191, 8
      %s193 = scalar_lea.vmem %s0, %s192
      %s194 = smul.u32 128, %s15
      %s195 = smul.u32 128, %s15
      %p196 = scmp.lt.s32.totalorder %s195, 255
      %s197 = scalar_select %p196, %s195, 255
      %s198 = smul.addr %s197, 8
      %s199 = scalar_lea.vmem %s4, %s198
      %s200 = smul.u32 128, %s15
      %v201 = vld [vmem:[%s193] sm:$0xff]
      %v202 = vld [vmem:[%s193 + $0x8] sm:$0xff]
      %v203 = vld [vmem:[%s193 + $0x10] sm:$0xff]
      %v204 = vld [vmem:[%s193 + $0x18] sm:$0xff]
      %v205 = vld [vmem:[%s193 + $0x20] sm:$0xff]
      %v206 = vld [vmem:[%s193 + $0x28] sm:$0xff]
      %v207 = vld [vmem:[%s193 + $0x30] sm:$0xff]
      %v208 = vld [vmem:[%s193 + $0x38] sm:$0xff]
      %v209 = vld [vmem:[%s193 + $0x40] sm:$0xff]
      %v210 = vld [vmem:[%s193 + $0x48] sm:$0xff]
      %v211 = vld [vmem:[%s193 + $0x50] sm:$0xff]
      %v212 = vld [vmem:[%s193 + $0x58] sm:$0xff]
      %v213 = vld [vmem:[%s193 + $0x60] sm:$0xff]
      %v214 = vld [vmem:[%s193 + $0x68] sm:$0xff]
      %v215 = vld [vmem:[%s193 + $0x70] sm:$0xff]
      %v216 = vld [vmem:[%s193 + $0x78] sm:$0xff]
      %v217 = vld [vmem:[%s193 + $0x80] sm:$0xff]
      %v218 = vld [vmem:[%s193 + $0x88] sm:$0xff]
      %v219 = vld [vmem:[%s193 + $0x90] sm:$0xff]
      %v220 = vld [vmem:[%s193 + $0x98] sm:$0xff]
      %v221 = vld [vmem:[%s193 + $0xa0] sm:$0xff]
      %v222 = vld [vmem:[%s193 + $0xa8] sm:$0xff]
      %v223 = vld [vmem:[%s193 + $0xb0] sm:$0xff]
      %v224 = vld [vmem:[%s193 + $0xb8] sm:$0xff]
      %v225 = vld [vmem:[%s193 + $0xc0] sm:$0xff]
      %v226 = vld [vmem:[%s193 + $0xc8] sm:$0xff]
      %v227 = vld [vmem:[%s193 + $0xd0] sm:$0xff]
      %v228 = vld [vmem:[%s193 + $0xd8] sm:$0xff]
      %v229 = vld [vmem:[%s193 + $0xe0] sm:$0xff]
      %v230 = vld [vmem:[%s193 + $0xe8] sm:$0xff]
      %v231 = vld [vmem:[%s193 + $0xf0] sm:$0xff]
      %v232 = vld [vmem:[%s193 + $0xf8] sm:$0xff]
      %v233 = vld [vmem:[%s193 + $0x100] sm:$0xff]
      %v234 = vld [vmem:[%s193 + $0x108] sm:$0xff]
      %v235 = vld [vmem:[%s193 + $0x110] sm:$0xff]
      %v236 = vld [vmem:[%s193 + $0x118] sm:$0xff]
      %v237 = vld [vmem:[%s193 + $0x120] sm:$0xff]
      %v238 = vld [vmem:[%s193 + $0x128] sm:$0xff]
      %v239 = vld [vmem:[%s193 + $0x130] sm:$0xff]
      %v240 = vld [vmem:[%s193 + $0x138] sm:$0xff]
      %v241 = vld [vmem:[%s193 + $0x140] sm:$0xff]
      %v242 = vld [vmem:[%s193 + $0x148] sm:$0xff]
      %v243 = vld [vmem:[%s193 + $0x150] sm:$0xff]
      %v244 = vld [vmem:[%s193 + $0x158] sm:$0xff]
      %v245 = vld [vmem:[%s193 + $0x160] sm:$0xff]
      %v246 = vld [vmem:[%s193 + $0x168] sm:$0xff]
      %v247 = vld [vmem:[%s193 + $0x170] sm:$0xff]
      %v248 = vld [vmem:[%s193 + $0x178] sm:$0xff]
      %v249 = vld [vmem:[%s193 + $0x180] sm:$0xff]
      %v250 = vld [vmem:[%s193 + $0x188] sm:$0xff]
      %v251 = vld [vmem:[%s193 + $0x190] sm:$0xff]
      %v252 = vld [vmem:[%s193 + $0x198] sm:$0xff]
      %v253 = vld [vmem:[%s193 + $0x1a0] sm:$0xff]
      %v254 = vld [vmem:[%s193 + $0x1a8] sm:$0xff]
      %v255 = vld [vmem:[%s193 + $0x1b0] sm:$0xff]
      %v256 = vld [vmem:[%s193 + $0x1b8] sm:$0xff]
      %v257 = vld [vmem:[%s193 + $0x1c0] sm:$0xff]
      %v258 = vld [vmem:[%s193 + $0x1c8] sm:$0xff]
      %v259 = vld [vmem:[%s193 + $0x1d0] sm:$0xff]
      %v260 = vld [vmem:[%s193 + $0x1d8] sm:$0xff]
      %v261 = vld [vmem:[%s193 + $0x1e0] sm:$0xff]
      %v262 = vld [vmem:[%s193 + $0x1e8] sm:$0xff]
      %v263 = vld [vmem:[%s193 + $0x1f0] sm:$0xff]
      %v264 = vld [vmem:[%s193 + $0x1f8] sm:$0xff]
      %v265 = vld [vmem:[%s193 + $0x200] sm:$0xff]
      %v266 = vld [vmem:[%s193 + $0x208] sm:$0xff]
      %v267 = vld [vmem:[%s193 + $0x210] sm:$0xff]
      %v268 = vld [vmem:[%s193 + $0x218] sm:$0xff]
      %v269 = vld [vmem:[%s193 + $0x220] sm:$0xff]
      %v270 = vld [vmem:[%s193 + $0x228] sm:$0xff]
      %v271 = vld [vmem:[%s193 + $0x230] sm:$0xff]
      %v272 = vld [vmem:[%s193 + $0x238] sm:$0xff]
      %v273 = vld [vmem:[%s193 + $0x240] sm:$0xff]
      %v274 = vld [vmem:[%s193 + $0x248] sm:$0xff]
      %v275 = vld [vmem:[%s193 + $0x250] sm:$0xff]
      %v276 = vld [vmem:[%s193 + $0x258] sm:$0xff]
      %v277 = vld [vmem:[%s193 + $0x260] sm:$0xff]
      %v278 = vld [vmem:[%s193 + $0x268] sm:$0xff]
      %v279 = vld [vmem:[%s193 + $0x270] sm:$0xff]
      %v280 = vld [vmem:[%s193 + $0x278] sm:$0xff]
      %v281 = vld [vmem:[%s193 + $0x280] sm:$0xff]
      %v282 = vld [vmem:[%s193 + $0x288] sm:$0xff]
      %v283 = vld [vmem:[%s193 + $0x290] sm:$0xff]
      %v284 = vld [vmem:[%s193 + $0x298] sm:$0xff]
      %v285 = vld [vmem:[%s193 + $0x2a0] sm:$0xff]
      %v286 = vld [vmem:[%s193 + $0x2a8] sm:$0xff]
      %v287 = vld [vmem:[%s193 + $0x2b0] sm:$0xff]
      %v288 = vld [vmem:[%s193 + $0x2b8] sm:$0xff]
      %v289 = vld [vmem:[%s193 + $0x2c0] sm:$0xff]
      %v290 = vld [vmem:[%s193 + $0x2c8] sm:$0xff]
      %v291 = vld [vmem:[%s193 + $0x2d0] sm:$0xff]
      %v292 = vld [vmem:[%s193 + $0x2d8] sm:$0xff]
      %v293 = vld [vmem:[%s193 + $0x2e0] sm:$0xff]
      %v294 = vld [vmem:[%s193 + $0x2e8] sm:$0xff]
      %v295 = vld [vmem:[%s193 + $0x2f0] sm:$0xff]
      %v296 = vld [vmem:[%s193 + $0x2f8] sm:$0xff]
      %v297 = vld [vmem:[%s193 + $0x300] sm:$0xff]
      %v298 = vld [vmem:[%s193 + $0x308] sm:$0xff]
      %v299 = vld [vmem:[%s193 + $0x310] sm:$0xff]
      %v300 = vld [vmem:[%s193 + $0x318] sm:$0xff]
      %v301 = vld [vmem:[%s193 + $0x320] sm:$0xff]
      %v302 = vld [vmem:[%s193 + $0x328] sm:$0xff]
      %v303 = vld [vmem:[%s193 + $0x330] sm:$0xff]
      %v304 = vld [vmem:[%s193 + $0x338] sm:$0xff]
      %v305 = vld [vmem:[%s193 + $0x340] sm:$0xff]
      %v306 = vld [vmem:[%s193 + $0x348] sm:$0xff]
      %v307 = vld [vmem:[%s193 + $0x350] sm:$0xff]
      %v308 = vld [vmem:[%s193 + $0x358] sm:$0xff]
      %v309 = vld [vmem:[%s193 + $0x360] sm:$0xff]
      %v310 = vld [vmem:[%s193 + $0x368] sm:$0xff]
      %v311 = vld [vmem:[%s193 + $0x370] sm:$0xff]
      %v312 = vld [vmem:[%s193 + $0x378] sm:$0xff]
      %v313 = vld [vmem:[%s193 + $0x380] sm:$0xff]
      %v314 = vld [vmem:[%s193 + $0x388] sm:$0xff]
      %v315 = vld [vmem:[%s193 + $0x390] sm:$0xff]
      %v316 = vld [vmem:[%s193 + $0x398] sm:$0xff]
      %v317 = vld [vmem:[%s193 + $0x3a0] sm:$0xff]
      %v318 = vld [vmem:[%s193 + $0x3a8] sm:$0xff]
      %v319 = vld [vmem:[%s193 + $0x3b0] sm:$0xff]
      %v320 = vld [vmem:[%s193 + $0x3b8] sm:$0xff]
      %v321 = vld [vmem:[%s193 + $0x3c0] sm:$0xff]
      %v322 = vld [vmem:[%s193 + $0x3c8] sm:$0xff]
      %v323 = vld [vmem:[%s193 + $0x3d0] sm:$0xff]
      %v324 = vld [vmem:[%s193 + $0x3d8] sm:$0xff]
      %v325 = vld [vmem:[%s193 + $0x3e0] sm:$0xff]
      %v326 = vld [vmem:[%s193 + $0x3e8] sm:$0xff]
      %v327 = vld [vmem:[%s193 + $0x3f0] sm:$0xff]
      %v328 = vld [vmem:[%s193 + $0x3f8] sm:$0xff]
      %v329 = vld [vmem:[%s1] sm:$0xff]
      %v330 = vld [vmem:[%s1 + $0x8] sm:$0xff]
      %v331 = vld [vmem:[%s1 + $0x10] sm:$0xff]
      %v332 = vld [vmem:[%s1 + $0x18] sm:$0xff]
      %v333 = vld [vmem:[%s2] sm:$0x1]
      %v335 = vlaneseq
      %v336 = vshrl.u32 %v335, 7
      %v337 = vsub.s32 0, %v336
      %v338 = vrot.slane %v333, %v337
      %vm340 = vcmask 261120
      %v342 = vsel %vm340, %v201, 0
      %v345 = vsel %vm340, %v202, 0
      %v348 = vsel %vm340, %v203, 0
      %v351 = vsel %vm340, %v204, 0
      %v354 = vsel %vm340, %v205, 0
      %v357 = vsel %vm340, %v206, 0
      %v360 = vsel %vm340, %v207, 0
      %v363 = vsel %vm340, %v208, 0
      %v366 = vsel %vm340, %v209, 0
      %v369 = vsel %vm340, %v210, 0
      %v372 = vsel %vm340, %v211, 0
      %v375 = vsel %vm340, %v212, 0
      %v378 = vsel %vm340, %v213, 0
      %v381 = vsel %vm340, %v214, 0
      %v384 = vsel %vm340, %v215, 0
      %v387 = vsel %vm340, %v216, 0
      %v390 = vsel %vm340, %v217, 0
      %v393 = vsel %vm340, %v218, 0
      %v396 = vsel %vm340, %v219, 0
      %v399 = vsel %vm340, %v220, 0
      %v402 = vsel %vm340, %v221, 0
      %v405 = vsel %vm340, %v222, 0
      %v408 = vsel %vm340, %v223, 0
      %v411 = vsel %vm340, %v224, 0
      %v414 = vsel %vm340, %v225, 0
      %v417 = vsel %vm340, %v226, 0
      %v420 = vsel %vm340, %v227, 0
      %v423 = vsel %vm340, %v228, 0
      %v426 = vsel %vm340, %v229, 0
      %v429 = vsel %vm340, %v230, 0
      %v432 = vsel %vm340, %v231, 0
      %v435 = vsel %vm340, %v232, 0
      %v438 = vsel %vm340, %v233, 0
      %v441 = vsel %vm340, %v234, 0
      %v444 = vsel %vm340, %v235, 0
      %v447 = vsel %vm340, %v236, 0
      %v450 = vsel %vm340, %v237, 0
      %v453 = vsel %vm340, %v238, 0
      %v456 = vsel %vm340, %v239, 0
      %v459 = vsel %vm340, %v240, 0
      %v462 = vsel %vm340, %v241, 0
      %v465 = vsel %vm340, %v242, 0
      %v468 = vsel %vm340, %v243, 0
      %v471 = vsel %vm340, %v244, 0
      %v474 = vsel %vm340, %v245, 0
      %v477 = vsel %vm340, %v246, 0
      %v480 = vsel %vm340, %v247, 0
      %v483 = vsel %vm340, %v248, 0
      %v486 = vsel %vm340, %v249, 0
      %v489 = vsel %vm340, %v250, 0
      %v492 = vsel %vm340, %v251, 0
      %v495 = vsel %vm340, %v252, 0
      %v498 = vsel %vm340, %v253, 0
      %v501 = vsel %vm340, %v254, 0
      %v504 = vsel %vm340, %v255, 0
      %v507 = vsel %vm340, %v256, 0
      %v510 = vsel %vm340, %v257, 0
      %v513 = vsel %vm340, %v258, 0
      %v516 = vsel %vm340, %v259, 0
      %v519 = vsel %vm340, %v260, 0
      %v522 = vsel %vm340, %v261, 0
      %v525 = vsel %vm340, %v262, 0
      %v528 = vsel %vm340, %v263, 0
      %v531 = vsel %vm340, %v264, 0
      %v534 = vsel %vm340, %v265, 0
      %v537 = vsel %vm340, %v266, 0
      %v540 = vsel %vm340, %v267, 0
      %v543 = vsel %vm340, %v268, 0
      %v546 = vsel %vm340, %v269, 0
      %v549 = vsel %vm340, %v270, 0
      %v552 = vsel %vm340, %v271, 0
      %v555 = vsel %vm340, %v272, 0
      %v558 = vsel %vm340, %v273, 0
      %v561 = vsel %vm340, %v274, 0
      %v564 = vsel %vm340, %v275, 0
      %v567 = vsel %vm340, %v276, 0
      %v570 = vsel %vm340, %v277, 0
      %v573 = vsel %vm340, %v278, 0
      %v576 = vsel %vm340, %v279, 0
      %v579 = vsel %vm340, %v280, 0
      %v582 = vsel %vm340, %v281, 0
      %v585 = vsel %vm340, %v282, 0
      %v588 = vsel %vm340, %v283, 0
      %v591 = vsel %vm340, %v284, 0
      %v594 = vsel %vm340, %v285, 0
      %v597 = vsel %vm340, %v286, 0
      %v600 = vsel %vm340, %v287, 0
      %v603 = vsel %vm340, %v288, 0
      %v606 = vsel %vm340, %v289, 0
      %v609 = vsel %vm340, %v290, 0
      %v612 = vsel %vm340, %v291, 0
      %v615 = vsel %vm340, %v292, 0
      %v618 = vsel %vm340, %v293, 0
      %v621 = vsel %vm340, %v294, 0
      %v624 = vsel %vm340, %v295, 0
      %v627 = vsel %vm340, %v296, 0
      %v630 = vsel %vm340, %v297, 0
      %v633 = vsel %vm340, %v298, 0
      %v636 = vsel %vm340, %v299, 0
      %v639 = vsel %vm340, %v300, 0
      %v642 = vsel %vm340, %v301, 0
      %v645 = vsel %vm340, %v302, 0
      %v648 = vsel %vm340, %v303, 0
      %v651 = vsel %vm340, %v304, 0
      %v654 = vsel %vm340, %v305, 0
      %v657 = vsel %vm340, %v306, 0
      %v660 = vsel %vm340, %v307, 0
      %v663 = vsel %vm340, %v308, 0
      %v666 = vsel %vm340, %v309, 0
      %v669 = vsel %vm340, %v310, 0
      %v672 = vsel %vm340, %v311, 0
      %v675 = vsel %vm340, %v312, 0
      %v678 = vsel %vm340, %v313, 0
      %v681 = vsel %vm340, %v314, 0
      %v684 = vsel %vm340, %v315, 0
      %v687 = vsel %vm340, %v316, 0
      %v690 = vsel %vm340, %v317, 0
      %v693 = vsel %vm340, %v318, 0
      %v696 = vsel %vm340, %v319, 0
      %v699 = vsel %vm340, %v320, 0
      %v702 = vsel %vm340, %v321, 0
      %v705 = vsel %vm340, %v322, 0
      %v708 = vsel %vm340, %v323, 0
      %v711 = vsel %vm340, %v324, 0
      %v714 = vsel %vm340, %v325, 0
      %v717 = vsel %vm340, %v326, 0
      %v720 = vsel %vm340, %v327, 0
      %v723 = vsel %vm340, %v328, 0
      %725 = vmatprep.subr.mxu0 0.0
      %v726 = vand.u32 %v329, 4294901760
      %727 = vmatpush1.msra.mxu0 %v726
      %728 = vmatprep.subr.mxu0 0.0
      %v729 = vand.u32 %v330, 4294901760
      %730 = vmatpush1.msra.mxu0 %v729
      %731 = vmatprep.subr.mxu0 0.0
      %v732 = vand.u32 %v331, 4294901760
      %733 = vmatpush1.msra.mxu0 %v732
      %734 = vmatprep.subr.mxu0 0.0
      %v735 = vand.u32 %v332, 4294901760
      %736 = vmatpush1.msra.mxu0 %v735
      %737 = vmatprep.subr.mxu0 0.0
      %738 = vmatpush1.msra.mxu0 0.0
      %739 = vmatprep.subr.mxu0 0.0
      %740 = vmatpush1.msra.mxu0 0.0
      %741 = vmatprep.subr.mxu0 0.0
      %742 = vmatpush1.msra.mxu0 0.0
      %743 = vmatprep.subr.mxu0 0.0
      %744 = vmatpush1.msra.mxu0 0.0
      %745 = vmatprep.subr.mxu0 0.0
      %746 = vmatpush1.msra.mxu0 0.0
      %747 = vmatprep.subr.mxu0 0.0
      %748 = vmatpush1.msra.mxu0 0.0
      %749 = vmatprep.subr.mxu0 0.0
      %750 = vmatpush1.msra.mxu0 0.0
      %751 = vmatprep.subr.mxu0 0.0
      %752 = vmatpush1.msra.mxu0 0.0
      %753 = vmatprep.subr.mxu0 0.0
      %754 = vmatpush1.msra.mxu0 0.0
      %755 = vmatprep.subr.mxu0 0.0
      %756 = vmatpush1.msra.mxu0 0.0
      %757 = vmatprep.subr.mxu0 0.0
      %758 = vmatpush1.msra.mxu0 0.0
      %759 = vmatprep.subr.mxu0 0.0
      %760 = vmatpush1.msra.mxu0 0.0
      %761 = vmatprep.subr.mxu0 0.0
      %762 = vmatpush1.msra.mxu0 0.0
      %763 = vmatprep.subr.mxu0 0.0
      %764 = vmatpush1.msra.mxu0 0.0
      %765 = vmatprep.subr.mxu0 0.0
      %766 = vmatpush1.msra.mxu0 0.0
      %767 = vmatprep.subr.mxu0 0.0
      %768 = vmatpush1.msra.mxu0 0.0
      %769 = vmatprep.subr.mxu0 0.0
      %770 = vmatpush1.msra.mxu0 0.0
      %771 = vmatprep.subr.mxu0 0.0
      %772 = vmatpush1.msra.mxu0 0.0
      %773 = vmatprep.subr.mxu0 0.0
      %774 = vmatpush1.msra.mxu0 0.0
      %775 = vmatprep.subr.mxu0 0.0
      %776 = vmatpush1.msra.mxu0 0.0
      %777 = vmatprep.subr.mxu0 0.0
      %778 = vmatpush1.msra.mxu0 0.0
      %779 = vmatprep.subr.mxu0 0.0
      %780 = vmatpush1.msra.mxu0 0.0
      %781 = vmatprep.subr.mxu0 0.0
      %782 = vmatpush1.msra.mxu0 0.0
      %783 = vmatprep.subr.mxu0 0.0
      %784 = vmatpush1.msra.mxu0 0.0
      %785 = vmatprep.subr.mxu0 0.0
      %786 = vmatpush1.msra.mxu0 0.0
      %787 = vmatprep.subr.mxu0 0.0
      %788 = vmatpush1.msra.mxu0 0.0
      %789 = vmatprep.subr.mxu0 0.0
      %790 = vmatpush1.msra.mxu0 0.0
      %791 = vmatprep.subr.mxu0 0.0
      %792 = vmatpush1.msra.mxu0 0.0
      %793 = vmatprep.mubr.f32.mxu0 0.0
      %v794 = vand.u32 %v342, 4294901760
      %v795 = vsub.f32 %v342, %v794
      %v796 = vand.u32 %v795, 4294901760
      %v797 = vsub.f32 %v795, %v796
      %v798 = vand.u32 %v797, 4294901760
      %799 = vmatmul.mubr.f32.gmra.mrb[0].mxu0 %v798
      %v800 = vpop.f32.mrb[0].mxu0
      %v801 = vadd.f32 %v338, %v800
      %v802 = vpop.f32.mrb[0].mxu0
      %803 = vmatprep.mubr.f32.mxu0 0.0
      %v804 = vand.u32 %v345, 4294901760
      %v805 = vsub.f32 %v345, %v804
      %v806 = vand.u32 %v805, 4294901760
      %v807 = vsub.f32 %v805, %v806
      %v808 = vand.u32 %v807, 4294901760
      %809 = vmatmul.mubr.f32.gmra.mrb[0].mxu0 %v808
      %v810 = vpop.f32.mrb[0].mxu0
      %v811 = vadd.f32 %v338, %v810
      %v812 = vpop.f32.mrb[0].mxu0
      %813 = vmatprep.mubr.f32.mxu0 0.0
      %v814 = vand.u32 %v348, 4294901760
      %v815 = vsub.f32 %v348, %v814
      %v816 = vand.u32 %v815, 4294901760
      %v817 = vsub.f32 %v815, %v816
      %v818 = vand.u32 %v817, 4294901760
      %819 = vmatmul.mubr.f32.gmra.mrb[0].mxu0 %v818
      %v820 = vpop.f32.mrb[0].mxu0
      %v821 = vadd.f32 %v338, %v820
      %v822 = vpop.f32.mrb[0].mxu0
      %823 = vmatprep.mubr.f32.mxu0 0.0
      %v824 = vand.u32 %v351, 4294901760
      %v825 = vsub.f32 %v351, %v824
      %v826 = vand.u32 %v825, 4294901760
      %v827 = vsub.f32 %v825, %v826
      %v828 = vand.u32 %v827, 4294901760
      %829 = vmatmul.mubr.f32.gmra.mrb[0].mxu0 %v828
      %v830 = vpop.f32.mrb[0].mxu0
      %v831 = vadd.f32 %v338, %v830
      %v832 = vpop.f32.mrb[0].mxu0
      %833 = vmatprep.mubr.f32.mxu0 0.0
      %v834 = vand.u32 %v354, 4294901760
      %v835 = vsub.f32 %v354, %v834
      %v836 = vand.u32 %v835, 4294901760
      %v837 = vsub.f32 %v835, %v836
      %v838 = vand.u32 %v837, 4294901760
      %839 = vmatmul.mubr.f32.gmra.mrb[0].mxu0 %v838
      %v840 = vpop.f32.mrb[0].mxu0
      %v841 = vadd.f32 %v338, %v840
      %v842 = vpop.f32.mrb[0].mxu0
      %843 = vmatprep.mubr.f32.mxu0 0.0
      %v844 = vand.u32 %v357, 4294901760
      %v845 = vsub.f32 %v357, %v844
      %v846 = vand.u32 %v845, 4294901760
      %v847 = vsub.f32 %v845, %v846
      %v848 = vand.u32 %v847, 4294901760
      %849 = vmatmul.mubr.f32.gmra.mrb[0].mxu0 %v848
      %v850 = vpop.f32.mrb[0].mxu0
      %v851 = vadd.f32 %v338, %v850
      %v852 = vpop.f32.mrb[0].mxu0
      %853 = vmatprep.mubr.f32.mxu0 0.0
      %v854 = vand.u32 %v360, 4294901760
      %v855 = vsub.f32 %v360, %v854
      %v856 = vand.u32 %v855, 4294901760
      %v857 = vsub.f32 %v855, %v856
      %v858 = vand.u32 %v857, 4294901760
      %859 = vmatmul.mubr.f32.gmra.mrb[0].mxu0 %v858
      %v860 = vpop.f32.mrb[0].mxu0
      %v861 = vadd.f32 %v338, %v860
      %v862 = vpop.f32.mrb[0].mxu0
      %863 = vmatprep.mubr.f32.mxu0 0.0
      %v864 = vand.u32 %v363, 4294901760
      %v865 = vsub.f32 %v363, %v864
      %v866 = vand.u32 %v865, 4294901760
      %v867 = vsub.f32 %v865, %v866
      %v868 = vand.u32 %v867, 4294901760
      %869 = vmatmul.mubr.f32.gmra.mrb[0].mxu0 %v868
      %v870 = vpop.f32.mrb[0].mxu0
      %v871 = vadd.f32 %v338, %v870
      %v872 = vpop.f32.mrb[0].mxu0
      %873 = vmatprep.mubr.f32.mxu0 0.0
      %v874 = vand.u32 %v366, 4294901760
      %v875 = vsub.f32 %v366, %v874
      %v876 = vand.u32 %v875, 4294901760
      %v877 = vsub.f32 %v875, %v876
      %v878 = vand.u32 %v877, 4294901760
      %879 = vmatmul.mubr.f32.gmra.mrb[0].mxu0 %v878
      %v880 = vpop.f32.mrb[0].mxu0
      %v881 = vadd.f32 %v338, %v880
      %v882 = vpop.f32.mrb[0].mxu0
      %883 = vmatprep.mubr.f32.mxu0 0.0
      %v884 = vand.u32 %v369, 4294901760
      %v885 = vsub.f32 %v369, %v884
      %v886 = vand.u32 %v885, 4294901760
      %v887 = vsub.f32 %v885, %v886
      %v888 = vand.u32 %v887, 4294901760
      %889 = vmatmul.mubr.f32.gmra.mrb[0].mxu0 %v888
      %v890 = vpop.f32.mrb[0].mxu0
      %v891 = vadd.f32 %v338, %v890
      %v892 = vpop.f32.mrb[0].mxu0
      %893 = vmatprep.mubr.f32.mxu0 0.0
      %v894 = vand.u32 %v372, 4294901760
      %v895 = vsub.f32 %v372, %v894
      %v896 = vand.u32 %v895, 4294901760
      %v897 = vsub.f32 %v895, %v896
      %v898 = vand.u32 %v897, 4294901760
      %899 = vmatmul.mubr.f32.gmra.mrb[0].mxu0 %v898
      %v900 = vpop.f32.mrb[0].mxu0
      %v901 = vadd.f32 %v338, %v900
      %v902 = vpop.f32.mrb[0].mxu0
      %903 = vmatprep.mubr.f32.mxu0 0.0
      %v904 = vand.u32 %v375, 4294901760
      %v905 = vsub.f32 %v375, %v904
      %v906 = vand.u32 %v905, 4294901760
      %v907 = vsub.f32 %v905, %v906
      %v908 = vand.u32 %v907, 4294901760
      %909 = vmatmul.mubr.f32.gmra.mrb[0].mxu0 %v908
      %v910 = vpop.f32.mrb[0].mxu0
      %v911 = vadd.f32 %v338, %v910
      %v912 = vpop.f32.mrb[0].mxu0
      %913 = vmatprep.mubr.f32.mxu0 0.0
      %v914 = vand.u32 %v378, 4294901760
      %v915 = vsub.f32 %v378, %v914
      %v916 = vand.u32 %v915, 4294901760
      %v917 = vsub.f32 %v915, %v916
      %v918 = vand.u32 %v917, 4294901760
      %919 = vmatmul.mubr.f32.gmra.mrb[0].mxu0 %v918
      %v920 = vpop.f32.mrb[0].mxu0
      %v921 = vadd.f32 %v338, %v920
      %v922 = vpop.f32.mrb[0].mxu0
      %923 = vmatprep.mubr.f32.mxu0 0.0
      %v924 = vand.u32 %v381, 4294901760
      %v925 = vsub.f32 %v381, %v924
      %v926 = vand.u32 %v925, 4294901760
      %v927 = vsub.f32 %v925, %v926
      %v928 = vand.u32 %v927, 4294901760
      %929 = vmatmul.mubr.f32.gmra.mrb[0].mxu0 %v928
      %v930 = vpop.f32.mrb[0].mxu0
      %v931 = vadd.f32 %v338, %v930
      %v932 = vpop.f32.mrb[0].mxu0
      %933 = vmatprep.mubr.f32.mxu0 0.0
      %v934 = vand.u32 %v384, 4294901760
      %v935 = vsub.f32 %v384, %v934
      %v936 = vand.u32 %v935, 4294901760
      %v937 = vsub.f32 %v935, %v936
      %v938 = vand.u32 %v937, 4294901760
      %939 = vmatmul.mubr.f32.gmra.mrb[0].mxu0 %v938
      %v940 = vpop.f32.mrb[0].mxu0
      %v941 = vadd.f32 %v338, %v940
      %v942 = vpop.f32.mrb[0].mxu0
      %943 = vmatprep.mubr.f32.mxu0 0.0
      %v944 = vand.u32 %v387, 4294901760
      %v945 = vsub.f32 %v387, %v944
      %v946 = vand.u32 %v945, 4294901760
      %v947 = vsub.f32 %v945, %v946
      %v948 = vand.u32 %v947, 4294901760
      %949 = vmatmul.mubr.f32.gmra.mrb[0].mxu0 %v948
      %v950 = vpop.f32.mrb[0].mxu0
      %v951 = vadd.f32 %v338, %v950
      %v952 = vpop.f32.mrb[0].mxu0
      %953 = vmatprep.mubr.f32.mxu0 0.0
      %v954 = vand.u32 %v390, 4294901760
      %v955 = vsub.f32 %v390, %v954
      %v956 = vand.u32 %v955, 4294901760
      %v957 = vsub.f32 %v955, %v956
      %v958 = vand.u32 %v957, 4294901760
      %959 = vmatmul.mubr.f32.gmra.mrb[0].mxu0 %v958
      %v960 = vpop.f32.mrb[0].mxu0
      %v961 = vadd.f32 %v338, %v960
      %v962 = vpop.f32.mrb[0].mxu0
      %963 = vmatprep.mubr.f32.mxu0 0.0
      %v964 = vand.u32 %v393, 4294901760
      %v965 = vsub.f32 %v393, %v964
      %v966 = vand.u32 %v965, 4294901760
      %v967 = vsub.f32 %v965, %v966
      %v968 = vand.u32 %v967, 4294901760
      %969 = vmatmul.mubr.f32.gmra.mrb[0].mxu0 %v968
      %v970 = vpop.f32.mrb[0].mxu0
      %v971 = vadd.f32 %v338, %v970
      %v972 = vpop.f32.mrb[0].mxu0
      %973 = vmatprep.mubr.f32.mxu0 0.0
      %v974 = vand.u32 %v396, 4294901760
      %v975 = vsub.f32 %v396, %v974
      %v976 = vand.u32 %v975, 4294901760
      %v977 = vsub.f32 %v975, %v976
      %v978 = vand.u32 %v977, 4294901760
      %979 = vmatmul.mubr.f32.gmra.mrb[0].mxu0 %v978
      %v980 = vpop.f32.mrb[0].mxu0
      %v981 = vadd.f32 %v338, %v980
      %v982 = vpop.f32.mrb[0].mxu0
      %983 = vmatprep.mubr.f32.mxu0 0.0
      %v984 = vand.u32 %v399, 4294901760
      %v985 = vsub.f32 %v399, %v984
      %v986 = vand.u32 %v985, 4294901760
      %v987 = vsub.f32 %v985, %v986
      %v988 = vand.u32 %v987, 4294901760
      %989 = vmatmul.mubr.f32.gmra.mrb[0].mxu0 %v988
      %v990 = vpop.f32.mrb[0].mxu0
      %v991 = vadd.f32 %v338, %v990
      %v992 = vpop.f32.mrb[0].mxu0
      %993 = vmatprep.mubr.f32.mxu0 0.0
      %v994 = vand.u32 %v402, 4294901760
      %v995 = vsub.f32 %v402, %v994
      %v996 = vand.u32 %v995, 4294901760
      %v997 = vsub.f32 %v995, %v996
      %v998 = vand.u32 %v997, 4294901760
      %999 = vmatmul.mubr.f32.gmra.mrb[0].mxu0 %v998
      %v1000 = vpop.f32.mrb[0].mxu0
      %v1001 = vadd.f32 %v338, %v1000
      %v1002 = vpop.f32.mrb[0].mxu0
      %1003 = vmatprep.mubr.f32.mxu0 0.0
      %v1004 = vand.u32 %v405, 4294901760
      %v1005 = vsub.f32 %v405, %v1004
      %v1006 = vand.u32 %v1005, 4294901760
      %v1007 = vsub.f32 %v1005, %v1006
      %v1008 = vand.u32 %v1007, 4294901760
      %1009 = vmatmul.mubr.f32.gmra.mrb[0].mxu0 %v1008
      %v1010 = vpop.f32.mrb[0].mxu0
      %v1011 = vadd.f32 %v338, %v1010
      %v1012 = vpop.f32.mrb[0].mxu0
      %1013 = vmatprep.mubr.f32.mxu0 0.0
      %v1014 = vand.u32 %v408, 4294901760
      %v1015 = vsub.f32 %v408, %v1014
      %v1016 = vand.u32 %v1015, 4294901760
      %v1017 = vsub.f32 %v1015, %v1016
      %v1018 = vand.u32 %v1017, 4294901760
      %1019 = vmatmul.mubr.f32.gmra.mrb[0].mxu0 %v1018
      %v1020 = vpop.f32.mrb[0].mxu0
      %v1021 = vadd.f32 %v338, %v1020
      %v1022 = vpop.f32.mrb[0].mxu0
      %1023 = vmatprep.mubr.f32.mxu0 0.0
      %v1024 = vand.u32 %v411, 4294901760
      %v1025 = vsub.f32 %v411, %v1024
      %v1026 = vand.u32 %v1025, 4294901760
      %v1027 = vsub.f32 %v1025, %v1026
      %v1028 = vand.u32 %v1027, 4294901760
      %1029 = vmatmul.mubr.f32.gmra.mrb[0].mxu0 %v1028
      %v1030 = vpop.f32.mrb[0].mxu0
      %v1031 = vadd.f32 %v338, %v1030
      %v1032 = vpop.f32.mrb[0].mxu0
      %1033 = vmatprep.mubr.f32.mxu0 0.0
      %v1034 = vand.u32 %v414, 4294901760
      %v1035 = vsub.f32 %v414, %v1034
      %v1036 = vand.u32 %v1035, 4294901760
      %v1037 = vsub.f32 %v1035, %v1036
      %v1038 = vand.u32 %v1037, 4294901760
      %1039 = vmatmul.mubr.f32.gmra.mrb[0].mxu0 %v1038
      %v1040 = vpop.f32.mrb[0].mxu0
      %v1041 = vadd.f32 %v338, %v1040
      %v1042 = vpop.f32.mrb[0].mxu0
      %1043 = vmatprep.mubr.f32.mxu0 0.0
      %v1044 = vand.u32 %v417, 4294901760
      %v1045 = vsub.f32 %v417, %v1044
      %v1046 = vand.u32 %v1045, 4294901760
      %v1047 = vsub.f32 %v1045, %v1046
      %v1048 = vand.u32 %v1047, 4294901760
      %1049 = vmatmul.mubr.f32.gmra.mrb[0].mxu0 %v1048
      %v1050 = vpop.f32.mrb[0].mxu0
      %v1051 = vadd.f32 %v338, %v1050
      %v1052 = vpop.f32.mrb[0].mxu0
      %1053 = vmatprep.mubr.f32.mxu0 0.0
      %v1054 = vand.u32 %v420, 4294901760
      %v1055 = vsub.f32 %v420, %v1054
      %v1056 = vand.u32 %v1055, 4294901760
      %v1057 = vsub.f32 %v1055, %v1056
      %v1058 = vand.u32 %v1057, 4294901760
      %1059 = vmatmul.mubr.f32.gmra.mrb[0].mxu0 %v1058
      %v1060 = vpop.f32.mrb[0].mxu0
      %v1061 = vadd.f32 %v338, %v1060
      %v1062 = vpop.f32.mrb[0].mxu0
      %1063 = vmatprep.mubr.f32.mxu0 0.0
      %v1064 = vand.u32 %v423, 4294901760
      %v1065 = vsub.f32 %v423, %v1064
      %v1066 = vand.u32 %v1065, 4294901760
      %v1067 = vsub.f32 %v1065, %v1066
      %v1068 = vand.u32 %v1067, 4294901760
      %1069 = vmatmul.mubr.f32.gmra.mrb[0].mxu0 %v1068
      %v1070 = vpop.f32.mrb[0].mxu0
      %v1071 = vadd.f32 %v338, %v1070
      %v1072 = vpop.f32.mrb[0].mxu0
      %1073 = vmatprep.mubr.f32.mxu0 0.0
      %v1074 = vand.u32 %v426, 4294901760
      %v1075 = vsub.f32 %v426, %v1074
      %v1076 = vand.u32 %v1075, 4294901760
      %v1077 = vsub.f32 %v1075, %v1076
      %v1078 = vand.u32 %v1077, 4294901760
      %1079 = vmatmul.mubr.f32.gmra.mrb[0].mxu0 %v1078
      %v1080 = vpop.f32.mrb[0].mxu0
      %v1081 = vadd.f32 %v338, %v1080
      %v1082 = vpop.f32.mrb[0].mxu0
      %1083 = vmatprep.mubr.f32.mxu0 0.0
      %v1084 = vand.u32 %v429, 4294901760
      %v1085 = vsub.f32 %v429, %v1084
      %v1086 = vand.u32 %v1085, 4294901760
      %v1087 = vsub.f32 %v1085, %v1086
      %v1088 = vand.u32 %v1087, 4294901760
      %1089 = vmatmul.mubr.f32.gmra.mrb[0].mxu0 %v1088
      %v1090 = vpop.f32.mrb[0].mxu0
      %v1091 = vadd.f32 %v338, %v1090
      %v1092 = vpop.f32.mrb[0].mxu0
      %1093 = vmatprep.mubr.f32.mxu0 0.0
      %v1094 = vand.u32 %v432, 4294901760
      %v1095 = vsub.f32 %v432, %v1094
      %v1096 = vand.u32 %v1095, 4294901760
      %v1097 = vsub.f32 %v1095, %v1096
      %v1098 = vand.u32 %v1097, 4294901760
      %1099 = vmatmul.mubr.f32.gmra.mrb[0].mxu0 %v1098
      %v1100 = vpop.f32.mrb[0].mxu0
      %v1101 = vadd.f32 %v338, %v1100
      %v1102 = vpop.f32.mrb[0].mxu0
      %1103 = vmatprep.mubr.f32.mxu0 0.0
      %v1104 = vand.u32 %v435, 4294901760
      %v1105 = vsub.f32 %v435, %v1104
      %v1106 = vand.u32 %v1105, 4294901760
      %v1107 = vsub.f32 %v1105, %v1106
      %v1108 = vand.u32 %v1107, 4294901760
      %1109 = vmatmul.mubr.f32.gmra.mrb[0].mxu0 %v1108
      %v1110 = vpop.f32.mrb[0].mxu0
      %v1111 = vadd.f32 %v338, %v1110
      %v1112 = vpop.f32.mrb[0].mxu0
      %1113 = vmatprep.mubr.f32.mxu0 0.0
      %v1114 = vand.u32 %v438, 4294901760
      %v1115 = vsub.f32 %v438, %v1114
      %v1116 = vand.u32 %v1115, 4294901760
      %v1117 = vsub.f32 %v1115, %v1116
      %v1118 = vand.u32 %v1117, 4294901760
      %1119 = vmatmul.mubr.f32.gmra.mrb[0].mxu0 %v1118
      %v1120 = vpop.f32.mrb[0].mxu0
      %v1121 = vadd.f32 %v338, %v1120
      %v1122 = vpop.f32.mrb[0].mxu0
      %1123 = vmatprep.mubr.f32.mxu0 0.0
      %v1124 = vand.u32 %v441, 4294901760
      %v1125 = vsub.f32 %v441, %v1124
      %v1126 = vand.u32 %v1125, 4294901760
      %v1127 = vsub.f32 %v1125, %v1126
      %v1128 = vand.u32 %v1127, 4294901760
      %1129 = vmatmul.mubr.f32.gmra.mrb[0].mxu0 %v1128
      %v1130 = vpop.f32.mrb[0].mxu0
      %v1131 = vadd.f32 %v338, %v1130
      %v1132 = vpop.f32.mrb[0].mxu0
      %1133 = vmatprep.mubr.f32.mxu0 0.0
      %v1134 = vand.u32 %v444, 4294901760
      %v1135 = vsub.f32 %v444, %v1134
      %v1136 = vand.u32 %v1135, 4294901760
      %v1137 = vsub.f32 %v1135, %v1136
      %v1138 = vand.u32 %v1137, 4294901760
      %1139 = vmatmul.mubr.f32.gmra.mrb[0].mxu0 %v1138
      %v1140 = vpop.f32.mrb[0].mxu0
      %v1141 = vadd.f32 %v338, %v1140
      %v1142 = vpop.f32.mrb[0].mxu0
      %1143 = vmatprep.mubr.f32.mxu0 0.0
      %v1144 = vand.u32 %v447, 4294901760
      %v1145 = vsub.f32 %v447, %v1144
      %v1146 = vand.u32 %v1145, 4294901760
      %v1147 = vsub.f32 %v1145, %v1146
      %v1148 = vand.u32 %v1147, 4294901760
      %1149 = vmatmul.mubr.f32.gmra.mrb[0].mxu0 %v1148
      %v1150 = vpop.f32.mrb[0].mxu0
      %v1151 = vadd.f32 %v338, %v1150
      %v1152 = vpop.f32.mrb[0].mxu0
      %1153 = vmatprep.mubr.f32.mxu0 0.0
      %v1154 = vand.u32 %v450, 4294901760
      %v1155 = vsub.f32 %v450, %v1154
      %v1156 = vand.u32 %v1155, 4294901760
      %v1157 = vsub.f32 %v1155, %v1156
      %v1158 = vand.u32 %v1157, 4294901760
      %1159 = vmatmul.mubr.f32.gmra.mrb[0].mxu0 %v1158
      %v1160 = vpop.f32.mrb[0].mxu0
      %v1161 = vadd.f32 %v338, %v1160
      %v1162 = vpop.f32.mrb[0].mxu0
      %1163 = vmatprep.mubr.f32.mxu0 0.0
      %v1164 = vand.u32 %v453, 4294901760
      %v1165 = vsub.f32 %v453, %v1164
      %v1166 = vand.u32 %v1165, 4294901760
      %v1167 = vsub.f32 %v1165, %v1166
      %v1168 = vand.u32 %v1167, 4294901760
      %1169 = vmatmul.mubr.f32.gmra.mrb[0].mxu0 %v1168
      %v1170 = vpop.f32.mrb[0].mxu0
      %v1171 = vadd.f32 %v338, %v1170
      %v1172 = vpop.f32.mrb[0].mxu0
      %1173 = vmatprep.mubr.f32.mxu0 0.0
      %v1174 = vand.u32 %v456, 4294901760
      %v1175 = vsub.f32 %v456, %v1174
      %v1176 = vand.u32 %v1175, 4294901760
      %v1177 = vsub.f32 %v1175, %v1176
      %v1178 = vand.u32 %v1177, 4294901760
      %1179 = vmatmul.mubr.f32.gmra.mrb[0].mxu0 %v1178
      %v1180 = vpop.f32.mrb[0].mxu0
      %v1181 = vadd.f32 %v338, %v1180
      %v1182 = vpop.f32.mrb[0].mxu0
      %1183 = vmatprep.mubr.f32.mxu0 0.0
      %v1184 = vand.u32 %v459, 4294901760
      %v1185 = vsub.f32 %v459, %v1184
      %v1186 = vand.u32 %v1185, 4294901760
      %v1187 = vsub.f32 %v1185, %v1186
      %v1188 = vand.u32 %v1187, 4294901760
      %1189 = vmatmul.mubr.f32.gmra.mrb[0].mxu0 %v1188
      %v1190 = vpop.f32.mrb[0].mxu0
      %v1191 = vadd.f32 %v338, %v1190
      %v1192 = vpop.f32.mrb[0].mxu0
      %1193 = vmatprep.mubr.f32.mxu0 0.0
      %v1194 = vand.u32 %v462, 4294901760
      %v1195 = vsub.f32 %v462, %v1194
      %v1196 = vand.u32 %v1195, 4294901760
      %v1197 = vsub.f32 %v1195, %v1196
      %v1198 = vand.u32 %v1197, 4294901760
      %1199 = vmatmul.mubr.f32.gmra.mrb[0].mxu0 %v1198
      %v1200 = vpop.f32.mrb[0].mxu0
      %v1201 = vadd.f32 %v338, %v1200
      %v1202 = vpop.f32.mrb[0].mxu0
      %1203 = vmatprep.mubr.f32.mxu0 0.0
      %v1204 = vand.u32 %v465, 4294901760
      %v1205 = vsub.f32 %v465, %v1204
      %v1206 = vand.u32 %v1205, 4294901760
      %v1207 = vsub.f32 %v1205, %v1206
      %v1208 = vand.u32 %v1207, 4294901760
      %1209 = vmatmul.mubr.f32.gmra.mrb[0].mxu0 %v1208
      %v1210 = vpop.f32.mrb[0].mxu0
      %v1211 = vadd.f32 %v338, %v1210
      %v1212 = vpop.f32.mrb[0].mxu0
      %1213 = vmatprep.mubr.f32.mxu0 0.0
      %v1214 = vand.u32 %v468, 4294901760
      %v1215 = vsub.f32 %v468, %v1214
      %v1216 = vand.u32 %v1215, 4294901760
      %v1217 = vsub.f32 %v1215, %v1216
      %v1218 = vand.u32 %v1217, 4294901760
      %1219 = vmatmul.mubr.f32.gmra.mrb[0].mxu0 %v1218
      %v1220 = vpop.f32.mrb[0].mxu0
      %v1221 = vadd.f32 %v338, %v1220
      %v1222 = vpop.f32.mrb[0].mxu0
      %1223 = vmatprep.mubr.f32.mxu0 0.0
      %v1224 = vand.u32 %v471, 4294901760
      %v1225 = vsub.f32 %v471, %v1224
      %v1226 = vand.u32 %v1225, 4294901760
      %v1227 = vsub.f32 %v1225, %v1226
      %v1228 = vand.u32 %v1227, 4294901760
      %1229 = vmatmul.mubr.f32.gmra.mrb[0].mxu0 %v1228
      %v1230 = vpop.f32.mrb[0].mxu0
      %v1231 = vadd.f32 %v338, %v1230
      %v1232 = vpop.f32.mrb[0].mxu0
      %1233 = vmatprep.mubr.f32.mxu0 0.0
      %v1234 = vand.u32 %v474, 4294901760
      %v1235 = vsub.f32 %v474, %v1234
      %v1236 = vand.u32 %v1235, 4294901760
      %v1237 = vsub.f32 %v1235, %v1236
      %v1238 = vand.u32 %v1237, 4294901760
      %1239 = vmatmul.mubr.f32.gmra.mrb[0].mxu0 %v1238
      %v1240 = vpop.f32.mrb[0].mxu0
      %v1241 = vadd.f32 %v338, %v1240
      %v1242 = vpop.f32.mrb[0].mxu0
      %1243 = vmatprep.mubr.f32.mxu0 0.0
      %v1244 = vand.u32 %v477, 4294901760
      %v1245 = vsub.f32 %v477, %v1244
      %v1246 = vand.u32 %v1245, 4294901760
      %v1247 = vsub.f32 %v1245, %v1246
      %v1248 = vand.u32 %v1247, 4294901760
      %1249 = vmatmul.mubr.f32.gmra.mrb[0].mxu0 %v1248
      %v1250 = vpop.f32.mrb[0].mxu0
      %v1251 = vadd.f32 %v338, %v1250
      %v1252 = vpop.f32.mrb[0].mxu0
      %1253 = vmatprep.mubr.f32.mxu0 0.0
      %v1254 = vand.u32 %v480, 4294901760
      %v1255 = vsub.f32 %v480, %v1254
      %v1256 = vand.u32 %v1255, 4294901760
      %v1257 = vsub.f32 %v1255, %v1256
      %v1258 = vand.u32 %v1257, 4294901760
      %1259 = vmatmul.mubr.f32.gmra.mrb[0].mxu0 %v1258
      %v1260 = vpop.f32.mrb[0].mxu0
      %v1261 = vadd.f32 %v338, %v1260
      %v1262 = vpop.f32.mrb[0].mxu0
      %1263 = vmatprep.mubr.f32.mxu0 0.0
      %v1264 = vand.u32 %v483, 4294901760
      %v1265 = vsub.f32 %v483, %v1264
      %v1266 = vand.u32 %v1265, 4294901760
      %v1267 = vsub.f32 %v1265, %v1266
      %v1268 = vand.u32 %v1267, 4294901760
      %1269 = vmatmul.mubr.f32.gmra.mrb[0].mxu0 %v1268
      %v1270 = vpop.f32.mrb[0].mxu0
      %v1271 = vadd.f32 %v338, %v1270
      %v1272 = vpop.f32.mrb[0].mxu0
      %1273 = vmatprep.mubr.f32.mxu0 0.0
      %v1274 = vand.u32 %v486, 4294901760
      %v1275 = vsub.f32 %v486, %v1274
      %v1276 = vand.u32 %v1275, 4294901760
      %v1277 = vsub.f32 %v1275, %v1276
      %v1278 = vand.u32 %v1277, 4294901760
      %1279 = vmatmul.mubr.f32.gmra.mrb[0].mxu0 %v1278
      %v1280 = vpop.f32.mrb[0].mxu0
      %v1281 = vadd.f32 %v338, %v1280
      %v1282 = vpop.f32.mrb[0].mxu0
      %1283 = vmatprep.mubr.f32.mxu0 0.0
      %v1284 = vand.u32 %v489, 4294901760
      %v1285 = vsub.f32 %v489, %v1284
      %v1286 = vand.u32 %v1285, 4294901760
      %v1287 = vsub.f32 %v1285, %v1286
      %v1288 = vand.u32 %v1287, 4294901760
      %1289 = vmatmul.mubr.f32.gmra.mrb[0].mxu0 %v1288
      %v1290 = vpop.f32.mrb[0].mxu0
      %v1291 = vadd.f32 %v338, %v1290
      %v1292 = vpop.f32.mrb[0].mxu0
      %1293 = vmatprep.mubr.f32.mxu0 0.0
      %v1294 = vand.u32 %v492, 4294901760
      %v1295 = vsub.f32 %v492, %v1294
      %v1296 = vand.u32 %v1295, 4294901760
      %v1297 = vsub.f32 %v1295, %v1296
      %v1298 = vand.u32 %v1297, 4294901760
      %1299 = vmatmul.mubr.f32.gmra.mrb[0].mxu0 %v1298
      %v1300 = vpop.f32.mrb[0].mxu0
      %v1301 = vadd.f32 %v338, %v1300
      %v1302 = vpop.f32.mrb[0].mxu0
      %1303 = vmatprep.mubr.f32.mxu0 0.0
      %v1304 = vand.u32 %v495, 4294901760
      %v1305 = vsub.f32 %v495, %v1304
      %v1306 = vand.u32 %v1305, 4294901760
      %v1307 = vsub.f32 %v1305, %v1306
      %v1308 = vand.u32 %v1307, 4294901760
      %1309 = vmatmul.mubr.f32.gmra.mrb[0].mxu0 %v1308
      %v1310 = vpop.f32.mrb[0].mxu0
      %v1311 = vadd.f32 %v338, %v1310
      %v1312 = vpop.f32.mrb[0].mxu0
      %1313 = vmatprep.mubr.f32.mxu0 0.0
      %v1314 = vand.u32 %v498, 4294901760
      %v1315 = vsub.f32 %v498, %v1314
      %v1316 = vand.u32 %v1315, 4294901760
      %v1317 = vsub.f32 %v1315, %v1316
      %v1318 = vand.u32 %v1317, 4294901760
      %1319 = vmatmul.mubr.f32.gmra.mrb[0].mxu0 %v1318
      %v1320 = vpop.f32.mrb[0].mxu0
      %v1321 = vadd.f32 %v338, %v1320
      %v1322 = vpop.f32.mrb[0].mxu0
      %1323 = vmatprep.mubr.f32.mxu0 0.0
      %v1324 = vand.u32 %v501, 4294901760
      %v1325 = vsub.f32 %v501, %v1324
      %v1326 = vand.u32 %v1325, 4294901760
      %v1327 = vsub.f32 %v1325, %v1326
      %v1328 = vand.u32 %v1327, 4294901760
      %1329 = vmatmul.mubr.f32.gmra.mrb[0].mxu0 %v1328
      %v1330 = vpop.f32.mrb[0].mxu0
      %v1331 = vadd.f32 %v338, %v1330
      %v1332 = vpop.f32.mrb[0].mxu0
      %1333 = vmatprep.mubr.f32.mxu0 0.0
      %v1334 = vand.u32 %v504, 4294901760
      %v1335 = vsub.f32 %v504, %v1334
      %v1336 = vand.u32 %v1335, 4294901760
      %v1337 = vsub.f32 %v1335, %v1336
      %v1338 = vand.u32 %v1337, 4294901760
      %1339 = vmatmul.mubr.f32.gmra.mrb[0].mxu0 %v1338
      %v1340 = vpop.f32.mrb[0].mxu0
      %v1341 = vadd.f32 %v338, %v1340
      %v1342 = vpop.f32.mrb[0].mxu0
      %1343 = vmatprep.mubr.f32.mxu0 0.0
      %v1344 = vand.u32 %v507, 4294901760
      %v1345 = vsub.f32 %v507, %v1344
      %v1346 = vand.u32 %v1345, 4294901760
      %v1347 = vsub.f32 %v1345, %v1346
      %v1348 = vand.u32 %v1347, 4294901760
      %1349 = vmatmul.mubr.f32.gmra.mrb[0].mxu0 %v1348
      %v1350 = vpop.f32.mrb[0].mxu0
      %v1351 = vadd.f32 %v338, %v1350
      %v1352 = vpop.f32.mrb[0].mxu0
      %1353 = vmatprep.mubr.f32.mxu0 0.0
      %v1354 = vand.u32 %v510, 4294901760
      %v1355 = vsub.f32 %v510, %v1354
      %v1356 = vand.u32 %v1355, 4294901760
      %v1357 = vsub.f32 %v1355, %v1356
      %v1358 = vand.u32 %v1357, 4294901760
      %1359 = vmatmul.mubr.f32.gmra.mrb[0].mxu0 %v1358
      %v1360 = vpop.f32.mrb[0].mxu0
      %v1361 = vadd.f32 %v338, %v1360
      %v1362 = vpop.f32.mrb[0].mxu0
      %1363 = vmatprep.mubr.f32.mxu0 0.0
      %v1364 = vand.u32 %v513, 4294901760
      %v1365 = vsub.f32 %v513, %v1364
      %v1366 = vand.u32 %v1365, 4294901760
      %v1367 = vsub.f32 %v1365, %v1366
      %v1368 = vand.u32 %v1367, 4294901760
      %1369 = vmatmul.mubr.f32.gmra.mrb[0].mxu0 %v1368
      %v1370 = vpop.f32.mrb[0].mxu0
      %v1371 = vadd.f32 %v338, %v1370
      %v1372 = vpop.f32.mrb[0].mxu0
      %1373 = vmatprep.mubr.f32.mxu0 0.0
      %v1374 = vand.u32 %v516, 4294901760
      %v1375 = vsub.f32 %v516, %v1374
      %v1376 = vand.u32 %v1375, 4294901760
      %v1377 = vsub.f32 %v1375, %v1376
      %v1378 = vand.u32 %v1377, 4294901760
      %1379 = vmatmul.mubr.f32.gmra.mrb[0].mxu0 %v1378
      %v1380 = vpop.f32.mrb[0].mxu0
      %v1381 = vadd.f32 %v338, %v1380
      %v1382 = vpop.f32.mrb[0].mxu0
      %1383 = vmatprep.mubr.f32.mxu0 0.0
      %v1384 = vand.u32 %v519, 4294901760
      %v1385 = vsub.f32 %v519, %v1384
      %v1386 = vand.u32 %v1385, 4294901760
      %v1387 = vsub.f32 %v1385, %v1386
      %v1388 = vand.u32 %v1387, 4294901760
      %1389 = vmatmul.mubr.f32.gmra.mrb[0].mxu0 %v1388
      %v1390 = vpop.f32.mrb[0].mxu0
      %v1391 = vadd.f32 %v338, %v1390
      %v1392 = vpop.f32.mrb[0].mxu0
      %1393 = vmatprep.mubr.f32.mxu0 0.0
      %v1394 = vand.u32 %v522, 4294901760
      %v1395 = vsub.f32 %v522, %v1394
      %v1396 = vand.u32 %v1395, 4294901760
      %v1397 = vsub.f32 %v1395, %v1396
      %v1398 = vand.u32 %v1397, 4294901760
      %1399 = vmatmul.mubr.f32.gmra.mrb[0].mxu0 %v1398
      %v1400 = vpop.f32.mrb[0].mxu0
      %v1401 = vadd.f32 %v338, %v1400
      %v1402 = vpop.f32.mrb[0].mxu0
      %1403 = vmatprep.mubr.f32.mxu0 0.0
      %v1404 = vand.u32 %v525, 4294901760
      %v1405 = vsub.f32 %v525, %v1404
      %v1406 = vand.u32 %v1405, 4294901760
      %v1407 = vsub.f32 %v1405, %v1406
      %v1408 = vand.u32 %v1407, 4294901760
      %1409 = vmatmul.mubr.f32.gmra.mrb[0].mxu0 %v1408
      %v1410 = vpop.f32.mrb[0].mxu0
      %v1411 = vadd.f32 %v338, %v1410
      %v1412 = vpop.f32.mrb[0].mxu0
      %1413 = vmatprep.mubr.f32.mxu0 0.0
      %v1414 = vand.u32 %v528, 4294901760
      %v1415 = vsub.f32 %v528, %v1414
      %v1416 = vand.u32 %v1415, 4294901760
      %v1417 = vsub.f32 %v1415, %v1416
      %v1418 = vand.u32 %v1417, 4294901760
      %1419 = vmatmul.mubr.f32.gmra.mrb[0].mxu0 %v1418
      %v1420 = vpop.f32.mrb[0].mxu0
      %v1421 = vadd.f32 %v338, %v1420
      %v1422 = vpop.f32.mrb[0].mxu0
      %1423 = vmatprep.mubr.f32.mxu0 0.0
      %v1424 = vand.u32 %v531, 4294901760
      %v1425 = vsub.f32 %v531, %v1424
      %v1426 = vand.u32 %v1425, 4294901760
      %v1427 = vsub.f32 %v1425, %v1426
      %v1428 = vand.u32 %v1427, 4294901760
      %1429 = vmatmul.mubr.f32.gmra.mrb[0].mxu0 %v1428
      %v1430 = vpop.f32.mrb[0].mxu0
      %v1431 = vadd.f32 %v338, %v1430
      %v1432 = vpop.f32.mrb[0].mxu0
      %1433 = vmatprep.mubr.f32.mxu0 0.0
      %v1434 = vand.u32 %v534, 4294901760
      %v1435 = vsub.f32 %v534, %v1434
      %v1436 = vand.u32 %v1435, 4294901760
      %v1437 = vsub.f32 %v1435, %v1436
      %v1438 = vand.u32 %v1437, 4294901760
      %1439 = vmatmul.mubr.f32.gmra.mrb[0].mxu0 %v1438
      %v1440 = vpop.f32.mrb[0].mxu0
      %v1441 = vadd.f32 %v338, %v1440
      %v1442 = vpop.f32.mrb[0].mxu0
      %1443 = vmatprep.mubr.f32.mxu0 0.0
      %v1444 = vand.u32 %v537, 4294901760
      %v1445 = vsub.f32 %v537, %v1444
      %v1446 = vand.u32 %v1445, 4294901760
      %v1447 = vsub.f32 %v1445, %v1446
      %v1448 = vand.u32 %v1447, 4294901760
      %1449 = vmatmul.mubr.f32.gmra.mrb[0].mxu0 %v1448
      %v1450 = vpop.f32.mrb[0].mxu0
      %v1451 = vadd.f32 %v338, %v1450
      %v1452 = vpop.f32.mrb[0].mxu0
      %1453 = vmatprep.mubr.f32.mxu0 0.0
      %v1454 = vand.u32 %v540, 4294901760
      %v1455 = vsub.f32 %v540, %v1454
      %v1456 = vand.u32 %v1455, 4294901760
      %v1457 = vsub.f32 %v1455, %v1456
      %v1458 = vand.u32 %v1457, 4294901760
      %1459 = vmatmul.mubr.f32.gmra.mrb[0].mxu0 %v1458
      %v1460 = vpop.f32.mrb[0].mxu0
      %v1461 = vadd.f32 %v338, %v1460
      %v1462 = vpop.f32.mrb[0].mxu0
      %1463 = vmatprep.mubr.f32.mxu0 0.0
      %v1464 = vand.u32 %v543, 4294901760
      %v1465 = vsub.f32 %v543, %v1464
      %v1466 = vand.u32 %v1465, 4294901760
      %v1467 = vsub.f32 %v1465, %v1466
      %v1468 = vand.u32 %v1467, 4294901760
      %1469 = vmatmul.mubr.f32.gmra.mrb[0].mxu0 %v1468
      %v1470 = vpop.f32.mrb[0].mxu0
      %v1471 = vadd.f32 %v338, %v1470
      %v1472 = vpop.f32.mrb[0].mxu0
      %1473 = vmatprep.mubr.f32.mxu0 0.0
      %v1474 = vand.u32 %v546, 4294901760
      %v1475 = vsub.f32 %v546, %v1474
      %v1476 = vand.u32 %v1475, 4294901760
      %v1477 = vsub.f32 %v1475, %v1476
      %v1478 = vand.u32 %v1477, 4294901760
      %1479 = vmatmul.mubr.f32.gmra.mrb[0].mxu0 %v1478
      %v1480 = vpop.f32.mrb[0].mxu0
      %v1481 = vadd.f32 %v338, %v1480
      %v1482 = vpop.f32.mrb[0].mxu0
      %1483 = vmatprep.mubr.f32.mxu0 0.0
      %v1484 = vand.u32 %v549, 4294901760
      %v1485 = vsub.f32 %v549, %v1484
      %v1486 = vand.u32 %v1485, 4294901760
      %v1487 = vsub.f32 %v1485, %v1486
      %v1488 = vand.u32 %v1487, 4294901760
      %1489 = vmatmul.mubr.f32.gmra.mrb[0].mxu0 %v1488
      %v1490 = vpop.f32.mrb[0].mxu0
      %v1491 = vadd.f32 %v338, %v1490
      %v1492 = vpop.f32.mrb[0].mxu0
      %1493 = vmatprep.mubr.f32.mxu0 0.0
      %v1494 = vand.u32 %v552, 4294901760
      %v1495 = vsub.f32 %v552, %v1494
      %v1496 = vand.u32 %v1495, 4294901760
      %v1497 = vsub.f32 %v1495, %v1496
      %v1498 = vand.u32 %v1497, 4294901760
      %1499 = vmatmul.mubr.f32.gmra.mrb[0].mxu0 %v1498
      %v1500 = vpop.f32.mrb[0].mxu0
      %v1501 = vadd.f32 %v338, %v1500
      %v1502 = vpop.f32.mrb[0].mxu0
      %1503 = vmatprep.mubr.f32.mxu0 0.0
      %v1504 = vand.u32 %v555, 4294901760
      %v1505 = vsub.f32 %v555, %v1504
      %v1506 = vand.u32 %v1505, 4294901760
      %v1507 = vsub.f32 %v1505, %v1506
      %v1508 = vand.u32 %v1507, 4294901760
      %1509 = vmatmul.mubr.f32.gmra.mrb[0].mxu0 %v1508
      %v1510 = vpop.f32.mrb[0].mxu0
      %v1511 = vadd.f32 %v338, %v1510
      %v1512 = vpop.f32.mrb[0].mxu0
      %1513 = vmatprep.mubr.f32.mxu0 0.0
      %v1514 = vand.u32 %v558, 4294901760
      %v1515 = vsub.f32 %v558, %v1514
      %v1516 = vand.u32 %v1515, 4294901760
      %v1517 = vsub.f32 %v1515, %v1516
      %v1518 = vand.u32 %v1517, 4294901760
      %1519 = vmatmul.mubr.f32.gmra.mrb[0].mxu0 %v1518
      %v1520 = vpop.f32.mrb[0].mxu0
      %v1521 = vadd.f32 %v338, %v1520
      %v1522 = vpop.f32.mrb[0].mxu0
      %1523 = vmatprep.mubr.f32.mxu0 0.0
      %v1524 = vand.u32 %v561, 4294901760
      %v1525 = vsub.f32 %v561, %v1524
      %v1526 = vand.u32 %v1525, 4294901760
      %v1527 = vsub.f32 %v1525, %v1526
      %v1528 = vand.u32 %v1527, 4294901760
      %1529 = vmatmul.mubr.f32.gmra.mrb[0].mxu0 %v1528
      %v1530 = vpop.f32.mrb[0].mxu0
      %v1531 = vadd.f32 %v338, %v1530
      %v1532 = vpop.f32.mrb[0].mxu0
      %1533 = vmatprep.mubr.f32.mxu0 0.0
      %v1534 = vand.u32 %v564, 4294901760
      %v1535 = vsub.f32 %v564, %v1534
      %v1536 = vand.u32 %v1535, 4294901760
      %v1537 = vsub.f32 %v1535, %v1536
      %v1538 = vand.u32 %v1537, 4294901760
      %1539 = vmatmul.mubr.f32.gmra.mrb[0].mxu0 %v1538
      %v1540 = vpop.f32.mrb[0].mxu0
      %v1541 = vadd.f32 %v338, %v1540
      %v1542 = vpop.f32.mrb[0].mxu0
      %1543 = vmatprep.mubr.f32.mxu0 0.0
      %v1544 = vand.u32 %v567, 4294901760
      %v1545 = vsub.f32 %v567, %v1544
      %v1546 = vand.u32 %v1545, 4294901760
      %v1547 = vsub.f32 %v1545, %v1546
      %v1548 = vand.u32 %v1547, 4294901760
      %1549 = vmatmul.mubr.f32.gmra.mrb[0].mxu0 %v1548
      %v1550 = vpop.f32.mrb[0].mxu0
      %v1551 = vadd.f32 %v338, %v1550
      %v1552 = vpop.f32.mrb[0].mxu0
      %1553 = vmatprep.mubr.f32.mxu0 0.0
      %v1554 = vand.u32 %v570, 4294901760
      %v1555 = vsub.f32 %v570, %v1554
      %v1556 = vand.u32 %v1555, 4294901760
      %v1557 = vsub.f32 %v1555, %v1556
      %v1558 = vand.u32 %v1557, 4294901760
      %1559 = vmatmul.mubr.f32.gmra.mrb[0].mxu0 %v1558
      %v1560 = vpop.f32.mrb[0].mxu0
      %v1561 = vadd.f32 %v338, %v1560
      %v1562 = vpop.f32.mrb[0].mxu0
      %1563 = vmatprep.mubr.f32.mxu0 0.0
      %v1564 = vand.u32 %v573, 4294901760
      %v1565 = vsub.f32 %v573, %v1564
      %v1566 = vand.u32 %v1565, 4294901760
      %v1567 = vsub.f32 %v1565, %v1566
      %v1568 = vand.u32 %v1567, 4294901760
      %1569 = vmatmul.mubr.f32.gmra.mrb[0].mxu0 %v1568
      %v1570 = vpop.f32.mrb[0].mxu0
      %v1571 = vadd.f32 %v338, %v1570
      %v1572 = vpop.f32.mrb[0].mxu0
      %1573 = vmatprep.mubr.f32.mxu0 0.0
      %v1574 = vand.u32 %v576, 4294901760
      %v1575 = vsub.f32 %v576, %v1574
      %v1576 = vand.u32 %v1575, 4294901760
      %v1577 = vsub.f32 %v1575, %v1576
      %v1578 = vand.u32 %v1577, 4294901760
      %1579 = vmatmul.mubr.f32.gmra.mrb[0].mxu0 %v1578
      %v1580 = vpop.f32.mrb[0].mxu0
      %v1581 = vadd.f32 %v338, %v1580
      %v1582 = vpop.f32.mrb[0].mxu0
      %1583 = vmatprep.mubr.f32.mxu0 0.0
      %v1584 = vand.u32 %v579, 4294901760
      %v1585 = vsub.f32 %v579, %v1584
      %v1586 = vand.u32 %v1585, 4294901760
      %v1587 = vsub.f32 %v1585, %v1586
      %v1588 = vand.u32 %v1587, 4294901760
      %1589 = vmatmul.mubr.f32.gmra.mrb[0].mxu0 %v1588
      %v1590 = vpop.f32.mrb[0].mxu0
      %v1591 = vadd.f32 %v338, %v1590
      %v1592 = vpop.f32.mrb[0].mxu0
      %1593 = vmatprep.mubr.f32.mxu0 0.0
      %v1594 = vand.u32 %v582, 4294901760
      %v1595 = vsub.f32 %v582, %v1594
      %v1596 = vand.u32 %v1595, 4294901760
      %v1597 = vsub.f32 %v1595, %v1596
      %v1598 = vand.u32 %v1597, 4294901760
      %1599 = vmatmul.mubr.f32.gmra.mrb[0].mxu0 %v1598
      %v1600 = vpop.f32.mrb[0].mxu0
      %v1601 = vadd.f32 %v338, %v1600
      %v1602 = vpop.f32.mrb[0].mxu0
      %1603 = vmatprep.mubr.f32.mxu0 0.0
      %v1604 = vand.u32 %v585, 4294901760
      %v1605 = vsub.f32 %v585, %v1604
      %v1606 = vand.u32 %v1605, 4294901760
      %v1607 = vsub.f32 %v1605, %v1606
      %v1608 = vand.u32 %v1607, 4294901760
      %1609 = vmatmul.mubr.f32.gmra.mrb[0].mxu0 %v1608
      %v1610 = vpop.f32.mrb[0].mxu0
      %v1611 = vadd.f32 %v338, %v1610
      %v1612 = vpop.f32.mrb[0].mxu0
      %1613 = vmatprep.mubr.f32.mxu0 0.0
      %v1614 = vand.u32 %v588, 4294901760
      %v1615 = vsub.f32 %v588, %v1614
      %v1616 = vand.u32 %v1615, 4294901760
      %v1617 = vsub.f32 %v1615, %v1616
      %v1618 = vand.u32 %v1617, 4294901760
      %1619 = vmatmul.mubr.f32.gmra.mrb[0].mxu0 %v1618
      %v1620 = vpop.f32.mrb[0].mxu0
      %v1621 = vadd.f32 %v338, %v1620
      %v1622 = vpop.f32.mrb[0].mxu0
      %1623 = vmatprep.mubr.f32.mxu0 0.0
      %v1624 = vand.u32 %v591, 4294901760
      %v1625 = vsub.f32 %v591, %v1624
      %v1626 = vand.u32 %v1625, 4294901760
      %v1627 = vsub.f32 %v1625, %v1626
      %v1628 = vand.u32 %v1627, 4294901760
      %1629 = vmatmul.mubr.f32.gmra.mrb[0].mxu0 %v1628
      %v1630 = vpop.f32.mrb[0].mxu0
      %v1631 = vadd.f32 %v338, %v1630
      %v1632 = vpop.f32.mrb[0].mxu0
      %1633 = vmatprep.mubr.f32.mxu0 0.0
      %v1634 = vand.u32 %v594, 4294901760
      %v1635 = vsub.f32 %v594, %v1634
      %v1636 = vand.u32 %v1635, 4294901760
      %v1637 = vsub.f32 %v1635, %v1636
      %v1638 = vand.u32 %v1637, 4294901760
      %1639 = vmatmul.mubr.f32.gmra.mrb[0].mxu0 %v1638
      %v1640 = vpop.f32.mrb[0].mxu0
      %v1641 = vadd.f32 %v338, %v1640
      %v1642 = vpop.f32.mrb[0].mxu0
      %1643 = vmatprep.mubr.f32.mxu0 0.0
      %v1644 = vand.u32 %v597, 4294901760
      %v1645 = vsub.f32 %v597, %v1644
      %v1646 = vand.u32 %v1645, 4294901760
      %v1647 = vsub.f32 %v1645, %v1646
      %v1648 = vand.u32 %v1647, 4294901760
      %1649 = vmatmul.mubr.f32.gmra.mrb[0].mxu0 %v1648
      %v1650 = vpop.f32.mrb[0].mxu0
      %v1651 = vadd.f32 %v338, %v1650
      %v1652 = vpop.f32.mrb[0].mxu0
      %1653 = vmatprep.mubr.f32.mxu0 0.0
      %v1654 = vand.u32 %v600, 4294901760
      %v1655 = vsub.f32 %v600, %v1654
      %v1656 = vand.u32 %v1655, 4294901760
      %v1657 = vsub.f32 %v1655, %v1656
      %v1658 = vand.u32 %v1657, 4294901760
      %1659 = vmatmul.mubr.f32.gmra.mrb[0].mxu0 %v1658
      %v1660 = vpop.f32.mrb[0].mxu0
      %v1661 = vadd.f32 %v338, %v1660
      %v1662 = vpop.f32.mrb[0].mxu0
      %1663 = vmatprep.mubr.f32.mxu0 0.0
      %v1664 = vand.u32 %v603, 4294901760
      %v1665 = vsub.f32 %v603, %v1664
      %v1666 = vand.u32 %v1665, 4294901760
      %v1667 = vsub.f32 %v1665, %v1666
      %v1668 = vand.u32 %v1667, 4294901760
      %1669 = vmatmul.mubr.f32.gmra.mrb[0].mxu0 %v1668
      %v1670 = vpop.f32.mrb[0].mxu0
      %v1671 = vadd.f32 %v338, %v1670
      %v1672 = vpop.f32.mrb[0].mxu0
      %1673 = vmatprep.mubr.f32.mxu0 0.0
      %v1674 = vand.u32 %v606, 4294901760
      %v1675 = vsub.f32 %v606, %v1674
      %v1676 = vand.u32 %v1675, 4294901760
      %v1677 = vsub.f32 %v1675, %v1676
      %v1678 = vand.u32 %v1677, 4294901760
      %1679 = vmatmul.mubr.f32.gmra.mrb[0].mxu0 %v1678
      %v1680 = vpop.f32.mrb[0].mxu0
      %v1681 = vadd.f32 %v338, %v1680
      %v1682 = vpop.f32.mrb[0].mxu0
      %1683 = vmatprep.mubr.f32.mxu0 0.0
      %v1684 = vand.u32 %v609, 4294901760
      %v1685 = vsub.f32 %v609, %v1684
      %v1686 = vand.u32 %v1685, 4294901760
      %v1687 = vsub.f32 %v1685, %v1686
      %v1688 = vand.u32 %v1687, 4294901760
      %1689 = vmatmul.mubr.f32.gmra.mrb[0].mxu0 %v1688
      %v1690 = vpop.f32.mrb[0].mxu0
      %v1691 = vadd.f32 %v338, %v1690
      %v1692 = vpop.f32.mrb[0].mxu0
      %1693 = vmatprep.mubr.f32.mxu0 0.0
      %v1694 = vand.u32 %v612, 4294901760
      %v1695 = vsub.f32 %v612, %v1694
      %v1696 = vand.u32 %v1695, 4294901760
      %v1697 = vsub.f32 %v1695, %v1696
      %v1698 = vand.u32 %v1697, 4294901760
      %1699 = vmatmul.mubr.f32.gmra.mrb[0].mxu0 %v1698
      %v1700 = vpop.f32.mrb[0].mxu0
      %v1701 = vadd.f32 %v338, %v1700
      %v1702 = vpop.f32.mrb[0].mxu0
      %1703 = vmatprep.mubr.f32.mxu0 0.0
      %v1704 = vand.u32 %v615, 4294901760
      %v1705 = vsub.f32 %v615, %v1704
      %v1706 = vand.u32 %v1705, 4294901760
      %v1707 = vsub.f32 %v1705, %v1706
      %v1708 = vand.u32 %v1707, 4294901760
      %1709 = vmatmul.mubr.f32.gmra.mrb[0].mxu0 %v1708
      %v1710 = vpop.f32.mrb[0].mxu0
      %v1711 = vadd.f32 %v338, %v1710
      %v1712 = vpop.f32.mrb[0].mxu0
      %1713 = vmatprep.mubr.f32.mxu0 0.0
      %v1714 = vand.u32 %v618, 4294901760
      %v1715 = vsub.f32 %v618, %v1714
      %v1716 = vand.u32 %v1715, 4294901760
      %v1717 = vsub.f32 %v1715, %v1716
      %v1718 = vand.u32 %v1717, 4294901760
      %1719 = vmatmul.mubr.f32.gmra.mrb[0].mxu0 %v1718
      %v1720 = vpop.f32.mrb[0].mxu0
      %v1721 = vadd.f32 %v338, %v1720
      %v1722 = vpop.f32.mrb[0].mxu0
      %1723 = vmatprep.mubr.f32.mxu0 0.0
      %v1724 = vand.u32 %v621, 4294901760
      %v1725 = vsub.f32 %v621, %v1724
      %v1726 = vand.u32 %v1725, 4294901760
      %v1727 = vsub.f32 %v1725, %v1726
      %v1728 = vand.u32 %v1727, 4294901760
      %1729 = vmatmul.mubr.f32.gmra.mrb[0].mxu0 %v1728
      %v1730 = vpop.f32.mrb[0].mxu0
      %v1731 = vadd.f32 %v338, %v1730
      %v1732 = vpop.f32.mrb[0].mxu0
      %1733 = vmatprep.mubr.f32.mxu0 0.0
      %v1734 = vand.u32 %v624, 4294901760
      %v1735 = vsub.f32 %v624, %v1734
      %v1736 = vand.u32 %v1735, 4294901760
      %v1737 = vsub.f32 %v1735, %v1736
      %v1738 = vand.u32 %v1737, 4294901760
      %1739 = vmatmul.mubr.f32.gmra.mrb[0].mxu0 %v1738
      %v1740 = vpop.f32.mrb[0].mxu0
      %v1741 = vadd.f32 %v338, %v1740
      %v1742 = vpop.f32.mrb[0].mxu0
      %1743 = vmatprep.mubr.f32.mxu0 0.0
      %v1744 = vand.u32 %v627, 4294901760
      %v1745 = vsub.f32 %v627, %v1744
      %v1746 = vand.u32 %v1745, 4294901760
      %v1747 = vsub.f32 %v1745, %v1746
      %v1748 = vand.u32 %v1747, 4294901760
      %1749 = vmatmul.mubr.f32.gmra.mrb[0].mxu0 %v1748
      %v1750 = vpop.f32.mrb[0].mxu0
      %v1751 = vadd.f32 %v338, %v1750
      %v1752 = vpop.f32.mrb[0].mxu0
      %1753 = vmatprep.mubr.f32.mxu0 0.0
      %v1754 = vand.u32 %v630, 4294901760
      %v1755 = vsub.f32 %v630, %v1754
      %v1756 = vand.u32 %v1755, 4294901760
      %v1757 = vsub.f32 %v1755, %v1756
      %v1758 = vand.u32 %v1757, 4294901760
      %1759 = vmatmul.mubr.f32.gmra.mrb[0].mxu0 %v1758
      %v1760 = vpop.f32.mrb[0].mxu0
      %v1761 = vadd.f32 %v338, %v1760
      %v1762 = vpop.f32.mrb[0].mxu0
      %1763 = vmatprep.mubr.f32.mxu0 0.0
      %v1764 = vand.u32 %v633, 4294901760
      %v1765 = vsub.f32 %v633, %v1764
      %v1766 = vand.u32 %v1765, 4294901760
      %v1767 = vsub.f32 %v1765, %v1766
      %v1768 = vand.u32 %v1767, 4294901760
      %1769 = vmatmul.mubr.f32.gmra.mrb[0].mxu0 %v1768
      %v1770 = vpop.f32.mrb[0].mxu0
      %v1771 = vadd.f32 %v338, %v1770
      %v1772 = vpop.f32.mrb[0].mxu0
      %1773 = vmatprep.mubr.f32.mxu0 0.0
      %v1774 = vand.u32 %v636, 4294901760
      %v1775 = vsub.f32 %v636, %v1774
      %v1776 = vand.u32 %v1775, 4294901760
      %v1777 = vsub.f32 %v1775, %v1776
      %v1778 = vand.u32 %v1777, 4294901760
      %1779 = vmatmul.mubr.f32.gmra.mrb[0].mxu0 %v1778
      %v1780 = vpop.f32.mrb[0].mxu0
      %v1781 = vadd.f32 %v338, %v1780
      %v1782 = vpop.f32.mrb[0].mxu0
      %1783 = vmatprep.mubr.f32.mxu0 0.0
      %v1784 = vand.u32 %v639, 4294901760
      %v1785 = vsub.f32 %v639, %v1784
      %v1786 = vand.u32 %v1785, 4294901760
      %v1787 = vsub.f32 %v1785, %v1786
      %v1788 = vand.u32 %v1787, 4294901760
      %1789 = vmatmul.mubr.f32.gmra.mrb[0].mxu0 %v1788
      %v1790 = vpop.f32.mrb[0].mxu0
      %v1791 = vadd.f32 %v338, %v1790
      %v1792 = vpop.f32.mrb[0].mxu0
      %1793 = vmatprep.mubr.f32.mxu0 0.0
      %v1794 = vand.u32 %v642, 4294901760
      %v1795 = vsub.f32 %v642, %v1794
      %v1796 = vand.u32 %v1795, 4294901760
      %v1797 = vsub.f32 %v1795, %v1796
      %v1798 = vand.u32 %v1797, 4294901760
      %1799 = vmatmul.mubr.f32.gmra.mrb[0].mxu0 %v1798
      %v1800 = vpop.f32.mrb[0].mxu0
      %v1801 = vadd.f32 %v338, %v1800
      %v1802 = vpop.f32.mrb[0].mxu0
      %1803 = vmatprep.mubr.f32.mxu0 0.0
      %v1804 = vand.u32 %v645, 4294901760
      %v1805 = vsub.f32 %v645, %v1804
      %v1806 = vand.u32 %v1805, 4294901760
      %v1807 = vsub.f32 %v1805, %v1806
      %v1808 = vand.u32 %v1807, 4294901760
      %1809 = vmatmul.mubr.f32.gmra.mrb[0].mxu0 %v1808
      %v1810 = vpop.f32.mrb[0].mxu0
      %v1811 = vadd.f32 %v338, %v1810
      %v1812 = vpop.f32.mrb[0].mxu0
      %1813 = vmatprep.mubr.f32.mxu0 0.0
      %v1814 = vand.u32 %v648, 4294901760
      %v1815 = vsub.f32 %v648, %v1814
      %v1816 = vand.u32 %v1815, 4294901760
      %v1817 = vsub.f32 %v1815, %v1816
      %v1818 = vand.u32 %v1817, 4294901760
      %1819 = vmatmul.mubr.f32.gmra.mrb[0].mxu0 %v1818
      %v1820 = vpop.f32.mrb[0].mxu0
      %v1821 = vadd.f32 %v338, %v1820
      %v1822 = vpop.f32.mrb[0].mxu0
      %1823 = vmatprep.mubr.f32.mxu0 0.0
      %v1824 = vand.u32 %v651, 4294901760
      %v1825 = vsub.f32 %v651, %v1824
      %v1826 = vand.u32 %v1825, 4294901760
      %v1827 = vsub.f32 %v1825, %v1826
      %v1828 = vand.u32 %v1827, 4294901760
      %1829 = vmatmul.mubr.f32.gmra.mrb[0].mxu0 %v1828
      %v1830 = vpop.f32.mrb[0].mxu0
      %v1831 = vadd.f32 %v338, %v1830
      %v1832 = vpop.f32.mrb[0].mxu0
      %1833 = vmatprep.mubr.f32.mxu0 0.0
      %v1834 = vand.u32 %v654, 4294901760
      %v1835 = vsub.f32 %v654, %v1834
      %v1836 = vand.u32 %v1835, 4294901760
      %v1837 = vsub.f32 %v1835, %v1836
      %v1838 = vand.u32 %v1837, 4294901760
      %1839 = vmatmul.mubr.f32.gmra.mrb[0].mxu0 %v1838
      %v1840 = vpop.f32.mrb[0].mxu0
      %v1841 = vadd.f32 %v338, %v1840
      %v1842 = vpop.f32.mrb[0].mxu0
      %1843 = vmatprep.mubr.f32.mxu0 0.0
      %v1844 = vand.u32 %v657, 4294901760
      %v1845 = vsub.f32 %v657, %v1844
      %v1846 = vand.u32 %v1845, 4294901760
      %v1847 = vsub.f32 %v1845, %v1846
      %v1848 = vand.u32 %v1847, 4294901760
      %1849 = vmatmul.mubr.f32.gmra.mrb[0].mxu0 %v1848
      %v1850 = vpop.f32.mrb[0].mxu0
      %v1851 = vadd.f32 %v338, %v1850
      %v1852 = vpop.f32.mrb[0].mxu0
      %1853 = vmatprep.mubr.f32.mxu0 0.0
      %v1854 = vand.u32 %v660, 4294901760
      %v1855 = vsub.f32 %v660, %v1854
      %v1856 = vand.u32 %v1855, 4294901760
      %v1857 = vsub.f32 %v1855, %v1856
      %v1858 = vand.u32 %v1857, 4294901760
      %1859 = vmatmul.mubr.f32.gmra.mrb[0].mxu0 %v1858
      %v1860 = vpop.f32.mrb[0].mxu0
      %v1861 = vadd.f32 %v338, %v1860
      %v1862 = vpop.f32.mrb[0].mxu0
      %1863 = vmatprep.mubr.f32.mxu0 0.0
      %v1864 = vand.u32 %v663, 4294901760
      %v1865 = vsub.f32 %v663, %v1864
      %v1866 = vand.u32 %v1865, 4294901760
      %v1867 = vsub.f32 %v1865, %v1866
      %v1868 = vand.u32 %v1867, 4294901760
      %1869 = vmatmul.mubr.f32.gmra.mrb[0].mxu0 %v1868
      %v1870 = vpop.f32.mrb[0].mxu0
      %v1871 = vadd.f32 %v338, %v1870
      %v1872 = vpop.f32.mrb[0].mxu0
      %1873 = vmatprep.mubr.f32.mxu0 0.0
      %v1874 = vand.u32 %v666, 4294901760
      %v1875 = vsub.f32 %v666, %v1874
      %v1876 = vand.u32 %v1875, 4294901760
      %v1877 = vsub.f32 %v1875, %v1876
      %v1878 = vand.u32 %v1877, 4294901760
      %1879 = vmatmul.mubr.f32.gmra.mrb[0].mxu0 %v1878
      %v1880 = vpop.f32.mrb[0].mxu0
      %v1881 = vadd.f32 %v338, %v1880
      %v1882 = vpop.f32.mrb[0].mxu0
      %1883 = vmatprep.mubr.f32.mxu0 0.0
      %v1884 = vand.u32 %v669, 4294901760
      %v1885 = vsub.f32 %v669, %v1884
      %v1886 = vand.u32 %v1885, 4294901760
      %v1887 = vsub.f32 %v1885, %v1886
      %v1888 = vand.u32 %v1887, 4294901760
      %1889 = vmatmul.mubr.f32.gmra.mrb[0].mxu0 %v1888
      %v1890 = vpop.f32.mrb[0].mxu0
      %v1891 = vadd.f32 %v338, %v1890
      %v1892 = vpop.f32.mrb[0].mxu0
      %1893 = vmatprep.mubr.f32.mxu0 0.0
      %v1894 = vand.u32 %v672, 4294901760
      %v1895 = vsub.f32 %v672, %v1894
      %v1896 = vand.u32 %v1895, 4294901760
      %v1897 = vsub.f32 %v1895, %v1896
      %v1898 = vand.u32 %v1897, 4294901760
      %1899 = vmatmul.mubr.f32.gmra.mrb[0].mxu0 %v1898
      %v1900 = vpop.f32.mrb[0].mxu0
      %v1901 = vadd.f32 %v338, %v1900
      %v1902 = vpop.f32.mrb[0].mxu0
      %1903 = vmatprep.mubr.f32.mxu0 0.0
      %v1904 = vand.u32 %v675, 4294901760
      %v1905 = vsub.f32 %v675, %v1904
      %v1906 = vand.u32 %v1905, 4294901760
      %v1907 = vsub.f32 %v1905, %v1906
      %v1908 = vand.u32 %v1907, 4294901760
      %1909 = vmatmul.mubr.f32.gmra.mrb[0].mxu0 %v1908
      %v1910 = vpop.f32.mrb[0].mxu0
      %v1911 = vadd.f32 %v338, %v1910
      %v1912 = vpop.f32.mrb[0].mxu0
      %1913 = vmatprep.mubr.f32.mxu0 0.0
      %v1914 = vand.u32 %v678, 4294901760
      %v1915 = vsub.f32 %v678, %v1914
      %v1916 = vand.u32 %v1915, 4294901760
      %v1917 = vsub.f32 %v1915, %v1916
      %v1918 = vand.u32 %v1917, 4294901760
      %1919 = vmatmul.mubr.f32.gmra.mrb[0].mxu0 %v1918
      %v1920 = vpop.f32.mrb[0].mxu0
      %v1921 = vadd.f32 %v338, %v1920
      %v1922 = vpop.f32.mrb[0].mxu0
      %1923 = vmatprep.mubr.f32.mxu0 0.0
      %v1924 = vand.u32 %v681, 4294901760
      %v1925 = vsub.f32 %v681, %v1924
      %v1926 = vand.u32 %v1925, 4294901760
      %v1927 = vsub.f32 %v1925, %v1926
      %v1928 = vand.u32 %v1927, 4294901760
      %1929 = vmatmul.mubr.f32.gmra.mrb[0].mxu0 %v1928
      %v1930 = vpop.f32.mrb[0].mxu0
      %v1931 = vadd.f32 %v338, %v1930
      %v1932 = vpop.f32.mrb[0].mxu0
      %1933 = vmatprep.mubr.f32.mxu0 0.0
      %v1934 = vand.u32 %v684, 4294901760
      %v1935 = vsub.f32 %v684, %v1934
      %v1936 = vand.u32 %v1935, 4294901760
      %v1937 = vsub.f32 %v1935, %v1936
      %v1938 = vand.u32 %v1937, 4294901760
      %1939 = vmatmul.mubr.f32.gmra.mrb[0].mxu0 %v1938
      %v1940 = vpop.f32.mrb[0].mxu0
      %v1941 = vadd.f32 %v338, %v1940
      %v1942 = vpop.f32.mrb[0].mxu0
      %1943 = vmatprep.mubr.f32.mxu0 0.0
      %v1944 = vand.u32 %v687, 4294901760
      %v1945 = vsub.f32 %v687, %v1944
      %v1946 = vand.u32 %v1945, 4294901760
      %v1947 = vsub.f32 %v1945, %v1946
      %v1948 = vand.u32 %v1947, 4294901760
      %1949 = vmatmul.mubr.f32.gmra.mrb[0].mxu0 %v1948
      %v1950 = vpop.f32.mrb[0].mxu0
      %v1951 = vadd.f32 %v338, %v1950
      %v1952 = vpop.f32.mrb[0].mxu0
      %1953 = vmatprep.mubr.f32.mxu0 0.0
      %v1954 = vand.u32 %v690, 4294901760
      %v1955 = vsub.f32 %v690, %v1954
      %v1956 = vand.u32 %v1955, 4294901760
      %v1957 = vsub.f32 %v1955, %v1956
      %v1958 = vand.u32 %v1957, 4294901760
      %1959 = vmatmul.mubr.f32.gmra.mrb[0].mxu0 %v1958
      %v1960 = vpop.f32.mrb[0].mxu0
      %v1961 = vadd.f32 %v338, %v1960
      %v1962 = vpop.f32.mrb[0].mxu0
      %1963 = vmatprep.mubr.f32.mxu0 0.0
      %v1964 = vand.u32 %v693, 4294901760
      %v1965 = vsub.f32 %v693, %v1964
      %v1966 = vand.u32 %v1965, 4294901760
      %v1967 = vsub.f32 %v1965, %v1966
      %v1968 = vand.u32 %v1967, 4294901760
      %1969 = vmatmul.mubr.f32.gmra.mrb[0].mxu0 %v1968
      %v1970 = vpop.f32.mrb[0].mxu0
      %v1971 = vadd.f32 %v338, %v1970
      %v1972 = vpop.f32.mrb[0].mxu0
      %1973 = vmatprep.mubr.f32.mxu0 0.0
      %v1974 = vand.u32 %v696, 4294901760
      %v1975 = vsub.f32 %v696, %v1974
      %v1976 = vand.u32 %v1975, 4294901760
      %v1977 = vsub.f32 %v1975, %v1976
      %v1978 = vand.u32 %v1977, 4294901760
      %1979 = vmatmul.mubr.f32.gmra.mrb[0].mxu0 %v1978
      %v1980 = vpop.f32.mrb[0].mxu0
      %v1981 = vadd.f32 %v338, %v1980
      %v1982 = vpop.f32.mrb[0].mxu0
      %1983 = vmatprep.mubr.f32.mxu0 0.0
      %v1984 = vand.u32 %v699, 4294901760
      %v1985 = vsub.f32 %v699, %v1984
      %v1986 = vand.u32 %v1985, 4294901760
      %v1987 = vsub.f32 %v1985, %v1986
      %v1988 = vand.u32 %v1987, 4294901760
      %1989 = vmatmul.mubr.f32.gmra.mrb[0].mxu0 %v1988
      %v1990 = vpop.f32.mrb[0].mxu0
      %v1991 = vadd.f32 %v338, %v1990
      %v1992 = vpop.f32.mrb[0].mxu0
      %1993 = vmatprep.mubr.f32.mxu0 0.0
      %v1994 = vand.u32 %v702, 4294901760
      %v1995 = vsub.f32 %v702, %v1994
      %v1996 = vand.u32 %v1995, 4294901760
      %v1997 = vsub.f32 %v1995, %v1996
      %v1998 = vand.u32 %v1997, 4294901760
      %1999 = vmatmul.mubr.f32.gmra.mrb[0].mxu0 %v1998
      %v2000 = vpop.f32.mrb[0].mxu0
      %v2001 = vadd.f32 %v338, %v2000
      %v2002 = vpop.f32.mrb[0].mxu0
      %2003 = vmatprep.mubr.f32.mxu0 0.0
      %v2004 = vand.u32 %v705, 4294901760
      %v2005 = vsub.f32 %v705, %v2004
      %v2006 = vand.u32 %v2005, 4294901760
      %v2007 = vsub.f32 %v2005, %v2006
      %v2008 = vand.u32 %v2007, 4294901760
      %2009 = vmatmul.mubr.f32.gmra.mrb[0].mxu0 %v2008
      %v2010 = vpop.f32.mrb[0].mxu0
      %v2011 = vadd.f32 %v338, %v2010
      %v2012 = vpop.f32.mrb[0].mxu0
      %2013 = vmatprep.mubr.f32.mxu0 0.0
      %v2014 = vand.u32 %v708, 4294901760
      %v2015 = vsub.f32 %v708, %v2014
      %v2016 = vand.u32 %v2015, 4294901760
      %v2017 = vsub.f32 %v2015, %v2016
      %v2018 = vand.u32 %v2017, 4294901760
      %2019 = vmatmul.mubr.f32.gmra.mrb[0].mxu0 %v2018
      %v2020 = vpop.f32.mrb[0].mxu0
      %v2021 = vadd.f32 %v338, %v2020
      %v2022 = vpop.f32.mrb[0].mxu0
      %2023 = vmatprep.mubr.f32.mxu0 0.0
      %v2024 = vand.u32 %v711, 4294901760
      %v2025 = vsub.f32 %v711, %v2024
      %v2026 = vand.u32 %v2025, 4294901760
      %v2027 = vsub.f32 %v2025, %v2026
      %v2028 = vand.u32 %v2027, 4294901760
      %2029 = vmatmul.mubr.f32.gmra.mrb[0].mxu0 %v2028
      %v2030 = vpop.f32.mrb[0].mxu0
      %v2031 = vadd.f32 %v338, %v2030
      %v2032 = vpop.f32.mrb[0].mxu0
      %2033 = vmatprep.mubr.f32.mxu0 0.0
      %v2034 = vand.u32 %v714, 4294901760
      %v2035 = vsub.f32 %v714, %v2034
      %v2036 = vand.u32 %v2035, 4294901760
      %v2037 = vsub.f32 %v2035, %v2036
      %v2038 = vand.u32 %v2037, 4294901760
      %2039 = vmatmul.mubr.f32.gmra.mrb[0].mxu0 %v2038
      %v2040 = vpop.f32.mrb[0].mxu0
      %v2041 = vadd.f32 %v338, %v2040
      %v2042 = vpop.f32.mrb[0].mxu0
      %2043 = vmatprep.mubr.f32.mxu0 0.0
      %v2044 = vand.u32 %v717, 4294901760
      %v2045 = vsub.f32 %v717, %v2044
      %v2046 = vand.u32 %v2045, 4294901760
      %v2047 = vsub.f32 %v2045, %v2046
      %v2048 = vand.u32 %v2047, 4294901760
      %2049 = vmatmul.mubr.f32.gmra.mrb[0].mxu0 %v2048
      %v2050 = vpop.f32.mrb[0].mxu0
      %v2051 = vadd.f32 %v338, %v2050
      %v2052 = vpop.f32.mrb[0].mxu0
      %2053 = vmatprep.mubr.f32.mxu0 0.0
      %v2054 = vand.u32 %v720, 4294901760
      %v2055 = vsub.f32 %v720, %v2054
      %v2056 = vand.u32 %v2055, 4294901760
      %v2057 = vsub.f32 %v2055, %v2056
      %v2058 = vand.u32 %v2057, 4294901760
      %2059 = vmatmul.mubr.f32.gmra.mrb[0].mxu0 %v2058
      %v2060 = vpop.f32.mrb[0].mxu0
      %v2061 = vadd.f32 %v338, %v2060
      %v2062 = vpop.f32.mrb[0].mxu0
      %2063 = vmatprep.mubr.f32.mxu0 0.0
      %v2064 = vand.u32 %v723, 4294901760
      %v2065 = vsub.f32 %v723, %v2064
      %v2066 = vand.u32 %v2065, 4294901760
      %v2067 = vsub.f32 %v2065, %v2066
      %v2068 = vand.u32 %v2067, 4294901760
      %2069 = vmatmul.mubr.f32.gmra.mrb[0].mxu0 %v2068
      %v2070 = vpop.f32.mrb[0].mxu0
      %v2071 = vadd.f32 %v338, %v2070
      %v2072 = vpop.f32.mrb[0].mxu0
      %2073 = vdwg.mxu0
      %2074 = vmatprep.subr.mxu0 0.0
      %v2075 = vand.u32 %v329, 4294901760
      %v2076 = vsub.f32 %v329, %v2075
      %v2077 = vand.u32 %v2076, 4294901760
      %v2078 = vsub.f32 %v2076, %v2077
      %v2079 = vand.u32 %v2078, 4294901760
      %2080 = vmatpush1.msra.mxu0 %v2079
      %2081 = vmatprep.subr.mxu0 0.0
      %v2082 = vand.u32 %v330, 4294901760
      %v2083 = vsub.f32 %v330, %v2082
      %v2084 = vand.u32 %v2083, 4294901760
      %v2085 = vsub.f32 %v2083, %v2084
      %v2086 = vand.u32 %v2085, 4294901760
      %2087 = vmatpush1.msra.mxu0 %v2086
      %2088 = vmatprep.subr.mxu0 0.0
      %v2089 = vand.u32 %v331, 4294901760
      %v2090 = vsub.f32 %v331, %v2089
      %v2091 = vand.u32 %v2090, 4294901760
      %v2092 = vsub.f32 %v2090, %v2091
      %v2093 = vand.u32 %v2092, 4294901760
      %2094 = vmatpush1.msra.mxu0 %v2093
      %2095 = vmatprep.subr.mxu0 0.0
      %v2096 = vand.u32 %v332, 4294901760
      %v2097 = vsub.f32 %v332, %v2096
      %v2098 = vand.u32 %v2097, 4294901760
      %v2099 = vsub.f32 %v2097, %v2098
      %v2100 = vand.u32 %v2099, 4294901760
      %2101 = vmatpush1.msra.mxu0 %v2100
      %2102 = vmatprep.subr.mxu0 0.0
      %2103 = vmatpush1.msra.mxu0 0.0
      %2104 = vmatprep.subr.mxu0 0.0
      %2105 = vmatpush1.msra.mxu0 0.0
      %2106 = vmatprep.subr.mxu0 0.0
      %2107 = vmatpush1.msra.mxu0 0.0
      %2108 = vmatprep.subr.mxu0 0.0
      %2109 = vmatpush1.msra.mxu0 0.0
      %2110 = vmatprep.subr.mxu0 0.0
      %2111 = vmatpush1.msra.mxu0 0.0
      %2112 = vmatprep.subr.mxu0 0.0
      %2113 = vmatpush1.msra.mxu0 0.0
      %2114 = vmatprep.subr.mxu0 0.0
      %2115 = vmatpush1.msra.mxu0 0.0
      %2116 = vmatprep.subr.mxu0 0.0
      %2117 = vmatpush1.msra.mxu0 0.0
      %2118 = vmatprep.subr.mxu0 0.0
      %2119 = vmatpush1.msra.mxu0 0.0
      %2120 = vmatprep.subr.mxu0 0.0
      %2121 = vmatpush1.msra.mxu0 0.0
      %2122 = vmatprep.subr.mxu0 0.0
      %2123 = vmatpush1.msra.mxu0 0.0
      %2124 = vmatprep.subr.mxu0 0.0
      %2125 = vmatpush1.msra.mxu0 0.0
      %2126 = vmatprep.subr.mxu0 0.0
      %2127 = vmatpush1.msra.mxu0 0.0
      %2128 = vmatprep.subr.mxu0 0.0
      %2129 = vmatpush1.msra.mxu0 0.0
      %2130 = vmatprep.subr.mxu0 0.0
      %2131 = vmatpush1.msra.mxu0 0.0
      %2132 = vmatprep.subr.mxu0 0.0
      %2133 = vmatpush1.msra.mxu0 0.0
      %2134 = vmatprep.subr.mxu0 0.0
      %2135 = vmatpush1.msra.mxu0 0.0
      %2136 = vmatprep.subr.mxu0 0.0
      %2137 = vmatpush1.msra.mxu0 0.0
      %2138 = vmatprep.subr.mxu0 0.0
      %2139 = vmatpush1.msra.mxu0 0.0
      %2140 = vmatprep.subr.mxu0 0.0
      %2141 = vmatpush1.msra.mxu0 0.0
      %2142 = vmatprep.subr.mxu0 0.0
      %2143 = vmatpush1.msra.mxu0 0.0
      %2144 = vmatprep.subr.mxu0 0.0
      %2145 = vmatpush1.msra.mxu0 0.0
      %2146 = vmatprep.subr.mxu0 0.0
      %2147 = vmatpush1.msra.mxu0 0.0
      %2148 = vmatprep.subr.mxu0 0.0
      %2149 = vmatpush1.msra.mxu0 0.0
      %2150 = vmatprep.subr.mxu0 0.0
      %2151 = vmatpush1.msra.mxu0 0.0
      %2152 = vmatprep.subr.mxu0 0.0
      %2153 = vmatpush1.msra.mxu0 0.0
      %2154 = vmatprep.subr.mxu0 0.0
      %2155 = vmatpush1.msra.mxu0 0.0
      %2156 = vmatprep.subr.mxu0 0.0
      %2157 = vmatpush1.msra.mxu0 0.0
      %2158 = vmatprep.mubr.f32.mxu0 0.0
      %v2159 = vand.u32 %v342, 4294901760
      %2160 = vmatmul.mubr.f32.gmra.mrb[0].mxu0 %v2159
      %v2161 = vpop.f32.mrb[0].mxu0
      %v2162 = vadd.f32 %v801, %v2161
      %v2163 = vpop.f32.mrb[0].mxu0
      %2164 = vmatprep.mubr.f32.mxu0 0.0
      %v2165 = vand.u32 %v345, 4294901760
      %2166 = vmatmul.mubr.f32.gmra.mrb[0].mxu0 %v2165
      %v2167 = vpop.f32.mrb[0].mxu0
      %v2168 = vadd.f32 %v811, %v2167
      %v2169 = vpop.f32.mrb[0].mxu0
      %2170 = vmatprep.mubr.f32.mxu0 0.0
      %v2171 = vand.u32 %v348, 4294901760
      %2172 = vmatmul.mubr.f32.gmra.mrb[0].mxu0 %v2171
      %v2173 = vpop.f32.mrb[0].mxu0
      %v2174 = vadd.f32 %v821, %v2173
      %v2175 = vpop.f32.mrb[0].mxu0
      %2176 = vmatprep.mubr.f32.mxu0 0.0
      %v2177 = vand.u32 %v351, 4294901760
      %2178 = vmatmul.mubr.f32.gmra.mrb[0].mxu0 %v2177
      %v2179 = vpop.f32.mrb[0].mxu0
      %v2180 = vadd.f32 %v831, %v2179
      %v2181 = vpop.f32.mrb[0].mxu0
      %2182 = vmatprep.mubr.f32.mxu0 0.0
      %v2183 = vand.u32 %v354, 4294901760
      %2184 = vmatmul.mubr.f32.gmra.mrb[0].mxu0 %v2183
      %v2185 = vpop.f32.mrb[0].mxu0
      %v2186 = vadd.f32 %v841, %v2185
      %v2187 = vpop.f32.mrb[0].mxu0
      %2188 = vmatprep.mubr.f32.mxu0 0.0
      %v2189 = vand.u32 %v357, 4294901760
      %2190 = vmatmul.mubr.f32.gmra.mrb[0].mxu0 %v2189
      %v2191 = vpop.f32.mrb[0].mxu0
      %v2192 = vadd.f32 %v851, %v2191
      %v2193 = vpop.f32.mrb[0].mxu0
      %2194 = vmatprep.mubr.f32.mxu0 0.0
      %v2195 = vand.u32 %v360, 4294901760
      %2196 = vmatmul.mubr.f32.gmra.mrb[0].mxu0 %v2195
      %v2197 = vpop.f32.mrb[0].mxu0
      %v2198 = vadd.f32 %v861, %v2197
      %v2199 = vpop.f32.mrb[0].mxu0
      %2200 = vmatprep.mubr.f32.mxu0 0.0
      %v2201 = vand.u32 %v363, 4294901760
      %2202 = vmatmul.mubr.f32.gmra.mrb[0].mxu0 %v2201
      %v2203 = vpop.f32.mrb[0].mxu0
      %v2204 = vadd.f32 %v871, %v2203
      %v2205 = vpop.f32.mrb[0].mxu0
      %2206 = vmatprep.mubr.f32.mxu0 0.0
      %v2207 = vand.u32 %v366, 4294901760
      %2208 = vmatmul.mubr.f32.gmra.mrb[0].mxu0 %v2207
      %v2209 = vpop.f32.mrb[0].mxu0
      %v2210 = vadd.f32 %v881, %v2209
      %v2211 = vpop.f32.mrb[0].mxu0
      %2212 = vmatprep.mubr.f32.mxu0 0.0
      %v2213 = vand.u32 %v369, 4294901760
      %2214 = vmatmul.mubr.f32.gmra.mrb[0].mxu0 %v2213
      %v2215 = vpop.f32.mrb[0].mxu0
      %v2216 = vadd.f32 %v891, %v2215
      %v2217 = vpop.f32.mrb[0].mxu0
      %2218 = vmatprep.mubr.f32.mxu0 0.0
      %v2219 = vand.u32 %v372, 4294901760
      %2220 = vmatmul.mubr.f32.gmra.mrb[0].mxu0 %v2219
      %v2221 = vpop.f32.mrb[0].mxu0
      %v2222 = vadd.f32 %v901, %v2221
      %v2223 = vpop.f32.mrb[0].mxu0
      %2224 = vmatprep.mubr.f32.mxu0 0.0
      %v2225 = vand.u32 %v375, 4294901760
      %2226 = vmatmul.mubr.f32.gmra.mrb[0].mxu0 %v2225
      %v2227 = vpop.f32.mrb[0].mxu0
      %v2228 = vadd.f32 %v911, %v2227
      %v2229 = vpop.f32.mrb[0].mxu0
      %2230 = vmatprep.mubr.f32.mxu0 0.0
      %v2231 = vand.u32 %v378, 4294901760
      %2232 = vmatmul.mubr.f32.gmra.mrb[0].mxu0 %v2231
      %v2233 = vpop.f32.mrb[0].mxu0
      %v2234 = vadd.f32 %v921, %v2233
      %v2235 = vpop.f32.mrb[0].mxu0
      %2236 = vmatprep.mubr.f32.mxu0 0.0
      %v2237 = vand.u32 %v381, 4294901760
      %2238 = vmatmul.mubr.f32.gmra.mrb[0].mxu0 %v2237
      %v2239 = vpop.f32.mrb[0].mxu0
      %v2240 = vadd.f32 %v931, %v2239
      %v2241 = vpop.f32.mrb[0].mxu0
      %2242 = vmatprep.mubr.f32.mxu0 0.0
      %v2243 = vand.u32 %v384, 4294901760
      %2244 = vmatmul.mubr.f32.gmra.mrb[0].mxu0 %v2243
      %v2245 = vpop.f32.mrb[0].mxu0
      %v2246 = vadd.f32 %v941, %v2245
      %v2247 = vpop.f32.mrb[0].mxu0
      %2248 = vmatprep.mubr.f32.mxu0 0.0
      %v2249 = vand.u32 %v387, 4294901760
      %2250 = vmatmul.mubr.f32.gmra.mrb[0].mxu0 %v2249
      %v2251 = vpop.f32.mrb[0].mxu0
      %v2252 = vadd.f32 %v951, %v2251
      %v2253 = vpop.f32.mrb[0].mxu0
      %2254 = vmatprep.mubr.f32.mxu0 0.0
      %v2255 = vand.u32 %v390, 4294901760
      %2256 = vmatmul.mubr.f32.gmra.mrb[0].mxu0 %v2255
      %v2257 = vpop.f32.mrb[0].mxu0
      %v2258 = vadd.f32 %v961, %v2257
      %v2259 = vpop.f32.mrb[0].mxu0
      %2260 = vmatprep.mubr.f32.mxu0 0.0
      %v2261 = vand.u32 %v393, 4294901760
      %2262 = vmatmul.mubr.f32.gmra.mrb[0].mxu0 %v2261
      %v2263 = vpop.f32.mrb[0].mxu0
      %v2264 = vadd.f32 %v971, %v2263
      %v2265 = vpop.f32.mrb[0].mxu0
      %2266 = vmatprep.mubr.f32.mxu0 0.0
      %v2267 = vand.u32 %v396, 4294901760
      %2268 = vmatmul.mubr.f32.gmra.mrb[0].mxu0 %v2267
      %v2269 = vpop.f32.mrb[0].mxu0
      %v2270 = vadd.f32 %v981, %v2269
      %v2271 = vpop.f32.mrb[0].mxu0
      %2272 = vmatprep.mubr.f32.mxu0 0.0
      %v2273 = vand.u32 %v399, 4294901760
      %2274 = vmatmul.mubr.f32.gmra.mrb[0].mxu0 %v2273
      %v2275 = vpop.f32.mrb[0].mxu0
      %v2276 = vadd.f32 %v991, %v2275
      %v2277 = vpop.f32.mrb[0].mxu0
      %2278 = vmatprep.mubr.f32.mxu0 0.0
      %v2279 = vand.u32 %v402, 4294901760
      %2280 = vmatmul.mubr.f32.gmra.mrb[0].mxu0 %v2279
      %v2281 = vpop.f32.mrb[0].mxu0
      %v2282 = vadd.f32 %v1001, %v2281
      %v2283 = vpop.f32.mrb[0].mxu0
      %2284 = vmatprep.mubr.f32.mxu0 0.0
      %v2285 = vand.u32 %v405, 4294901760
      %2286 = vmatmul.mubr.f32.gmra.mrb[0].mxu0 %v2285
      %v2287 = vpop.f32.mrb[0].mxu0
      %v2288 = vadd.f32 %v1011, %v2287
      %v2289 = vpop.f32.mrb[0].mxu0
      %2290 = vmatprep.mubr.f32.mxu0 0.0
      %v2291 = vand.u32 %v408, 4294901760
      %2292 = vmatmul.mubr.f32.gmra.mrb[0].mxu0 %v2291
      %v2293 = vpop.f32.mrb[0].mxu0
      %v2294 = vadd.f32 %v1021, %v2293
      %v2295 = vpop.f32.mrb[0].mxu0
      %2296 = vmatprep.mubr.f32.mxu0 0.0
      %v2297 = vand.u32 %v411, 4294901760
      %2298 = vmatmul.mubr.f32.gmra.mrb[0].mxu0 %v2297
      %v2299 = vpop.f32.mrb[0].mxu0
      %v2300 = vadd.f32 %v1031, %v2299
      %v2301 = vpop.f32.mrb[0].mxu0
      %2302 = vmatprep.mubr.f32.mxu0 0.0
      %v2303 = vand.u32 %v414, 4294901760
      %2304 = vmatmul.mubr.f32.gmra.mrb[0].mxu0 %v2303
      %v2305 = vpop.f32.mrb[0].mxu0
      %v2306 = vadd.f32 %v1041, %v2305
      %v2307 = vpop.f32.mrb[0].mxu0
      %2308 = vmatprep.mubr.f32.mxu0 0.0
      %v2309 = vand.u32 %v417, 4294901760
      %2310 = vmatmul.mubr.f32.gmra.mrb[0].mxu0 %v2309
      %v2311 = vpop.f32.mrb[0].mxu0
      %v2312 = vadd.f32 %v1051, %v2311
      %v2313 = vpop.f32.mrb[0].mxu0
      %2314 = vmatprep.mubr.f32.mxu0 0.0
      %v2315 = vand.u32 %v420, 4294901760
      %2316 = vmatmul.mubr.f32.gmra.mrb[0].mxu0 %v2315
      %v2317 = vpop.f32.mrb[0].mxu0
      %v2318 = vadd.f32 %v1061, %v2317
      %v2319 = vpop.f32.mrb[0].mxu0
      %2320 = vmatprep.mubr.f32.mxu0 0.0
      %v2321 = vand.u32 %v423, 4294901760
      %2322 = vmatmul.mubr.f32.gmra.mrb[0].mxu0 %v2321
      %v2323 = vpop.f32.mrb[0].mxu0
      %v2324 = vadd.f32 %v1071, %v2323
      %v2325 = vpop.f32.mrb[0].mxu0
      %2326 = vmatprep.mubr.f32.mxu0 0.0
      %v2327 = vand.u32 %v426, 4294901760
      %2328 = vmatmul.mubr.f32.gmra.mrb[0].mxu0 %v2327
      %v2329 = vpop.f32.mrb[0].mxu0
      %v2330 = vadd.f32 %v1081, %v2329
      %v2331 = vpop.f32.mrb[0].mxu0
      %2332 = vmatprep.mubr.f32.mxu0 0.0
      %v2333 = vand.u32 %v429, 4294901760
      %2334 = vmatmul.mubr.f32.gmra.mrb[0].mxu0 %v2333
      %v2335 = vpop.f32.mrb[0].mxu0
      %v2336 = vadd.f32 %v1091, %v2335
      %v2337 = vpop.f32.mrb[0].mxu0
      %2338 = vmatprep.mubr.f32.mxu0 0.0
      %v2339 = vand.u32 %v432, 4294901760
      %2340 = vmatmul.mubr.f32.gmra.mrb[0].mxu0 %v2339
      %v2341 = vpop.f32.mrb[0].mxu0
      %v2342 = vadd.f32 %v1101, %v2341
      %v2343 = vpop.f32.mrb[0].mxu0
      %2344 = vmatprep.mubr.f32.mxu0 0.0
      %v2345 = vand.u32 %v435, 4294901760
      %2346 = vmatmul.mubr.f32.gmra.mrb[0].mxu0 %v2345
      %v2347 = vpop.f32.mrb[0].mxu0
      %v2348 = vadd.f32 %v1111, %v2347
      %v2349 = vpop.f32.mrb[0].mxu0
      %2350 = vmatprep.mubr.f32.mxu0 0.0
      %v2351 = vand.u32 %v438, 4294901760
      %2352 = vmatmul.mubr.f32.gmra.mrb[0].mxu0 %v2351
      %v2353 = vpop.f32.mrb[0].mxu0
      %v2354 = vadd.f32 %v1121, %v2353
      %v2355 = vpop.f32.mrb[0].mxu0
      %2356 = vmatprep.mubr.f32.mxu0 0.0
      %v2357 = vand.u32 %v441, 4294901760
      %2358 = vmatmul.mubr.f32.gmra.mrb[0].mxu0 %v2357
      %v2359 = vpop.f32.mrb[0].mxu0
      %v2360 = vadd.f32 %v1131, %v2359
      %v2361 = vpop.f32.mrb[0].mxu0
      %2362 = vmatprep.mubr.f32.mxu0 0.0
      %v2363 = vand.u32 %v444, 4294901760
      %2364 = vmatmul.mubr.f32.gmra.mrb[0].mxu0 %v2363
      %v2365 = vpop.f32.mrb[0].mxu0
      %v2366 = vadd.f32 %v1141, %v2365
      %v2367 = vpop.f32.mrb[0].mxu0
      %2368 = vmatprep.mubr.f32.mxu0 0.0
      %v2369 = vand.u32 %v447, 4294901760
      %2370 = vmatmul.mubr.f32.gmra.mrb[0].mxu0 %v2369
      %v2371 = vpop.f32.mrb[0].mxu0
      %v2372 = vadd.f32 %v1151, %v2371
      %v2373 = vpop.f32.mrb[0].mxu0
      %2374 = vmatprep.mubr.f32.mxu0 0.0
      %v2375 = vand.u32 %v450, 4294901760
      %2376 = vmatmul.mubr.f32.gmra.mrb[0].mxu0 %v2375
      %v2377 = vpop.f32.mrb[0].mxu0
      %v2378 = vadd.f32 %v1161, %v2377
      %v2379 = vpop.f32.mrb[0].mxu0
      %2380 = vmatprep.mubr.f32.mxu0 0.0
      %v2381 = vand.u32 %v453, 4294901760
      %2382 = vmatmul.mubr.f32.gmra.mrb[0].mxu0 %v2381
      %v2383 = vpop.f32.mrb[0].mxu0
      %v2384 = vadd.f32 %v1171, %v2383
      %v2385 = vpop.f32.mrb[0].mxu0
      %2386 = vmatprep.mubr.f32.mxu0 0.0
      %v2387 = vand.u32 %v456, 4294901760
      %2388 = vmatmul.mubr.f32.gmra.mrb[0].mxu0 %v2387
      %v2389 = vpop.f32.mrb[0].mxu0
      %v2390 = vadd.f32 %v1181, %v2389
      %v2391 = vpop.f32.mrb[0].mxu0
      %2392 = vmatprep.mubr.f32.mxu0 0.0
      %v2393 = vand.u32 %v459, 4294901760
      %2394 = vmatmul.mubr.f32.gmra.mrb[0].mxu0 %v2393
      %v2395 = vpop.f32.mrb[0].mxu0
      %v2396 = vadd.f32 %v1191, %v2395
      %v2397 = vpop.f32.mrb[0].mxu0
      %2398 = vmatprep.mubr.f32.mxu0 0.0
      %v2399 = vand.u32 %v462, 4294901760
      %2400 = vmatmul.mubr.f32.gmra.mrb[0].mxu0 %v2399
      %v2401 = vpop.f32.mrb[0].mxu0
      %v2402 = vadd.f32 %v1201, %v2401
      %v2403 = vpop.f32.mrb[0].mxu0
      %2404 = vmatprep.mubr.f32.mxu0 0.0
      %v2405 = vand.u32 %v465, 4294901760
      %2406 = vmatmul.mubr.f32.gmra.mrb[0].mxu0 %v2405
      %v2407 = vpop.f32.mrb[0].mxu0
      %v2408 = vadd.f32 %v1211, %v2407
      %v2409 = vpop.f32.mrb[0].mxu0
      %2410 = vmatprep.mubr.f32.mxu0 0.0
      %v2411 = vand.u32 %v468, 4294901760
      %2412 = vmatmul.mubr.f32.gmra.mrb[0].mxu0 %v2411
      %v2413 = vpop.f32.mrb[0].mxu0
      %v2414 = vadd.f32 %v1221, %v2413
      %v2415 = vpop.f32.mrb[0].mxu0
      %2416 = vmatprep.mubr.f32.mxu0 0.0
      %v2417 = vand.u32 %v471, 4294901760
      %2418 = vmatmul.mubr.f32.gmra.mrb[0].mxu0 %v2417
      %v2419 = vpop.f32.mrb[0].mxu0
      %v2420 = vadd.f32 %v1231, %v2419
      %v2421 = vpop.f32.mrb[0].mxu0
      %2422 = vmatprep.mubr.f32.mxu0 0.0
      %v2423 = vand.u32 %v474, 4294901760
      %2424 = vmatmul.mubr.f32.gmra.mrb[0].mxu0 %v2423
      %v2425 = vpop.f32.mrb[0].mxu0
      %v2426 = vadd.f32 %v1241, %v2425
      %v2427 = vpop.f32.mrb[0].mxu0
      %2428 = vmatprep.mubr.f32.mxu0 0.0
      %v2429 = vand.u32 %v477, 4294901760
      %2430 = vmatmul.mubr.f32.gmra.mrb[0].mxu0 %v2429
      %v2431 = vpop.f32.mrb[0].mxu0
      %v2432 = vadd.f32 %v1251, %v2431
      %v2433 = vpop.f32.mrb[0].mxu0
      %2434 = vmatprep.mubr.f32.mxu0 0.0
      %v2435 = vand.u32 %v480, 4294901760
      %2436 = vmatmul.mubr.f32.gmra.mrb[0].mxu0 %v2435
      %v2437 = vpop.f32.mrb[0].mxu0
      %v2438 = vadd.f32 %v1261, %v2437
      %v2439 = vpop.f32.mrb[0].mxu0
      %2440 = vmatprep.mubr.f32.mxu0 0.0
      %v2441 = vand.u32 %v483, 4294901760
      %2442 = vmatmul.mubr.f32.gmra.mrb[0].mxu0 %v2441
      %v2443 = vpop.f32.mrb[0].mxu0
      %v2444 = vadd.f32 %v1271, %v2443
      %v2445 = vpop.f32.mrb[0].mxu0
      %2446 = vmatprep.mubr.f32.mxu0 0.0
      %v2447 = vand.u32 %v486, 4294901760
      %2448 = vmatmul.mubr.f32.gmra.mrb[0].mxu0 %v2447
      %v2449 = vpop.f32.mrb[0].mxu0
      %v2450 = vadd.f32 %v1281, %v2449
      %v2451 = vpop.f32.mrb[0].mxu0
      %2452 = vmatprep.mubr.f32.mxu0 0.0
      %v2453 = vand.u32 %v489, 4294901760
      %2454 = vmatmul.mubr.f32.gmra.mrb[0].mxu0 %v2453
      %v2455 = vpop.f32.mrb[0].mxu0
      %v2456 = vadd.f32 %v1291, %v2455
      %v2457 = vpop.f32.mrb[0].mxu0
      %2458 = vmatprep.mubr.f32.mxu0 0.0
      %v2459 = vand.u32 %v492, 4294901760
      %2460 = vmatmul.mubr.f32.gmra.mrb[0].mxu0 %v2459
      %v2461 = vpop.f32.mrb[0].mxu0
      %v2462 = vadd.f32 %v1301, %v2461
      %v2463 = vpop.f32.mrb[0].mxu0
      %2464 = vmatprep.mubr.f32.mxu0 0.0
      %v2465 = vand.u32 %v495, 4294901760
      %2466 = vmatmul.mubr.f32.gmra.mrb[0].mxu0 %v2465
      %v2467 = vpop.f32.mrb[0].mxu0
      %v2468 = vadd.f32 %v1311, %v2467
      %v2469 = vpop.f32.mrb[0].mxu0
      %2470 = vmatprep.mubr.f32.mxu0 0.0
      %v2471 = vand.u32 %v498, 4294901760
      %2472 = vmatmul.mubr.f32.gmra.mrb[0].mxu0 %v2471
      %v2473 = vpop.f32.mrb[0].mxu0
      %v2474 = vadd.f32 %v1321, %v2473
      %v2475 = vpop.f32.mrb[0].mxu0
      %2476 = vmatprep.mubr.f32.mxu0 0.0
      %v2477 = vand.u32 %v501, 4294901760
      %2478 = vmatmul.mubr.f32.gmra.mrb[0].mxu0 %v2477
      %v2479 = vpop.f32.mrb[0].mxu0
      %v2480 = vadd.f32 %v1331, %v2479
      %v2481 = vpop.f32.mrb[0].mxu0
      %2482 = vmatprep.mubr.f32.mxu0 0.0
      %v2483 = vand.u32 %v504, 4294901760
      %2484 = vmatmul.mubr.f32.gmra.mrb[0].mxu0 %v2483
      %v2485 = vpop.f32.mrb[0].mxu0
      %v2486 = vadd.f32 %v1341, %v2485
      %v2487 = vpop.f32.mrb[0].mxu0
      %2488 = vmatprep.mubr.f32.mxu0 0.0
      %v2489 = vand.u32 %v507, 4294901760
      %2490 = vmatmul.mubr.f32.gmra.mrb[0].mxu0 %v2489
      %v2491 = vpop.f32.mrb[0].mxu0
      %v2492 = vadd.f32 %v1351, %v2491
      %v2493 = vpop.f32.mrb[0].mxu0
      %2494 = vmatprep.mubr.f32.mxu0 0.0
      %v2495 = vand.u32 %v510, 4294901760
      %2496 = vmatmul.mubr.f32.gmra.mrb[0].mxu0 %v2495
      %v2497 = vpop.f32.mrb[0].mxu0
      %v2498 = vadd.f32 %v1361, %v2497
      %v2499 = vpop.f32.mrb[0].mxu0
      %2500 = vmatprep.mubr.f32.mxu0 0.0
      %v2501 = vand.u32 %v513, 4294901760
      %2502 = vmatmul.mubr.f32.gmra.mrb[0].mxu0 %v2501
      %v2503 = vpop.f32.mrb[0].mxu0
      %v2504 = vadd.f32 %v1371, %v2503
      %v2505 = vpop.f32.mrb[0].mxu0
      %2506 = vmatprep.mubr.f32.mxu0 0.0
      %v2507 = vand.u32 %v516, 4294901760
      %2508 = vmatmul.mubr.f32.gmra.mrb[0].mxu0 %v2507
      %v2509 = vpop.f32.mrb[0].mxu0
      %v2510 = vadd.f32 %v1381, %v2509
      %v2511 = vpop.f32.mrb[0].mxu0
      %2512 = vmatprep.mubr.f32.mxu0 0.0
      %v2513 = vand.u32 %v519, 4294901760
      %2514 = vmatmul.mubr.f32.gmra.mrb[0].mxu0 %v2513
      %v2515 = vpop.f32.mrb[0].mxu0
      %v2516 = vadd.f32 %v1391, %v2515
      %v2517 = vpop.f32.mrb[0].mxu0
      %2518 = vmatprep.mubr.f32.mxu0 0.0
      %v2519 = vand.u32 %v522, 4294901760
      %2520 = vmatmul.mubr.f32.gmra.mrb[0].mxu0 %v2519
      %v2521 = vpop.f32.mrb[0].mxu0
      %v2522 = vadd.f32 %v1401, %v2521
      %v2523 = vpop.f32.mrb[0].mxu0
      %2524 = vmatprep.mubr.f32.mxu0 0.0
      %v2525 = vand.u32 %v525, 4294901760
      %2526 = vmatmul.mubr.f32.gmra.mrb[0].mxu0 %v2525
      %v2527 = vpop.f32.mrb[0].mxu0
      %v2528 = vadd.f32 %v1411, %v2527
      %v2529 = vpop.f32.mrb[0].mxu0
      %2530 = vmatprep.mubr.f32.mxu0 0.0
      %v2531 = vand.u32 %v528, 4294901760
      %2532 = vmatmul.mubr.f32.gmra.mrb[0].mxu0 %v2531
      %v2533 = vpop.f32.mrb[0].mxu0
      %v2534 = vadd.f32 %v1421, %v2533
      %v2535 = vpop.f32.mrb[0].mxu0
      %2536 = vmatprep.mubr.f32.mxu0 0.0
      %v2537 = vand.u32 %v531, 4294901760
      %2538 = vmatmul.mubr.f32.gmra.mrb[0].mxu0 %v2537
      %v2539 = vpop.f32.mrb[0].mxu0
      %v2540 = vadd.f32 %v1431, %v2539
      %v2541 = vpop.f32.mrb[0].mxu0
      %2542 = vmatprep.mubr.f32.mxu0 0.0
      %v2543 = vand.u32 %v534, 4294901760
      %2544 = vmatmul.mubr.f32.gmra.mrb[0].mxu0 %v2543
      %v2545 = vpop.f32.mrb[0].mxu0
      %v2546 = vadd.f32 %v1441, %v2545
      %v2547 = vpop.f32.mrb[0].mxu0
      %2548 = vmatprep.mubr.f32.mxu0 0.0
      %v2549 = vand.u32 %v537, 4294901760
      %2550 = vmatmul.mubr.f32.gmra.mrb[0].mxu0 %v2549
      %v2551 = vpop.f32.mrb[0].mxu0
      %v2552 = vadd.f32 %v1451, %v2551
      %v2553 = vpop.f32.mrb[0].mxu0
      %2554 = vmatprep.mubr.f32.mxu0 0.0
      %v2555 = vand.u32 %v540, 4294901760
      %2556 = vmatmul.mubr.f32.gmra.mrb[0].mxu0 %v2555
      %v2557 = vpop.f32.mrb[0].mxu0
      %v2558 = vadd.f32 %v1461, %v2557
      %v2559 = vpop.f32.mrb[0].mxu0
      %2560 = vmatprep.mubr.f32.mxu0 0.0
      %v2561 = vand.u32 %v543, 4294901760
      %2562 = vmatmul.mubr.f32.gmra.mrb[0].mxu0 %v2561
      %v2563 = vpop.f32.mrb[0].mxu0
      %v2564 = vadd.f32 %v1471, %v2563
      %v2565 = vpop.f32.mrb[0].mxu0
      %2566 = vmatprep.mubr.f32.mxu0 0.0
      %v2567 = vand.u32 %v546, 4294901760
      %2568 = vmatmul.mubr.f32.gmra.mrb[0].mxu0 %v2567
      %v2569 = vpop.f32.mrb[0].mxu0
      %v2570 = vadd.f32 %v1481, %v2569
      %v2571 = vpop.f32.mrb[0].mxu0
      %2572 = vmatprep.mubr.f32.mxu0 0.0
      %v2573 = vand.u32 %v549, 4294901760
      %2574 = vmatmul.mubr.f32.gmra.mrb[0].mxu0 %v2573
      %v2575 = vpop.f32.mrb[0].mxu0
      %v2576 = vadd.f32 %v1491, %v2575
      %v2577 = vpop.f32.mrb[0].mxu0
      %2578 = vmatprep.mubr.f32.mxu0 0.0
      %v2579 = vand.u32 %v552, 4294901760
      %2580 = vmatmul.mubr.f32.gmra.mrb[0].mxu0 %v2579
      %v2581 = vpop.f32.mrb[0].mxu0
      %v2582 = vadd.f32 %v1501, %v2581
      %v2583 = vpop.f32.mrb[0].mxu0
      %2584 = vmatprep.mubr.f32.mxu0 0.0
      %v2585 = vand.u32 %v555, 4294901760
      %2586 = vmatmul.mubr.f32.gmra.mrb[0].mxu0 %v2585
      %v2587 = vpop.f32.mrb[0].mxu0
      %v2588 = vadd.f32 %v1511, %v2587
      %v2589 = vpop.f32.mrb[0].mxu0
      %2590 = vmatprep.mubr.f32.mxu0 0.0
      %v2591 = vand.u32 %v558, 4294901760
      %2592 = vmatmul.mubr.f32.gmra.mrb[0].mxu0 %v2591
      %v2593 = vpop.f32.mrb[0].mxu0
      %v2594 = vadd.f32 %v1521, %v2593
      %v2595 = vpop.f32.mrb[0].mxu0
      %2596 = vmatprep.mubr.f32.mxu0 0.0
      %v2597 = vand.u32 %v561, 4294901760
      %2598 = vmatmul.mubr.f32.gmra.mrb[0].mxu0 %v2597
      %v2599 = vpop.f32.mrb[0].mxu0
      %v2600 = vadd.f32 %v1531, %v2599
      %v2601 = vpop.f32.mrb[0].mxu0
      %2602 = vmatprep.mubr.f32.mxu0 0.0
      %v2603 = vand.u32 %v564, 4294901760
      %2604 = vmatmul.mubr.f32.gmra.mrb[0].mxu0 %v2603
      %v2605 = vpop.f32.mrb[0].mxu0
      %v2606 = vadd.f32 %v1541, %v2605
      %v2607 = vpop.f32.mrb[0].mxu0
      %2608 = vmatprep.mubr.f32.mxu0 0.0
      %v2609 = vand.u32 %v567, 4294901760
      %2610 = vmatmul.mubr.f32.gmra.mrb[0].mxu0 %v2609
      %v2611 = vpop.f32.mrb[0].mxu0
      %v2612 = vadd.f32 %v1551, %v2611
      %v2613 = vpop.f32.mrb[0].mxu0
      %2614 = vmatprep.mubr.f32.mxu0 0.0
      %v2615 = vand.u32 %v570, 4294901760
      %2616 = vmatmul.mubr.f32.gmra.mrb[0].mxu0 %v2615
      %v2617 = vpop.f32.mrb[0].mxu0
      %v2618 = vadd.f32 %v1561, %v2617
      %v2619 = vpop.f32.mrb[0].mxu0
      %2620 = vmatprep.mubr.f32.mxu0 0.0
      %v2621 = vand.u32 %v573, 4294901760
      %2622 = vmatmul.mubr.f32.gmra.mrb[0].mxu0 %v2621
      %v2623 = vpop.f32.mrb[0].mxu0
      %v2624 = vadd.f32 %v1571, %v2623
      %v2625 = vpop.f32.mrb[0].mxu0
      %2626 = vmatprep.mubr.f32.mxu0 0.0
      %v2627 = vand.u32 %v576, 4294901760
      %2628 = vmatmul.mubr.f32.gmra.mrb[0].mxu0 %v2627
      %v2629 = vpop.f32.mrb[0].mxu0
      %v2630 = vadd.f32 %v1581, %v2629
      %v2631 = vpop.f32.mrb[0].mxu0
      %2632 = vmatprep.mubr.f32.mxu0 0.0
      %v2633 = vand.u32 %v579, 4294901760
      %2634 = vmatmul.mubr.f32.gmra.mrb[0].mxu0 %v2633
      %v2635 = vpop.f32.mrb[0].mxu0
      %v2636 = vadd.f32 %v1591, %v2635
      %v2637 = vpop.f32.mrb[0].mxu0
      %2638 = vmatprep.mubr.f32.mxu0 0.0
      %v2639 = vand.u32 %v582, 4294901760
      %2640 = vmatmul.mubr.f32.gmra.mrb[0].mxu0 %v2639
      %v2641 = vpop.f32.mrb[0].mxu0
      %v2642 = vadd.f32 %v1601, %v2641
      %v2643 = vpop.f32.mrb[0].mxu0
      %2644 = vmatprep.mubr.f32.mxu0 0.0
      %v2645 = vand.u32 %v585, 4294901760
      %2646 = vmatmul.mubr.f32.gmra.mrb[0].mxu0 %v2645
      %v2647 = vpop.f32.mrb[0].mxu0
      %v2648 = vadd.f32 %v1611, %v2647
      %v2649 = vpop.f32.mrb[0].mxu0
      %2650 = vmatprep.mubr.f32.mxu0 0.0
      %v2651 = vand.u32 %v588, 4294901760
      %2652 = vmatmul.mubr.f32.gmra.mrb[0].mxu0 %v2651
      %v2653 = vpop.f32.mrb[0].mxu0
      %v2654 = vadd.f32 %v1621, %v2653
      %v2655 = vpop.f32.mrb[0].mxu0
      %2656 = vmatprep.mubr.f32.mxu0 0.0
      %v2657 = vand.u32 %v591, 4294901760
      %2658 = vmatmul.mubr.f32.gmra.mrb[0].mxu0 %v2657
      %v2659 = vpop.f32.mrb[0].mxu0
      %v2660 = vadd.f32 %v1631, %v2659
      %v2661 = vpop.f32.mrb[0].mxu0
      %2662 = vmatprep.mubr.f32.mxu0 0.0
      %v2663 = vand.u32 %v594, 4294901760
      %2664 = vmatmul.mubr.f32.gmra.mrb[0].mxu0 %v2663
      %v2665 = vpop.f32.mrb[0].mxu0
      %v2666 = vadd.f32 %v1641, %v2665
      %v2667 = vpop.f32.mrb[0].mxu0
      %2668 = vmatprep.mubr.f32.mxu0 0.0
      %v2669 = vand.u32 %v597, 4294901760
      %2670 = vmatmul.mubr.f32.gmra.mrb[0].mxu0 %v2669
      %v2671 = vpop.f32.mrb[0].mxu0
      %v2672 = vadd.f32 %v1651, %v2671
      %v2673 = vpop.f32.mrb[0].mxu0
      %2674 = vmatprep.mubr.f32.mxu0 0.0
      %v2675 = vand.u32 %v600, 4294901760
      %2676 = vmatmul.mubr.f32.gmra.mrb[0].mxu0 %v2675
      %v2677 = vpop.f32.mrb[0].mxu0
      %v2678 = vadd.f32 %v1661, %v2677
      %v2679 = vpop.f32.mrb[0].mxu0
      %2680 = vmatprep.mubr.f32.mxu0 0.0
      %v2681 = vand.u32 %v603, 4294901760
      %2682 = vmatmul.mubr.f32.gmra.mrb[0].mxu0 %v2681
      %v2683 = vpop.f32.mrb[0].mxu0
      %v2684 = vadd.f32 %v1671, %v2683
      %v2685 = vpop.f32.mrb[0].mxu0
      %2686 = vmatprep.mubr.f32.mxu0 0.0
      %v2687 = vand.u32 %v606, 4294901760
      %2688 = vmatmul.mubr.f32.gmra.mrb[0].mxu0 %v2687
      %v2689 = vpop.f32.mrb[0].mxu0
      %v2690 = vadd.f32 %v1681, %v2689
      %v2691 = vpop.f32.mrb[0].mxu0
      %2692 = vmatprep.mubr.f32.mxu0 0.0
      %v2693 = vand.u32 %v609, 4294901760
      %2694 = vmatmul.mubr.f32.gmra.mrb[0].mxu0 %v2693
      %v2695 = vpop.f32.mrb[0].mxu0
      %v2696 = vadd.f32 %v1691, %v2695
      %v2697 = vpop.f32.mrb[0].mxu0
      %2698 = vmatprep.mubr.f32.mxu0 0.0
      %v2699 = vand.u32 %v612, 4294901760
      %2700 = vmatmul.mubr.f32.gmra.mrb[0].mxu0 %v2699
      %v2701 = vpop.f32.mrb[0].mxu0
      %v2702 = vadd.f32 %v1701, %v2701
      %v2703 = vpop.f32.mrb[0].mxu0
      %2704 = vmatprep.mubr.f32.mxu0 0.0
      %v2705 = vand.u32 %v615, 4294901760
      %2706 = vmatmul.mubr.f32.gmra.mrb[0].mxu0 %v2705
      %v2707 = vpop.f32.mrb[0].mxu0
      %v2708 = vadd.f32 %v1711, %v2707
      %v2709 = vpop.f32.mrb[0].mxu0
      %2710 = vmatprep.mubr.f32.mxu0 0.0
      %v2711 = vand.u32 %v618, 4294901760
      %2712 = vmatmul.mubr.f32.gmra.mrb[0].mxu0 %v2711
      %v2713 = vpop.f32.mrb[0].mxu0
      %v2714 = vadd.f32 %v1721, %v2713
      %v2715 = vpop.f32.mrb[0].mxu0
      %2716 = vmatprep.mubr.f32.mxu0 0.0
      %v2717 = vand.u32 %v621, 4294901760
      %2718 = vmatmul.mubr.f32.gmra.mrb[0].mxu0 %v2717
      %v2719 = vpop.f32.mrb[0].mxu0
      %v2720 = vadd.f32 %v1731, %v2719
      %v2721 = vpop.f32.mrb[0].mxu0
      %2722 = vmatprep.mubr.f32.mxu0 0.0
      %v2723 = vand.u32 %v624, 4294901760
      %2724 = vmatmul.mubr.f32.gmra.mrb[0].mxu0 %v2723
      %v2725 = vpop.f32.mrb[0].mxu0
      %v2726 = vadd.f32 %v1741, %v2725
      %v2727 = vpop.f32.mrb[0].mxu0
      %2728 = vmatprep.mubr.f32.mxu0 0.0
      %v2729 = vand.u32 %v627, 4294901760
      %2730 = vmatmul.mubr.f32.gmra.mrb[0].mxu0 %v2729
      %v2731 = vpop.f32.mrb[0].mxu0
      %v2732 = vadd.f32 %v1751, %v2731
      %v2733 = vpop.f32.mrb[0].mxu0
      %2734 = vmatprep.mubr.f32.mxu0 0.0
      %v2735 = vand.u32 %v630, 4294901760
      %2736 = vmatmul.mubr.f32.gmra.mrb[0].mxu0 %v2735
      %v2737 = vpop.f32.mrb[0].mxu0
      %v2738 = vadd.f32 %v1761, %v2737
      %v2739 = vpop.f32.mrb[0].mxu0
      %2740 = vmatprep.mubr.f32.mxu0 0.0
      %v2741 = vand.u32 %v633, 4294901760
      %2742 = vmatmul.mubr.f32.gmra.mrb[0].mxu0 %v2741
      %v2743 = vpop.f32.mrb[0].mxu0
      %v2744 = vadd.f32 %v1771, %v2743
      %v2745 = vpop.f32.mrb[0].mxu0
      %2746 = vmatprep.mubr.f32.mxu0 0.0
      %v2747 = vand.u32 %v636, 4294901760
      %2748 = vmatmul.mubr.f32.gmra.mrb[0].mxu0 %v2747
      %v2749 = vpop.f32.mrb[0].mxu0
      %v2750 = vadd.f32 %v1781, %v2749
      %v2751 = vpop.f32.mrb[0].mxu0
      %2752 = vmatprep.mubr.f32.mxu0 0.0
      %v2753 = vand.u32 %v639, 4294901760
      %2754 = vmatmul.mubr.f32.gmra.mrb[0].mxu0 %v2753
      %v2755 = vpop.f32.mrb[0].mxu0
      %v2756 = vadd.f32 %v1791, %v2755
      %v2757 = vpop.f32.mrb[0].mxu0
      %2758 = vmatprep.mubr.f32.mxu0 0.0
      %v2759 = vand.u32 %v642, 4294901760
      %2760 = vmatmul.mubr.f32.gmra.mrb[0].mxu0 %v2759
      %v2761 = vpop.f32.mrb[0].mxu0
      %v2762 = vadd.f32 %v1801, %v2761
      %v2763 = vpop.f32.mrb[0].mxu0
      %2764 = vmatprep.mubr.f32.mxu0 0.0
      %v2765 = vand.u32 %v645, 4294901760
      %2766 = vmatmul.mubr.f32.gmra.mrb[0].mxu0 %v2765
      %v2767 = vpop.f32.mrb[0].mxu0
      %v2768 = vadd.f32 %v1811, %v2767
      %v2769 = vpop.f32.mrb[0].mxu0
      %2770 = vmatprep.mubr.f32.mxu0 0.0
      %v2771 = vand.u32 %v648, 4294901760
      %2772 = vmatmul.mubr.f32.gmra.mrb[0].mxu0 %v2771
      %v2773 = vpop.f32.mrb[0].mxu0
      %v2774 = vadd.f32 %v1821, %v2773
      %v2775 = vpop.f32.mrb[0].mxu0
      %2776 = vmatprep.mubr.f32.mxu0 0.0
      %v2777 = vand.u32 %v651, 4294901760
      %2778 = vmatmul.mubr.f32.gmra.mrb[0].mxu0 %v2777
      %v2779 = vpop.f32.mrb[0].mxu0
      %v2780 = vadd.f32 %v1831, %v2779
      %v2781 = vpop.f32.mrb[0].mxu0
      %2782 = vmatprep.mubr.f32.mxu0 0.0
      %v2783 = vand.u32 %v654, 4294901760
      %2784 = vmatmul.mubr.f32.gmra.mrb[0].mxu0 %v2783
      %v2785 = vpop.f32.mrb[0].mxu0
      %v2786 = vadd.f32 %v1841, %v2785
      %v2787 = vpop.f32.mrb[0].mxu0
      %2788 = vmatprep.mubr.f32.mxu0 0.0
      %v2789 = vand.u32 %v657, 4294901760
      %2790 = vmatmul.mubr.f32.gmra.mrb[0].mxu0 %v2789
      %v2791 = vpop.f32.mrb[0].mxu0
      %v2792 = vadd.f32 %v1851, %v2791
      %v2793 = vpop.f32.mrb[0].mxu0
      %2794 = vmatprep.mubr.f32.mxu0 0.0
      %v2795 = vand.u32 %v660, 4294901760
      %2796 = vmatmul.mubr.f32.gmra.mrb[0].mxu0 %v2795
      %v2797 = vpop.f32.mrb[0].mxu0
      %v2798 = vadd.f32 %v1861, %v2797
      %v2799 = vpop.f32.mrb[0].mxu0
      %2800 = vmatprep.mubr.f32.mxu0 0.0
      %v2801 = vand.u32 %v663, 4294901760
      %2802 = vmatmul.mubr.f32.gmra.mrb[0].mxu0 %v2801
      %v2803 = vpop.f32.mrb[0].mxu0
      %v2804 = vadd.f32 %v1871, %v2803
      %v2805 = vpop.f32.mrb[0].mxu0
      %2806 = vmatprep.mubr.f32.mxu0 0.0
      %v2807 = vand.u32 %v666, 4294901760
      %2808 = vmatmul.mubr.f32.gmra.mrb[0].mxu0 %v2807
      %v2809 = vpop.f32.mrb[0].mxu0
      %v2810 = vadd.f32 %v1881, %v2809
      %v2811 = vpop.f32.mrb[0].mxu0
      %2812 = vmatprep.mubr.f32.mxu0 0.0
      %v2813 = vand.u32 %v669, 4294901760
      %2814 = vmatmul.mubr.f32.gmra.mrb[0].mxu0 %v2813
      %v2815 = vpop.f32.mrb[0].mxu0
      %v2816 = vadd.f32 %v1891, %v2815
      %v2817 = vpop.f32.mrb[0].mxu0
      %2818 = vmatprep.mubr.f32.mxu0 0.0
      %v2819 = vand.u32 %v672, 4294901760
      %2820 = vmatmul.mubr.f32.gmra.mrb[0].mxu0 %v2819
      %v2821 = vpop.f32.mrb[0].mxu0
      %v2822 = vadd.f32 %v1901, %v2821
      %v2823 = vpop.f32.mrb[0].mxu0
      %2824 = vmatprep.mubr.f32.mxu0 0.0
      %v2825 = vand.u32 %v675, 4294901760
      %2826 = vmatmul.mubr.f32.gmra.mrb[0].mxu0 %v2825
      %v2827 = vpop.f32.mrb[0].mxu0
      %v2828 = vadd.f32 %v1911, %v2827
      %v2829 = vpop.f32.mrb[0].mxu0
      %2830 = vmatprep.mubr.f32.mxu0 0.0
      %v2831 = vand.u32 %v678, 4294901760
      %2832 = vmatmul.mubr.f32.gmra.mrb[0].mxu0 %v2831
      %v2833 = vpop.f32.mrb[0].mxu0
      %v2834 = vadd.f32 %v1921, %v2833
      %v2835 = vpop.f32.mrb[0].mxu0
      %2836 = vmatprep.mubr.f32.mxu0 0.0
      %v2837 = vand.u32 %v681, 4294901760
      %2838 = vmatmul.mubr.f32.gmra.mrb[0].mxu0 %v2837
      %v2839 = vpop.f32.mrb[0].mxu0
      %v2840 = vadd.f32 %v1931, %v2839
      %v2841 = vpop.f32.mrb[0].mxu0
      %2842 = vmatprep.mubr.f32.mxu0 0.0
      %v2843 = vand.u32 %v684, 4294901760
      %2844 = vmatmul.mubr.f32.gmra.mrb[0].mxu0 %v2843
      %v2845 = vpop.f32.mrb[0].mxu0
      %v2846 = vadd.f32 %v1941, %v2845
      %v2847 = vpop.f32.mrb[0].mxu0
      %2848 = vmatprep.mubr.f32.mxu0 0.0
      %v2849 = vand.u32 %v687, 4294901760
      %2850 = vmatmul.mubr.f32.gmra.mrb[0].mxu0 %v2849
      %v2851 = vpop.f32.mrb[0].mxu0
      %v2852 = vadd.f32 %v1951, %v2851
      %v2853 = vpop.f32.mrb[0].mxu0
      %2854 = vmatprep.mubr.f32.mxu0 0.0
      %v2855 = vand.u32 %v690, 4294901760
      %2856 = vmatmul.mubr.f32.gmra.mrb[0].mxu0 %v2855
      %v2857 = vpop.f32.mrb[0].mxu0
      %v2858 = vadd.f32 %v1961, %v2857
      %v2859 = vpop.f32.mrb[0].mxu0
      %2860 = vmatprep.mubr.f32.mxu0 0.0
      %v2861 = vand.u32 %v693, 4294901760
      %2862 = vmatmul.mubr.f32.gmra.mrb[0].mxu0 %v2861
      %v2863 = vpop.f32.mrb[0].mxu0
      %v2864 = vadd.f32 %v1971, %v2863
      %v2865 = vpop.f32.mrb[0].mxu0
      %2866 = vmatprep.mubr.f32.mxu0 0.0
      %v2867 = vand.u32 %v696, 4294901760
      %2868 = vmatmul.mubr.f32.gmra.mrb[0].mxu0 %v2867
      %v2869 = vpop.f32.mrb[0].mxu0
      %v2870 = vadd.f32 %v1981, %v2869
      %v2871 = vpop.f32.mrb[0].mxu0
      %2872 = vmatprep.mubr.f32.mxu0 0.0
      %v2873 = vand.u32 %v699, 4294901760
      %2874 = vmatmul.mubr.f32.gmra.mrb[0].mxu0 %v2873
      %v2875 = vpop.f32.mrb[0].mxu0
      %v2876 = vadd.f32 %v1991, %v2875
      %v2877 = vpop.f32.mrb[0].mxu0
      %2878 = vmatprep.mubr.f32.mxu0 0.0
      %v2879 = vand.u32 %v702, 4294901760
      %2880 = vmatmul.mubr.f32.gmra.mrb[0].mxu0 %v2879
      %v2881 = vpop.f32.mrb[0].mxu0
      %v2882 = vadd.f32 %v2001, %v2881
      %v2883 = vpop.f32.mrb[0].mxu0
      %2884 = vmatprep.mubr.f32.mxu0 0.0
      %v2885 = vand.u32 %v705, 4294901760
      %2886 = vmatmul.mubr.f32.gmra.mrb[0].mxu0 %v2885
      %v2887 = vpop.f32.mrb[0].mxu0
      %v2888 = vadd.f32 %v2011, %v2887
      %v2889 = vpop.f32.mrb[0].mxu0
      %2890 = vmatprep.mubr.f32.mxu0 0.0
      %v2891 = vand.u32 %v708, 4294901760
      %2892 = vmatmul.mubr.f32.gmra.mrb[0].mxu0 %v2891
      %v2893 = vpop.f32.mrb[0].mxu0
      %v2894 = vadd.f32 %v2021, %v2893
      %v2895 = vpop.f32.mrb[0].mxu0
      %2896 = vmatprep.mubr.f32.mxu0 0.0
      %v2897 = vand.u32 %v711, 4294901760
      %2898 = vmatmul.mubr.f32.gmra.mrb[0].mxu0 %v2897
      %v2899 = vpop.f32.mrb[0].mxu0
      %v2900 = vadd.f32 %v2031, %v2899
      %v2901 = vpop.f32.mrb[0].mxu0
      %2902 = vmatprep.mubr.f32.mxu0 0.0
      %v2903 = vand.u32 %v714, 4294901760
      %2904 = vmatmul.mubr.f32.gmra.mrb[0].mxu0 %v2903
      %v2905 = vpop.f32.mrb[0].mxu0
      %v2906 = vadd.f32 %v2041, %v2905
      %v2907 = vpop.f32.mrb[0].mxu0
      %2908 = vmatprep.mubr.f32.mxu0 0.0
      %v2909 = vand.u32 %v717, 4294901760
      %2910 = vmatmul.mubr.f32.gmra.mrb[0].mxu0 %v2909
      %v2911 = vpop.f32.mrb[0].mxu0
      %v2912 = vadd.f32 %v2051, %v2911
      %v2913 = vpop.f32.mrb[0].mxu0
      %2914 = vmatprep.mubr.f32.mxu0 0.0
      %v2915 = vand.u32 %v720, 4294901760
      %2916 = vmatmul.mubr.f32.gmra.mrb[0].mxu0 %v2915
      %v2917 = vpop.f32.mrb[0].mxu0
      %v2918 = vadd.f32 %v2061, %v2917
      %v2919 = vpop.f32.mrb[0].mxu0
      %2920 = vmatprep.mubr.f32.mxu0 0.0
      %v2921 = vand.u32 %v723, 4294901760
      %2922 = vmatmul.mubr.f32.gmra.mrb[0].mxu0 %v2921
      %v2923 = vpop.f32.mrb[0].mxu0
      %v2924 = vadd.f32 %v2071, %v2923
      %v2925 = vpop.f32.mrb[0].mxu0
      %2926 = vdwg.mxu0
      %2927 = vmatprep.subr.mxu0 0.0
      %v2928 = vand.u32 %v329, 4294901760
      %v2929 = vsub.f32 %v329, %v2928
      %2930 = vmatpush1.msra.mxu0 %v2929
      %2931 = vmatprep.subr.mxu0 0.0
      %v2932 = vand.u32 %v330, 4294901760
      %v2933 = vsub.f32 %v330, %v2932
      %2934 = vmatpush1.msra.mxu0 %v2933
      %2935 = vmatprep.subr.mxu0 0.0
      %v2936 = vand.u32 %v331, 4294901760
      %v2937 = vsub.f32 %v331, %v2936
      %2938 = vmatpush1.msra.mxu0 %v2937
      %2939 = vmatprep.subr.mxu0 0.0
      %v2940 = vand.u32 %v332, 4294901760
      %v2941 = vsub.f32 %v332, %v2940
      %2942 = vmatpush1.msra.mxu0 %v2941
      %2943 = vmatprep.subr.mxu0 0.0
      %2944 = vmatpush1.msra.mxu0 0.0
      %2945 = vmatprep.subr.mxu0 0.0
      %2946 = vmatpush1.msra.mxu0 0.0
      %2947 = vmatprep.subr.mxu0 0.0
      %2948 = vmatpush1.msra.mxu0 0.0
      %2949 = vmatprep.subr.mxu0 0.0
      %2950 = vmatpush1.msra.mxu0 0.0
      %2951 = vmatprep.subr.mxu0 0.0
      %2952 = vmatpush1.msra.mxu0 0.0
      %2953 = vmatprep.subr.mxu0 0.0
      %2954 = vmatpush1.msra.mxu0 0.0
      %2955 = vmatprep.subr.mxu0 0.0
      %2956 = vmatpush1.msra.mxu0 0.0
      %2957 = vmatprep.subr.mxu0 0.0
      %2958 = vmatpush1.msra.mxu0 0.0
      %2959 = vmatprep.subr.mxu0 0.0
      %2960 = vmatpush1.msra.mxu0 0.0
      %2961 = vmatprep.subr.mxu0 0.0
      %2962 = vmatpush1.msra.mxu0 0.0
      %2963 = vmatprep.subr.mxu0 0.0
      %2964 = vmatpush1.msra.mxu0 0.0
      %2965 = vmatprep.subr.mxu0 0.0
      %2966 = vmatpush1.msra.mxu0 0.0
      %2967 = vmatprep.subr.mxu0 0.0
      %2968 = vmatpush1.msra.mxu0 0.0
      %2969 = vmatprep.subr.mxu0 0.0
      %2970 = vmatpush1.msra.mxu0 0.0
      %2971 = vmatprep.subr.mxu0 0.0
      %2972 = vmatpush1.msra.mxu0 0.0
      %2973 = vmatprep.subr.mxu0 0.0
      %2974 = vmatpush1.msra.mxu0 0.0
      %2975 = vmatprep.subr.mxu0 0.0
      %2976 = vmatpush1.msra.mxu0 0.0
      %2977 = vmatprep.subr.mxu0 0.0
      %2978 = vmatpush1.msra.mxu0 0.0
      %2979 = vmatprep.subr.mxu0 0.0
      %2980 = vmatpush1.msra.mxu0 0.0
      %2981 = vmatprep.subr.mxu0 0.0
      %2982 = vmatpush1.msra.mxu0 0.0
      %2983 = vmatprep.subr.mxu0 0.0
      %2984 = vmatpush1.msra.mxu0 0.0
      %2985 = vmatprep.subr.mxu0 0.0
      %2986 = vmatpush1.msra.mxu0 0.0
      %2987 = vmatprep.subr.mxu0 0.0
      %2988 = vmatpush1.msra.mxu0 0.0
      %2989 = vmatprep.subr.mxu0 0.0
      %2990 = vmatpush1.msra.mxu0 0.0
      %2991 = vmatprep.subr.mxu0 0.0
      %2992 = vmatpush1.msra.mxu0 0.0
      %2993 = vmatprep.subr.mxu0 0.0
      %2994 = vmatpush1.msra.mxu0 0.0
      %2995 = vmatprep.subr.mxu0 0.0
      %2996 = vmatpush1.msra.mxu0 0.0
      %2997 = vmatprep.subr.mxu0 0.0
      %2998 = vmatpush1.msra.mxu0 0.0
      %2999 = vmatprep.mubr.f32.mxu0 0.0
      %v3000 = vand.u32 %v342, 4294901760
      %v3001 = vsub.f32 %v342, %v3000
      %3002 = vmatmul.mubr.f32.gmra.mrb[0].mxu0 %v3001
      %v3003 = vpop.f32.mrb[0].mxu0
      %v3004 = vadd.f32 %v2162, %v3003
      %v3005 = vpop.f32.mrb[0].mxu0
      %3006 = vmatprep.mubr.f32.mxu0 0.0
      %v3007 = vand.u32 %v345, 4294901760
      %v3008 = vsub.f32 %v345, %v3007
      %3009 = vmatmul.mubr.f32.gmra.mrb[0].mxu0 %v3008
      %v3010 = vpop.f32.mrb[0].mxu0
      %v3011 = vadd.f32 %v2168, %v3010
      %v3012 = vpop.f32.mrb[0].mxu0
      %3013 = vmatprep.mubr.f32.mxu0 0.0
      %v3014 = vand.u32 %v348, 4294901760
      %v3015 = vsub.f32 %v348, %v3014
      %3016 = vmatmul.mubr.f32.gmra.mrb[0].mxu0 %v3015
      %v3017 = vpop.f32.mrb[0].mxu0
      %v3018 = vadd.f32 %v2174, %v3017
      %v3019 = vpop.f32.mrb[0].mxu0
      %3020 = vmatprep.mubr.f32.mxu0 0.0
      %v3021 = vand.u32 %v351, 4294901760
      %v3022 = vsub.f32 %v351, %v3021
      %3023 = vmatmul.mubr.f32.gmra.mrb[0].mxu0 %v3022
      %v3024 = vpop.f32.mrb[0].mxu0
      %v3025 = vadd.f32 %v2180, %v3024
      %v3026 = vpop.f32.mrb[0].mxu0
      %3027 = vmatprep.mubr.f32.mxu0 0.0
      %v3028 = vand.u32 %v354, 4294901760
      %v3029 = vsub.f32 %v354, %v3028
      %3030 = vmatmul.mubr.f32.gmra.mrb[0].mxu0 %v3029
      %v3031 = vpop.f32.mrb[0].mxu0
      %v3032 = vadd.f32 %v2186, %v3031
      %v3033 = vpop.f32.mrb[0].mxu0
      %3034 = vmatprep.mubr.f32.mxu0 0.0
      %v3035 = vand.u32 %v357, 4294901760
      %v3036 = vsub.f32 %v357, %v3035
      %3037 = vmatmul.mubr.f32.gmra.mrb[0].mxu0 %v3036
      %v3038 = vpop.f32.mrb[0].mxu0
      %v3039 = vadd.f32 %v2192, %v3038
      %v3040 = vpop.f32.mrb[0].mxu0
      %3041 = vmatprep.mubr.f32.mxu0 0.0
      %v3042 = vand.u32 %v360, 4294901760
      %v3043 = vsub.f32 %v360, %v3042
      %3044 = vmatmul.mubr.f32.gmra.mrb[0].mxu0 %v3043
      %v3045 = vpop.f32.mrb[0].mxu0
      %v3046 = vadd.f32 %v2198, %v3045
      %v3047 = vpop.f32.mrb[0].mxu0
      %3048 = vmatprep.mubr.f32.mxu0 0.0
      %v3049 = vand.u32 %v363, 4294901760
      %v3050 = vsub.f32 %v363, %v3049
      %3051 = vmatmul.mubr.f32.gmra.mrb[0].mxu0 %v3050
      %v3052 = vpop.f32.mrb[0].mxu0
      %v3053 = vadd.f32 %v2204, %v3052
      %v3054 = vpop.f32.mrb[0].mxu0
      %3055 = vmatprep.mubr.f32.mxu0 0.0
      %v3056 = vand.u32 %v366, 4294901760
      %v3057 = vsub.f32 %v366, %v3056
      %3058 = vmatmul.mubr.f32.gmra.mrb[0].mxu0 %v3057
      %v3059 = vpop.f32.mrb[0].mxu0
      %v3060 = vadd.f32 %v2210, %v3059
      %v3061 = vpop.f32.mrb[0].mxu0
      %3062 = vmatprep.mubr.f32.mxu0 0.0
      %v3063 = vand.u32 %v369, 4294901760
      %v3064 = vsub.f32 %v369, %v3063
      %3065 = vmatmul.mubr.f32.gmra.mrb[0].mxu0 %v3064
      %v3066 = vpop.f32.mrb[0].mxu0
      %v3067 = vadd.f32 %v2216, %v3066
      %v3068 = vpop.f32.mrb[0].mxu0
      %3069 = vmatprep.mubr.f32.mxu0 0.0
      %v3070 = vand.u32 %v372, 4294901760
      %v3071 = vsub.f32 %v372, %v3070
      %3072 = vmatmul.mubr.f32.gmra.mrb[0].mxu0 %v3071
      %v3073 = vpop.f32.mrb[0].mxu0
      %v3074 = vadd.f32 %v2222, %v3073
      %v3075 = vpop.f32.mrb[0].mxu0
      %3076 = vmatprep.mubr.f32.mxu0 0.0
      %v3077 = vand.u32 %v375, 4294901760
      %v3078 = vsub.f32 %v375, %v3077
      %3079 = vmatmul.mubr.f32.gmra.mrb[0].mxu0 %v3078
      %v3080 = vpop.f32.mrb[0].mxu0
      %v3081 = vadd.f32 %v2228, %v3080
      %v3082 = vpop.f32.mrb[0].mxu0
      %3083 = vmatprep.mubr.f32.mxu0 0.0
      %v3084 = vand.u32 %v378, 4294901760
      %v3085 = vsub.f32 %v378, %v3084
      %3086 = vmatmul.mubr.f32.gmra.mrb[0].mxu0 %v3085
      %v3087 = vpop.f32.mrb[0].mxu0
      %v3088 = vadd.f32 %v2234, %v3087
      %v3089 = vpop.f32.mrb[0].mxu0
      %3090 = vmatprep.mubr.f32.mxu0 0.0
      %v3091 = vand.u32 %v381, 4294901760
      %v3092 = vsub.f32 %v381, %v3091
      %3093 = vmatmul.mubr.f32.gmra.mrb[0].mxu0 %v3092
      %v3094 = vpop.f32.mrb[0].mxu0
      %v3095 = vadd.f32 %v2240, %v3094
      %v3096 = vpop.f32.mrb[0].mxu0
      %3097 = vmatprep.mubr.f32.mxu0 0.0
      %v3098 = vand.u32 %v384, 4294901760
      %v3099 = vsub.f32 %v384, %v3098
      %3100 = vmatmul.mubr.f32.gmra.mrb[0].mxu0 %v3099
      %v3101 = vpop.f32.mrb[0].mxu0
      %v3102 = vadd.f32 %v2246, %v3101
      %v3103 = vpop.f32.mrb[0].mxu0
      %3104 = vmatprep.mubr.f32.mxu0 0.0
      %v3105 = vand.u32 %v387, 4294901760
      %v3106 = vsub.f32 %v387, %v3105
      %3107 = vmatmul.mubr.f32.gmra.mrb[0].mxu0 %v3106
      %v3108 = vpop.f32.mrb[0].mxu0
      %v3109 = vadd.f32 %v2252, %v3108
      %v3110 = vpop.f32.mrb[0].mxu0
      %3111 = vmatprep.mubr.f32.mxu0 0.0
      %v3112 = vand.u32 %v390, 4294901760
      %v3113 = vsub.f32 %v390, %v3112
      %3114 = vmatmul.mubr.f32.gmra.mrb[0].mxu0 %v3113
      %v3115 = vpop.f32.mrb[0].mxu0
      %v3116 = vadd.f32 %v2258, %v3115
      %v3117 = vpop.f32.mrb[0].mxu0
      %3118 = vmatprep.mubr.f32.mxu0 0.0
      %v3119 = vand.u32 %v393, 4294901760
      %v3120 = vsub.f32 %v393, %v3119
      %3121 = vmatmul.mubr.f32.gmra.mrb[0].mxu0 %v3120
      %v3122 = vpop.f32.mrb[0].mxu0
      %v3123 = vadd.f32 %v2264, %v3122
      %v3124 = vpop.f32.mrb[0].mxu0
      %3125 = vmatprep.mubr.f32.mxu0 0.0
      %v3126 = vand.u32 %v396, 4294901760
      %v3127 = vsub.f32 %v396, %v3126
      %3128 = vmatmul.mubr.f32.gmra.mrb[0].mxu0 %v3127
      %v3129 = vpop.f32.mrb[0].mxu0
      %v3130 = vadd.f32 %v2270, %v3129
      %v3131 = vpop.f32.mrb[0].mxu0
      %3132 = vmatprep.mubr.f32.mxu0 0.0
      %v3133 = vand.u32 %v399, 4294901760
      %v3134 = vsub.f32 %v399, %v3133
      %3135 = vmatmul.mubr.f32.gmra.mrb[0].mxu0 %v3134
      %v3136 = vpop.f32.mrb[0].mxu0
      %v3137 = vadd.f32 %v2276, %v3136
      %v3138 = vpop.f32.mrb[0].mxu0
      %3139 = vmatprep.mubr.f32.mxu0 0.0
      %v3140 = vand.u32 %v402, 4294901760
      %v3141 = vsub.f32 %v402, %v3140
      %3142 = vmatmul.mubr.f32.gmra.mrb[0].mxu0 %v3141
      %v3143 = vpop.f32.mrb[0].mxu0
      %v3144 = vadd.f32 %v2282, %v3143
      %v3145 = vpop.f32.mrb[0].mxu0
      %3146 = vmatprep.mubr.f32.mxu0 0.0
      %v3147 = vand.u32 %v405, 4294901760
      %v3148 = vsub.f32 %v405, %v3147
      %3149 = vmatmul.mubr.f32.gmra.mrb[0].mxu0 %v3148
      %v3150 = vpop.f32.mrb[0].mxu0
      %v3151 = vadd.f32 %v2288, %v3150
      %v3152 = vpop.f32.mrb[0].mxu0
      %3153 = vmatprep.mubr.f32.mxu0 0.0
      %v3154 = vand.u32 %v408, 4294901760
      %v3155 = vsub.f32 %v408, %v3154
      %3156 = vmatmul.mubr.f32.gmra.mrb[0].mxu0 %v3155
      %v3157 = vpop.f32.mrb[0].mxu0
      %v3158 = vadd.f32 %v2294, %v3157
      %v3159 = vpop.f32.mrb[0].mxu0
      %3160 = vmatprep.mubr.f32.mxu0 0.0
      %v3161 = vand.u32 %v411, 4294901760
      %v3162 = vsub.f32 %v411, %v3161
      %3163 = vmatmul.mubr.f32.gmra.mrb[0].mxu0 %v3162
      %v3164 = vpop.f32.mrb[0].mxu0
      %v3165 = vadd.f32 %v2300, %v3164
      %v3166 = vpop.f32.mrb[0].mxu0
      %3167 = vmatprep.mubr.f32.mxu0 0.0
      %v3168 = vand.u32 %v414, 4294901760
      %v3169 = vsub.f32 %v414, %v3168
      %3170 = vmatmul.mubr.f32.gmra.mrb[0].mxu0 %v3169
      %v3171 = vpop.f32.mrb[0].mxu0
      %v3172 = vadd.f32 %v2306, %v3171
      %v3173 = vpop.f32.mrb[0].mxu0
      %3174 = vmatprep.mubr.f32.mxu0 0.0
      %v3175 = vand.u32 %v417, 4294901760
      %v3176 = vsub.f32 %v417, %v3175
      %3177 = vmatmul.mubr.f32.gmra.mrb[0].mxu0 %v3176
      %v3178 = vpop.f32.mrb[0].mxu0
      %v3179 = vadd.f32 %v2312, %v3178
      %v3180 = vpop.f32.mrb[0].mxu0
      %3181 = vmatprep.mubr.f32.mxu0 0.0
      %v3182 = vand.u32 %v420, 4294901760
      %v3183 = vsub.f32 %v420, %v3182
      %3184 = vmatmul.mubr.f32.gmra.mrb[0].mxu0 %v3183
      %v3185 = vpop.f32.mrb[0].mxu0
      %v3186 = vadd.f32 %v2318, %v3185
      %v3187 = vpop.f32.mrb[0].mxu0
      %3188 = vmatprep.mubr.f32.mxu0 0.0
      %v3189 = vand.u32 %v423, 4294901760
      %v3190 = vsub.f32 %v423, %v3189
      %3191 = vmatmul.mubr.f32.gmra.mrb[0].mxu0 %v3190
      %v3192 = vpop.f32.mrb[0].mxu0
      %v3193 = vadd.f32 %v2324, %v3192
      %v3194 = vpop.f32.mrb[0].mxu0
      %3195 = vmatprep.mubr.f32.mxu0 0.0
      %v3196 = vand.u32 %v426, 4294901760
      %v3197 = vsub.f32 %v426, %v3196
      %3198 = vmatmul.mubr.f32.gmra.mrb[0].mxu0 %v3197
      %v3199 = vpop.f32.mrb[0].mxu0
      %v3200 = vadd.f32 %v2330, %v3199
      %v3201 = vpop.f32.mrb[0].mxu0
      %3202 = vmatprep.mubr.f32.mxu0 0.0
      %v3203 = vand.u32 %v429, 4294901760
      %v3204 = vsub.f32 %v429, %v3203
      %3205 = vmatmul.mubr.f32.gmra.mrb[0].mxu0 %v3204
      %v3206 = vpop.f32.mrb[0].mxu0
      %v3207 = vadd.f32 %v2336, %v3206
      %v3208 = vpop.f32.mrb[0].mxu0
      %3209 = vmatprep.mubr.f32.mxu0 0.0
      %v3210 = vand.u32 %v432, 4294901760
      %v3211 = vsub.f32 %v432, %v3210
      %3212 = vmatmul.mubr.f32.gmra.mrb[0].mxu0 %v3211
      %v3213 = vpop.f32.mrb[0].mxu0
      %v3214 = vadd.f32 %v2342, %v3213
      %v3215 = vpop.f32.mrb[0].mxu0
      %3216 = vmatprep.mubr.f32.mxu0 0.0
      %v3217 = vand.u32 %v435, 4294901760
      %v3218 = vsub.f32 %v435, %v3217
      %3219 = vmatmul.mubr.f32.gmra.mrb[0].mxu0 %v3218
      %v3220 = vpop.f32.mrb[0].mxu0
      %v3221 = vadd.f32 %v2348, %v3220
      %v3222 = vpop.f32.mrb[0].mxu0
      %3223 = vmatprep.mubr.f32.mxu0 0.0
      %v3224 = vand.u32 %v438, 4294901760
      %v3225 = vsub.f32 %v438, %v3224
      %3226 = vmatmul.mubr.f32.gmra.mrb[0].mxu0 %v3225
      %v3227 = vpop.f32.mrb[0].mxu0
      %v3228 = vadd.f32 %v2354, %v3227
      %v3229 = vpop.f32.mrb[0].mxu0
      %3230 = vmatprep.mubr.f32.mxu0 0.0
      %v3231 = vand.u32 %v441, 4294901760
      %v3232 = vsub.f32 %v441, %v3231
      %3233 = vmatmul.mubr.f32.gmra.mrb[0].mxu0 %v3232
      %v3234 = vpop.f32.mrb[0].mxu0
      %v3235 = vadd.f32 %v2360, %v3234
      %v3236 = vpop.f32.mrb[0].mxu0
      %3237 = vmatprep.mubr.f32.mxu0 0.0
      %v3238 = vand.u32 %v444, 4294901760
      %v3239 = vsub.f32 %v444, %v3238
      %3240 = vmatmul.mubr.f32.gmra.mrb[0].mxu0 %v3239
      %v3241 = vpop.f32.mrb[0].mxu0
      %v3242 = vadd.f32 %v2366, %v3241
      %v3243 = vpop.f32.mrb[0].mxu0
      %3244 = vmatprep.mubr.f32.mxu0 0.0
      %v3245 = vand.u32 %v447, 4294901760
      %v3246 = vsub.f32 %v447, %v3245
      %3247 = vmatmul.mubr.f32.gmra.mrb[0].mxu0 %v3246
      %v3248 = vpop.f32.mrb[0].mxu0
      %v3249 = vadd.f32 %v2372, %v3248
      %v3250 = vpop.f32.mrb[0].mxu0
      %3251 = vmatprep.mubr.f32.mxu0 0.0
      %v3252 = vand.u32 %v450, 4294901760
      %v3253 = vsub.f32 %v450, %v3252
      %3254 = vmatmul.mubr.f32.gmra.mrb[0].mxu0 %v3253
      %v3255 = vpop.f32.mrb[0].mxu0
      %v3256 = vadd.f32 %v2378, %v3255
      %v3257 = vpop.f32.mrb[0].mxu0
      %3258 = vmatprep.mubr.f32.mxu0 0.0
      %v3259 = vand.u32 %v453, 4294901760
      %v3260 = vsub.f32 %v453, %v3259
      %3261 = vmatmul.mubr.f32.gmra.mrb[0].mxu0 %v3260
      %v3262 = vpop.f32.mrb[0].mxu0
      %v3263 = vadd.f32 %v2384, %v3262
      %v3264 = vpop.f32.mrb[0].mxu0
      %3265 = vmatprep.mubr.f32.mxu0 0.0
      %v3266 = vand.u32 %v456, 4294901760
      %v3267 = vsub.f32 %v456, %v3266
      %3268 = vmatmul.mubr.f32.gmra.mrb[0].mxu0 %v3267
      %v3269 = vpop.f32.mrb[0].mxu0
      %v3270 = vadd.f32 %v2390, %v3269
      %v3271 = vpop.f32.mrb[0].mxu0
      %3272 = vmatprep.mubr.f32.mxu0 0.0
      %v3273 = vand.u32 %v459, 4294901760
      %v3274 = vsub.f32 %v459, %v3273
      %3275 = vmatmul.mubr.f32.gmra.mrb[0].mxu0 %v3274
      %v3276 = vpop.f32.mrb[0].mxu0
      %v3277 = vadd.f32 %v2396, %v3276
      %v3278 = vpop.f32.mrb[0].mxu0
      %3279 = vmatprep.mubr.f32.mxu0 0.0
      %v3280 = vand.u32 %v462, 4294901760
      %v3281 = vsub.f32 %v462, %v3280
      %3282 = vmatmul.mubr.f32.gmra.mrb[0].mxu0 %v3281
      %v3283 = vpop.f32.mrb[0].mxu0
      %v3284 = vadd.f32 %v2402, %v3283
      %v3285 = vpop.f32.mrb[0].mxu0
      %3286 = vmatprep.mubr.f32.mxu0 0.0
      %v3287 = vand.u32 %v465, 4294901760
      %v3288 = vsub.f32 %v465, %v3287
      %3289 = vmatmul.mubr.f32.gmra.mrb[0].mxu0 %v3288
      %v3290 = vpop.f32.mrb[0].mxu0
      %v3291 = vadd.f32 %v2408, %v3290
      %v3292 = vpop.f32.mrb[0].mxu0
      %3293 = vmatprep.mubr.f32.mxu0 0.0
      %v3294 = vand.u32 %v468, 4294901760
      %v3295 = vsub.f32 %v468, %v3294
      %3296 = vmatmul.mubr.f32.gmra.mrb[0].mxu0 %v3295
      %v3297 = vpop.f32.mrb[0].mxu0
      %v3298 = vadd.f32 %v2414, %v3297
      %v3299 = vpop.f32.mrb[0].mxu0
      %3300 = vmatprep.mubr.f32.mxu0 0.0
      %v3301 = vand.u32 %v471, 4294901760
      %v3302 = vsub.f32 %v471, %v3301
      %3303 = vmatmul.mubr.f32.gmra.mrb[0].mxu0 %v3302
      %v3304 = vpop.f32.mrb[0].mxu0
      %v3305 = vadd.f32 %v2420, %v3304
      %v3306 = vpop.f32.mrb[0].mxu0
      %3307 = vmatprep.mubr.f32.mxu0 0.0
      %v3308 = vand.u32 %v474, 4294901760
      %v3309 = vsub.f32 %v474, %v3308
      %3310 = vmatmul.mubr.f32.gmra.mrb[0].mxu0 %v3309
      %v3311 = vpop.f32.mrb[0].mxu0
      %v3312 = vadd.f32 %v2426, %v3311
      %v3313 = vpop.f32.mrb[0].mxu0
      %3314 = vmatprep.mubr.f32.mxu0 0.0
      %v3315 = vand.u32 %v477, 4294901760
      %v3316 = vsub.f32 %v477, %v3315
      %3317 = vmatmul.mubr.f32.gmra.mrb[0].mxu0 %v3316
      %v3318 = vpop.f32.mrb[0].mxu0
      %v3319 = vadd.f32 %v2432, %v3318
      %v3320 = vpop.f32.mrb[0].mxu0
      %3321 = vmatprep.mubr.f32.mxu0 0.0
      %v3322 = vand.u32 %v480, 4294901760
      %v3323 = vsub.f32 %v480, %v3322
      %3324 = vmatmul.mubr.f32.gmra.mrb[0].mxu0 %v3323
      %v3325 = vpop.f32.mrb[0].mxu0
      %v3326 = vadd.f32 %v2438, %v3325
      %v3327 = vpop.f32.mrb[0].mxu0
      %3328 = vmatprep.mubr.f32.mxu0 0.0
      %v3329 = vand.u32 %v483, 4294901760
      %v3330 = vsub.f32 %v483, %v3329
      %3331 = vmatmul.mubr.f32.gmra.mrb[0].mxu0 %v3330
      %v3332 = vpop.f32.mrb[0].mxu0
      %v3333 = vadd.f32 %v2444, %v3332
      %v3334 = vpop.f32.mrb[0].mxu0
      %3335 = vmatprep.mubr.f32.mxu0 0.0
      %v3336 = vand.u32 %v486, 4294901760
      %v3337 = vsub.f32 %v486, %v3336
      %3338 = vmatmul.mubr.f32.gmra.mrb[0].mxu0 %v3337
      %v3339 = vpop.f32.mrb[0].mxu0
      %v3340 = vadd.f32 %v2450, %v3339
      %v3341 = vpop.f32.mrb[0].mxu0
      %3342 = vmatprep.mubr.f32.mxu0 0.0
      %v3343 = vand.u32 %v489, 4294901760
      %v3344 = vsub.f32 %v489, %v3343
      %3345 = vmatmul.mubr.f32.gmra.mrb[0].mxu0 %v3344
      %v3346 = vpop.f32.mrb[0].mxu0
      %v3347 = vadd.f32 %v2456, %v3346
      %v3348 = vpop.f32.mrb[0].mxu0
      %3349 = vmatprep.mubr.f32.mxu0 0.0
      %v3350 = vand.u32 %v492, 4294901760
      %v3351 = vsub.f32 %v492, %v3350
      %3352 = vmatmul.mubr.f32.gmra.mrb[0].mxu0 %v3351
      %v3353 = vpop.f32.mrb[0].mxu0
      %v3354 = vadd.f32 %v2462, %v3353
      %v3355 = vpop.f32.mrb[0].mxu0
      %3356 = vmatprep.mubr.f32.mxu0 0.0
      %v3357 = vand.u32 %v495, 4294901760
      %v3358 = vsub.f32 %v495, %v3357
      %3359 = vmatmul.mubr.f32.gmra.mrb[0].mxu0 %v3358
      %v3360 = vpop.f32.mrb[0].mxu0
      %v3361 = vadd.f32 %v2468, %v3360
      %v3362 = vpop.f32.mrb[0].mxu0
      %3363 = vmatprep.mubr.f32.mxu0 0.0
      %v3364 = vand.u32 %v498, 4294901760
      %v3365 = vsub.f32 %v498, %v3364
      %3366 = vmatmul.mubr.f32.gmra.mrb[0].mxu0 %v3365
      %v3367 = vpop.f32.mrb[0].mxu0
      %v3368 = vadd.f32 %v2474, %v3367
      %v3369 = vpop.f32.mrb[0].mxu0
      %3370 = vmatprep.mubr.f32.mxu0 0.0
      %v3371 = vand.u32 %v501, 4294901760
      %v3372 = vsub.f32 %v501, %v3371
      %3373 = vmatmul.mubr.f32.gmra.mrb[0].mxu0 %v3372
      %v3374 = vpop.f32.mrb[0].mxu0
      %v3375 = vadd.f32 %v2480, %v3374
      %v3376 = vpop.f32.mrb[0].mxu0
      %3377 = vmatprep.mubr.f32.mxu0 0.0
      %v3378 = vand.u32 %v504, 4294901760
      %v3379 = vsub.f32 %v504, %v3378
      %3380 = vmatmul.mubr.f32.gmra.mrb[0].mxu0 %v3379
      %v3381 = vpop.f32.mrb[0].mxu0
      %v3382 = vadd.f32 %v2486, %v3381
      %v3383 = vpop.f32.mrb[0].mxu0
      %3384 = vmatprep.mubr.f32.mxu0 0.0
      %v3385 = vand.u32 %v507, 4294901760
      %v3386 = vsub.f32 %v507, %v3385
      %3387 = vmatmul.mubr.f32.gmra.mrb[0].mxu0 %v3386
      %v3388 = vpop.f32.mrb[0].mxu0
      %v3389 = vadd.f32 %v2492, %v3388
      %v3390 = vpop.f32.mrb[0].mxu0
      %3391 = vmatprep.mubr.f32.mxu0 0.0
      %v3392 = vand.u32 %v510, 4294901760
      %v3393 = vsub.f32 %v510, %v3392
      %3394 = vmatmul.mubr.f32.gmra.mrb[0].mxu0 %v3393
      %v3395 = vpop.f32.mrb[0].mxu0
      %v3396 = vadd.f32 %v2498, %v3395
      %v3397 = vpop.f32.mrb[0].mxu0
      %3398 = vmatprep.mubr.f32.mxu0 0.0
      %v3399 = vand.u32 %v513, 4294901760
      %v3400 = vsub.f32 %v513, %v3399
      %3401 = vmatmul.mubr.f32.gmra.mrb[0].mxu0 %v3400
      %v3402 = vpop.f32.mrb[0].mxu0
      %v3403 = vadd.f32 %v2504, %v3402
      %v3404 = vpop.f32.mrb[0].mxu0
      %3405 = vmatprep.mubr.f32.mxu0 0.0
      %v3406 = vand.u32 %v516, 4294901760
      %v3407 = vsub.f32 %v516, %v3406
      %3408 = vmatmul.mubr.f32.gmra.mrb[0].mxu0 %v3407
      %v3409 = vpop.f32.mrb[0].mxu0
      %v3410 = vadd.f32 %v2510, %v3409
      %v3411 = vpop.f32.mrb[0].mxu0
      %3412 = vmatprep.mubr.f32.mxu0 0.0
      %v3413 = vand.u32 %v519, 4294901760
      %v3414 = vsub.f32 %v519, %v3413
      %3415 = vmatmul.mubr.f32.gmra.mrb[0].mxu0 %v3414
      %v3416 = vpop.f32.mrb[0].mxu0
      %v3417 = vadd.f32 %v2516, %v3416
      %v3418 = vpop.f32.mrb[0].mxu0
      %3419 = vmatprep.mubr.f32.mxu0 0.0
      %v3420 = vand.u32 %v522, 4294901760
      %v3421 = vsub.f32 %v522, %v3420
      %3422 = vmatmul.mubr.f32.gmra.mrb[0].mxu0 %v3421
      %v3423 = vpop.f32.mrb[0].mxu0
      %v3424 = vadd.f32 %v2522, %v3423
      %v3425 = vpop.f32.mrb[0].mxu0
      %3426 = vmatprep.mubr.f32.mxu0 0.0
      %v3427 = vand.u32 %v525, 4294901760
      %v3428 = vsub.f32 %v525, %v3427
      %3429 = vmatmul.mubr.f32.gmra.mrb[0].mxu0 %v3428
      %v3430 = vpop.f32.mrb[0].mxu0
      %v3431 = vadd.f32 %v2528, %v3430
      %v3432 = vpop.f32.mrb[0].mxu0
      %3433 = vmatprep.mubr.f32.mxu0 0.0
      %v3434 = vand.u32 %v528, 4294901760
      %v3435 = vsub.f32 %v528, %v3434
      %3436 = vmatmul.mubr.f32.gmra.mrb[0].mxu0 %v3435
      %v3437 = vpop.f32.mrb[0].mxu0
      %v3438 = vadd.f32 %v2534, %v3437
      %v3439 = vpop.f32.mrb[0].mxu0
      %3440 = vmatprep.mubr.f32.mxu0 0.0
      %v3441 = vand.u32 %v531, 4294901760
      %v3442 = vsub.f32 %v531, %v3441
      %3443 = vmatmul.mubr.f32.gmra.mrb[0].mxu0 %v3442
      %v3444 = vpop.f32.mrb[0].mxu0
      %v3445 = vadd.f32 %v2540, %v3444
      %v3446 = vpop.f32.mrb[0].mxu0
      %3447 = vmatprep.mubr.f32.mxu0 0.0
      %v3448 = vand.u32 %v534, 4294901760
      %v3449 = vsub.f32 %v534, %v3448
      %3450 = vmatmul.mubr.f32.gmra.mrb[0].mxu0 %v3449
      %v3451 = vpop.f32.mrb[0].mxu0
      %v3452 = vadd.f32 %v2546, %v3451
      %v3453 = vpop.f32.mrb[0].mxu0
      %3454 = vmatprep.mubr.f32.mxu0 0.0
      %v3455 = vand.u32 %v537, 4294901760
      %v3456 = vsub.f32 %v537, %v3455
      %3457 = vmatmul.mubr.f32.gmra.mrb[0].mxu0 %v3456
      %v3458 = vpop.f32.mrb[0].mxu0
      %v3459 = vadd.f32 %v2552, %v3458
      %v3460 = vpop.f32.mrb[0].mxu0
      %3461 = vmatprep.mubr.f32.mxu0 0.0
      %v3462 = vand.u32 %v540, 4294901760
      %v3463 = vsub.f32 %v540, %v3462
      %3464 = vmatmul.mubr.f32.gmra.mrb[0].mxu0 %v3463
      %v3465 = vpop.f32.mrb[0].mxu0
      %v3466 = vadd.f32 %v2558, %v3465
      %v3467 = vpop.f32.mrb[0].mxu0
      %3468 = vmatprep.mubr.f32.mxu0 0.0
      %v3469 = vand.u32 %v543, 4294901760
      %v3470 = vsub.f32 %v543, %v3469
      %3471 = vmatmul.mubr.f32.gmra.mrb[0].mxu0 %v3470
      %v3472 = vpop.f32.mrb[0].mxu0
      %v3473 = vadd.f32 %v2564, %v3472
      %v3474 = vpop.f32.mrb[0].mxu0
      %3475 = vmatprep.mubr.f32.mxu0 0.0
      %v3476 = vand.u32 %v546, 4294901760
      %v3477 = vsub.f32 %v546, %v3476
      %3478 = vmatmul.mubr.f32.gmra.mrb[0].mxu0 %v3477
      %v3479 = vpop.f32.mrb[0].mxu0
      %v3480 = vadd.f32 %v2570, %v3479
      %v3481 = vpop.f32.mrb[0].mxu0
      %3482 = vmatprep.mubr.f32.mxu0 0.0
      %v3483 = vand.u32 %v549, 4294901760
      %v3484 = vsub.f32 %v549, %v3483
      %3485 = vmatmul.mubr.f32.gmra.mrb[0].mxu0 %v3484
      %v3486 = vpop.f32.mrb[0].mxu0
      %v3487 = vadd.f32 %v2576, %v3486
      %v3488 = vpop.f32.mrb[0].mxu0
      %3489 = vmatprep.mubr.f32.mxu0 0.0
      %v3490 = vand.u32 %v552, 4294901760
      %v3491 = vsub.f32 %v552, %v3490
      %3492 = vmatmul.mubr.f32.gmra.mrb[0].mxu0 %v3491
      %v3493 = vpop.f32.mrb[0].mxu0
      %v3494 = vadd.f32 %v2582, %v3493
      %v3495 = vpop.f32.mrb[0].mxu0
      %3496 = vmatprep.mubr.f32.mxu0 0.0
      %v3497 = vand.u32 %v555, 4294901760
      %v3498 = vsub.f32 %v555, %v3497
      %3499 = vmatmul.mubr.f32.gmra.mrb[0].mxu0 %v3498
      %v3500 = vpop.f32.mrb[0].mxu0
      %v3501 = vadd.f32 %v2588, %v3500
      %v3502 = vpop.f32.mrb[0].mxu0
      %3503 = vmatprep.mubr.f32.mxu0 0.0
      %v3504 = vand.u32 %v558, 4294901760
      %v3505 = vsub.f32 %v558, %v3504
      %3506 = vmatmul.mubr.f32.gmra.mrb[0].mxu0 %v3505
      %v3507 = vpop.f32.mrb[0].mxu0
      %v3508 = vadd.f32 %v2594, %v3507
      %v3509 = vpop.f32.mrb[0].mxu0
      %3510 = vmatprep.mubr.f32.mxu0 0.0
      %v3511 = vand.u32 %v561, 4294901760
      %v3512 = vsub.f32 %v561, %v3511
      %3513 = vmatmul.mubr.f32.gmra.mrb[0].mxu0 %v3512
      %v3514 = vpop.f32.mrb[0].mxu0
      %v3515 = vadd.f32 %v2600, %v3514
      %v3516 = vpop.f32.mrb[0].mxu0
      %3517 = vmatprep.mubr.f32.mxu0 0.0
      %v3518 = vand.u32 %v564, 4294901760
      %v3519 = vsub.f32 %v564, %v3518
      %3520 = vmatmul.mubr.f32.gmra.mrb[0].mxu0 %v3519
      %v3521 = vpop.f32.mrb[0].mxu0
      %v3522 = vadd.f32 %v2606, %v3521
      %v3523 = vpop.f32.mrb[0].mxu0
      %3524 = vmatprep.mubr.f32.mxu0 0.0
      %v3525 = vand.u32 %v567, 4294901760
      %v3526 = vsub.f32 %v567, %v3525
      %3527 = vmatmul.mubr.f32.gmra.mrb[0].mxu0 %v3526
      %v3528 = vpop.f32.mrb[0].mxu0
      %v3529 = vadd.f32 %v2612, %v3528
      %v3530 = vpop.f32.mrb[0].mxu0
      %3531 = vmatprep.mubr.f32.mxu0 0.0
      %v3532 = vand.u32 %v570, 4294901760
      %v3533 = vsub.f32 %v570, %v3532
      %3534 = vmatmul.mubr.f32.gmra.mrb[0].mxu0 %v3533
      %v3535 = vpop.f32.mrb[0].mxu0
      %v3536 = vadd.f32 %v2618, %v3535
      %v3537 = vpop.f32.mrb[0].mxu0
      %3538 = vmatprep.mubr.f32.mxu0 0.0
      %v3539 = vand.u32 %v573, 4294901760
      %v3540 = vsub.f32 %v573, %v3539
      %3541 = vmatmul.mubr.f32.gmra.mrb[0].mxu0 %v3540
      %v3542 = vpop.f32.mrb[0].mxu0
      %v3543 = vadd.f32 %v2624, %v3542
      %v3544 = vpop.f32.mrb[0].mxu0
      %3545 = vmatprep.mubr.f32.mxu0 0.0
      %v3546 = vand.u32 %v576, 4294901760
      %v3547 = vsub.f32 %v576, %v3546
      %3548 = vmatmul.mubr.f32.gmra.mrb[0].mxu0 %v3547
      %v3549 = vpop.f32.mrb[0].mxu0
      %v3550 = vadd.f32 %v2630, %v3549
      %v3551 = vpop.f32.mrb[0].mxu0
      %3552 = vmatprep.mubr.f32.mxu0 0.0
      %v3553 = vand.u32 %v579, 4294901760
      %v3554 = vsub.f32 %v579, %v3553
      %3555 = vmatmul.mubr.f32.gmra.mrb[0].mxu0 %v3554
      %v3556 = vpop.f32.mrb[0].mxu0
      %v3557 = vadd.f32 %v2636, %v3556
      %v3558 = vpop.f32.mrb[0].mxu0
      %3559 = vmatprep.mubr.f32.mxu0 0.0
      %v3560 = vand.u32 %v582, 4294901760
      %v3561 = vsub.f32 %v582, %v3560
      %3562 = vmatmul.mubr.f32.gmra.mrb[0].mxu0 %v3561
      %v3563 = vpop.f32.mrb[0].mxu0
      %v3564 = vadd.f32 %v2642, %v3563
      %v3565 = vpop.f32.mrb[0].mxu0
      %3566 = vmatprep.mubr.f32.mxu0 0.0
      %v3567 = vand.u32 %v585, 4294901760
      %v3568 = vsub.f32 %v585, %v3567
      %3569 = vmatmul.mubr.f32.gmra.mrb[0].mxu0 %v3568
      %v3570 = vpop.f32.mrb[0].mxu0
      %v3571 = vadd.f32 %v2648, %v3570
      %v3572 = vpop.f32.mrb[0].mxu0
      %3573 = vmatprep.mubr.f32.mxu0 0.0
      %v3574 = vand.u32 %v588, 4294901760
      %v3575 = vsub.f32 %v588, %v3574
      %3576 = vmatmul.mubr.f32.gmra.mrb[0].mxu0 %v3575
      %v3577 = vpop.f32.mrb[0].mxu0
      %v3578 = vadd.f32 %v2654, %v3577
      %v3579 = vpop.f32.mrb[0].mxu0
      %3580 = vmatprep.mubr.f32.mxu0 0.0
      %v3581 = vand.u32 %v591, 4294901760
      %v3582 = vsub.f32 %v591, %v3581
      %3583 = vmatmul.mubr.f32.gmra.mrb[0].mxu0 %v3582
      %v3584 = vpop.f32.mrb[0].mxu0
      %v3585 = vadd.f32 %v2660, %v3584
      %v3586 = vpop.f32.mrb[0].mxu0
      %3587 = vmatprep.mubr.f32.mxu0 0.0
      %v3588 = vand.u32 %v594, 4294901760
      %v3589 = vsub.f32 %v594, %v3588
      %3590 = vmatmul.mubr.f32.gmra.mrb[0].mxu0 %v3589
      %v3591 = vpop.f32.mrb[0].mxu0
      %v3592 = vadd.f32 %v2666, %v3591
      %v3593 = vpop.f32.mrb[0].mxu0
      %3594 = vmatprep.mubr.f32.mxu0 0.0
      %v3595 = vand.u32 %v597, 4294901760
      %v3596 = vsub.f32 %v597, %v3595
      %3597 = vmatmul.mubr.f32.gmra.mrb[0].mxu0 %v3596
      %v3598 = vpop.f32.mrb[0].mxu0
      %v3599 = vadd.f32 %v2672, %v3598
      %v3600 = vpop.f32.mrb[0].mxu0
      %3601 = vmatprep.mubr.f32.mxu0 0.0
      %v3602 = vand.u32 %v600, 4294901760
      %v3603 = vsub.f32 %v600, %v3602
      %3604 = vmatmul.mubr.f32.gmra.mrb[0].mxu0 %v3603
      %v3605 = vpop.f32.mrb[0].mxu0
      %v3606 = vadd.f32 %v2678, %v3605
      %v3607 = vpop.f32.mrb[0].mxu0
      %3608 = vmatprep.mubr.f32.mxu0 0.0
      %v3609 = vand.u32 %v603, 4294901760
      %v3610 = vsub.f32 %v603, %v3609
      %3611 = vmatmul.mubr.f32.gmra.mrb[0].mxu0 %v3610
      %v3612 = vpop.f32.mrb[0].mxu0
      %v3613 = vadd.f32 %v2684, %v3612
      %v3614 = vpop.f32.mrb[0].mxu0
      %3615 = vmatprep.mubr.f32.mxu0 0.0
      %v3616 = vand.u32 %v606, 4294901760
      %v3617 = vsub.f32 %v606, %v3616
      %3618 = vmatmul.mubr.f32.gmra.mrb[0].mxu0 %v3617
      %v3619 = vpop.f32.mrb[0].mxu0
      %v3620 = vadd.f32 %v2690, %v3619
      %v3621 = vpop.f32.mrb[0].mxu0
      %3622 = vmatprep.mubr.f32.mxu0 0.0
      %v3623 = vand.u32 %v609, 4294901760
      %v3624 = vsub.f32 %v609, %v3623
      %3625 = vmatmul.mubr.f32.gmra.mrb[0].mxu0 %v3624
      %v3626 = vpop.f32.mrb[0].mxu0
      %v3627 = vadd.f32 %v2696, %v3626
      %v3628 = vpop.f32.mrb[0].mxu0
      %3629 = vmatprep.mubr.f32.mxu0 0.0
      %v3630 = vand.u32 %v612, 4294901760
      %v3631 = vsub.f32 %v612, %v3630
      %3632 = vmatmul.mubr.f32.gmra.mrb[0].mxu0 %v3631
      %v3633 = vpop.f32.mrb[0].mxu0
      %v3634 = vadd.f32 %v2702, %v3633
      %v3635 = vpop.f32.mrb[0].mxu0
      %3636 = vmatprep.mubr.f32.mxu0 0.0
      %v3637 = vand.u32 %v615, 4294901760
      %v3638 = vsub.f32 %v615, %v3637
      %3639 = vmatmul.mubr.f32.gmra.mrb[0].mxu0 %v3638
      %v3640 = vpop.f32.mrb[0].mxu0
      %v3641 = vadd.f32 %v2708, %v3640
      %v3642 = vpop.f32.mrb[0].mxu0
      %3643 = vmatprep.mubr.f32.mxu0 0.0
      %v3644 = vand.u32 %v618, 4294901760
      %v3645 = vsub.f32 %v618, %v3644
      %3646 = vmatmul.mubr.f32.gmra.mrb[0].mxu0 %v3645
      %v3647 = vpop.f32.mrb[0].mxu0
      %v3648 = vadd.f32 %v2714, %v3647
      %v3649 = vpop.f32.mrb[0].mxu0
      %3650 = vmatprep.mubr.f32.mxu0 0.0
      %v3651 = vand.u32 %v621, 4294901760
      %v3652 = vsub.f32 %v621, %v3651
      %3653 = vmatmul.mubr.f32.gmra.mrb[0].mxu0 %v3652
      %v3654 = vpop.f32.mrb[0].mxu0
      %v3655 = vadd.f32 %v2720, %v3654
      %v3656 = vpop.f32.mrb[0].mxu0
      %3657 = vmatprep.mubr.f32.mxu0 0.0
      %v3658 = vand.u32 %v624, 4294901760
      %v3659 = vsub.f32 %v624, %v3658
      %3660 = vmatmul.mubr.f32.gmra.mrb[0].mxu0 %v3659
      %v3661 = vpop.f32.mrb[0].mxu0
      %v3662 = vadd.f32 %v2726, %v3661
      %v3663 = vpop.f32.mrb[0].mxu0
      %3664 = vmatprep.mubr.f32.mxu0 0.0
      %v3665 = vand.u32 %v627, 4294901760
      %v3666 = vsub.f32 %v627, %v3665
      %3667 = vmatmul.mubr.f32.gmra.mrb[0].mxu0 %v3666
      %v3668 = vpop.f32.mrb[0].mxu0
      %v3669 = vadd.f32 %v2732, %v3668
      %v3670 = vpop.f32.mrb[0].mxu0
      %3671 = vmatprep.mubr.f32.mxu0 0.0
      %v3672 = vand.u32 %v630, 4294901760
      %v3673 = vsub.f32 %v630, %v3672
      %3674 = vmatmul.mubr.f32.gmra.mrb[0].mxu0 %v3673
      %v3675 = vpop.f32.mrb[0].mxu0
      %v3676 = vadd.f32 %v2738, %v3675
      %v3677 = vpop.f32.mrb[0].mxu0
      %3678 = vmatprep.mubr.f32.mxu0 0.0
      %v3679 = vand.u32 %v633, 4294901760
      %v3680 = vsub.f32 %v633, %v3679
      %3681 = vmatmul.mubr.f32.gmra.mrb[0].mxu0 %v3680
      %v3682 = vpop.f32.mrb[0].mxu0
      %v3683 = vadd.f32 %v2744, %v3682
      %v3684 = vpop.f32.mrb[0].mxu0
      %3685 = vmatprep.mubr.f32.mxu0 0.0
      %v3686 = vand.u32 %v636, 4294901760
      %v3687 = vsub.f32 %v636, %v3686
      %3688 = vmatmul.mubr.f32.gmra.mrb[0].mxu0 %v3687
      %v3689 = vpop.f32.mrb[0].mxu0
      %v3690 = vadd.f32 %v2750, %v3689
      %v3691 = vpop.f32.mrb[0].mxu0
      %3692 = vmatprep.mubr.f32.mxu0 0.0
      %v3693 = vand.u32 %v639, 4294901760
      %v3694 = vsub.f32 %v639, %v3693
      %3695 = vmatmul.mubr.f32.gmra.mrb[0].mxu0 %v3694
      %v3696 = vpop.f32.mrb[0].mxu0
      %v3697 = vadd.f32 %v2756, %v3696
      %v3698 = vpop.f32.mrb[0].mxu0
      %3699 = vmatprep.mubr.f32.mxu0 0.0
      %v3700 = vand.u32 %v642, 4294901760
      %v3701 = vsub.f32 %v642, %v3700
      %3702 = vmatmul.mubr.f32.gmra.mrb[0].mxu0 %v3701
      %v3703 = vpop.f32.mrb[0].mxu0
      %v3704 = vadd.f32 %v2762, %v3703
      %v3705 = vpop.f32.mrb[0].mxu0
      %3706 = vmatprep.mubr.f32.mxu0 0.0
      %v3707 = vand.u32 %v645, 4294901760
      %v3708 = vsub.f32 %v645, %v3707
      %3709 = vmatmul.mubr.f32.gmra.mrb[0].mxu0 %v3708
      %v3710 = vpop.f32.mrb[0].mxu0
      %v3711 = vadd.f32 %v2768, %v3710
      %v3712 = vpop.f32.mrb[0].mxu0
      %3713 = vmatprep.mubr.f32.mxu0 0.0
      %v3714 = vand.u32 %v648, 4294901760
      %v3715 = vsub.f32 %v648, %v3714
      %3716 = vmatmul.mubr.f32.gmra.mrb[0].mxu0 %v3715
      %v3717 = vpop.f32.mrb[0].mxu0
      %v3718 = vadd.f32 %v2774, %v3717
      %v3719 = vpop.f32.mrb[0].mxu0
      %3720 = vmatprep.mubr.f32.mxu0 0.0
      %v3721 = vand.u32 %v651, 4294901760
      %v3722 = vsub.f32 %v651, %v3721
      %3723 = vmatmul.mubr.f32.gmra.mrb[0].mxu0 %v3722
      %v3724 = vpop.f32.mrb[0].mxu0
      %v3725 = vadd.f32 %v2780, %v3724
      %v3726 = vpop.f32.mrb[0].mxu0
      %3727 = vmatprep.mubr.f32.mxu0 0.0
      %v3728 = vand.u32 %v654, 4294901760
      %v3729 = vsub.f32 %v654, %v3728
      %3730 = vmatmul.mubr.f32.gmra.mrb[0].mxu0 %v3729
      %v3731 = vpop.f32.mrb[0].mxu0
      %v3732 = vadd.f32 %v2786, %v3731
      %v3733 = vpop.f32.mrb[0].mxu0
      %3734 = vmatprep.mubr.f32.mxu0 0.0
      %v3735 = vand.u32 %v657, 4294901760
      %v3736 = vsub.f32 %v657, %v3735
      %3737 = vmatmul.mubr.f32.gmra.mrb[0].mxu0 %v3736
      %v3738 = vpop.f32.mrb[0].mxu0
      %v3739 = vadd.f32 %v2792, %v3738
      %v3740 = vpop.f32.mrb[0].mxu0
      %3741 = vmatprep.mubr.f32.mxu0 0.0
      %v3742 = vand.u32 %v660, 4294901760
      %v3743 = vsub.f32 %v660, %v3742
      %3744 = vmatmul.mubr.f32.gmra.mrb[0].mxu0 %v3743
      %v3745 = vpop.f32.mrb[0].mxu0
      %v3746 = vadd.f32 %v2798, %v3745
      %v3747 = vpop.f32.mrb[0].mxu0
      %3748 = vmatprep.mubr.f32.mxu0 0.0
      %v3749 = vand.u32 %v663, 4294901760
      %v3750 = vsub.f32 %v663, %v3749
      %3751 = vmatmul.mubr.f32.gmra.mrb[0].mxu0 %v3750
      %v3752 = vpop.f32.mrb[0].mxu0
      %v3753 = vadd.f32 %v2804, %v3752
      %v3754 = vpop.f32.mrb[0].mxu0
      %3755 = vmatprep.mubr.f32.mxu0 0.0
      %v3756 = vand.u32 %v666, 4294901760
      %v3757 = vsub.f32 %v666, %v3756
      %3758 = vmatmul.mubr.f32.gmra.mrb[0].mxu0 %v3757
      %v3759 = vpop.f32.mrb[0].mxu0
      %v3760 = vadd.f32 %v2810, %v3759
      %v3761 = vpop.f32.mrb[0].mxu0
      %3762 = vmatprep.mubr.f32.mxu0 0.0
      %v3763 = vand.u32 %v669, 4294901760
      %v3764 = vsub.f32 %v669, %v3763
      %3765 = vmatmul.mubr.f32.gmra.mrb[0].mxu0 %v3764
      %v3766 = vpop.f32.mrb[0].mxu0
      %v3767 = vadd.f32 %v2816, %v3766
      %v3768 = vpop.f32.mrb[0].mxu0
      %3769 = vmatprep.mubr.f32.mxu0 0.0
      %v3770 = vand.u32 %v672, 4294901760
      %v3771 = vsub.f32 %v672, %v3770
      %3772 = vmatmul.mubr.f32.gmra.mrb[0].mxu0 %v3771
      %v3773 = vpop.f32.mrb[0].mxu0
      %v3774 = vadd.f32 %v2822, %v3773
      %v3775 = vpop.f32.mrb[0].mxu0
      %3776 = vmatprep.mubr.f32.mxu0 0.0
      %v3777 = vand.u32 %v675, 4294901760
      %v3778 = vsub.f32 %v675, %v3777
      %3779 = vmatmul.mubr.f32.gmra.mrb[0].mxu0 %v3778
      %v3780 = vpop.f32.mrb[0].mxu0
      %v3781 = vadd.f32 %v2828, %v3780
      %v3782 = vpop.f32.mrb[0].mxu0
      %3783 = vmatprep.mubr.f32.mxu0 0.0
      %v3784 = vand.u32 %v678, 4294901760
      %v3785 = vsub.f32 %v678, %v3784
      %3786 = vmatmul.mubr.f32.gmra.mrb[0].mxu0 %v3785
      %v3787 = vpop.f32.mrb[0].mxu0
      %v3788 = vadd.f32 %v2834, %v3787
      %v3789 = vpop.f32.mrb[0].mxu0
      %3790 = vmatprep.mubr.f32.mxu0 0.0
      %v3791 = vand.u32 %v681, 4294901760
      %v3792 = vsub.f32 %v681, %v3791
      %3793 = vmatmul.mubr.f32.gmra.mrb[0].mxu0 %v3792
      %v3794 = vpop.f32.mrb[0].mxu0
      %v3795 = vadd.f32 %v2840, %v3794
      %v3796 = vpop.f32.mrb[0].mxu0
      %3797 = vmatprep.mubr.f32.mxu0 0.0
      %v3798 = vand.u32 %v684, 4294901760
      %v3799 = vsub.f32 %v684, %v3798
      %3800 = vmatmul.mubr.f32.gmra.mrb[0].mxu0 %v3799
      %v3801 = vpop.f32.mrb[0].mxu0
      %v3802 = vadd.f32 %v2846, %v3801
      %v3803 = vpop.f32.mrb[0].mxu0
      %3804 = vmatprep.mubr.f32.mxu0 0.0
      %v3805 = vand.u32 %v687, 4294901760
      %v3806 = vsub.f32 %v687, %v3805
      %3807 = vmatmul.mubr.f32.gmra.mrb[0].mxu0 %v3806
      %v3808 = vpop.f32.mrb[0].mxu0
      %v3809 = vadd.f32 %v2852, %v3808
      %v3810 = vpop.f32.mrb[0].mxu0
      %3811 = vmatprep.mubr.f32.mxu0 0.0
      %v3812 = vand.u32 %v690, 4294901760
      %v3813 = vsub.f32 %v690, %v3812
      %3814 = vmatmul.mubr.f32.gmra.mrb[0].mxu0 %v3813
      %v3815 = vpop.f32.mrb[0].mxu0
      %v3816 = vadd.f32 %v2858, %v3815
      %v3817 = vpop.f32.mrb[0].mxu0
      %3818 = vmatprep.mubr.f32.mxu0 0.0
      %v3819 = vand.u32 %v693, 4294901760
      %v3820 = vsub.f32 %v693, %v3819
      %3821 = vmatmul.mubr.f32.gmra.mrb[0].mxu0 %v3820
      %v3822 = vpop.f32.mrb[0].mxu0
      %v3823 = vadd.f32 %v2864, %v3822
      %v3824 = vpop.f32.mrb[0].mxu0
      %3825 = vmatprep.mubr.f32.mxu0 0.0
      %v3826 = vand.u32 %v696, 4294901760
      %v3827 = vsub.f32 %v696, %v3826
      %3828 = vmatmul.mubr.f32.gmra.mrb[0].mxu0 %v3827
      %v3829 = vpop.f32.mrb[0].mxu0
      %v3830 = vadd.f32 %v2870, %v3829
      %v3831 = vpop.f32.mrb[0].mxu0
      %3832 = vmatprep.mubr.f32.mxu0 0.0
      %v3833 = vand.u32 %v699, 4294901760
      %v3834 = vsub.f32 %v699, %v3833
      %3835 = vmatmul.mubr.f32.gmra.mrb[0].mxu0 %v3834
      %v3836 = vpop.f32.mrb[0].mxu0
      %v3837 = vadd.f32 %v2876, %v3836
      %v3838 = vpop.f32.mrb[0].mxu0
      %3839 = vmatprep.mubr.f32.mxu0 0.0
      %v3840 = vand.u32 %v702, 4294901760
      %v3841 = vsub.f32 %v702, %v3840
      %3842 = vmatmul.mubr.f32.gmra.mrb[0].mxu0 %v3841
      %v3843 = vpop.f32.mrb[0].mxu0
      %v3844 = vadd.f32 %v2882, %v3843
      %v3845 = vpop.f32.mrb[0].mxu0
      %3846 = vmatprep.mubr.f32.mxu0 0.0
      %v3847 = vand.u32 %v705, 4294901760
      %v3848 = vsub.f32 %v705, %v3847
      %3849 = vmatmul.mubr.f32.gmra.mrb[0].mxu0 %v3848
      %v3850 = vpop.f32.mrb[0].mxu0
      %v3851 = vadd.f32 %v2888, %v3850
      %v3852 = vpop.f32.mrb[0].mxu0
      %3853 = vmatprep.mubr.f32.mxu0 0.0
      %v3854 = vand.u32 %v708, 4294901760
      %v3855 = vsub.f32 %v708, %v3854
      %3856 = vmatmul.mubr.f32.gmra.mrb[0].mxu0 %v3855
      %v3857 = vpop.f32.mrb[0].mxu0
      %v3858 = vadd.f32 %v2894, %v3857
      %v3859 = vpop.f32.mrb[0].mxu0
      %3860 = vmatprep.mubr.f32.mxu0 0.0
      %v3861 = vand.u32 %v711, 4294901760
      %v3862 = vsub.f32 %v711, %v3861
      %3863 = vmatmul.mubr.f32.gmra.mrb[0].mxu0 %v3862
      %v3864 = vpop.f32.mrb[0].mxu0
      %v3865 = vadd.f32 %v2900, %v3864
      %v3866 = vpop.f32.mrb[0].mxu0
      %3867 = vmatprep.mubr.f32.mxu0 0.0
      %v3868 = vand.u32 %v714, 4294901760
      %v3869 = vsub.f32 %v714, %v3868
      %3870 = vmatmul.mubr.f32.gmra.mrb[0].mxu0 %v3869
      %v3871 = vpop.f32.mrb[0].mxu0
      %v3872 = vadd.f32 %v2906, %v3871
      %v3873 = vpop.f32.mrb[0].mxu0
      %3874 = vmatprep.mubr.f32.mxu0 0.0
      %v3875 = vand.u32 %v717, 4294901760
      %v3876 = vsub.f32 %v717, %v3875
      %3877 = vmatmul.mubr.f32.gmra.mrb[0].mxu0 %v3876
      %v3878 = vpop.f32.mrb[0].mxu0
      %v3879 = vadd.f32 %v2912, %v3878
      %v3880 = vpop.f32.mrb[0].mxu0
      %3881 = vmatprep.mubr.f32.mxu0 0.0
      %v3882 = vand.u32 %v720, 4294901760
      %v3883 = vsub.f32 %v720, %v3882
      %3884 = vmatmul.mubr.f32.gmra.mrb[0].mxu0 %v3883
      %v3885 = vpop.f32.mrb[0].mxu0
      %v3886 = vadd.f32 %v2918, %v3885
      %v3887 = vpop.f32.mrb[0].mxu0
      %3888 = vmatprep.mubr.f32.mxu0 0.0
      %v3889 = vand.u32 %v723, 4294901760
      %v3890 = vsub.f32 %v723, %v3889
      %3891 = vmatmul.mubr.f32.gmra.mrb[0].mxu0 %v3890
      %v3892 = vpop.f32.mrb[0].mxu0
      %v3893 = vadd.f32 %v2924, %v3892
      %v3894 = vpop.f32.mrb[0].mxu0
      %3895 = vdwg.mxu0
      %3896 = vmatprep.subr.mxu0 0.0
      %v3897 = vand.u32 %v329, 4294901760
      %3898 = vmatpush1.msra.mxu0 %v3897
      %3899 = vmatprep.subr.mxu0 0.0
      %v3900 = vand.u32 %v330, 4294901760
      %3901 = vmatpush1.msra.mxu0 %v3900
      %3902 = vmatprep.subr.mxu0 0.0
      %v3903 = vand.u32 %v331, 4294901760
      %3904 = vmatpush1.msra.mxu0 %v3903
      %3905 = vmatprep.subr.mxu0 0.0
      %v3906 = vand.u32 %v332, 4294901760
      %3907 = vmatpush1.msra.mxu0 %v3906
      %3908 = vmatprep.subr.mxu0 0.0
      %3909 = vmatpush1.msra.mxu0 0.0
      %3910 = vmatprep.subr.mxu0 0.0
      %3911 = vmatpush1.msra.mxu0 0.0
      %3912 = vmatprep.subr.mxu0 0.0
      %3913 = vmatpush1.msra.mxu0 0.0
      %3914 = vmatprep.subr.mxu0 0.0
      %3915 = vmatpush1.msra.mxu0 0.0
      %3916 = vmatprep.subr.mxu0 0.0
      %3917 = vmatpush1.msra.mxu0 0.0
      %3918 = vmatprep.subr.mxu0 0.0
      %3919 = vmatpush1.msra.mxu0 0.0
      %3920 = vmatprep.subr.mxu0 0.0
      %3921 = vmatpush1.msra.mxu0 0.0
      %3922 = vmatprep.subr.mxu0 0.0
      %3923 = vmatpush1.msra.mxu0 0.0
      %3924 = vmatprep.subr.mxu0 0.0
      %3925 = vmatpush1.msra.mxu0 0.0
      %3926 = vmatprep.subr.mxu0 0.0
      %3927 = vmatpush1.msra.mxu0 0.0
      %3928 = vmatprep.subr.mxu0 0.0
      %3929 = vmatpush1.msra.mxu0 0.0
      %3930 = vmatprep.subr.mxu0 0.0
      %3931 = vmatpush1.msra.mxu0 0.0
      %3932 = vmatprep.subr.mxu0 0.0
      %3933 = vmatpush1.msra.mxu0 0.0
      %3934 = vmatprep.subr.mxu0 0.0
      %3935 = vmatpush1.msra.mxu0 0.0
      %3936 = vmatprep.subr.mxu0 0.0
      %3937 = vmatpush1.msra.mxu0 0.0
      %3938 = vmatprep.subr.mxu0 0.0
      %3939 = vmatpush1.msra.mxu0 0.0
      %3940 = vmatprep.subr.mxu0 0.0
      %3941 = vmatpush1.msra.mxu0 0.0
      %3942 = vmatprep.subr.mxu0 0.0
      %3943 = vmatpush1.msra.mxu0 0.0
      %3944 = vmatprep.subr.mxu0 0.0
      %3945 = vmatpush1.msra.mxu0 0.0
      %3946 = vmatprep.subr.mxu0 0.0
      %3947 = vmatpush1.msra.mxu0 0.0
      %3948 = vmatprep.subr.mxu0 0.0
      %3949 = vmatpush1.msra.mxu0 0.0
      %3950 = vmatprep.subr.mxu0 0.0
      %3951 = vmatpush1.msra.mxu0 0.0
      %3952 = vmatprep.subr.mxu0 0.0
      %3953 = vmatpush1.msra.mxu0 0.0
      %3954 = vmatprep.subr.mxu0 0.0
      %3955 = vmatpush1.msra.mxu0 0.0
      %3956 = vmatprep.subr.mxu0 0.0
      %3957 = vmatpush1.msra.mxu0 0.0
      %3958 = vmatprep.subr.mxu0 0.0
      %3959 = vmatpush1.msra.mxu0 0.0
      %3960 = vmatprep.subr.mxu0 0.0
      %3961 = vmatpush1.msra.mxu0 0.0
      %3962 = vmatprep.subr.mxu0 0.0
      %3963 = vmatpush1.msra.mxu0 0.0
      %3964 = vmatprep.mubr.f32.mxu0 0.0
      %v3965 = vand.u32 %v342, 4294901760
      %v3966 = vsub.f32 %v342, %v3965
      %v3967 = vand.u32 %v3966, 4294901760
      %3968 = vmatmul.mubr.f32.gmra.mrb[0].mxu0 %v3967
      %v3969 = vpop.f32.mrb[0].mxu0
      %v3970 = vadd.f32 %v3004, %v3969
      %v3971 = vpop.f32.mrb[0].mxu0
      %3972 = vmatprep.mubr.f32.mxu0 0.0
      %v3973 = vand.u32 %v345, 4294901760
      %v3974 = vsub.f32 %v345, %v3973
      %v3975 = vand.u32 %v3974, 4294901760
      %3976 = vmatmul.mubr.f32.gmra.mrb[0].mxu0 %v3975
      %v3977 = vpop.f32.mrb[0].mxu0
      %v3978 = vadd.f32 %v3011, %v3977
      %v3979 = vpop.f32.mrb[0].mxu0
      %3980 = vmatprep.mubr.f32.mxu0 0.0
      %v3981 = vand.u32 %v348, 4294901760
      %v3982 = vsub.f32 %v348, %v3981
      %v3983 = vand.u32 %v3982, 4294901760
      %3984 = vmatmul.mubr.f32.gmra.mrb[0].mxu0 %v3983
      %v3985 = vpop.f32.mrb[0].mxu0
      %v3986 = vadd.f32 %v3018, %v3985
      %v3987 = vpop.f32.mrb[0].mxu0
      %3988 = vmatprep.mubr.f32.mxu0 0.0
      %v3989 = vand.u32 %v351, 4294901760
      %v3990 = vsub.f32 %v351, %v3989
      %v3991 = vand.u32 %v3990, 4294901760
      %3992 = vmatmul.mubr.f32.gmra.mrb[0].mxu0 %v3991
      %v3993 = vpop.f32.mrb[0].mxu0
      %v3994 = vadd.f32 %v3025, %v3993
      %v3995 = vpop.f32.mrb[0].mxu0
      %3996 = vmatprep.mubr.f32.mxu0 0.0
      %v3997 = vand.u32 %v354, 4294901760
      %v3998 = vsub.f32 %v354, %v3997
      %v3999 = vand.u32 %v3998, 4294901760
      %4000 = vmatmul.mubr.f32.gmra.mrb[0].mxu0 %v3999
      %v4001 = vpop.f32.mrb[0].mxu0
      %v4002 = vadd.f32 %v3032, %v4001
      %v4003 = vpop.f32.mrb[0].mxu0
      %4004 = vmatprep.mubr.f32.mxu0 0.0
      %v4005 = vand.u32 %v357, 4294901760
      %v4006 = vsub.f32 %v357, %v4005
      %v4007 = vand.u32 %v4006, 4294901760
      %4008 = vmatmul.mubr.f32.gmra.mrb[0].mxu0 %v4007
      %v4009 = vpop.f32.mrb[0].mxu0
      %v4010 = vadd.f32 %v3039, %v4009
      %v4011 = vpop.f32.mrb[0].mxu0
      %4012 = vmatprep.mubr.f32.mxu0 0.0
      %v4013 = vand.u32 %v360, 4294901760
      %v4014 = vsub.f32 %v360, %v4013
      %v4015 = vand.u32 %v4014, 4294901760
      %4016 = vmatmul.mubr.f32.gmra.mrb[0].mxu0 %v4015
      %v4017 = vpop.f32.mrb[0].mxu0
      %v4018 = vadd.f32 %v3046, %v4017
      %v4019 = vpop.f32.mrb[0].mxu0
      %4020 = vmatprep.mubr.f32.mxu0 0.0
      %v4021 = vand.u32 %v363, 4294901760
      %v4022 = vsub.f32 %v363, %v4021
      %v4023 = vand.u32 %v4022, 4294901760
      %4024 = vmatmul.mubr.f32.gmra.mrb[0].mxu0 %v4023
      %v4025 = vpop.f32.mrb[0].mxu0
      %v4026 = vadd.f32 %v3053, %v4025
      %v4027 = vpop.f32.mrb[0].mxu0
      %4028 = vmatprep.mubr.f32.mxu0 0.0
      %v4029 = vand.u32 %v366, 4294901760
      %v4030 = vsub.f32 %v366, %v4029
      %v4031 = vand.u32 %v4030, 4294901760
      %4032 = vmatmul.mubr.f32.gmra.mrb[0].mxu0 %v4031
      %v4033 = vpop.f32.mrb[0].mxu0
      %v4034 = vadd.f32 %v3060, %v4033
      %v4035 = vpop.f32.mrb[0].mxu0
      %4036 = vmatprep.mubr.f32.mxu0 0.0
      %v4037 = vand.u32 %v369, 4294901760
      %v4038 = vsub.f32 %v369, %v4037
      %v4039 = vand.u32 %v4038, 4294901760
      %4040 = vmatmul.mubr.f32.gmra.mrb[0].mxu0 %v4039
      %v4041 = vpop.f32.mrb[0].mxu0
      %v4042 = vadd.f32 %v3067, %v4041
      %v4043 = vpop.f32.mrb[0].mxu0
      %4044 = vmatprep.mubr.f32.mxu0 0.0
      %v4045 = vand.u32 %v372, 4294901760
      %v4046 = vsub.f32 %v372, %v4045
      %v4047 = vand.u32 %v4046, 4294901760
      %4048 = vmatmul.mubr.f32.gmra.mrb[0].mxu0 %v4047
      %v4049 = vpop.f32.mrb[0].mxu0
      %v4050 = vadd.f32 %v3074, %v4049
      %v4051 = vpop.f32.mrb[0].mxu0
      %4052 = vmatprep.mubr.f32.mxu0 0.0
      %v4053 = vand.u32 %v375, 4294901760
      %v4054 = vsub.f32 %v375, %v4053
      %v4055 = vand.u32 %v4054, 4294901760
      %4056 = vmatmul.mubr.f32.gmra.mrb[0].mxu0 %v4055
      %v4057 = vpop.f32.mrb[0].mxu0
      %v4058 = vadd.f32 %v3081, %v4057
      %v4059 = vpop.f32.mrb[0].mxu0
      %4060 = vmatprep.mubr.f32.mxu0 0.0
      %v4061 = vand.u32 %v378, 4294901760
      %v4062 = vsub.f32 %v378, %v4061
      %v4063 = vand.u32 %v4062, 4294901760
      %4064 = vmatmul.mubr.f32.gmra.mrb[0].mxu0 %v4063
      %v4065 = vpop.f32.mrb[0].mxu0
      %v4066 = vadd.f32 %v3088, %v4065
      %v4067 = vpop.f32.mrb[0].mxu0
      %4068 = vmatprep.mubr.f32.mxu0 0.0
      %v4069 = vand.u32 %v381, 4294901760
      %v4070 = vsub.f32 %v381, %v4069
      %v4071 = vand.u32 %v4070, 4294901760
      %4072 = vmatmul.mubr.f32.gmra.mrb[0].mxu0 %v4071
      %v4073 = vpop.f32.mrb[0].mxu0
      %v4074 = vadd.f32 %v3095, %v4073
      %v4075 = vpop.f32.mrb[0].mxu0
      %4076 = vmatprep.mubr.f32.mxu0 0.0
      %v4077 = vand.u32 %v384, 4294901760
      %v4078 = vsub.f32 %v384, %v4077
      %v4079 = vand.u32 %v4078, 4294901760
      %4080 = vmatmul.mubr.f32.gmra.mrb[0].mxu0 %v4079
      %v4081 = vpop.f32.mrb[0].mxu0
      %v4082 = vadd.f32 %v3102, %v4081
      %v4083 = vpop.f32.mrb[0].mxu0
      %4084 = vmatprep.mubr.f32.mxu0 0.0
      %v4085 = vand.u32 %v387, 4294901760
      %v4086 = vsub.f32 %v387, %v4085
      %v4087 = vand.u32 %v4086, 4294901760
      %4088 = vmatmul.mubr.f32.gmra.mrb[0].mxu0 %v4087
      %v4089 = vpop.f32.mrb[0].mxu0
      %v4090 = vadd.f32 %v3109, %v4089
      %v4091 = vpop.f32.mrb[0].mxu0
      %4092 = vmatprep.mubr.f32.mxu0 0.0
      %v4093 = vand.u32 %v390, 4294901760
      %v4094 = vsub.f32 %v390, %v4093
      %v4095 = vand.u32 %v4094, 4294901760
      %4096 = vmatmul.mubr.f32.gmra.mrb[0].mxu0 %v4095
      %v4097 = vpop.f32.mrb[0].mxu0
      %v4098 = vadd.f32 %v3116, %v4097
      %v4099 = vpop.f32.mrb[0].mxu0
      %4100 = vmatprep.mubr.f32.mxu0 0.0
      %v4101 = vand.u32 %v393, 4294901760
      %v4102 = vsub.f32 %v393, %v4101
      %v4103 = vand.u32 %v4102, 4294901760
      %4104 = vmatmul.mubr.f32.gmra.mrb[0].mxu0 %v4103
      %v4105 = vpop.f32.mrb[0].mxu0
      %v4106 = vadd.f32 %v3123, %v4105
      %v4107 = vpop.f32.mrb[0].mxu0
      %4108 = vmatprep.mubr.f32.mxu0 0.0
      %v4109 = vand.u32 %v396, 4294901760
      %v4110 = vsub.f32 %v396, %v4109
      %v4111 = vand.u32 %v4110, 4294901760
      %4112 = vmatmul.mubr.f32.gmra.mrb[0].mxu0 %v4111
      %v4113 = vpop.f32.mrb[0].mxu0
      %v4114 = vadd.f32 %v3130, %v4113
      %v4115 = vpop.f32.mrb[0].mxu0
      %4116 = vmatprep.mubr.f32.mxu0 0.0
      %v4117 = vand.u32 %v399, 4294901760
      %v4118 = vsub.f32 %v399, %v4117
      %v4119 = vand.u32 %v4118, 4294901760
      %4120 = vmatmul.mubr.f32.gmra.mrb[0].mxu0 %v4119
      %v4121 = vpop.f32.mrb[0].mxu0
      %v4122 = vadd.f32 %v3137, %v4121
      %v4123 = vpop.f32.mrb[0].mxu0
      %4124 = vmatprep.mubr.f32.mxu0 0.0
      %v4125 = vand.u32 %v402, 4294901760
      %v4126 = vsub.f32 %v402, %v4125
      %v4127 = vand.u32 %v4126, 4294901760
      %4128 = vmatmul.mubr.f32.gmra.mrb[0].mxu0 %v4127
      %v4129 = vpop.f32.mrb[0].mxu0
      %v4130 = vadd.f32 %v3144, %v4129
      %v4131 = vpop.f32.mrb[0].mxu0
      %4132 = vmatprep.mubr.f32.mxu0 0.0
      %v4133 = vand.u32 %v405, 4294901760
      %v4134 = vsub.f32 %v405, %v4133
      %v4135 = vand.u32 %v4134, 4294901760
      %4136 = vmatmul.mubr.f32.gmra.mrb[0].mxu0 %v4135
      %v4137 = vpop.f32.mrb[0].mxu0
      %v4138 = vadd.f32 %v3151, %v4137
      %v4139 = vpop.f32.mrb[0].mxu0
      %4140 = vmatprep.mubr.f32.mxu0 0.0
      %v4141 = vand.u32 %v408, 4294901760
      %v4142 = vsub.f32 %v408, %v4141
      %v4143 = vand.u32 %v4142, 4294901760
      %4144 = vmatmul.mubr.f32.gmra.mrb[0].mxu0 %v4143
      %v4145 = vpop.f32.mrb[0].mxu0
      %v4146 = vadd.f32 %v3158, %v4145
      %v4147 = vpop.f32.mrb[0].mxu0
      %4148 = vmatprep.mubr.f32.mxu0 0.0
      %v4149 = vand.u32 %v411, 4294901760
      %v4150 = vsub.f32 %v411, %v4149
      %v4151 = vand.u32 %v4150, 4294901760
      %4152 = vmatmul.mubr.f32.gmra.mrb[0].mxu0 %v4151
      %v4153 = vpop.f32.mrb[0].mxu0
      %v4154 = vadd.f32 %v3165, %v4153
      %v4155 = vpop.f32.mrb[0].mxu0
      %4156 = vmatprep.mubr.f32.mxu0 0.0
      %v4157 = vand.u32 %v414, 4294901760
      %v4158 = vsub.f32 %v414, %v4157
      %v4159 = vand.u32 %v4158, 4294901760
      %4160 = vmatmul.mubr.f32.gmra.mrb[0].mxu0 %v4159
      %v4161 = vpop.f32.mrb[0].mxu0
      %v4162 = vadd.f32 %v3172, %v4161
      %v4163 = vpop.f32.mrb[0].mxu0
      %4164 = vmatprep.mubr.f32.mxu0 0.0
      %v4165 = vand.u32 %v417, 4294901760
      %v4166 = vsub.f32 %v417, %v4165
      %v4167 = vand.u32 %v4166, 4294901760
      %4168 = vmatmul.mubr.f32.gmra.mrb[0].mxu0 %v4167
      %v4169 = vpop.f32.mrb[0].mxu0
      %v4170 = vadd.f32 %v3179, %v4169
      %v4171 = vpop.f32.mrb[0].mxu0
      %4172 = vmatprep.mubr.f32.mxu0 0.0
      %v4173 = vand.u32 %v420, 4294901760
      %v4174 = vsub.f32 %v420, %v4173
      %v4175 = vand.u32 %v4174, 4294901760
      %4176 = vmatmul.mubr.f32.gmra.mrb[0].mxu0 %v4175
      %v4177 = vpop.f32.mrb[0].mxu0
      %v4178 = vadd.f32 %v3186, %v4177
      %v4179 = vpop.f32.mrb[0].mxu0
      %4180 = vmatprep.mubr.f32.mxu0 0.0
      %v4181 = vand.u32 %v423, 4294901760
      %v4182 = vsub.f32 %v423, %v4181
      %v4183 = vand.u32 %v4182, 4294901760
      %4184 = vmatmul.mubr.f32.gmra.mrb[0].mxu0 %v4183
      %v4185 = vpop.f32.mrb[0].mxu0
      %v4186 = vadd.f32 %v3193, %v4185
      %v4187 = vpop.f32.mrb[0].mxu0
      %4188 = vmatprep.mubr.f32.mxu0 0.0
      %v4189 = vand.u32 %v426, 4294901760
      %v4190 = vsub.f32 %v426, %v4189
      %v4191 = vand.u32 %v4190, 4294901760
      %4192 = vmatmul.mubr.f32.gmra.mrb[0].mxu0 %v4191
      %v4193 = vpop.f32.mrb[0].mxu0
      %v4194 = vadd.f32 %v3200, %v4193
      %v4195 = vpop.f32.mrb[0].mxu0
      %4196 = vmatprep.mubr.f32.mxu0 0.0
      %v4197 = vand.u32 %v429, 4294901760
      %v4198 = vsub.f32 %v429, %v4197
      %v4199 = vand.u32 %v4198, 4294901760
      %4200 = vmatmul.mubr.f32.gmra.mrb[0].mxu0 %v4199
      %v4201 = vpop.f32.mrb[0].mxu0
      %v4202 = vadd.f32 %v3207, %v4201
      %v4203 = vpop.f32.mrb[0].mxu0
      %4204 = vmatprep.mubr.f32.mxu0 0.0
      %v4205 = vand.u32 %v432, 4294901760
      %v4206 = vsub.f32 %v432, %v4205
      %v4207 = vand.u32 %v4206, 4294901760
      %4208 = vmatmul.mubr.f32.gmra.mrb[0].mxu0 %v4207
      %v4209 = vpop.f32.mrb[0].mxu0
      %v4210 = vadd.f32 %v3214, %v4209
      %v4211 = vpop.f32.mrb[0].mxu0
      %4212 = vmatprep.mubr.f32.mxu0 0.0
      %v4213 = vand.u32 %v435, 4294901760
      %v4214 = vsub.f32 %v435, %v4213
      %v4215 = vand.u32 %v4214, 4294901760
      %4216 = vmatmul.mubr.f32.gmra.mrb[0].mxu0 %v4215
      %v4217 = vpop.f32.mrb[0].mxu0
      %v4218 = vadd.f32 %v3221, %v4217
      %v4219 = vpop.f32.mrb[0].mxu0
      %4220 = vmatprep.mubr.f32.mxu0 0.0
      %v4221 = vand.u32 %v438, 4294901760
      %v4222 = vsub.f32 %v438, %v4221
      %v4223 = vand.u32 %v4222, 4294901760
      %4224 = vmatmul.mubr.f32.gmra.mrb[0].mxu0 %v4223
      %v4225 = vpop.f32.mrb[0].mxu0
      %v4226 = vadd.f32 %v3228, %v4225
      %v4227 = vpop.f32.mrb[0].mxu0
      %4228 = vmatprep.mubr.f32.mxu0 0.0
      %v4229 = vand.u32 %v441, 4294901760
      %v4230 = vsub.f32 %v441, %v4229
      %v4231 = vand.u32 %v4230, 4294901760
      %4232 = vmatmul.mubr.f32.gmra.mrb[0].mxu0 %v4231
      %v4233 = vpop.f32.mrb[0].mxu0
      %v4234 = vadd.f32 %v3235, %v4233
      %v4235 = vpop.f32.mrb[0].mxu0
      %4236 = vmatprep.mubr.f32.mxu0 0.0
      %v4237 = vand.u32 %v444, 4294901760
      %v4238 = vsub.f32 %v444, %v4237
      %v4239 = vand.u32 %v4238, 4294901760
      %4240 = vmatmul.mubr.f32.gmra.mrb[0].mxu0 %v4239
      %v4241 = vpop.f32.mrb[0].mxu0
      %v4242 = vadd.f32 %v3242, %v4241
      %v4243 = vpop.f32.mrb[0].mxu0
      %4244 = vmatprep.mubr.f32.mxu0 0.0
      %v4245 = vand.u32 %v447, 4294901760
      %v4246 = vsub.f32 %v447, %v4245
      %v4247 = vand.u32 %v4246, 4294901760
      %4248 = vmatmul.mubr.f32.gmra.mrb[0].mxu0 %v4247
      %v4249 = vpop.f32.mrb[0].mxu0
      %v4250 = vadd.f32 %v3249, %v4249
      %v4251 = vpop.f32.mrb[0].mxu0
      %4252 = vmatprep.mubr.f32.mxu0 0.0
      %v4253 = vand.u32 %v450, 4294901760
      %v4254 = vsub.f32 %v450, %v4253
      %v4255 = vand.u32 %v4254, 4294901760
      %4256 = vmatmul.mubr.f32.gmra.mrb[0].mxu0 %v4255
      %v4257 = vpop.f32.mrb[0].mxu0
      %v4258 = vadd.f32 %v3256, %v4257
      %v4259 = vpop.f32.mrb[0].mxu0
      %4260 = vmatprep.mubr.f32.mxu0 0.0
      %v4261 = vand.u32 %v453, 4294901760
      %v4262 = vsub.f32 %v453, %v4261
      %v4263 = vand.u32 %v4262, 4294901760
      %4264 = vmatmul.mubr.f32.gmra.mrb[0].mxu0 %v4263
      %v4265 = vpop.f32.mrb[0].mxu0
      %v4266 = vadd.f32 %v3263, %v4265
      %v4267 = vpop.f32.mrb[0].mxu0
      %4268 = vmatprep.mubr.f32.mxu0 0.0
      %v4269 = vand.u32 %v456, 4294901760
      %v4270 = vsub.f32 %v456, %v4269
      %v4271 = vand.u32 %v4270, 4294901760
      %4272 = vmatmul.mubr.f32.gmra.mrb[0].mxu0 %v4271
      %v4273 = vpop.f32.mrb[0].mxu0
      %v4274 = vadd.f32 %v3270, %v4273
      %v4275 = vpop.f32.mrb[0].mxu0
      %4276 = vmatprep.mubr.f32.mxu0 0.0
      %v4277 = vand.u32 %v459, 4294901760
      %v4278 = vsub.f32 %v459, %v4277
      %v4279 = vand.u32 %v4278, 4294901760
      %4280 = vmatmul.mubr.f32.gmra.mrb[0].mxu0 %v4279
      %v4281 = vpop.f32.mrb[0].mxu0
      %v4282 = vadd.f32 %v3277, %v4281
      %v4283 = vpop.f32.mrb[0].mxu0
      %4284 = vmatprep.mubr.f32.mxu0 0.0
      %v4285 = vand.u32 %v462, 4294901760
      %v4286 = vsub.f32 %v462, %v4285
      %v4287 = vand.u32 %v4286, 4294901760
      %4288 = vmatmul.mubr.f32.gmra.mrb[0].mxu0 %v4287
      %v4289 = vpop.f32.mrb[0].mxu0
      %v4290 = vadd.f32 %v3284, %v4289
      %v4291 = vpop.f32.mrb[0].mxu0
      %4292 = vmatprep.mubr.f32.mxu0 0.0
      %v4293 = vand.u32 %v465, 4294901760
      %v4294 = vsub.f32 %v465, %v4293
      %v4295 = vand.u32 %v4294, 4294901760
      %4296 = vmatmul.mubr.f32.gmra.mrb[0].mxu0 %v4295
      %v4297 = vpop.f32.mrb[0].mxu0
      %v4298 = vadd.f32 %v3291, %v4297
      %v4299 = vpop.f32.mrb[0].mxu0
      %4300 = vmatprep.mubr.f32.mxu0 0.0
      %v4301 = vand.u32 %v468, 4294901760
      %v4302 = vsub.f32 %v468, %v4301
      %v4303 = vand.u32 %v4302, 4294901760
      %4304 = vmatmul.mubr.f32.gmra.mrb[0].mxu0 %v4303
      %v4305 = vpop.f32.mrb[0].mxu0
      %v4306 = vadd.f32 %v3298, %v4305
      %v4307 = vpop.f32.mrb[0].mxu0
      %4308 = vmatprep.mubr.f32.mxu0 0.0
      %v4309 = vand.u32 %v471, 4294901760
      %v4310 = vsub.f32 %v471, %v4309
      %v4311 = vand.u32 %v4310, 4294901760
      %4312 = vmatmul.mubr.f32.gmra.mrb[0].mxu0 %v4311
      %v4313 = vpop.f32.mrb[0].mxu0
      %v4314 = vadd.f32 %v3305, %v4313
      %v4315 = vpop.f32.mrb[0].mxu0
      %4316 = vmatprep.mubr.f32.mxu0 0.0
      %v4317 = vand.u32 %v474, 4294901760
      %v4318 = vsub.f32 %v474, %v4317
      %v4319 = vand.u32 %v4318, 4294901760
      %4320 = vmatmul.mubr.f32.gmra.mrb[0].mxu0 %v4319
      %v4321 = vpop.f32.mrb[0].mxu0
      %v4322 = vadd.f32 %v3312, %v4321
      %v4323 = vpop.f32.mrb[0].mxu0
      %4324 = vmatprep.mubr.f32.mxu0 0.0
      %v4325 = vand.u32 %v477, 4294901760
      %v4326 = vsub.f32 %v477, %v4325
      %v4327 = vand.u32 %v4326, 4294901760
      %4328 = vmatmul.mubr.f32.gmra.mrb[0].mxu0 %v4327
      %v4329 = vpop.f32.mrb[0].mxu0
      %v4330 = vadd.f32 %v3319, %v4329
      %v4331 = vpop.f32.mrb[0].mxu0
      %4332 = vmatprep.mubr.f32.mxu0 0.0
      %v4333 = vand.u32 %v480, 4294901760
      %v4334 = vsub.f32 %v480, %v4333
      %v4335 = vand.u32 %v4334, 4294901760
      %4336 = vmatmul.mubr.f32.gmra.mrb[0].mxu0 %v4335
      %v4337 = vpop.f32.mrb[0].mxu0
      %v4338 = vadd.f32 %v3326, %v4337
      %v4339 = vpop.f32.mrb[0].mxu0
      %4340 = vmatprep.mubr.f32.mxu0 0.0
      %v4341 = vand.u32 %v483, 4294901760
      %v4342 = vsub.f32 %v483, %v4341
      %v4343 = vand.u32 %v4342, 4294901760
      %4344 = vmatmul.mubr.f32.gmra.mrb[0].mxu0 %v4343
      %v4345 = vpop.f32.mrb[0].mxu0
      %v4346 = vadd.f32 %v3333, %v4345
      %v4347 = vpop.f32.mrb[0].mxu0
      %4348 = vmatprep.mubr.f32.mxu0 0.0
      %v4349 = vand.u32 %v486, 4294901760
      %v4350 = vsub.f32 %v486, %v4349
      %v4351 = vand.u32 %v4350, 4294901760
      %4352 = vmatmul.mubr.f32.gmra.mrb[0].mxu0 %v4351
      %v4353 = vpop.f32.mrb[0].mxu0
      %v4354 = vadd.f32 %v3340, %v4353
      %v4355 = vpop.f32.mrb[0].mxu0
      %4356 = vmatprep.mubr.f32.mxu0 0.0
      %v4357 = vand.u32 %v489, 4294901760
      %v4358 = vsub.f32 %v489, %v4357
      %v4359 = vand.u32 %v4358, 4294901760
      %4360 = vmatmul.mubr.f32.gmra.mrb[0].mxu0 %v4359
      %v4361 = vpop.f32.mrb[0].mxu0
      %v4362 = vadd.f32 %v3347, %v4361
      %v4363 = vpop.f32.mrb[0].mxu0
      %4364 = vmatprep.mubr.f32.mxu0 0.0
      %v4365 = vand.u32 %v492, 4294901760
      %v4366 = vsub.f32 %v492, %v4365
      %v4367 = vand.u32 %v4366, 4294901760
      %4368 = vmatmul.mubr.f32.gmra.mrb[0].mxu0 %v4367
      %v4369 = vpop.f32.mrb[0].mxu0
      %v4370 = vadd.f32 %v3354, %v4369
      %v4371 = vpop.f32.mrb[0].mxu0
      %4372 = vmatprep.mubr.f32.mxu0 0.0
      %v4373 = vand.u32 %v495, 4294901760
      %v4374 = vsub.f32 %v495, %v4373
      %v4375 = vand.u32 %v4374, 4294901760
      %4376 = vmatmul.mubr.f32.gmra.mrb[0].mxu0 %v4375
      %v4377 = vpop.f32.mrb[0].mxu0
      %v4378 = vadd.f32 %v3361, %v4377
      %v4379 = vpop.f32.mrb[0].mxu0
      %4380 = vmatprep.mubr.f32.mxu0 0.0
      %v4381 = vand.u32 %v498, 4294901760
      %v4382 = vsub.f32 %v498, %v4381
      %v4383 = vand.u32 %v4382, 4294901760
      %4384 = vmatmul.mubr.f32.gmra.mrb[0].mxu0 %v4383
      %v4385 = vpop.f32.mrb[0].mxu0
      %v4386 = vadd.f32 %v3368, %v4385
      %v4387 = vpop.f32.mrb[0].mxu0
      %4388 = vmatprep.mubr.f32.mxu0 0.0
      %v4389 = vand.u32 %v501, 4294901760
      %v4390 = vsub.f32 %v501, %v4389
      %v4391 = vand.u32 %v4390, 4294901760
      %4392 = vmatmul.mubr.f32.gmra.mrb[0].mxu0 %v4391
      %v4393 = vpop.f32.mrb[0].mxu0
      %v4394 = vadd.f32 %v3375, %v4393
      %v4395 = vpop.f32.mrb[0].mxu0
      %4396 = vmatprep.mubr.f32.mxu0 0.0
      %v4397 = vand.u32 %v504, 4294901760
      %v4398 = vsub.f32 %v504, %v4397
      %v4399 = vand.u32 %v4398, 4294901760
      %4400 = vmatmul.mubr.f32.gmra.mrb[0].mxu0 %v4399
      %v4401 = vpop.f32.mrb[0].mxu0
      %v4402 = vadd.f32 %v3382, %v4401
      %v4403 = vpop.f32.mrb[0].mxu0
      %4404 = vmatprep.mubr.f32.mxu0 0.0
      %v4405 = vand.u32 %v507, 4294901760
      %v4406 = vsub.f32 %v507, %v4405
      %v4407 = vand.u32 %v4406, 4294901760
      %4408 = vmatmul.mubr.f32.gmra.mrb[0].mxu0 %v4407
      %v4409 = vpop.f32.mrb[0].mxu0
      %v4410 = vadd.f32 %v3389, %v4409
      %v4411 = vpop.f32.mrb[0].mxu0
      %4412 = vmatprep.mubr.f32.mxu0 0.0
      %v4413 = vand.u32 %v510, 4294901760
      %v4414 = vsub.f32 %v510, %v4413
      %v4415 = vand.u32 %v4414, 4294901760
      %4416 = vmatmul.mubr.f32.gmra.mrb[0].mxu0 %v4415
      %v4417 = vpop.f32.mrb[0].mxu0
      %v4418 = vadd.f32 %v3396, %v4417
      %v4419 = vpop.f32.mrb[0].mxu0
      %4420 = vmatprep.mubr.f32.mxu0 0.0
      %v4421 = vand.u32 %v513, 4294901760
      %v4422 = vsub.f32 %v513, %v4421
      %v4423 = vand.u32 %v4422, 4294901760
      %4424 = vmatmul.mubr.f32.gmra.mrb[0].mxu0 %v4423
      %v4425 = vpop.f32.mrb[0].mxu0
      %v4426 = vadd.f32 %v3403, %v4425
      %v4427 = vpop.f32.mrb[0].mxu0
      %4428 = vmatprep.mubr.f32.mxu0 0.0
      %v4429 = vand.u32 %v516, 4294901760
      %v4430 = vsub.f32 %v516, %v4429
      %v4431 = vand.u32 %v4430, 4294901760
      %4432 = vmatmul.mubr.f32.gmra.mrb[0].mxu0 %v4431
      %v4433 = vpop.f32.mrb[0].mxu0
      %v4434 = vadd.f32 %v3410, %v4433
      %v4435 = vpop.f32.mrb[0].mxu0
      %4436 = vmatprep.mubr.f32.mxu0 0.0
      %v4437 = vand.u32 %v519, 4294901760
      %v4438 = vsub.f32 %v519, %v4437
      %v4439 = vand.u32 %v4438, 4294901760
      %4440 = vmatmul.mubr.f32.gmra.mrb[0].mxu0 %v4439
      %v4441 = vpop.f32.mrb[0].mxu0
      %v4442 = vadd.f32 %v3417, %v4441
      %v4443 = vpop.f32.mrb[0].mxu0
      %4444 = vmatprep.mubr.f32.mxu0 0.0
      %v4445 = vand.u32 %v522, 4294901760
      %v4446 = vsub.f32 %v522, %v4445
      %v4447 = vand.u32 %v4446, 4294901760
      %4448 = vmatmul.mubr.f32.gmra.mrb[0].mxu0 %v4447
      %v4449 = vpop.f32.mrb[0].mxu0
      %v4450 = vadd.f32 %v3424, %v4449
      %v4451 = vpop.f32.mrb[0].mxu0
      %4452 = vmatprep.mubr.f32.mxu0 0.0
      %v4453 = vand.u32 %v525, 4294901760
      %v4454 = vsub.f32 %v525, %v4453
      %v4455 = vand.u32 %v4454, 4294901760
      %4456 = vmatmul.mubr.f32.gmra.mrb[0].mxu0 %v4455
      %v4457 = vpop.f32.mrb[0].mxu0
      %v4458 = vadd.f32 %v3431, %v4457
      %v4459 = vpop.f32.mrb[0].mxu0
      %4460 = vmatprep.mubr.f32.mxu0 0.0
      %v4461 = vand.u32 %v528, 4294901760
      %v4462 = vsub.f32 %v528, %v4461
      %v4463 = vand.u32 %v4462, 4294901760
      %4464 = vmatmul.mubr.f32.gmra.mrb[0].mxu0 %v4463
      %v4465 = vpop.f32.mrb[0].mxu0
      %v4466 = vadd.f32 %v3438, %v4465
      %v4467 = vpop.f32.mrb[0].mxu0
      %4468 = vmatprep.mubr.f32.mxu0 0.0
      %v4469 = vand.u32 %v531, 4294901760
      %v4470 = vsub.f32 %v531, %v4469
      %v4471 = vand.u32 %v4470, 4294901760
      %4472 = vmatmul.mubr.f32.gmra.mrb[0].mxu0 %v4471
      %v4473 = vpop.f32.mrb[0].mxu0
      %v4474 = vadd.f32 %v3445, %v4473
      %v4475 = vpop.f32.mrb[0].mxu0
      %4476 = vmatprep.mubr.f32.mxu0 0.0
      %v4477 = vand.u32 %v534, 4294901760
      %v4478 = vsub.f32 %v534, %v4477
      %v4479 = vand.u32 %v4478, 4294901760
      %4480 = vmatmul.mubr.f32.gmra.mrb[0].mxu0 %v4479
      %v4481 = vpop.f32.mrb[0].mxu0
      %v4482 = vadd.f32 %v3452, %v4481
      %v4483 = vpop.f32.mrb[0].mxu0
      %4484 = vmatprep.mubr.f32.mxu0 0.0
      %v4485 = vand.u32 %v537, 4294901760
      %v4486 = vsub.f32 %v537, %v4485
      %v4487 = vand.u32 %v4486, 4294901760
      %4488 = vmatmul.mubr.f32.gmra.mrb[0].mxu0 %v4487
      %v4489 = vpop.f32.mrb[0].mxu0
      %v4490 = vadd.f32 %v3459, %v4489
      %v4491 = vpop.f32.mrb[0].mxu0
      %4492 = vmatprep.mubr.f32.mxu0 0.0
      %v4493 = vand.u32 %v540, 4294901760
      %v4494 = vsub.f32 %v540, %v4493
      %v4495 = vand.u32 %v4494, 4294901760
      %4496 = vmatmul.mubr.f32.gmra.mrb[0].mxu0 %v4495
      %v4497 = vpop.f32.mrb[0].mxu0
      %v4498 = vadd.f32 %v3466, %v4497
      %v4499 = vpop.f32.mrb[0].mxu0
      %4500 = vmatprep.mubr.f32.mxu0 0.0
      %v4501 = vand.u32 %v543, 4294901760
      %v4502 = vsub.f32 %v543, %v4501
      %v4503 = vand.u32 %v4502, 4294901760
      %4504 = vmatmul.mubr.f32.gmra.mrb[0].mxu0 %v4503
      %v4505 = vpop.f32.mrb[0].mxu0
      %v4506 = vadd.f32 %v3473, %v4505
      %v4507 = vpop.f32.mrb[0].mxu0
      %4508 = vmatprep.mubr.f32.mxu0 0.0
      %v4509 = vand.u32 %v546, 4294901760
      %v4510 = vsub.f32 %v546, %v4509
      %v4511 = vand.u32 %v4510, 4294901760
      %4512 = vmatmul.mubr.f32.gmra.mrb[0].mxu0 %v4511
      %v4513 = vpop.f32.mrb[0].mxu0
      %v4514 = vadd.f32 %v3480, %v4513
      %v4515 = vpop.f32.mrb[0].mxu0
      %4516 = vmatprep.mubr.f32.mxu0 0.0
      %v4517 = vand.u32 %v549, 4294901760
      %v4518 = vsub.f32 %v549, %v4517
      %v4519 = vand.u32 %v4518, 4294901760
      %4520 = vmatmul.mubr.f32.gmra.mrb[0].mxu0 %v4519
      %v4521 = vpop.f32.mrb[0].mxu0
      %v4522 = vadd.f32 %v3487, %v4521
      %v4523 = vpop.f32.mrb[0].mxu0
      %4524 = vmatprep.mubr.f32.mxu0 0.0
      %v4525 = vand.u32 %v552, 4294901760
      %v4526 = vsub.f32 %v552, %v4525
      %v4527 = vand.u32 %v4526, 4294901760
      %4528 = vmatmul.mubr.f32.gmra.mrb[0].mxu0 %v4527
      %v4529 = vpop.f32.mrb[0].mxu0
      %v4530 = vadd.f32 %v3494, %v4529
      %v4531 = vpop.f32.mrb[0].mxu0
      %4532 = vmatprep.mubr.f32.mxu0 0.0
      %v4533 = vand.u32 %v555, 4294901760
      %v4534 = vsub.f32 %v555, %v4533
      %v4535 = vand.u32 %v4534, 4294901760
      %4536 = vmatmul.mubr.f32.gmra.mrb[0].mxu0 %v4535
      %v4537 = vpop.f32.mrb[0].mxu0
      %v4538 = vadd.f32 %v3501, %v4537
      %v4539 = vpop.f32.mrb[0].mxu0
      %4540 = vmatprep.mubr.f32.mxu0 0.0
      %v4541 = vand.u32 %v558, 4294901760
      %v4542 = vsub.f32 %v558, %v4541
      %v4543 = vand.u32 %v4542, 4294901760
      %4544 = vmatmul.mubr.f32.gmra.mrb[0].mxu0 %v4543
      %v4545 = vpop.f32.mrb[0].mxu0
      %v4546 = vadd.f32 %v3508, %v4545
      %v4547 = vpop.f32.mrb[0].mxu0
      %4548 = vmatprep.mubr.f32.mxu0 0.0
      %v4549 = vand.u32 %v561, 4294901760
      %v4550 = vsub.f32 %v561, %v4549
      %v4551 = vand.u32 %v4550, 4294901760
      %4552 = vmatmul.mubr.f32.gmra.mrb[0].mxu0 %v4551
      %v4553 = vpop.f32.mrb[0].mxu0
      %v4554 = vadd.f32 %v3515, %v4553
      %v4555 = vpop.f32.mrb[0].mxu0
      %4556 = vmatprep.mubr.f32.mxu0 0.0
      %v4557 = vand.u32 %v564, 4294901760
      %v4558 = vsub.f32 %v564, %v4557
      %v4559 = vand.u32 %v4558, 4294901760
      %4560 = vmatmul.mubr.f32.gmra.mrb[0].mxu0 %v4559
      %v4561 = vpop.f32.mrb[0].mxu0
      %v4562 = vadd.f32 %v3522, %v4561
      %v4563 = vpop.f32.mrb[0].mxu0
      %4564 = vmatprep.mubr.f32.mxu0 0.0
      %v4565 = vand.u32 %v567, 4294901760
      %v4566 = vsub.f32 %v567, %v4565
      %v4567 = vand.u32 %v4566, 4294901760
      %4568 = vmatmul.mubr.f32.gmra.mrb[0].mxu0 %v4567
      %v4569 = vpop.f32.mrb[0].mxu0
      %v4570 = vadd.f32 %v3529, %v4569
      %v4571 = vpop.f32.mrb[0].mxu0
      %4572 = vmatprep.mubr.f32.mxu0 0.0
      %v4573 = vand.u32 %v570, 4294901760
      %v4574 = vsub.f32 %v570, %v4573
      %v4575 = vand.u32 %v4574, 4294901760
      %4576 = vmatmul.mubr.f32.gmra.mrb[0].mxu0 %v4575
      %v4577 = vpop.f32.mrb[0].mxu0
      %v4578 = vadd.f32 %v3536, %v4577
      %v4579 = vpop.f32.mrb[0].mxu0
      %4580 = vmatprep.mubr.f32.mxu0 0.0
      %v4581 = vand.u32 %v573, 4294901760
      %v4582 = vsub.f32 %v573, %v4581
      %v4583 = vand.u32 %v4582, 4294901760
      %4584 = vmatmul.mubr.f32.gmra.mrb[0].mxu0 %v4583
      %v4585 = vpop.f32.mrb[0].mxu0
      %v4586 = vadd.f32 %v3543, %v4585
      %v4587 = vpop.f32.mrb[0].mxu0
      %4588 = vmatprep.mubr.f32.mxu0 0.0
      %v4589 = vand.u32 %v576, 4294901760
      %v4590 = vsub.f32 %v576, %v4589
      %v4591 = vand.u32 %v4590, 4294901760
      %4592 = vmatmul.mubr.f32.gmra.mrb[0].mxu0 %v4591
      %v4593 = vpop.f32.mrb[0].mxu0
      %v4594 = vadd.f32 %v3550, %v4593
      %v4595 = vpop.f32.mrb[0].mxu0
      %4596 = vmatprep.mubr.f32.mxu0 0.0
      %v4597 = vand.u32 %v579, 4294901760
      %v4598 = vsub.f32 %v579, %v4597
      %v4599 = vand.u32 %v4598, 4294901760
      %4600 = vmatmul.mubr.f32.gmra.mrb[0].mxu0 %v4599
      %v4601 = vpop.f32.mrb[0].mxu0
      %v4602 = vadd.f32 %v3557, %v4601
      %v4603 = vpop.f32.mrb[0].mxu0
      %4604 = vmatprep.mubr.f32.mxu0 0.0
      %v4605 = vand.u32 %v582, 4294901760
      %v4606 = vsub.f32 %v582, %v4605
      %v4607 = vand.u32 %v4606, 4294901760
      %4608 = vmatmul.mubr.f32.gmra.mrb[0].mxu0 %v4607
      %v4609 = vpop.f32.mrb[0].mxu0
      %v4610 = vadd.f32 %v3564, %v4609
      %v4611 = vpop.f32.mrb[0].mxu0
      %4612 = vmatprep.mubr.f32.mxu0 0.0
      %v4613 = vand.u32 %v585, 4294901760
      %v4614 = vsub.f32 %v585, %v4613
      %v4615 = vand.u32 %v4614, 4294901760
      %4616 = vmatmul.mubr.f32.gmra.mrb[0].mxu0 %v4615
      %v4617 = vpop.f32.mrb[0].mxu0
      %v4618 = vadd.f32 %v3571, %v4617
      %v4619 = vpop.f32.mrb[0].mxu0
      %4620 = vmatprep.mubr.f32.mxu0 0.0
      %v4621 = vand.u32 %v588, 4294901760
      %v4622 = vsub.f32 %v588, %v4621
      %v4623 = vand.u32 %v4622, 4294901760
      %4624 = vmatmul.mubr.f32.gmra.mrb[0].mxu0 %v4623
      %v4625 = vpop.f32.mrb[0].mxu0
      %v4626 = vadd.f32 %v3578, %v4625
      %v4627 = vpop.f32.mrb[0].mxu0
      %4628 = vmatprep.mubr.f32.mxu0 0.0
      %v4629 = vand.u32 %v591, 4294901760
      %v4630 = vsub.f32 %v591, %v4629
      %v4631 = vand.u32 %v4630, 4294901760
      %4632 = vmatmul.mubr.f32.gmra.mrb[0].mxu0 %v4631
      %v4633 = vpop.f32.mrb[0].mxu0
      %v4634 = vadd.f32 %v3585, %v4633
      %v4635 = vpop.f32.mrb[0].mxu0
      %4636 = vmatprep.mubr.f32.mxu0 0.0
      %v4637 = vand.u32 %v594, 4294901760
      %v4638 = vsub.f32 %v594, %v4637
      %v4639 = vand.u32 %v4638, 4294901760
      %4640 = vmatmul.mubr.f32.gmra.mrb[0].mxu0 %v4639
      %v4641 = vpop.f32.mrb[0].mxu0
      %v4642 = vadd.f32 %v3592, %v4641
      %v4643 = vpop.f32.mrb[0].mxu0
      %4644 = vmatprep.mubr.f32.mxu0 0.0
      %v4645 = vand.u32 %v597, 4294901760
      %v4646 = vsub.f32 %v597, %v4645
      %v4647 = vand.u32 %v4646, 4294901760
      %4648 = vmatmul.mubr.f32.gmra.mrb[0].mxu0 %v4647
      %v4649 = vpop.f32.mrb[0].mxu0
      %v4650 = vadd.f32 %v3599, %v4649
      %v4651 = vpop.f32.mrb[0].mxu0
      %4652 = vmatprep.mubr.f32.mxu0 0.0
      %v4653 = vand.u32 %v600, 4294901760
      %v4654 = vsub.f32 %v600, %v4653
      %v4655 = vand.u32 %v4654, 4294901760
      %4656 = vmatmul.mubr.f32.gmra.mrb[0].mxu0 %v4655
      %v4657 = vpop.f32.mrb[0].mxu0
      %v4658 = vadd.f32 %v3606, %v4657
      %v4659 = vpop.f32.mrb[0].mxu0
      %4660 = vmatprep.mubr.f32.mxu0 0.0
      %v4661 = vand.u32 %v603, 4294901760
      %v4662 = vsub.f32 %v603, %v4661
      %v4663 = vand.u32 %v4662, 4294901760
      %4664 = vmatmul.mubr.f32.gmra.mrb[0].mxu0 %v4663
      %v4665 = vpop.f32.mrb[0].mxu0
      %v4666 = vadd.f32 %v3613, %v4665
      %v4667 = vpop.f32.mrb[0].mxu0
      %4668 = vmatprep.mubr.f32.mxu0 0.0
      %v4669 = vand.u32 %v606, 4294901760
      %v4670 = vsub.f32 %v606, %v4669
      %v4671 = vand.u32 %v4670, 4294901760
      %4672 = vmatmul.mubr.f32.gmra.mrb[0].mxu0 %v4671
      %v4673 = vpop.f32.mrb[0].mxu0
      %v4674 = vadd.f32 %v3620, %v4673
      %v4675 = vpop.f32.mrb[0].mxu0
      %4676 = vmatprep.mubr.f32.mxu0 0.0
      %v4677 = vand.u32 %v609, 4294901760
      %v4678 = vsub.f32 %v609, %v4677
      %v4679 = vand.u32 %v4678, 4294901760
      %4680 = vmatmul.mubr.f32.gmra.mrb[0].mxu0 %v4679
      %v4681 = vpop.f32.mrb[0].mxu0
      %v4682 = vadd.f32 %v3627, %v4681
      %v4683 = vpop.f32.mrb[0].mxu0
      %4684 = vmatprep.mubr.f32.mxu0 0.0
      %v4685 = vand.u32 %v612, 4294901760
      %v4686 = vsub.f32 %v612, %v4685
      %v4687 = vand.u32 %v4686, 4294901760
      %4688 = vmatmul.mubr.f32.gmra.mrb[0].mxu0 %v4687
      %v4689 = vpop.f32.mrb[0].mxu0
      %v4690 = vadd.f32 %v3634, %v4689
      %v4691 = vpop.f32.mrb[0].mxu0
      %4692 = vmatprep.mubr.f32.mxu0 0.0
      %v4693 = vand.u32 %v615, 4294901760
      %v4694 = vsub.f32 %v615, %v4693
      %v4695 = vand.u32 %v4694, 4294901760
      %4696 = vmatmul.mubr.f32.gmra.mrb[0].mxu0 %v4695
      %v4697 = vpop.f32.mrb[0].mxu0
      %v4698 = vadd.f32 %v3641, %v4697
      %v4699 = vpop.f32.mrb[0].mxu0
      %4700 = vmatprep.mubr.f32.mxu0 0.0
      %v4701 = vand.u32 %v618, 4294901760
      %v4702 = vsub.f32 %v618, %v4701
      %v4703 = vand.u32 %v4702, 4294901760
      %4704 = vmatmul.mubr.f32.gmra.mrb[0].mxu0 %v4703
      %v4705 = vpop.f32.mrb[0].mxu0
      %v4706 = vadd.f32 %v3648, %v4705
      %v4707 = vpop.f32.mrb[0].mxu0
      %4708 = vmatprep.mubr.f32.mxu0 0.0
      %v4709 = vand.u32 %v621, 4294901760
      %v4710 = vsub.f32 %v621, %v4709
      %v4711 = vand.u32 %v4710, 4294901760
      %4712 = vmatmul.mubr.f32.gmra.mrb[0].mxu0 %v4711
      %v4713 = vpop.f32.mrb[0].mxu0
      %v4714 = vadd.f32 %v3655, %v4713
      %v4715 = vpop.f32.mrb[0].mxu0
      %4716 = vmatprep.mubr.f32.mxu0 0.0
      %v4717 = vand.u32 %v624, 4294901760
      %v4718 = vsub.f32 %v624, %v4717
      %v4719 = vand.u32 %v4718, 4294901760
      %4720 = vmatmul.mubr.f32.gmra.mrb[0].mxu0 %v4719
      %v4721 = vpop.f32.mrb[0].mxu0
      %v4722 = vadd.f32 %v3662, %v4721
      %v4723 = vpop.f32.mrb[0].mxu0
      %4724 = vmatprep.mubr.f32.mxu0 0.0
      %v4725 = vand.u32 %v627, 4294901760
      %v4726 = vsub.f32 %v627, %v4725
      %v4727 = vand.u32 %v4726, 4294901760
      %4728 = vmatmul.mubr.f32.gmra.mrb[0].mxu0 %v4727
      %v4729 = vpop.f32.mrb[0].mxu0
      %v4730 = vadd.f32 %v3669, %v4729
      %v4731 = vpop.f32.mrb[0].mxu0
      %4732 = vmatprep.mubr.f32.mxu0 0.0
      %v4733 = vand.u32 %v630, 4294901760
      %v4734 = vsub.f32 %v630, %v4733
      %v4735 = vand.u32 %v4734, 4294901760
      %4736 = vmatmul.mubr.f32.gmra.mrb[0].mxu0 %v4735
      %v4737 = vpop.f32.mrb[0].mxu0
      %v4738 = vadd.f32 %v3676, %v4737
      %v4739 = vpop.f32.mrb[0].mxu0
      %4740 = vmatprep.mubr.f32.mxu0 0.0
      %v4741 = vand.u32 %v633, 4294901760
      %v4742 = vsub.f32 %v633, %v4741
      %v4743 = vand.u32 %v4742, 4294901760
      %4744 = vmatmul.mubr.f32.gmra.mrb[0].mxu0 %v4743
      %v4745 = vpop.f32.mrb[0].mxu0
      %v4746 = vadd.f32 %v3683, %v4745
      %v4747 = vpop.f32.mrb[0].mxu0
      %4748 = vmatprep.mubr.f32.mxu0 0.0
      %v4749 = vand.u32 %v636, 4294901760
      %v4750 = vsub.f32 %v636, %v4749
      %v4751 = vand.u32 %v4750, 4294901760
      %4752 = vmatmul.mubr.f32.gmra.mrb[0].mxu0 %v4751
      %v4753 = vpop.f32.mrb[0].mxu0
      %v4754 = vadd.f32 %v3690, %v4753
      %v4755 = vpop.f32.mrb[0].mxu0
      %4756 = vmatprep.mubr.f32.mxu0 0.0
      %v4757 = vand.u32 %v639, 4294901760
      %v4758 = vsub.f32 %v639, %v4757
      %v4759 = vand.u32 %v4758, 4294901760
      %4760 = vmatmul.mubr.f32.gmra.mrb[0].mxu0 %v4759
      %v4761 = vpop.f32.mrb[0].mxu0
      %v4762 = vadd.f32 %v3697, %v4761
      %v4763 = vpop.f32.mrb[0].mxu0
      %4764 = vmatprep.mubr.f32.mxu0 0.0
      %v4765 = vand.u32 %v642, 4294901760
      %v4766 = vsub.f32 %v642, %v4765
      %v4767 = vand.u32 %v4766, 4294901760
      %4768 = vmatmul.mubr.f32.gmra.mrb[0].mxu0 %v4767
      %v4769 = vpop.f32.mrb[0].mxu0
      %v4770 = vadd.f32 %v3704, %v4769
      %v4771 = vpop.f32.mrb[0].mxu0
      %4772 = vmatprep.mubr.f32.mxu0 0.0
      %v4773 = vand.u32 %v645, 4294901760
      %v4774 = vsub.f32 %v645, %v4773
      %v4775 = vand.u32 %v4774, 4294901760
      %4776 = vmatmul.mubr.f32.gmra.mrb[0].mxu0 %v4775
      %v4777 = vpop.f32.mrb[0].mxu0
      %v4778 = vadd.f32 %v3711, %v4777
      %v4779 = vpop.f32.mrb[0].mxu0
      %4780 = vmatprep.mubr.f32.mxu0 0.0
      %v4781 = vand.u32 %v648, 4294901760
      %v4782 = vsub.f32 %v648, %v4781
      %v4783 = vand.u32 %v4782, 4294901760
      %4784 = vmatmul.mubr.f32.gmra.mrb[0].mxu0 %v4783
      %v4785 = vpop.f32.mrb[0].mxu0
      %v4786 = vadd.f32 %v3718, %v4785
      %v4787 = vpop.f32.mrb[0].mxu0
      %4788 = vmatprep.mubr.f32.mxu0 0.0
      %v4789 = vand.u32 %v651, 4294901760
      %v4790 = vsub.f32 %v651, %v4789
      %v4791 = vand.u32 %v4790, 4294901760
      %4792 = vmatmul.mubr.f32.gmra.mrb[0].mxu0 %v4791
      %v4793 = vpop.f32.mrb[0].mxu0
      %v4794 = vadd.f32 %v3725, %v4793
      %v4795 = vpop.f32.mrb[0].mxu0
      %4796 = vmatprep.mubr.f32.mxu0 0.0
      %v4797 = vand.u32 %v654, 4294901760
      %v4798 = vsub.f32 %v654, %v4797
      %v4799 = vand.u32 %v4798, 4294901760
      %4800 = vmatmul.mubr.f32.gmra.mrb[0].mxu0 %v4799
      %v4801 = vpop.f32.mrb[0].mxu0
      %v4802 = vadd.f32 %v3732, %v4801
      %v4803 = vpop.f32.mrb[0].mxu0
      %4804 = vmatprep.mubr.f32.mxu0 0.0
      %v4805 = vand.u32 %v657, 4294901760
      %v4806 = vsub.f32 %v657, %v4805
      %v4807 = vand.u32 %v4806, 4294901760
      %4808 = vmatmul.mubr.f32.gmra.mrb[0].mxu0 %v4807
      %v4809 = vpop.f32.mrb[0].mxu0
      %v4810 = vadd.f32 %v3739, %v4809
      %v4811 = vpop.f32.mrb[0].mxu0
      %4812 = vmatprep.mubr.f32.mxu0 0.0
      %v4813 = vand.u32 %v660, 4294901760
      %v4814 = vsub.f32 %v660, %v4813
      %v4815 = vand.u32 %v4814, 4294901760
      %4816 = vmatmul.mubr.f32.gmra.mrb[0].mxu0 %v4815
      %v4817 = vpop.f32.mrb[0].mxu0
      %v4818 = vadd.f32 %v3746, %v4817
      %v4819 = vpop.f32.mrb[0].mxu0
      %4820 = vmatprep.mubr.f32.mxu0 0.0
      %v4821 = vand.u32 %v663, 4294901760
      %v4822 = vsub.f32 %v663, %v4821
      %v4823 = vand.u32 %v4822, 4294901760
      %4824 = vmatmul.mubr.f32.gmra.mrb[0].mxu0 %v4823
      %v4825 = vpop.f32.mrb[0].mxu0
      %v4826 = vadd.f32 %v3753, %v4825
      %v4827 = vpop.f32.mrb[0].mxu0
      %4828 = vmatprep.mubr.f32.mxu0 0.0
      %v4829 = vand.u32 %v666, 4294901760
      %v4830 = vsub.f32 %v666, %v4829
      %v4831 = vand.u32 %v4830, 4294901760
      %4832 = vmatmul.mubr.f32.gmra.mrb[0].mxu0 %v4831
      %v4833 = vpop.f32.mrb[0].mxu0
      %v4834 = vadd.f32 %v3760, %v4833
      %v4835 = vpop.f32.mrb[0].mxu0
      %4836 = vmatprep.mubr.f32.mxu0 0.0
      %v4837 = vand.u32 %v669, 4294901760
      %v4838 = vsub.f32 %v669, %v4837
      %v4839 = vand.u32 %v4838, 4294901760
      %4840 = vmatmul.mubr.f32.gmra.mrb[0].mxu0 %v4839
      %v4841 = vpop.f32.mrb[0].mxu0
      %v4842 = vadd.f32 %v3767, %v4841
      %v4843 = vpop.f32.mrb[0].mxu0
      %4844 = vmatprep.mubr.f32.mxu0 0.0
      %v4845 = vand.u32 %v672, 4294901760
      %v4846 = vsub.f32 %v672, %v4845
      %v4847 = vand.u32 %v4846, 4294901760
      %4848 = vmatmul.mubr.f32.gmra.mrb[0].mxu0 %v4847
      %v4849 = vpop.f32.mrb[0].mxu0
      %v4850 = vadd.f32 %v3774, %v4849
      %v4851 = vpop.f32.mrb[0].mxu0
      %4852 = vmatprep.mubr.f32.mxu0 0.0
      %v4853 = vand.u32 %v675, 4294901760
      %v4854 = vsub.f32 %v675, %v4853
      %v4855 = vand.u32 %v4854, 4294901760
      %4856 = vmatmul.mubr.f32.gmra.mrb[0].mxu0 %v4855
      %v4857 = vpop.f32.mrb[0].mxu0
      %v4858 = vadd.f32 %v3781, %v4857
      %v4859 = vpop.f32.mrb[0].mxu0
      %4860 = vmatprep.mubr.f32.mxu0 0.0
      %v4861 = vand.u32 %v678, 4294901760
      %v4862 = vsub.f32 %v678, %v4861
      %v4863 = vand.u32 %v4862, 4294901760
      %4864 = vmatmul.mubr.f32.gmra.mrb[0].mxu0 %v4863
      %v4865 = vpop.f32.mrb[0].mxu0
      %v4866 = vadd.f32 %v3788, %v4865
      %v4867 = vpop.f32.mrb[0].mxu0
      %4868 = vmatprep.mubr.f32.mxu0 0.0
      %v4869 = vand.u32 %v681, 4294901760
      %v4870 = vsub.f32 %v681, %v4869
      %v4871 = vand.u32 %v4870, 4294901760
      %4872 = vmatmul.mubr.f32.gmra.mrb[0].mxu0 %v4871
      %v4873 = vpop.f32.mrb[0].mxu0
      %v4874 = vadd.f32 %v3795, %v4873
      %v4875 = vpop.f32.mrb[0].mxu0
      %4876 = vmatprep.mubr.f32.mxu0 0.0
      %v4877 = vand.u32 %v684, 4294901760
      %v4878 = vsub.f32 %v684, %v4877
      %v4879 = vand.u32 %v4878, 4294901760
      %4880 = vmatmul.mubr.f32.gmra.mrb[0].mxu0 %v4879
      %v4881 = vpop.f32.mrb[0].mxu0
      %v4882 = vadd.f32 %v3802, %v4881
      %v4883 = vpop.f32.mrb[0].mxu0
      %4884 = vmatprep.mubr.f32.mxu0 0.0
      %v4885 = vand.u32 %v687, 4294901760
      %v4886 = vsub.f32 %v687, %v4885
      %v4887 = vand.u32 %v4886, 4294901760
      %4888 = vmatmul.mubr.f32.gmra.mrb[0].mxu0 %v4887
      %v4889 = vpop.f32.mrb[0].mxu0
      %v4890 = vadd.f32 %v3809, %v4889
      %v4891 = vpop.f32.mrb[0].mxu0
      %4892 = vmatprep.mubr.f32.mxu0 0.0
      %v4893 = vand.u32 %v690, 4294901760
      %v4894 = vsub.f32 %v690, %v4893
      %v4895 = vand.u32 %v4894, 4294901760
      %4896 = vmatmul.mubr.f32.gmra.mrb[0].mxu0 %v4895
      %v4897 = vpop.f32.mrb[0].mxu0
      %v4898 = vadd.f32 %v3816, %v4897
      %v4899 = vpop.f32.mrb[0].mxu0
      %4900 = vmatprep.mubr.f32.mxu0 0.0
      %v4901 = vand.u32 %v693, 4294901760
      %v4902 = vsub.f32 %v693, %v4901
      %v4903 = vand.u32 %v4902, 4294901760
      %4904 = vmatmul.mubr.f32.gmra.mrb[0].mxu0 %v4903
      %v4905 = vpop.f32.mrb[0].mxu0
      %v4906 = vadd.f32 %v3823, %v4905
      %v4907 = vpop.f32.mrb[0].mxu0
      %4908 = vmatprep.mubr.f32.mxu0 0.0
      %v4909 = vand.u32 %v696, 4294901760
      %v4910 = vsub.f32 %v696, %v4909
      %v4911 = vand.u32 %v4910, 4294901760
      %4912 = vmatmul.mubr.f32.gmra.mrb[0].mxu0 %v4911
      %v4913 = vpop.f32.mrb[0].mxu0
      %v4914 = vadd.f32 %v3830, %v4913
      %v4915 = vpop.f32.mrb[0].mxu0
      %4916 = vmatprep.mubr.f32.mxu0 0.0
      %v4917 = vand.u32 %v699, 4294901760
      %v4918 = vsub.f32 %v699, %v4917
      %v4919 = vand.u32 %v4918, 4294901760
      %4920 = vmatmul.mubr.f32.gmra.mrb[0].mxu0 %v4919
      %v4921 = vpop.f32.mrb[0].mxu0
      %v4922 = vadd.f32 %v3837, %v4921
      %v4923 = vpop.f32.mrb[0].mxu0
      %4924 = vmatprep.mubr.f32.mxu0 0.0
      %v4925 = vand.u32 %v702, 4294901760
      %v4926 = vsub.f32 %v702, %v4925
      %v4927 = vand.u32 %v4926, 4294901760
      %4928 = vmatmul.mubr.f32.gmra.mrb[0].mxu0 %v4927
      %v4929 = vpop.f32.mrb[0].mxu0
      %v4930 = vadd.f32 %v3844, %v4929
      %v4931 = vpop.f32.mrb[0].mxu0
      %4932 = vmatprep.mubr.f32.mxu0 0.0
      %v4933 = vand.u32 %v705, 4294901760
      %v4934 = vsub.f32 %v705, %v4933
      %v4935 = vand.u32 %v4934, 4294901760
      %4936 = vmatmul.mubr.f32.gmra.mrb[0].mxu0 %v4935
      %v4937 = vpop.f32.mrb[0].mxu0
      %v4938 = vadd.f32 %v3851, %v4937
      %v4939 = vpop.f32.mrb[0].mxu0
      %4940 = vmatprep.mubr.f32.mxu0 0.0
      %v4941 = vand.u32 %v708, 4294901760
      %v4942 = vsub.f32 %v708, %v4941
      %v4943 = vand.u32 %v4942, 4294901760
      %4944 = vmatmul.mubr.f32.gmra.mrb[0].mxu0 %v4943
      %v4945 = vpop.f32.mrb[0].mxu0
      %v4946 = vadd.f32 %v3858, %v4945
      %v4947 = vpop.f32.mrb[0].mxu0
      %4948 = vmatprep.mubr.f32.mxu0 0.0
      %v4949 = vand.u32 %v711, 4294901760
      %v4950 = vsub.f32 %v711, %v4949
      %v4951 = vand.u32 %v4950, 4294901760
      %4952 = vmatmul.mubr.f32.gmra.mrb[0].mxu0 %v4951
      %v4953 = vpop.f32.mrb[0].mxu0
      %v4954 = vadd.f32 %v3865, %v4953
      %v4955 = vpop.f32.mrb[0].mxu0
      %4956 = vmatprep.mubr.f32.mxu0 0.0
      %v4957 = vand.u32 %v714, 4294901760
      %v4958 = vsub.f32 %v714, %v4957
      %v4959 = vand.u32 %v4958, 4294901760
      %4960 = vmatmul.mubr.f32.gmra.mrb[0].mxu0 %v4959
      %v4961 = vpop.f32.mrb[0].mxu0
      %v4962 = vadd.f32 %v3872, %v4961
      %v4963 = vpop.f32.mrb[0].mxu0
      %4964 = vmatprep.mubr.f32.mxu0 0.0
      %v4965 = vand.u32 %v717, 4294901760
      %v4966 = vsub.f32 %v717, %v4965
      %v4967 = vand.u32 %v4966, 4294901760
      %4968 = vmatmul.mubr.f32.gmra.mrb[0].mxu0 %v4967
      %v4969 = vpop.f32.mrb[0].mxu0
      %v4970 = vadd.f32 %v3879, %v4969
      %v4971 = vpop.f32.mrb[0].mxu0
      %4972 = vmatprep.mubr.f32.mxu0 0.0
      %v4973 = vand.u32 %v720, 4294901760
      %v4974 = vsub.f32 %v720, %v4973
      %v4975 = vand.u32 %v4974, 4294901760
      %4976 = vmatmul.mubr.f32.gmra.mrb[0].mxu0 %v4975
      %v4977 = vpop.f32.mrb[0].mxu0
      %v4978 = vadd.f32 %v3886, %v4977
      %v4979 = vpop.f32.mrb[0].mxu0
      %4980 = vmatprep.mubr.f32.mxu0 0.0
      %v4981 = vand.u32 %v723, 4294901760
      %v4982 = vsub.f32 %v723, %v4981
      %v4983 = vand.u32 %v4982, 4294901760
      %4984 = vmatmul.mubr.f32.gmra.mrb[0].mxu0 %v4983
      %v4985 = vpop.f32.mrb[0].mxu0
      %v4986 = vadd.f32 %v3893, %v4985
      %v4987 = vpop.f32.mrb[0].mxu0
      %4988 = vdwg.mxu0
      %4989 = vmatprep.subr.mxu0 0.0
      %v4990 = vand.u32 %v329, 4294901760
      %v4991 = vsub.f32 %v329, %v4990
      %v4992 = vand.u32 %v4991, 4294901760
      %4993 = vmatpush1.msra.mxu0 %v4992
      %4994 = vmatprep.subr.mxu0 0.0
      %v4995 = vand.u32 %v330, 4294901760
      %v4996 = vsub.f32 %v330, %v4995
      %v4997 = vand.u32 %v4996, 4294901760
      %4998 = vmatpush1.msra.mxu0 %v4997
      %4999 = vmatprep.subr.mxu0 0.0
      %v5000 = vand.u32 %v331, 4294901760
      %v5001 = vsub.f32 %v331, %v5000
      %v5002 = vand.u32 %v5001, 4294901760
      %5003 = vmatpush1.msra.mxu0 %v5002
      %5004 = vmatprep.subr.mxu0 0.0
      %v5005 = vand.u32 %v332, 4294901760
      %v5006 = vsub.f32 %v332, %v5005
      %v5007 = vand.u32 %v5006, 4294901760
      %5008 = vmatpush1.msra.mxu0 %v5007
      %5009 = vmatprep.subr.mxu0 0.0
      %5010 = vmatpush1.msra.mxu0 0.0
      %5011 = vmatprep.subr.mxu0 0.0
      %5012 = vmatpush1.msra.mxu0 0.0
      %5013 = vmatprep.subr.mxu0 0.0
      %5014 = vmatpush1.msra.mxu0 0.0
      %5015 = vmatprep.subr.mxu0 0.0
      %5016 = vmatpush1.msra.mxu0 0.0
      %5017 = vmatprep.subr.mxu0 0.0
      %5018 = vmatpush1.msra.mxu0 0.0
      %5019 = vmatprep.subr.mxu0 0.0
      %5020 = vmatpush1.msra.mxu0 0.0
      %5021 = vmatprep.subr.mxu0 0.0
      %5022 = vmatpush1.msra.mxu0 0.0
      %5023 = vmatprep.subr.mxu0 0.0
      %5024 = vmatpush1.msra.mxu0 0.0
      %5025 = vmatprep.subr.mxu0 0.0
      %5026 = vmatpush1.msra.mxu0 0.0
      %5027 = vmatprep.subr.mxu0 0.0
      %5028 = vmatpush1.msra.mxu0 0.0
      %5029 = vmatprep.subr.mxu0 0.0
      %5030 = vmatpush1.msra.mxu0 0.0
      %5031 = vmatprep.subr.mxu0 0.0
      %5032 = vmatpush1.msra.mxu0 0.0
      %5033 = vmatprep.subr.mxu0 0.0
      %5034 = vmatpush1.msra.mxu0 0.0
      %5035 = vmatprep.subr.mxu0 0.0
      %5036 = vmatpush1.msra.mxu0 0.0
      %5037 = vmatprep.subr.mxu0 0.0
      %5038 = vmatpush1.msra.mxu0 0.0
      %5039 = vmatprep.subr.mxu0 0.0
      %5040 = vmatpush1.msra.mxu0 0.0
      %5041 = vmatprep.subr.mxu0 0.0
      %5042 = vmatpush1.msra.mxu0 0.0
      %5043 = vmatprep.subr.mxu0 0.0
      %5044 = vmatpush1.msra.mxu0 0.0
      %5045 = vmatprep.subr.mxu0 0.0
      %5046 = vmatpush1.msra.mxu0 0.0
      %5047 = vmatprep.subr.mxu0 0.0
      %5048 = vmatpush1.msra.mxu0 0.0
      %5049 = vmatprep.subr.mxu0 0.0
      %5050 = vmatpush1.msra.mxu0 0.0
      %5051 = vmatprep.subr.mxu0 0.0
      %5052 = vmatpush1.msra.mxu0 0.0
      %5053 = vmatprep.subr.mxu0 0.0
      %5054 = vmatpush1.msra.mxu0 0.0
      %5055 = vmatprep.subr.mxu0 0.0
      %5056 = vmatpush1.msra.mxu0 0.0
      %5057 = vmatprep.subr.mxu0 0.0
      %5058 = vmatpush1.msra.mxu0 0.0
      %5059 = vmatprep.subr.mxu0 0.0
      %5060 = vmatpush1.msra.mxu0 0.0
      %5061 = vmatprep.subr.mxu0 0.0
      %5062 = vmatpush1.msra.mxu0 0.0
      %5063 = vmatprep.subr.mxu0 0.0
      %5064 = vmatpush1.msra.mxu0 0.0
      %5065 = vmatprep.mubr.f32.mxu0 0.0
      %v5066 = vand.u32 %v342, 4294901760
      %5067 = vmatmul.mubr.f32.gmra.mrb[0].mxu0 %v5066
      %v5068 = vpop.f32.mrb[0].mxu0
      %v5069 = vadd.f32 %v3970, %v5068
      %v5070 = vpop.f32.mrb[0].mxu0
      %5071 = vmatprep.mubr.f32.mxu0 0.0
      %v5072 = vand.u32 %v345, 4294901760
      %5073 = vmatmul.mubr.f32.gmra.mrb[0].mxu0 %v5072
      %v5074 = vpop.f32.mrb[0].mxu0
      %v5075 = vadd.f32 %v3978, %v5074
      %v5076 = vpop.f32.mrb[0].mxu0
      %5077 = vmatprep.mubr.f32.mxu0 0.0
      %v5078 = vand.u32 %v348, 4294901760
      %5079 = vmatmul.mubr.f32.gmra.mrb[0].mxu0 %v5078
      %v5080 = vpop.f32.mrb[0].mxu0
      %v5081 = vadd.f32 %v3986, %v5080
      %v5082 = vpop.f32.mrb[0].mxu0
      %5083 = vmatprep.mubr.f32.mxu0 0.0
      %v5084 = vand.u32 %v351, 4294901760
      %5085 = vmatmul.mubr.f32.gmra.mrb[0].mxu0 %v5084
      %v5086 = vpop.f32.mrb[0].mxu0
      %v5087 = vadd.f32 %v3994, %v5086
      %v5088 = vpop.f32.mrb[0].mxu0
      %5089 = vmatprep.mubr.f32.mxu0 0.0
      %v5090 = vand.u32 %v354, 4294901760
      %5091 = vmatmul.mubr.f32.gmra.mrb[0].mxu0 %v5090
      %v5092 = vpop.f32.mrb[0].mxu0
      %v5093 = vadd.f32 %v4002, %v5092
      %v5094 = vpop.f32.mrb[0].mxu0
      %5095 = vmatprep.mubr.f32.mxu0 0.0
      %v5096 = vand.u32 %v357, 4294901760
      %5097 = vmatmul.mubr.f32.gmra.mrb[0].mxu0 %v5096
      %v5098 = vpop.f32.mrb[0].mxu0
      %v5099 = vadd.f32 %v4010, %v5098
      %v5100 = vpop.f32.mrb[0].mxu0
      %5101 = vmatprep.mubr.f32.mxu0 0.0
      %v5102 = vand.u32 %v360, 4294901760
      %5103 = vmatmul.mubr.f32.gmra.mrb[0].mxu0 %v5102
      %v5104 = vpop.f32.mrb[0].mxu0
      %v5105 = vadd.f32 %v4018, %v5104
      %v5106 = vpop.f32.mrb[0].mxu0
      %5107 = vmatprep.mubr.f32.mxu0 0.0
      %v5108 = vand.u32 %v363, 4294901760
      %5109 = vmatmul.mubr.f32.gmra.mrb[0].mxu0 %v5108
      %v5110 = vpop.f32.mrb[0].mxu0
      %v5111 = vadd.f32 %v4026, %v5110
      %v5112 = vpop.f32.mrb[0].mxu0
      %5113 = vmatprep.mubr.f32.mxu0 0.0
      %v5114 = vand.u32 %v366, 4294901760
      %5115 = vmatmul.mubr.f32.gmra.mrb[0].mxu0 %v5114
      %v5116 = vpop.f32.mrb[0].mxu0
      %v5117 = vadd.f32 %v4034, %v5116
      %v5118 = vpop.f32.mrb[0].mxu0
      %5119 = vmatprep.mubr.f32.mxu0 0.0
      %v5120 = vand.u32 %v369, 4294901760
      %5121 = vmatmul.mubr.f32.gmra.mrb[0].mxu0 %v5120
      %v5122 = vpop.f32.mrb[0].mxu0
      %v5123 = vadd.f32 %v4042, %v5122
      %v5124 = vpop.f32.mrb[0].mxu0
      %5125 = vmatprep.mubr.f32.mxu0 0.0
      %v5126 = vand.u32 %v372, 4294901760
      %5127 = vmatmul.mubr.f32.gmra.mrb[0].mxu0 %v5126
      %v5128 = vpop.f32.mrb[0].mxu0
      %v5129 = vadd.f32 %v4050, %v5128
      %v5130 = vpop.f32.mrb[0].mxu0
      %5131 = vmatprep.mubr.f32.mxu0 0.0
      %v5132 = vand.u32 %v375, 4294901760
      %5133 = vmatmul.mubr.f32.gmra.mrb[0].mxu0 %v5132
      %v5134 = vpop.f32.mrb[0].mxu0
      %v5135 = vadd.f32 %v4058, %v5134
      %v5136 = vpop.f32.mrb[0].mxu0
      %5137 = vmatprep.mubr.f32.mxu0 0.0
      %v5138 = vand.u32 %v378, 4294901760
      %5139 = vmatmul.mubr.f32.gmra.mrb[0].mxu0 %v5138
      %v5140 = vpop.f32.mrb[0].mxu0
      %v5141 = vadd.f32 %v4066, %v5140
      %v5142 = vpop.f32.mrb[0].mxu0
      %5143 = vmatprep.mubr.f32.mxu0 0.0
      %v5144 = vand.u32 %v381, 4294901760
      %5145 = vmatmul.mubr.f32.gmra.mrb[0].mxu0 %v5144
      %v5146 = vpop.f32.mrb[0].mxu0
      %v5147 = vadd.f32 %v4074, %v5146
      %v5148 = vpop.f32.mrb[0].mxu0
      %5149 = vmatprep.mubr.f32.mxu0 0.0
      %v5150 = vand.u32 %v384, 4294901760
      %5151 = vmatmul.mubr.f32.gmra.mrb[0].mxu0 %v5150
      %v5152 = vpop.f32.mrb[0].mxu0
      %v5153 = vadd.f32 %v4082, %v5152
      %v5154 = vpop.f32.mrb[0].mxu0
      %5155 = vmatprep.mubr.f32.mxu0 0.0
      %v5156 = vand.u32 %v387, 4294901760
      %5157 = vmatmul.mubr.f32.gmra.mrb[0].mxu0 %v5156
      %v5158 = vpop.f32.mrb[0].mxu0
      %v5159 = vadd.f32 %v4090, %v5158
      %v5160 = vpop.f32.mrb[0].mxu0
      %5161 = vmatprep.mubr.f32.mxu0 0.0
      %v5162 = vand.u32 %v390, 4294901760
      %5163 = vmatmul.mubr.f32.gmra.mrb[0].mxu0 %v5162
      %v5164 = vpop.f32.mrb[0].mxu0
      %v5165 = vadd.f32 %v4098, %v5164
      %v5166 = vpop.f32.mrb[0].mxu0
      %5167 = vmatprep.mubr.f32.mxu0 0.0
      %v5168 = vand.u32 %v393, 4294901760
      %5169 = vmatmul.mubr.f32.gmra.mrb[0].mxu0 %v5168
      %v5170 = vpop.f32.mrb[0].mxu0
      %v5171 = vadd.f32 %v4106, %v5170
      %v5172 = vpop.f32.mrb[0].mxu0
      %5173 = vmatprep.mubr.f32.mxu0 0.0
      %v5174 = vand.u32 %v396, 4294901760
      %5175 = vmatmul.mubr.f32.gmra.mrb[0].mxu0 %v5174
      %v5176 = vpop.f32.mrb[0].mxu0
      %v5177 = vadd.f32 %v4114, %v5176
      %v5178 = vpop.f32.mrb[0].mxu0
      %5179 = vmatprep.mubr.f32.mxu0 0.0
      %v5180 = vand.u32 %v399, 4294901760
      %5181 = vmatmul.mubr.f32.gmra.mrb[0].mxu0 %v5180
      %v5182 = vpop.f32.mrb[0].mxu0
      %v5183 = vadd.f32 %v4122, %v5182
      %v5184 = vpop.f32.mrb[0].mxu0
      %5185 = vmatprep.mubr.f32.mxu0 0.0
      %v5186 = vand.u32 %v402, 4294901760
      %5187 = vmatmul.mubr.f32.gmra.mrb[0].mxu0 %v5186
      %v5188 = vpop.f32.mrb[0].mxu0
      %v5189 = vadd.f32 %v4130, %v5188
      %v5190 = vpop.f32.mrb[0].mxu0
      %5191 = vmatprep.mubr.f32.mxu0 0.0
      %v5192 = vand.u32 %v405, 4294901760
      %5193 = vmatmul.mubr.f32.gmra.mrb[0].mxu0 %v5192
      %v5194 = vpop.f32.mrb[0].mxu0
      %v5195 = vadd.f32 %v4138, %v5194
      %v5196 = vpop.f32.mrb[0].mxu0
      %5197 = vmatprep.mubr.f32.mxu0 0.0
      %v5198 = vand.u32 %v408, 4294901760
      %5199 = vmatmul.mubr.f32.gmra.mrb[0].mxu0 %v5198
      %v5200 = vpop.f32.mrb[0].mxu0
      %v5201 = vadd.f32 %v4146, %v5200
      %v5202 = vpop.f32.mrb[0].mxu0
      %5203 = vmatprep.mubr.f32.mxu0 0.0
      %v5204 = vand.u32 %v411, 4294901760
      %5205 = vmatmul.mubr.f32.gmra.mrb[0].mxu0 %v5204
      %v5206 = vpop.f32.mrb[0].mxu0
      %v5207 = vadd.f32 %v4154, %v5206
      %v5208 = vpop.f32.mrb[0].mxu0
      %5209 = vmatprep.mubr.f32.mxu0 0.0
      %v5210 = vand.u32 %v414, 4294901760
      %5211 = vmatmul.mubr.f32.gmra.mrb[0].mxu0 %v5210
      %v5212 = vpop.f32.mrb[0].mxu0
      %v5213 = vadd.f32 %v4162, %v5212
      %v5214 = vpop.f32.mrb[0].mxu0
      %5215 = vmatprep.mubr.f32.mxu0 0.0
      %v5216 = vand.u32 %v417, 4294901760
      %5217 = vmatmul.mubr.f32.gmra.mrb[0].mxu0 %v5216
      %v5218 = vpop.f32.mrb[0].mxu0
      %v5219 = vadd.f32 %v4170, %v5218
      %v5220 = vpop.f32.mrb[0].mxu0
      %5221 = vmatprep.mubr.f32.mxu0 0.0
      %v5222 = vand.u32 %v420, 4294901760
      %5223 = vmatmul.mubr.f32.gmra.mrb[0].mxu0 %v5222
      %v5224 = vpop.f32.mrb[0].mxu0
      %v5225 = vadd.f32 %v4178, %v5224
      %v5226 = vpop.f32.mrb[0].mxu0
      %5227 = vmatprep.mubr.f32.mxu0 0.0
      %v5228 = vand.u32 %v423, 4294901760
      %5229 = vmatmul.mubr.f32.gmra.mrb[0].mxu0 %v5228
      %v5230 = vpop.f32.mrb[0].mxu0
      %v5231 = vadd.f32 %v4186, %v5230
      %v5232 = vpop.f32.mrb[0].mxu0
      %5233 = vmatprep.mubr.f32.mxu0 0.0
      %v5234 = vand.u32 %v426, 4294901760
      %5235 = vmatmul.mubr.f32.gmra.mrb[0].mxu0 %v5234
      %v5236 = vpop.f32.mrb[0].mxu0
      %v5237 = vadd.f32 %v4194, %v5236
      %v5238 = vpop.f32.mrb[0].mxu0
      %5239 = vmatprep.mubr.f32.mxu0 0.0
      %v5240 = vand.u32 %v429, 4294901760
      %5241 = vmatmul.mubr.f32.gmra.mrb[0].mxu0 %v5240
      %v5242 = vpop.f32.mrb[0].mxu0
      %v5243 = vadd.f32 %v4202, %v5242
      %v5244 = vpop.f32.mrb[0].mxu0
      %5245 = vmatprep.mubr.f32.mxu0 0.0
      %v5246 = vand.u32 %v432, 4294901760
      %5247 = vmatmul.mubr.f32.gmra.mrb[0].mxu0 %v5246
      %v5248 = vpop.f32.mrb[0].mxu0
      %v5249 = vadd.f32 %v4210, %v5248
      %v5250 = vpop.f32.mrb[0].mxu0
      %5251 = vmatprep.mubr.f32.mxu0 0.0
      %v5252 = vand.u32 %v435, 4294901760
      %5253 = vmatmul.mubr.f32.gmra.mrb[0].mxu0 %v5252
      %v5254 = vpop.f32.mrb[0].mxu0
      %v5255 = vadd.f32 %v4218, %v5254
      %v5256 = vpop.f32.mrb[0].mxu0
      %5257 = vmatprep.mubr.f32.mxu0 0.0
      %v5258 = vand.u32 %v438, 4294901760
      %5259 = vmatmul.mubr.f32.gmra.mrb[0].mxu0 %v5258
      %v5260 = vpop.f32.mrb[0].mxu0
      %v5261 = vadd.f32 %v4226, %v5260
      %v5262 = vpop.f32.mrb[0].mxu0
      %5263 = vmatprep.mubr.f32.mxu0 0.0
      %v5264 = vand.u32 %v441, 4294901760
      %5265 = vmatmul.mubr.f32.gmra.mrb[0].mxu0 %v5264
      %v5266 = vpop.f32.mrb[0].mxu0
      %v5267 = vadd.f32 %v4234, %v5266
      %v5268 = vpop.f32.mrb[0].mxu0
      %5269 = vmatprep.mubr.f32.mxu0 0.0
      %v5270 = vand.u32 %v444, 4294901760
      %5271 = vmatmul.mubr.f32.gmra.mrb[0].mxu0 %v5270
      %v5272 = vpop.f32.mrb[0].mxu0
      %v5273 = vadd.f32 %v4242, %v5272
      %v5274 = vpop.f32.mrb[0].mxu0
      %5275 = vmatprep.mubr.f32.mxu0 0.0
      %v5276 = vand.u32 %v447, 4294901760
      %5277 = vmatmul.mubr.f32.gmra.mrb[0].mxu0 %v5276
      %v5278 = vpop.f32.mrb[0].mxu0
      %v5279 = vadd.f32 %v4250, %v5278
      %v5280 = vpop.f32.mrb[0].mxu0
      %5281 = vmatprep.mubr.f32.mxu0 0.0
      %v5282 = vand.u32 %v450, 4294901760
      %5283 = vmatmul.mubr.f32.gmra.mrb[0].mxu0 %v5282
      %v5284 = vpop.f32.mrb[0].mxu0
      %v5285 = vadd.f32 %v4258, %v5284
      %v5286 = vpop.f32.mrb[0].mxu0
      %5287 = vmatprep.mubr.f32.mxu0 0.0
      %v5288 = vand.u32 %v453, 4294901760
      %5289 = vmatmul.mubr.f32.gmra.mrb[0].mxu0 %v5288
      %v5290 = vpop.f32.mrb[0].mxu0
      %v5291 = vadd.f32 %v4266, %v5290
      %v5292 = vpop.f32.mrb[0].mxu0
      %5293 = vmatprep.mubr.f32.mxu0 0.0
      %v5294 = vand.u32 %v456, 4294901760
      %5295 = vmatmul.mubr.f32.gmra.mrb[0].mxu0 %v5294
      %v5296 = vpop.f32.mrb[0].mxu0
      %v5297 = vadd.f32 %v4274, %v5296
      %v5298 = vpop.f32.mrb[0].mxu0
      %5299 = vmatprep.mubr.f32.mxu0 0.0
      %v5300 = vand.u32 %v459, 4294901760
      %5301 = vmatmul.mubr.f32.gmra.mrb[0].mxu0 %v5300
      %v5302 = vpop.f32.mrb[0].mxu0
      %v5303 = vadd.f32 %v4282, %v5302
      %v5304 = vpop.f32.mrb[0].mxu0
      %5305 = vmatprep.mubr.f32.mxu0 0.0
      %v5306 = vand.u32 %v462, 4294901760
      %5307 = vmatmul.mubr.f32.gmra.mrb[0].mxu0 %v5306
      %v5308 = vpop.f32.mrb[0].mxu0
      %v5309 = vadd.f32 %v4290, %v5308
      %v5310 = vpop.f32.mrb[0].mxu0
      %5311 = vmatprep.mubr.f32.mxu0 0.0
      %v5312 = vand.u32 %v465, 4294901760
      %5313 = vmatmul.mubr.f32.gmra.mrb[0].mxu0 %v5312
      %v5314 = vpop.f32.mrb[0].mxu0
      %v5315 = vadd.f32 %v4298, %v5314
      %v5316 = vpop.f32.mrb[0].mxu0
      %5317 = vmatprep.mubr.f32.mxu0 0.0
      %v5318 = vand.u32 %v468, 4294901760
      %5319 = vmatmul.mubr.f32.gmra.mrb[0].mxu0 %v5318
      %v5320 = vpop.f32.mrb[0].mxu0
      %v5321 = vadd.f32 %v4306, %v5320
      %v5322 = vpop.f32.mrb[0].mxu0
      %5323 = vmatprep.mubr.f32.mxu0 0.0
      %v5324 = vand.u32 %v471, 4294901760
      %5325 = vmatmul.mubr.f32.gmra.mrb[0].mxu0 %v5324
      %v5326 = vpop.f32.mrb[0].mxu0
      %v5327 = vadd.f32 %v4314, %v5326
      %v5328 = vpop.f32.mrb[0].mxu0
      %5329 = vmatprep.mubr.f32.mxu0 0.0
      %v5330 = vand.u32 %v474, 4294901760
      %5331 = vmatmul.mubr.f32.gmra.mrb[0].mxu0 %v5330
      %v5332 = vpop.f32.mrb[0].mxu0
      %v5333 = vadd.f32 %v4322, %v5332
      %v5334 = vpop.f32.mrb[0].mxu0
      %5335 = vmatprep.mubr.f32.mxu0 0.0
      %v5336 = vand.u32 %v477, 4294901760
      %5337 = vmatmul.mubr.f32.gmra.mrb[0].mxu0 %v5336
      %v5338 = vpop.f32.mrb[0].mxu0
      %v5339 = vadd.f32 %v4330, %v5338
      %v5340 = vpop.f32.mrb[0].mxu0
      %5341 = vmatprep.mubr.f32.mxu0 0.0
      %v5342 = vand.u32 %v480, 4294901760
      %5343 = vmatmul.mubr.f32.gmra.mrb[0].mxu0 %v5342
      %v5344 = vpop.f32.mrb[0].mxu0
      %v5345 = vadd.f32 %v4338, %v5344
      %v5346 = vpop.f32.mrb[0].mxu0
      %5347 = vmatprep.mubr.f32.mxu0 0.0
      %v5348 = vand.u32 %v483, 4294901760
      %5349 = vmatmul.mubr.f32.gmra.mrb[0].mxu0 %v5348
      %v5350 = vpop.f32.mrb[0].mxu0
      %v5351 = vadd.f32 %v4346, %v5350
      %v5352 = vpop.f32.mrb[0].mxu0
      %5353 = vmatprep.mubr.f32.mxu0 0.0
      %v5354 = vand.u32 %v486, 4294901760
      %5355 = vmatmul.mubr.f32.gmra.mrb[0].mxu0 %v5354
      %v5356 = vpop.f32.mrb[0].mxu0
      %v5357 = vadd.f32 %v4354, %v5356
      %v5358 = vpop.f32.mrb[0].mxu0
      %5359 = vmatprep.mubr.f32.mxu0 0.0
      %v5360 = vand.u32 %v489, 4294901760
      %5361 = vmatmul.mubr.f32.gmra.mrb[0].mxu0 %v5360
      %v5362 = vpop.f32.mrb[0].mxu0
      %v5363 = vadd.f32 %v4362, %v5362
      %v5364 = vpop.f32.mrb[0].mxu0
      %5365 = vmatprep.mubr.f32.mxu0 0.0
      %v5366 = vand.u32 %v492, 4294901760
      %5367 = vmatmul.mubr.f32.gmra.mrb[0].mxu0 %v5366
      %v5368 = vpop.f32.mrb[0].mxu0
      %v5369 = vadd.f32 %v4370, %v5368
      %v5370 = vpop.f32.mrb[0].mxu0
      %5371 = vmatprep.mubr.f32.mxu0 0.0
      %v5372 = vand.u32 %v495, 4294901760
      %5373 = vmatmul.mubr.f32.gmra.mrb[0].mxu0 %v5372
      %v5374 = vpop.f32.mrb[0].mxu0
      %v5375 = vadd.f32 %v4378, %v5374
      %v5376 = vpop.f32.mrb[0].mxu0
      %5377 = vmatprep.mubr.f32.mxu0 0.0
      %v5378 = vand.u32 %v498, 4294901760
      %5379 = vmatmul.mubr.f32.gmra.mrb[0].mxu0 %v5378
      %v5380 = vpop.f32.mrb[0].mxu0
      %v5381 = vadd.f32 %v4386, %v5380
      %v5382 = vpop.f32.mrb[0].mxu0
      %5383 = vmatprep.mubr.f32.mxu0 0.0
      %v5384 = vand.u32 %v501, 4294901760
      %5385 = vmatmul.mubr.f32.gmra.mrb[0].mxu0 %v5384
      %v5386 = vpop.f32.mrb[0].mxu0
      %v5387 = vadd.f32 %v4394, %v5386
      %v5388 = vpop.f32.mrb[0].mxu0
      %5389 = vmatprep.mubr.f32.mxu0 0.0
      %v5390 = vand.u32 %v504, 4294901760
      %5391 = vmatmul.mubr.f32.gmra.mrb[0].mxu0 %v5390
      %v5392 = vpop.f32.mrb[0].mxu0
      %v5393 = vadd.f32 %v4402, %v5392
      %v5394 = vpop.f32.mrb[0].mxu0
      %5395 = vmatprep.mubr.f32.mxu0 0.0
      %v5396 = vand.u32 %v507, 4294901760
      %5397 = vmatmul.mubr.f32.gmra.mrb[0].mxu0 %v5396
      %v5398 = vpop.f32.mrb[0].mxu0
      %v5399 = vadd.f32 %v4410, %v5398
      %v5400 = vpop.f32.mrb[0].mxu0
      %5401 = vmatprep.mubr.f32.mxu0 0.0
      %v5402 = vand.u32 %v510, 4294901760
      %5403 = vmatmul.mubr.f32.gmra.mrb[0].mxu0 %v5402
      %v5404 = vpop.f32.mrb[0].mxu0
      %v5405 = vadd.f32 %v4418, %v5404
      %v5406 = vpop.f32.mrb[0].mxu0
      %5407 = vmatprep.mubr.f32.mxu0 0.0
      %v5408 = vand.u32 %v513, 4294901760
      %5409 = vmatmul.mubr.f32.gmra.mrb[0].mxu0 %v5408
      %v5410 = vpop.f32.mrb[0].mxu0
      %v5411 = vadd.f32 %v4426, %v5410
      %v5412 = vpop.f32.mrb[0].mxu0
      %5413 = vmatprep.mubr.f32.mxu0 0.0
      %v5414 = vand.u32 %v516, 4294901760
      %5415 = vmatmul.mubr.f32.gmra.mrb[0].mxu0 %v5414
      %v5416 = vpop.f32.mrb[0].mxu0
      %v5417 = vadd.f32 %v4434, %v5416
      %v5418 = vpop.f32.mrb[0].mxu0
      %5419 = vmatprep.mubr.f32.mxu0 0.0
      %v5420 = vand.u32 %v519, 4294901760
      %5421 = vmatmul.mubr.f32.gmra.mrb[0].mxu0 %v5420
      %v5422 = vpop.f32.mrb[0].mxu0
      %v5423 = vadd.f32 %v4442, %v5422
      %v5424 = vpop.f32.mrb[0].mxu0
      %5425 = vmatprep.mubr.f32.mxu0 0.0
      %v5426 = vand.u32 %v522, 4294901760
      %5427 = vmatmul.mubr.f32.gmra.mrb[0].mxu0 %v5426
      %v5428 = vpop.f32.mrb[0].mxu0
      %v5429 = vadd.f32 %v4450, %v5428
      %v5430 = vpop.f32.mrb[0].mxu0
      %5431 = vmatprep.mubr.f32.mxu0 0.0
      %v5432 = vand.u32 %v525, 4294901760
      %5433 = vmatmul.mubr.f32.gmra.mrb[0].mxu0 %v5432
      %v5434 = vpop.f32.mrb[0].mxu0
      %v5435 = vadd.f32 %v4458, %v5434
      %v5436 = vpop.f32.mrb[0].mxu0
      %5437 = vmatprep.mubr.f32.mxu0 0.0
      %v5438 = vand.u32 %v528, 4294901760
      %5439 = vmatmul.mubr.f32.gmra.mrb[0].mxu0 %v5438
      %v5440 = vpop.f32.mrb[0].mxu0
      %v5441 = vadd.f32 %v4466, %v5440
      %v5442 = vpop.f32.mrb[0].mxu0
      %5443 = vmatprep.mubr.f32.mxu0 0.0
      %v5444 = vand.u32 %v531, 4294901760
      %5445 = vmatmul.mubr.f32.gmra.mrb[0].mxu0 %v5444
      %v5446 = vpop.f32.mrb[0].mxu0
      %v5447 = vadd.f32 %v4474, %v5446
      %v5448 = vpop.f32.mrb[0].mxu0
      %5449 = vmatprep.mubr.f32.mxu0 0.0
      %v5450 = vand.u32 %v534, 4294901760
      %5451 = vmatmul.mubr.f32.gmra.mrb[0].mxu0 %v5450
      %v5452 = vpop.f32.mrb[0].mxu0
      %v5453 = vadd.f32 %v4482, %v5452
      %v5454 = vpop.f32.mrb[0].mxu0
      %5455 = vmatprep.mubr.f32.mxu0 0.0
      %v5456 = vand.u32 %v537, 4294901760
      %5457 = vmatmul.mubr.f32.gmra.mrb[0].mxu0 %v5456
      %v5458 = vpop.f32.mrb[0].mxu0
      %v5459 = vadd.f32 %v4490, %v5458
      %v5460 = vpop.f32.mrb[0].mxu0
      %5461 = vmatprep.mubr.f32.mxu0 0.0
      %v5462 = vand.u32 %v540, 4294901760
      %5463 = vmatmul.mubr.f32.gmra.mrb[0].mxu0 %v5462
      %v5464 = vpop.f32.mrb[0].mxu0
      %v5465 = vadd.f32 %v4498, %v5464
      %v5466 = vpop.f32.mrb[0].mxu0
      %5467 = vmatprep.mubr.f32.mxu0 0.0
      %v5468 = vand.u32 %v543, 4294901760
      %5469 = vmatmul.mubr.f32.gmra.mrb[0].mxu0 %v5468
      %v5470 = vpop.f32.mrb[0].mxu0
      %v5471 = vadd.f32 %v4506, %v5470
      %v5472 = vpop.f32.mrb[0].mxu0
      %5473 = vmatprep.mubr.f32.mxu0 0.0
      %v5474 = vand.u32 %v546, 4294901760
      %5475 = vmatmul.mubr.f32.gmra.mrb[0].mxu0 %v5474
      %v5476 = vpop.f32.mrb[0].mxu0
      %v5477 = vadd.f32 %v4514, %v5476
      %v5478 = vpop.f32.mrb[0].mxu0
      %5479 = vmatprep.mubr.f32.mxu0 0.0
      %v5480 = vand.u32 %v549, 4294901760
      %5481 = vmatmul.mubr.f32.gmra.mrb[0].mxu0 %v5480
      %v5482 = vpop.f32.mrb[0].mxu0
      %v5483 = vadd.f32 %v4522, %v5482
      %v5484 = vpop.f32.mrb[0].mxu0
      %5485 = vmatprep.mubr.f32.mxu0 0.0
      %v5486 = vand.u32 %v552, 4294901760
      %5487 = vmatmul.mubr.f32.gmra.mrb[0].mxu0 %v5486
      %v5488 = vpop.f32.mrb[0].mxu0
      %v5489 = vadd.f32 %v4530, %v5488
      %v5490 = vpop.f32.mrb[0].mxu0
      %5491 = vmatprep.mubr.f32.mxu0 0.0
      %v5492 = vand.u32 %v555, 4294901760
      %5493 = vmatmul.mubr.f32.gmra.mrb[0].mxu0 %v5492
      %v5494 = vpop.f32.mrb[0].mxu0
      %v5495 = vadd.f32 %v4538, %v5494
      %v5496 = vpop.f32.mrb[0].mxu0
      %5497 = vmatprep.mubr.f32.mxu0 0.0
      %v5498 = vand.u32 %v558, 4294901760
      %5499 = vmatmul.mubr.f32.gmra.mrb[0].mxu0 %v5498
      %v5500 = vpop.f32.mrb[0].mxu0
      %v5501 = vadd.f32 %v4546, %v5500
      %v5502 = vpop.f32.mrb[0].mxu0
      %5503 = vmatprep.mubr.f32.mxu0 0.0
      %v5504 = vand.u32 %v561, 4294901760
      %5505 = vmatmul.mubr.f32.gmra.mrb[0].mxu0 %v5504
      %v5506 = vpop.f32.mrb[0].mxu0
      %v5507 = vadd.f32 %v4554, %v5506
      %v5508 = vpop.f32.mrb[0].mxu0
      %5509 = vmatprep.mubr.f32.mxu0 0.0
      %v5510 = vand.u32 %v564, 4294901760
      %5511 = vmatmul.mubr.f32.gmra.mrb[0].mxu0 %v5510
      %v5512 = vpop.f32.mrb[0].mxu0
      %v5513 = vadd.f32 %v4562, %v5512
      %v5514 = vpop.f32.mrb[0].mxu0
      %5515 = vmatprep.mubr.f32.mxu0 0.0
      %v5516 = vand.u32 %v567, 4294901760
      %5517 = vmatmul.mubr.f32.gmra.mrb[0].mxu0 %v5516
      %v5518 = vpop.f32.mrb[0].mxu0
      %v5519 = vadd.f32 %v4570, %v5518
      %v5520 = vpop.f32.mrb[0].mxu0
      %5521 = vmatprep.mubr.f32.mxu0 0.0
      %v5522 = vand.u32 %v570, 4294901760
      %5523 = vmatmul.mubr.f32.gmra.mrb[0].mxu0 %v5522
      %v5524 = vpop.f32.mrb[0].mxu0
      %v5525 = vadd.f32 %v4578, %v5524
      %v5526 = vpop.f32.mrb[0].mxu0
      %5527 = vmatprep.mubr.f32.mxu0 0.0
      %v5528 = vand.u32 %v573, 4294901760
      %5529 = vmatmul.mubr.f32.gmra.mrb[0].mxu0 %v5528
      %v5530 = vpop.f32.mrb[0].mxu0
      %v5531 = vadd.f32 %v4586, %v5530
      %v5532 = vpop.f32.mrb[0].mxu0
      %5533 = vmatprep.mubr.f32.mxu0 0.0
      %v5534 = vand.u32 %v576, 4294901760
      %5535 = vmatmul.mubr.f32.gmra.mrb[0].mxu0 %v5534
      %v5536 = vpop.f32.mrb[0].mxu0
      %v5537 = vadd.f32 %v4594, %v5536
      %v5538 = vpop.f32.mrb[0].mxu0
      %5539 = vmatprep.mubr.f32.mxu0 0.0
      %v5540 = vand.u32 %v579, 4294901760
      %5541 = vmatmul.mubr.f32.gmra.mrb[0].mxu0 %v5540
      %v5542 = vpop.f32.mrb[0].mxu0
      %v5543 = vadd.f32 %v4602, %v5542
      %v5544 = vpop.f32.mrb[0].mxu0
      %5545 = vmatprep.mubr.f32.mxu0 0.0
      %v5546 = vand.u32 %v582, 4294901760
      %5547 = vmatmul.mubr.f32.gmra.mrb[0].mxu0 %v5546
      %v5548 = vpop.f32.mrb[0].mxu0
      %v5549 = vadd.f32 %v4610, %v5548
      %v5550 = vpop.f32.mrb[0].mxu0
      %5551 = vmatprep.mubr.f32.mxu0 0.0
      %v5552 = vand.u32 %v585, 4294901760
      %5553 = vmatmul.mubr.f32.gmra.mrb[0].mxu0 %v5552
      %v5554 = vpop.f32.mrb[0].mxu0
      %v5555 = vadd.f32 %v4618, %v5554
      %v5556 = vpop.f32.mrb[0].mxu0
      %5557 = vmatprep.mubr.f32.mxu0 0.0
      %v5558 = vand.u32 %v588, 4294901760
      %5559 = vmatmul.mubr.f32.gmra.mrb[0].mxu0 %v5558
      %v5560 = vpop.f32.mrb[0].mxu0
      %v5561 = vadd.f32 %v4626, %v5560
      %v5562 = vpop.f32.mrb[0].mxu0
      %5563 = vmatprep.mubr.f32.mxu0 0.0
      %v5564 = vand.u32 %v591, 4294901760
      %5565 = vmatmul.mubr.f32.gmra.mrb[0].mxu0 %v5564
      %v5566 = vpop.f32.mrb[0].mxu0
      %v5567 = vadd.f32 %v4634, %v5566
      %v5568 = vpop.f32.mrb[0].mxu0
      %5569 = vmatprep.mubr.f32.mxu0 0.0
      %v5570 = vand.u32 %v594, 4294901760
      %5571 = vmatmul.mubr.f32.gmra.mrb[0].mxu0 %v5570
      %v5572 = vpop.f32.mrb[0].mxu0
      %v5573 = vadd.f32 %v4642, %v5572
      %v5574 = vpop.f32.mrb[0].mxu0
      %5575 = vmatprep.mubr.f32.mxu0 0.0
      %v5576 = vand.u32 %v597, 4294901760
      %5577 = vmatmul.mubr.f32.gmra.mrb[0].mxu0 %v5576
      %v5578 = vpop.f32.mrb[0].mxu0
      %v5579 = vadd.f32 %v4650, %v5578
      %v5580 = vpop.f32.mrb[0].mxu0
      %5581 = vmatprep.mubr.f32.mxu0 0.0
      %v5582 = vand.u32 %v600, 4294901760
      %5583 = vmatmul.mubr.f32.gmra.mrb[0].mxu0 %v5582
      %v5584 = vpop.f32.mrb[0].mxu0
      %v5585 = vadd.f32 %v4658, %v5584
      %v5586 = vpop.f32.mrb[0].mxu0
      %5587 = vmatprep.mubr.f32.mxu0 0.0
      %v5588 = vand.u32 %v603, 4294901760
      %5589 = vmatmul.mubr.f32.gmra.mrb[0].mxu0 %v5588
      %v5590 = vpop.f32.mrb[0].mxu0
      %v5591 = vadd.f32 %v4666, %v5590
      %v5592 = vpop.f32.mrb[0].mxu0
      %5593 = vmatprep.mubr.f32.mxu0 0.0
      %v5594 = vand.u32 %v606, 4294901760
      %5595 = vmatmul.mubr.f32.gmra.mrb[0].mxu0 %v5594
      %v5596 = vpop.f32.mrb[0].mxu0
      %v5597 = vadd.f32 %v4674, %v5596
      %v5598 = vpop.f32.mrb[0].mxu0
      %5599 = vmatprep.mubr.f32.mxu0 0.0
      %v5600 = vand.u32 %v609, 4294901760
      %5601 = vmatmul.mubr.f32.gmra.mrb[0].mxu0 %v5600
      %v5602 = vpop.f32.mrb[0].mxu0
      %v5603 = vadd.f32 %v4682, %v5602
      %v5604 = vpop.f32.mrb[0].mxu0
      %5605 = vmatprep.mubr.f32.mxu0 0.0
      %v5606 = vand.u32 %v612, 4294901760
      %5607 = vmatmul.mubr.f32.gmra.mrb[0].mxu0 %v5606
      %v5608 = vpop.f32.mrb[0].mxu0
      %v5609 = vadd.f32 %v4690, %v5608
      %v5610 = vpop.f32.mrb[0].mxu0
      %5611 = vmatprep.mubr.f32.mxu0 0.0
      %v5612 = vand.u32 %v615, 4294901760
      %5613 = vmatmul.mubr.f32.gmra.mrb[0].mxu0 %v5612
      %v5614 = vpop.f32.mrb[0].mxu0
      %v5615 = vadd.f32 %v4698, %v5614
      %v5616 = vpop.f32.mrb[0].mxu0
      %5617 = vmatprep.mubr.f32.mxu0 0.0
      %v5618 = vand.u32 %v618, 4294901760
      %5619 = vmatmul.mubr.f32.gmra.mrb[0].mxu0 %v5618
      %v5620 = vpop.f32.mrb[0].mxu0
      %v5621 = vadd.f32 %v4706, %v5620
      %v5622 = vpop.f32.mrb[0].mxu0
      %5623 = vmatprep.mubr.f32.mxu0 0.0
      %v5624 = vand.u32 %v621, 4294901760
      %5625 = vmatmul.mubr.f32.gmra.mrb[0].mxu0 %v5624
      %v5626 = vpop.f32.mrb[0].mxu0
      %v5627 = vadd.f32 %v4714, %v5626
      %v5628 = vpop.f32.mrb[0].mxu0
      %5629 = vmatprep.mubr.f32.mxu0 0.0
      %v5630 = vand.u32 %v624, 4294901760
      %5631 = vmatmul.mubr.f32.gmra.mrb[0].mxu0 %v5630
      %v5632 = vpop.f32.mrb[0].mxu0
      %v5633 = vadd.f32 %v4722, %v5632
      %v5634 = vpop.f32.mrb[0].mxu0
      %5635 = vmatprep.mubr.f32.mxu0 0.0
      %v5636 = vand.u32 %v627, 4294901760
      %5637 = vmatmul.mubr.f32.gmra.mrb[0].mxu0 %v5636
      %v5638 = vpop.f32.mrb[0].mxu0
      %v5639 = vadd.f32 %v4730, %v5638
      %v5640 = vpop.f32.mrb[0].mxu0
      %5641 = vmatprep.mubr.f32.mxu0 0.0
      %v5642 = vand.u32 %v630, 4294901760
      %5643 = vmatmul.mubr.f32.gmra.mrb[0].mxu0 %v5642
      %v5644 = vpop.f32.mrb[0].mxu0
      %v5645 = vadd.f32 %v4738, %v5644
      %v5646 = vpop.f32.mrb[0].mxu0
      %5647 = vmatprep.mubr.f32.mxu0 0.0
      %v5648 = vand.u32 %v633, 4294901760
      %5649 = vmatmul.mubr.f32.gmra.mrb[0].mxu0 %v5648
      %v5650 = vpop.f32.mrb[0].mxu0
      %v5651 = vadd.f32 %v4746, %v5650
      %v5652 = vpop.f32.mrb[0].mxu0
      %5653 = vmatprep.mubr.f32.mxu0 0.0
      %v5654 = vand.u32 %v636, 4294901760
      %5655 = vmatmul.mubr.f32.gmra.mrb[0].mxu0 %v5654
      %v5656 = vpop.f32.mrb[0].mxu0
      %v5657 = vadd.f32 %v4754, %v5656
      %v5658 = vpop.f32.mrb[0].mxu0
      %5659 = vmatprep.mubr.f32.mxu0 0.0
      %v5660 = vand.u32 %v639, 4294901760
      %5661 = vmatmul.mubr.f32.gmra.mrb[0].mxu0 %v5660
      %v5662 = vpop.f32.mrb[0].mxu0
      %v5663 = vadd.f32 %v4762, %v5662
      %v5664 = vpop.f32.mrb[0].mxu0
      %5665 = vmatprep.mubr.f32.mxu0 0.0
      %v5666 = vand.u32 %v642, 4294901760
      %5667 = vmatmul.mubr.f32.gmra.mrb[0].mxu0 %v5666
      %v5668 = vpop.f32.mrb[0].mxu0
      %v5669 = vadd.f32 %v4770, %v5668
      %v5670 = vpop.f32.mrb[0].mxu0
      %5671 = vmatprep.mubr.f32.mxu0 0.0
      %v5672 = vand.u32 %v645, 4294901760
      %5673 = vmatmul.mubr.f32.gmra.mrb[0].mxu0 %v5672
      %v5674 = vpop.f32.mrb[0].mxu0
      %v5675 = vadd.f32 %v4778, %v5674
      %v5676 = vpop.f32.mrb[0].mxu0
      %5677 = vmatprep.mubr.f32.mxu0 0.0
      %v5678 = vand.u32 %v648, 4294901760
      %5679 = vmatmul.mubr.f32.gmra.mrb[0].mxu0 %v5678
      %v5680 = vpop.f32.mrb[0].mxu0
      %v5681 = vadd.f32 %v4786, %v5680
      %v5682 = vpop.f32.mrb[0].mxu0
      %5683 = vmatprep.mubr.f32.mxu0 0.0
      %v5684 = vand.u32 %v651, 4294901760
      %5685 = vmatmul.mubr.f32.gmra.mrb[0].mxu0 %v5684
      %v5686 = vpop.f32.mrb[0].mxu0
      %v5687 = vadd.f32 %v4794, %v5686
      %v5688 = vpop.f32.mrb[0].mxu0
      %5689 = vmatprep.mubr.f32.mxu0 0.0
      %v5690 = vand.u32 %v654, 4294901760
      %5691 = vmatmul.mubr.f32.gmra.mrb[0].mxu0 %v5690
      %v5692 = vpop.f32.mrb[0].mxu0
      %v5693 = vadd.f32 %v4802, %v5692
      %v5694 = vpop.f32.mrb[0].mxu0
      %5695 = vmatprep.mubr.f32.mxu0 0.0
      %v5696 = vand.u32 %v657, 4294901760
      %5697 = vmatmul.mubr.f32.gmra.mrb[0].mxu0 %v5696
      %v5698 = vpop.f32.mrb[0].mxu0
      %v5699 = vadd.f32 %v4810, %v5698
      %v5700 = vpop.f32.mrb[0].mxu0
      %5701 = vmatprep.mubr.f32.mxu0 0.0
      %v5702 = vand.u32 %v660, 4294901760
      %5703 = vmatmul.mubr.f32.gmra.mrb[0].mxu0 %v5702
      %v5704 = vpop.f32.mrb[0].mxu0
      %v5705 = vadd.f32 %v4818, %v5704
      %v5706 = vpop.f32.mrb[0].mxu0
      %5707 = vmatprep.mubr.f32.mxu0 0.0
      %v5708 = vand.u32 %v663, 4294901760
      %5709 = vmatmul.mubr.f32.gmra.mrb[0].mxu0 %v5708
      %v5710 = vpop.f32.mrb[0].mxu0
      %v5711 = vadd.f32 %v4826, %v5710
      %v5712 = vpop.f32.mrb[0].mxu0
      %5713 = vmatprep.mubr.f32.mxu0 0.0
      %v5714 = vand.u32 %v666, 4294901760
      %5715 = vmatmul.mubr.f32.gmra.mrb[0].mxu0 %v5714
      %v5716 = vpop.f32.mrb[0].mxu0
      %v5717 = vadd.f32 %v4834, %v5716
      %v5718 = vpop.f32.mrb[0].mxu0
      %5719 = vmatprep.mubr.f32.mxu0 0.0
      %v5720 = vand.u32 %v669, 4294901760
      %5721 = vmatmul.mubr.f32.gmra.mrb[0].mxu0 %v5720
      %v5722 = vpop.f32.mrb[0].mxu0
      %v5723 = vadd.f32 %v4842, %v5722
      %v5724 = vpop.f32.mrb[0].mxu0
      %5725 = vmatprep.mubr.f32.mxu0 0.0
      %v5726 = vand.u32 %v672, 4294901760
      %5727 = vmatmul.mubr.f32.gmra.mrb[0].mxu0 %v5726
      %v5728 = vpop.f32.mrb[0].mxu0
      %v5729 = vadd.f32 %v4850, %v5728
      %v5730 = vpop.f32.mrb[0].mxu0
      %5731 = vmatprep.mubr.f32.mxu0 0.0
      %v5732 = vand.u32 %v675, 4294901760
      %5733 = vmatmul.mubr.f32.gmra.mrb[0].mxu0 %v5732
      %v5734 = vpop.f32.mrb[0].mxu0
      %v5735 = vadd.f32 %v4858, %v5734
      %v5736 = vpop.f32.mrb[0].mxu0
      %5737 = vmatprep.mubr.f32.mxu0 0.0
      %v5738 = vand.u32 %v678, 4294901760
      %5739 = vmatmul.mubr.f32.gmra.mrb[0].mxu0 %v5738
      %v5740 = vpop.f32.mrb[0].mxu0
      %v5741 = vadd.f32 %v4866, %v5740
      %v5742 = vpop.f32.mrb[0].mxu0
      %5743 = vmatprep.mubr.f32.mxu0 0.0
      %v5744 = vand.u32 %v681, 4294901760
      %5745 = vmatmul.mubr.f32.gmra.mrb[0].mxu0 %v5744
      %v5746 = vpop.f32.mrb[0].mxu0
      %v5747 = vadd.f32 %v4874, %v5746
      %v5748 = vpop.f32.mrb[0].mxu0
      %5749 = vmatprep.mubr.f32.mxu0 0.0
      %v5750 = vand.u32 %v684, 4294901760
      %5751 = vmatmul.mubr.f32.gmra.mrb[0].mxu0 %v5750
      %v5752 = vpop.f32.mrb[0].mxu0
      %v5753 = vadd.f32 %v4882, %v5752
      %v5754 = vpop.f32.mrb[0].mxu0
      %5755 = vmatprep.mubr.f32.mxu0 0.0
      %v5756 = vand.u32 %v687, 4294901760
      %5757 = vmatmul.mubr.f32.gmra.mrb[0].mxu0 %v5756
      %v5758 = vpop.f32.mrb[0].mxu0
      %v5759 = vadd.f32 %v4890, %v5758
      %v5760 = vpop.f32.mrb[0].mxu0
      %5761 = vmatprep.mubr.f32.mxu0 0.0
      %v5762 = vand.u32 %v690, 4294901760
      %5763 = vmatmul.mubr.f32.gmra.mrb[0].mxu0 %v5762
      %v5764 = vpop.f32.mrb[0].mxu0
      %v5765 = vadd.f32 %v4898, %v5764
      %v5766 = vpop.f32.mrb[0].mxu0
      %5767 = vmatprep.mubr.f32.mxu0 0.0
      %v5768 = vand.u32 %v693, 4294901760
      %5769 = vmatmul.mubr.f32.gmra.mrb[0].mxu0 %v5768
      %v5770 = vpop.f32.mrb[0].mxu0
      %v5771 = vadd.f32 %v4906, %v5770
      %v5772 = vpop.f32.mrb[0].mxu0
      %5773 = vmatprep.mubr.f32.mxu0 0.0
      %v5774 = vand.u32 %v696, 4294901760
      %5775 = vmatmul.mubr.f32.gmra.mrb[0].mxu0 %v5774
      %v5776 = vpop.f32.mrb[0].mxu0
      %v5777 = vadd.f32 %v4914, %v5776
      %v5778 = vpop.f32.mrb[0].mxu0
      %5779 = vmatprep.mubr.f32.mxu0 0.0
      %v5780 = vand.u32 %v699, 4294901760
      %5781 = vmatmul.mubr.f32.gmra.mrb[0].mxu0 %v5780
      %v5782 = vpop.f32.mrb[0].mxu0
      %v5783 = vadd.f32 %v4922, %v5782
      %v5784 = vpop.f32.mrb[0].mxu0
      %5785 = vmatprep.mubr.f32.mxu0 0.0
      %v5786 = vand.u32 %v702, 4294901760
      %5787 = vmatmul.mubr.f32.gmra.mrb[0].mxu0 %v5786
      %v5788 = vpop.f32.mrb[0].mxu0
      %v5789 = vadd.f32 %v4930, %v5788
      %v5790 = vpop.f32.mrb[0].mxu0
      %5791 = vmatprep.mubr.f32.mxu0 0.0
      %v5792 = vand.u32 %v705, 4294901760
      %5793 = vmatmul.mubr.f32.gmra.mrb[0].mxu0 %v5792
      %v5794 = vpop.f32.mrb[0].mxu0
      %v5795 = vadd.f32 %v4938, %v5794
      %v5796 = vpop.f32.mrb[0].mxu0
      %5797 = vmatprep.mubr.f32.mxu0 0.0
      %v5798 = vand.u32 %v708, 4294901760
      %5799 = vmatmul.mubr.f32.gmra.mrb[0].mxu0 %v5798
      %v5800 = vpop.f32.mrb[0].mxu0
      %v5801 = vadd.f32 %v4946, %v5800
      %v5802 = vpop.f32.mrb[0].mxu0
      %5803 = vmatprep.mubr.f32.mxu0 0.0
      %v5804 = vand.u32 %v711, 4294901760
      %5805 = vmatmul.mubr.f32.gmra.mrb[0].mxu0 %v5804
      %v5806 = vpop.f32.mrb[0].mxu0
      %v5807 = vadd.f32 %v4954, %v5806
      %v5808 = vpop.f32.mrb[0].mxu0
      %5809 = vmatprep.mubr.f32.mxu0 0.0
      %v5810 = vand.u32 %v714, 4294901760
      %5811 = vmatmul.mubr.f32.gmra.mrb[0].mxu0 %v5810
      %v5812 = vpop.f32.mrb[0].mxu0
      %v5813 = vadd.f32 %v4962, %v5812
      %v5814 = vpop.f32.mrb[0].mxu0
      %5815 = vmatprep.mubr.f32.mxu0 0.0
      %v5816 = vand.u32 %v717, 4294901760
      %5817 = vmatmul.mubr.f32.gmra.mrb[0].mxu0 %v5816
      %v5818 = vpop.f32.mrb[0].mxu0
      %v5819 = vadd.f32 %v4970, %v5818
      %v5820 = vpop.f32.mrb[0].mxu0
      %5821 = vmatprep.mubr.f32.mxu0 0.0
      %v5822 = vand.u32 %v720, 4294901760
      %5823 = vmatmul.mubr.f32.gmra.mrb[0].mxu0 %v5822
      %v5824 = vpop.f32.mrb[0].mxu0
      %v5825 = vadd.f32 %v4978, %v5824
      %v5826 = vpop.f32.mrb[0].mxu0
      %5827 = vmatprep.mubr.f32.mxu0 0.0
      %v5828 = vand.u32 %v723, 4294901760
      %5829 = vmatmul.mubr.f32.gmra.mrb[0].mxu0 %v5828
      %v5830 = vpop.f32.mrb[0].mxu0
      %v5831 = vadd.f32 %v4986, %v5830
      %v5832 = vpop.f32.mrb[0].mxu0
      %5833 = vdwg.mxu0
      %5834 = vmatprep.subr.mxu0 0.0
      %v5835 = vand.u32 %v329, 4294901760
      %5836 = vmatpush1.msra.mxu0 %v5835
      %5837 = vmatprep.subr.mxu0 0.0
      %v5838 = vand.u32 %v330, 4294901760
      %5839 = vmatpush1.msra.mxu0 %v5838
      %5840 = vmatprep.subr.mxu0 0.0
      %v5841 = vand.u32 %v331, 4294901760
      %5842 = vmatpush1.msra.mxu0 %v5841
      %5843 = vmatprep.subr.mxu0 0.0
      %v5844 = vand.u32 %v332, 4294901760
      %5845 = vmatpush1.msra.mxu0 %v5844
      %5846 = vmatprep.subr.mxu0 0.0
      %5847 = vmatpush1.msra.mxu0 0.0
      %5848 = vmatprep.subr.mxu0 0.0
      %5849 = vmatpush1.msra.mxu0 0.0
      %5850 = vmatprep.subr.mxu0 0.0
      %5851 = vmatpush1.msra.mxu0 0.0
      %5852 = vmatprep.subr.mxu0 0.0
      %5853 = vmatpush1.msra.mxu0 0.0
      %5854 = vmatprep.subr.mxu0 0.0
      %5855 = vmatpush1.msra.mxu0 0.0
      %5856 = vmatprep.subr.mxu0 0.0
      %5857 = vmatpush1.msra.mxu0 0.0
      %5858 = vmatprep.subr.mxu0 0.0
      %5859 = vmatpush1.msra.mxu0 0.0
      %5860 = vmatprep.subr.mxu0 0.0
      %5861 = vmatpush1.msra.mxu0 0.0
      %5862 = vmatprep.subr.mxu0 0.0
      %5863 = vmatpush1.msra.mxu0 0.0
      %5864 = vmatprep.subr.mxu0 0.0
      %5865 = vmatpush1.msra.mxu0 0.0
      %5866 = vmatprep.subr.mxu0 0.0
      %5867 = vmatpush1.msra.mxu0 0.0
      %5868 = vmatprep.subr.mxu0 0.0
      %5869 = vmatpush1.msra.mxu0 0.0
      %5870 = vmatprep.subr.mxu0 0.0
      %5871 = vmatpush1.msra.mxu0 0.0
      %5872 = vmatprep.subr.mxu0 0.0
      %5873 = vmatpush1.msra.mxu0 0.0
      %5874 = vmatprep.subr.mxu0 0.0
      %5875 = vmatpush1.msra.mxu0 0.0
      %5876 = vmatprep.subr.mxu0 0.0
      %5877 = vmatpush1.msra.mxu0 0.0
      %5878 = vmatprep.subr.mxu0 0.0
      %5879 = vmatpush1.msra.mxu0 0.0
      %5880 = vmatprep.subr.mxu0 0.0
      %5881 = vmatpush1.msra.mxu0 0.0
      %5882 = vmatprep.subr.mxu0 0.0
      %5883 = vmatpush1.msra.mxu0 0.0
      %5884 = vmatprep.subr.mxu0 0.0
      %5885 = vmatpush1.msra.mxu0 0.0
      %5886 = vmatprep.subr.mxu0 0.0
      %5887 = vmatpush1.msra.mxu0 0.0
      %5888 = vmatprep.subr.mxu0 0.0
      %5889 = vmatpush1.msra.mxu0 0.0
      %5890 = vmatprep.subr.mxu0 0.0
      %5891 = vmatpush1.msra.mxu0 0.0
      %5892 = vmatprep.subr.mxu0 0.0
      %5893 = vmatpush1.msra.mxu0 0.0
      %5894 = vmatprep.subr.mxu0 0.0
      %5895 = vmatpush1.msra.mxu0 0.0
      %5896 = vmatprep.subr.mxu0 0.0
      %5897 = vmatpush1.msra.mxu0 0.0
      %5898 = vmatprep.subr.mxu0 0.0
      %5899 = vmatpush1.msra.mxu0 0.0
      %5900 = vmatprep.subr.mxu0 0.0
      %5901 = vmatpush1.msra.mxu0 0.0
      %5902 = vmatprep.mubr.f32.mxu0 0.0
      %v5903 = vand.u32 %v342, 4294901760
      %5904 = vmatmul.mubr.f32.gmra.mrb[0].mxu0 %v5903
      %v5905 = vpop.f32.mrb[0].mxu0
      %v5906 = vadd.f32 %v5069, %v5905
      %v5907 = vpop.f32.mrb[0].mxu0
      %5908 = vmatprep.mubr.f32.mxu0 0.0
      %v5909 = vand.u32 %v345, 4294901760
      %5910 = vmatmul.mubr.f32.gmra.mrb[0].mxu0 %v5909
      %v5911 = vpop.f32.mrb[0].mxu0
      %v5912 = vadd.f32 %v5075, %v5911
      %v5913 = vpop.f32.mrb[0].mxu0
      %5914 = vmatprep.mubr.f32.mxu0 0.0
      %v5915 = vand.u32 %v348, 4294901760
      %5916 = vmatmul.mubr.f32.gmra.mrb[0].mxu0 %v5915
      %v5917 = vpop.f32.mrb[0].mxu0
      %v5918 = vadd.f32 %v5081, %v5917
      %v5919 = vpop.f32.mrb[0].mxu0
      %5920 = vmatprep.mubr.f32.mxu0 0.0
      %v5921 = vand.u32 %v351, 4294901760
      %5922 = vmatmul.mubr.f32.gmra.mrb[0].mxu0 %v5921
      %v5923 = vpop.f32.mrb[0].mxu0
      %v5924 = vadd.f32 %v5087, %v5923
      %v5925 = vpop.f32.mrb[0].mxu0
      %5926 = vmatprep.mubr.f32.mxu0 0.0
      %v5927 = vand.u32 %v354, 4294901760
      %5928 = vmatmul.mubr.f32.gmra.mrb[0].mxu0 %v5927
      %v5929 = vpop.f32.mrb[0].mxu0
      %v5930 = vadd.f32 %v5093, %v5929
      %v5931 = vpop.f32.mrb[0].mxu0
      %5932 = vmatprep.mubr.f32.mxu0 0.0
      %v5933 = vand.u32 %v357, 4294901760
      %5934 = vmatmul.mubr.f32.gmra.mrb[0].mxu0 %v5933
      %v5935 = vpop.f32.mrb[0].mxu0
      %v5936 = vadd.f32 %v5099, %v5935
      %v5937 = vpop.f32.mrb[0].mxu0
      %5938 = vmatprep.mubr.f32.mxu0 0.0
      %v5939 = vand.u32 %v360, 4294901760
      %5940 = vmatmul.mubr.f32.gmra.mrb[0].mxu0 %v5939
      %v5941 = vpop.f32.mrb[0].mxu0
      %v5942 = vadd.f32 %v5105, %v5941
      %v5943 = vpop.f32.mrb[0].mxu0
      %5944 = vmatprep.mubr.f32.mxu0 0.0
      %v5945 = vand.u32 %v363, 4294901760
      %5946 = vmatmul.mubr.f32.gmra.mrb[0].mxu0 %v5945
      %v5947 = vpop.f32.mrb[0].mxu0
      %v5948 = vadd.f32 %v5111, %v5947
      %v5949 = vpop.f32.mrb[0].mxu0
      %5950 = vmatprep.mubr.f32.mxu0 0.0
      %v5951 = vand.u32 %v366, 4294901760
      %5952 = vmatmul.mubr.f32.gmra.mrb[0].mxu0 %v5951
      %v5953 = vpop.f32.mrb[0].mxu0
      %v5954 = vadd.f32 %v5117, %v5953
      %v5955 = vpop.f32.mrb[0].mxu0
      %5956 = vmatprep.mubr.f32.mxu0 0.0
      %v5957 = vand.u32 %v369, 4294901760
      %5958 = vmatmul.mubr.f32.gmra.mrb[0].mxu0 %v5957
      %v5959 = vpop.f32.mrb[0].mxu0
      %v5960 = vadd.f32 %v5123, %v5959
      %v5961 = vpop.f32.mrb[0].mxu0
      %5962 = vmatprep.mubr.f32.mxu0 0.0
      %v5963 = vand.u32 %v372, 4294901760
      %5964 = vmatmul.mubr.f32.gmra.mrb[0].mxu0 %v5963
      %v5965 = vpop.f32.mrb[0].mxu0
      %v5966 = vadd.f32 %v5129, %v5965
      %v5967 = vpop.f32.mrb[0].mxu0
      %5968 = vmatprep.mubr.f32.mxu0 0.0
      %v5969 = vand.u32 %v375, 4294901760
      %5970 = vmatmul.mubr.f32.gmra.mrb[0].mxu0 %v5969
      %v5971 = vpop.f32.mrb[0].mxu0
      %v5972 = vadd.f32 %v5135, %v5971
      %v5973 = vpop.f32.mrb[0].mxu0
      %5974 = vmatprep.mubr.f32.mxu0 0.0
      %v5975 = vand.u32 %v378, 4294901760
      %5976 = vmatmul.mubr.f32.gmra.mrb[0].mxu0 %v5975
      %v5977 = vpop.f32.mrb[0].mxu0
      %v5978 = vadd.f32 %v5141, %v5977
      %v5979 = vpop.f32.mrb[0].mxu0
      %5980 = vmatprep.mubr.f32.mxu0 0.0
      %v5981 = vand.u32 %v381, 4294901760
      %5982 = vmatmul.mubr.f32.gmra.mrb[0].mxu0 %v5981
      %v5983 = vpop.f32.mrb[0].mxu0
      %v5984 = vadd.f32 %v5147, %v5983
      %v5985 = vpop.f32.mrb[0].mxu0
      %5986 = vmatprep.mubr.f32.mxu0 0.0
      %v5987 = vand.u32 %v384, 4294901760
      %5988 = vmatmul.mubr.f32.gmra.mrb[0].mxu0 %v5987
      %v5989 = vpop.f32.mrb[0].mxu0
      %v5990 = vadd.f32 %v5153, %v5989
      %v5991 = vpop.f32.mrb[0].mxu0
      %5992 = vmatprep.mubr.f32.mxu0 0.0
      %v5993 = vand.u32 %v387, 4294901760
      %5994 = vmatmul.mubr.f32.gmra.mrb[0].mxu0 %v5993
      %v5995 = vpop.f32.mrb[0].mxu0
      %v5996 = vadd.f32 %v5159, %v5995
      %v5997 = vpop.f32.mrb[0].mxu0
      %5998 = vmatprep.mubr.f32.mxu0 0.0
      %v5999 = vand.u32 %v390, 4294901760
      %6000 = vmatmul.mubr.f32.gmra.mrb[0].mxu0 %v5999
      %v6001 = vpop.f32.mrb[0].mxu0
      %v6002 = vadd.f32 %v5165, %v6001
      %v6003 = vpop.f32.mrb[0].mxu0
      %6004 = vmatprep.mubr.f32.mxu0 0.0
      %v6005 = vand.u32 %v393, 4294901760
      %6006 = vmatmul.mubr.f32.gmra.mrb[0].mxu0 %v6005
      %v6007 = vpop.f32.mrb[0].mxu0
      %v6008 = vadd.f32 %v5171, %v6007
      %v6009 = vpop.f32.mrb[0].mxu0
      %6010 = vmatprep.mubr.f32.mxu0 0.0
      %v6011 = vand.u32 %v396, 4294901760
      %6012 = vmatmul.mubr.f32.gmra.mrb[0].mxu0 %v6011
      %v6013 = vpop.f32.mrb[0].mxu0
      %v6014 = vadd.f32 %v5177, %v6013
      %v6015 = vpop.f32.mrb[0].mxu0
      %6016 = vmatprep.mubr.f32.mxu0 0.0
      %v6017 = vand.u32 %v399, 4294901760
      %6018 = vmatmul.mubr.f32.gmra.mrb[0].mxu0 %v6017
      %v6019 = vpop.f32.mrb[0].mxu0
      %v6020 = vadd.f32 %v5183, %v6019
      %v6021 = vpop.f32.mrb[0].mxu0
      %6022 = vmatprep.mubr.f32.mxu0 0.0
      %v6023 = vand.u32 %v402, 4294901760
      %6024 = vmatmul.mubr.f32.gmra.mrb[0].mxu0 %v6023
      %v6025 = vpop.f32.mrb[0].mxu0
      %v6026 = vadd.f32 %v5189, %v6025
      %v6027 = vpop.f32.mrb[0].mxu0
      %6028 = vmatprep.mubr.f32.mxu0 0.0
      %v6029 = vand.u32 %v405, 4294901760
      %6030 = vmatmul.mubr.f32.gmra.mrb[0].mxu0 %v6029
      %v6031 = vpop.f32.mrb[0].mxu0
      %v6032 = vadd.f32 %v5195, %v6031
      %v6033 = vpop.f32.mrb[0].mxu0
      %6034 = vmatprep.mubr.f32.mxu0 0.0
      %v6035 = vand.u32 %v408, 4294901760
      %6036 = vmatmul.mubr.f32.gmra.mrb[0].mxu0 %v6035
      %v6037 = vpop.f32.mrb[0].mxu0
      %v6038 = vadd.f32 %v5201, %v6037
      %v6039 = vpop.f32.mrb[0].mxu0
      %6040 = vmatprep.mubr.f32.mxu0 0.0
      %v6041 = vand.u32 %v411, 4294901760
      %6042 = vmatmul.mubr.f32.gmra.mrb[0].mxu0 %v6041
      %v6043 = vpop.f32.mrb[0].mxu0
      %v6044 = vadd.f32 %v5207, %v6043
      %v6045 = vpop.f32.mrb[0].mxu0
      %6046 = vmatprep.mubr.f32.mxu0 0.0
      %v6047 = vand.u32 %v414, 4294901760
      %6048 = vmatmul.mubr.f32.gmra.mrb[0].mxu0 %v6047
      %v6049 = vpop.f32.mrb[0].mxu0
      %v6050 = vadd.f32 %v5213, %v6049
      %v6051 = vpop.f32.mrb[0].mxu0
      %6052 = vmatprep.mubr.f32.mxu0 0.0
      %v6053 = vand.u32 %v417, 4294901760
      %6054 = vmatmul.mubr.f32.gmra.mrb[0].mxu0 %v6053
      %v6055 = vpop.f32.mrb[0].mxu0
      %v6056 = vadd.f32 %v5219, %v6055
      %v6057 = vpop.f32.mrb[0].mxu0
      %6058 = vmatprep.mubr.f32.mxu0 0.0
      %v6059 = vand.u32 %v420, 4294901760
      %6060 = vmatmul.mubr.f32.gmra.mrb[0].mxu0 %v6059
      %v6061 = vpop.f32.mrb[0].mxu0
      %v6062 = vadd.f32 %v5225, %v6061
      %v6063 = vpop.f32.mrb[0].mxu0
      %6064 = vmatprep.mubr.f32.mxu0 0.0
      %v6065 = vand.u32 %v423, 4294901760
      %6066 = vmatmul.mubr.f32.gmra.mrb[0].mxu0 %v6065
      %v6067 = vpop.f32.mrb[0].mxu0
      %v6068 = vadd.f32 %v5231, %v6067
      %v6069 = vpop.f32.mrb[0].mxu0
      %6070 = vmatprep.mubr.f32.mxu0 0.0
      %v6071 = vand.u32 %v426, 4294901760
      %6072 = vmatmul.mubr.f32.gmra.mrb[0].mxu0 %v6071
      %v6073 = vpop.f32.mrb[0].mxu0
      %v6074 = vadd.f32 %v5237, %v6073
      %v6075 = vpop.f32.mrb[0].mxu0
      %6076 = vmatprep.mubr.f32.mxu0 0.0
      %v6077 = vand.u32 %v429, 4294901760
      %6078 = vmatmul.mubr.f32.gmra.mrb[0].mxu0 %v6077
      %v6079 = vpop.f32.mrb[0].mxu0
      %v6080 = vadd.f32 %v5243, %v6079
      %v6081 = vpop.f32.mrb[0].mxu0
      %6082 = vmatprep.mubr.f32.mxu0 0.0
      %v6083 = vand.u32 %v432, 4294901760
      %6084 = vmatmul.mubr.f32.gmra.mrb[0].mxu0 %v6083
      %v6085 = vpop.f32.mrb[0].mxu0
      %v6086 = vadd.f32 %v5249, %v6085
      %v6087 = vpop.f32.mrb[0].mxu0
      %6088 = vmatprep.mubr.f32.mxu0 0.0
      %v6089 = vand.u32 %v435, 4294901760
      %6090 = vmatmul.mubr.f32.gmra.mrb[0].mxu0 %v6089
      %v6091 = vpop.f32.mrb[0].mxu0
      %v6092 = vadd.f32 %v5255, %v6091
      %v6093 = vpop.f32.mrb[0].mxu0
      %6094 = vmatprep.mubr.f32.mxu0 0.0
      %v6095 = vand.u32 %v438, 4294901760
      %6096 = vmatmul.mubr.f32.gmra.mrb[0].mxu0 %v6095
      %v6097 = vpop.f32.mrb[0].mxu0
      %v6098 = vadd.f32 %v5261, %v6097
      %v6099 = vpop.f32.mrb[0].mxu0
      %6100 = vmatprep.mubr.f32.mxu0 0.0
      %v6101 = vand.u32 %v441, 4294901760
      %6102 = vmatmul.mubr.f32.gmra.mrb[0].mxu0 %v6101
      %v6103 = vpop.f32.mrb[0].mxu0
      %v6104 = vadd.f32 %v5267, %v6103
      %v6105 = vpop.f32.mrb[0].mxu0
      %6106 = vmatprep.mubr.f32.mxu0 0.0
      %v6107 = vand.u32 %v444, 4294901760
      %6108 = vmatmul.mubr.f32.gmra.mrb[0].mxu0 %v6107
      %v6109 = vpop.f32.mrb[0].mxu0
      %v6110 = vadd.f32 %v5273, %v6109
      %v6111 = vpop.f32.mrb[0].mxu0
      %6112 = vmatprep.mubr.f32.mxu0 0.0
      %v6113 = vand.u32 %v447, 4294901760
      %6114 = vmatmul.mubr.f32.gmra.mrb[0].mxu0 %v6113
      %v6115 = vpop.f32.mrb[0].mxu0
      %v6116 = vadd.f32 %v5279, %v6115
      %v6117 = vpop.f32.mrb[0].mxu0
      %6118 = vmatprep.mubr.f32.mxu0 0.0
      %v6119 = vand.u32 %v450, 4294901760
      %6120 = vmatmul.mubr.f32.gmra.mrb[0].mxu0 %v6119
      %v6121 = vpop.f32.mrb[0].mxu0
      %v6122 = vadd.f32 %v5285, %v6121
      %v6123 = vpop.f32.mrb[0].mxu0
      %6124 = vmatprep.mubr.f32.mxu0 0.0
      %v6125 = vand.u32 %v453, 4294901760
      %6126 = vmatmul.mubr.f32.gmra.mrb[0].mxu0 %v6125
      %v6127 = vpop.f32.mrb[0].mxu0
      %v6128 = vadd.f32 %v5291, %v6127
      %v6129 = vpop.f32.mrb[0].mxu0
      %6130 = vmatprep.mubr.f32.mxu0 0.0
      %v6131 = vand.u32 %v456, 4294901760
      %6132 = vmatmul.mubr.f32.gmra.mrb[0].mxu0 %v6131
      %v6133 = vpop.f32.mrb[0].mxu0
      %v6134 = vadd.f32 %v5297, %v6133
      %v6135 = vpop.f32.mrb[0].mxu0
      %6136 = vmatprep.mubr.f32.mxu0 0.0
      %v6137 = vand.u32 %v459, 4294901760
      %6138 = vmatmul.mubr.f32.gmra.mrb[0].mxu0 %v6137
      %v6139 = vpop.f32.mrb[0].mxu0
      %v6140 = vadd.f32 %v5303, %v6139
      %v6141 = vpop.f32.mrb[0].mxu0
      %6142 = vmatprep.mubr.f32.mxu0 0.0
      %v6143 = vand.u32 %v462, 4294901760
      %6144 = vmatmul.mubr.f32.gmra.mrb[0].mxu0 %v6143
      %v6145 = vpop.f32.mrb[0].mxu0
      %v6146 = vadd.f32 %v5309, %v6145
      %v6147 = vpop.f32.mrb[0].mxu0
      %6148 = vmatprep.mubr.f32.mxu0 0.0
      %v6149 = vand.u32 %v465, 4294901760
      %6150 = vmatmul.mubr.f32.gmra.mrb[0].mxu0 %v6149
      %v6151 = vpop.f32.mrb[0].mxu0
      %v6152 = vadd.f32 %v5315, %v6151
      %v6153 = vpop.f32.mrb[0].mxu0
      %6154 = vmatprep.mubr.f32.mxu0 0.0
      %v6155 = vand.u32 %v468, 4294901760
      %6156 = vmatmul.mubr.f32.gmra.mrb[0].mxu0 %v6155
      %v6157 = vpop.f32.mrb[0].mxu0
      %v6158 = vadd.f32 %v5321, %v6157
      %v6159 = vpop.f32.mrb[0].mxu0
      %6160 = vmatprep.mubr.f32.mxu0 0.0
      %v6161 = vand.u32 %v471, 4294901760
      %6162 = vmatmul.mubr.f32.gmra.mrb[0].mxu0 %v6161
      %v6163 = vpop.f32.mrb[0].mxu0
      %v6164 = vadd.f32 %v5327, %v6163
      %v6165 = vpop.f32.mrb[0].mxu0
      %6166 = vmatprep.mubr.f32.mxu0 0.0
      %v6167 = vand.u32 %v474, 4294901760
      %6168 = vmatmul.mubr.f32.gmra.mrb[0].mxu0 %v6167
      %v6169 = vpop.f32.mrb[0].mxu0
      %v6170 = vadd.f32 %v5333, %v6169
      %v6171 = vpop.f32.mrb[0].mxu0
      %6172 = vmatprep.mubr.f32.mxu0 0.0
      %v6173 = vand.u32 %v477, 4294901760
      %6174 = vmatmul.mubr.f32.gmra.mrb[0].mxu0 %v6173
      %v6175 = vpop.f32.mrb[0].mxu0
      %v6176 = vadd.f32 %v5339, %v6175
      %v6177 = vpop.f32.mrb[0].mxu0
      %6178 = vmatprep.mubr.f32.mxu0 0.0
      %v6179 = vand.u32 %v480, 4294901760
      %6180 = vmatmul.mubr.f32.gmra.mrb[0].mxu0 %v6179
      %v6181 = vpop.f32.mrb[0].mxu0
      %v6182 = vadd.f32 %v5345, %v6181
      %v6183 = vpop.f32.mrb[0].mxu0
      %6184 = vmatprep.mubr.f32.mxu0 0.0
      %v6185 = vand.u32 %v483, 4294901760
      %6186 = vmatmul.mubr.f32.gmra.mrb[0].mxu0 %v6185
      %v6187 = vpop.f32.mrb[0].mxu0
      %v6188 = vadd.f32 %v5351, %v6187
      %v6189 = vpop.f32.mrb[0].mxu0
      %6190 = vmatprep.mubr.f32.mxu0 0.0
      %v6191 = vand.u32 %v486, 4294901760
      %6192 = vmatmul.mubr.f32.gmra.mrb[0].mxu0 %v6191
      %v6193 = vpop.f32.mrb[0].mxu0
      %v6194 = vadd.f32 %v5357, %v6193
      %v6195 = vpop.f32.mrb[0].mxu0
      %6196 = vmatprep.mubr.f32.mxu0 0.0
      %v6197 = vand.u32 %v489, 4294901760
      %6198 = vmatmul.mubr.f32.gmra.mrb[0].mxu0 %v6197
      %v6199 = vpop.f32.mrb[0].mxu0
      %v6200 = vadd.f32 %v5363, %v6199
      %v6201 = vpop.f32.mrb[0].mxu0
      %6202 = vmatprep.mubr.f32.mxu0 0.0
      %v6203 = vand.u32 %v492, 4294901760
      %6204 = vmatmul.mubr.f32.gmra.mrb[0].mxu0 %v6203
      %v6205 = vpop.f32.mrb[0].mxu0
      %v6206 = vadd.f32 %v5369, %v6205
      %v6207 = vpop.f32.mrb[0].mxu0
      %6208 = vmatprep.mubr.f32.mxu0 0.0
      %v6209 = vand.u32 %v495, 4294901760
      %6210 = vmatmul.mubr.f32.gmra.mrb[0].mxu0 %v6209
      %v6211 = vpop.f32.mrb[0].mxu0
      %v6212 = vadd.f32 %v5375, %v6211
      %v6213 = vpop.f32.mrb[0].mxu0
      %6214 = vmatprep.mubr.f32.mxu0 0.0
      %v6215 = vand.u32 %v498, 4294901760
      %6216 = vmatmul.mubr.f32.gmra.mrb[0].mxu0 %v6215
      %v6217 = vpop.f32.mrb[0].mxu0
      %v6218 = vadd.f32 %v5381, %v6217
      %v6219 = vpop.f32.mrb[0].mxu0
      %6220 = vmatprep.mubr.f32.mxu0 0.0
      %v6221 = vand.u32 %v501, 4294901760
      %6222 = vmatmul.mubr.f32.gmra.mrb[0].mxu0 %v6221
      %v6223 = vpop.f32.mrb[0].mxu0
      %v6224 = vadd.f32 %v5387, %v6223
      %v6225 = vpop.f32.mrb[0].mxu0
      %6226 = vmatprep.mubr.f32.mxu0 0.0
      %v6227 = vand.u32 %v504, 4294901760
      %6228 = vmatmul.mubr.f32.gmra.mrb[0].mxu0 %v6227
      %v6229 = vpop.f32.mrb[0].mxu0
      %v6230 = vadd.f32 %v5393, %v6229
      %v6231 = vpop.f32.mrb[0].mxu0
      %6232 = vmatprep.mubr.f32.mxu0 0.0
      %v6233 = vand.u32 %v507, 4294901760
      %6234 = vmatmul.mubr.f32.gmra.mrb[0].mxu0 %v6233
      %v6235 = vpop.f32.mrb[0].mxu0
      %v6236 = vadd.f32 %v5399, %v6235
      %v6237 = vpop.f32.mrb[0].mxu0
      %6238 = vmatprep.mubr.f32.mxu0 0.0
      %v6239 = vand.u32 %v510, 4294901760
      %6240 = vmatmul.mubr.f32.gmra.mrb[0].mxu0 %v6239
      %v6241 = vpop.f32.mrb[0].mxu0
      %v6242 = vadd.f32 %v5405, %v6241
      %v6243 = vpop.f32.mrb[0].mxu0
      %6244 = vmatprep.mubr.f32.mxu0 0.0
      %v6245 = vand.u32 %v513, 4294901760
      %6246 = vmatmul.mubr.f32.gmra.mrb[0].mxu0 %v6245
      %v6247 = vpop.f32.mrb[0].mxu0
      %v6248 = vadd.f32 %v5411, %v6247
      %v6249 = vpop.f32.mrb[0].mxu0
      %6250 = vmatprep.mubr.f32.mxu0 0.0
      %v6251 = vand.u32 %v516, 4294901760
      %6252 = vmatmul.mubr.f32.gmra.mrb[0].mxu0 %v6251
      %v6253 = vpop.f32.mrb[0].mxu0
      %v6254 = vadd.f32 %v5417, %v6253
      %v6255 = vpop.f32.mrb[0].mxu0
      %6256 = vmatprep.mubr.f32.mxu0 0.0
      %v6257 = vand.u32 %v519, 4294901760
      %6258 = vmatmul.mubr.f32.gmra.mrb[0].mxu0 %v6257
      %v6259 = vpop.f32.mrb[0].mxu0
      %v6260 = vadd.f32 %v5423, %v6259
      %v6261 = vpop.f32.mrb[0].mxu0
      %6262 = vmatprep.mubr.f32.mxu0 0.0
      %v6263 = vand.u32 %v522, 4294901760
      %6264 = vmatmul.mubr.f32.gmra.mrb[0].mxu0 %v6263
      %v6265 = vpop.f32.mrb[0].mxu0
      %v6266 = vadd.f32 %v5429, %v6265
      %v6267 = vpop.f32.mrb[0].mxu0
      %6268 = vmatprep.mubr.f32.mxu0 0.0
      %v6269 = vand.u32 %v525, 4294901760
      %6270 = vmatmul.mubr.f32.gmra.mrb[0].mxu0 %v6269
      %v6271 = vpop.f32.mrb[0].mxu0
      %v6272 = vadd.f32 %v5435, %v6271
      %v6273 = vpop.f32.mrb[0].mxu0
      %6274 = vmatprep.mubr.f32.mxu0 0.0
      %v6275 = vand.u32 %v528, 4294901760
      %6276 = vmatmul.mubr.f32.gmra.mrb[0].mxu0 %v6275
      %v6277 = vpop.f32.mrb[0].mxu0
      %v6278 = vadd.f32 %v5441, %v6277
      %v6279 = vpop.f32.mrb[0].mxu0
      %6280 = vmatprep.mubr.f32.mxu0 0.0
      %v6281 = vand.u32 %v531, 4294901760
      %6282 = vmatmul.mubr.f32.gmra.mrb[0].mxu0 %v6281
      %v6283 = vpop.f32.mrb[0].mxu0
      %v6284 = vadd.f32 %v5447, %v6283
      %v6285 = vpop.f32.mrb[0].mxu0
      %6286 = vmatprep.mubr.f32.mxu0 0.0
      %v6287 = vand.u32 %v534, 4294901760
      %6288 = vmatmul.mubr.f32.gmra.mrb[0].mxu0 %v6287
      %v6289 = vpop.f32.mrb[0].mxu0
      %v6290 = vadd.f32 %v5453, %v6289
      %v6291 = vpop.f32.mrb[0].mxu0
      %6292 = vmatprep.mubr.f32.mxu0 0.0
      %v6293 = vand.u32 %v537, 4294901760
      %6294 = vmatmul.mubr.f32.gmra.mrb[0].mxu0 %v6293
      %v6295 = vpop.f32.mrb[0].mxu0
      %v6296 = vadd.f32 %v5459, %v6295
      %v6297 = vpop.f32.mrb[0].mxu0
      %6298 = vmatprep.mubr.f32.mxu0 0.0
      %v6299 = vand.u32 %v540, 4294901760
      %6300 = vmatmul.mubr.f32.gmra.mrb[0].mxu0 %v6299
      %v6301 = vpop.f32.mrb[0].mxu0
      %v6302 = vadd.f32 %v5465, %v6301
      %v6303 = vpop.f32.mrb[0].mxu0
      %6304 = vmatprep.mubr.f32.mxu0 0.0
      %v6305 = vand.u32 %v543, 4294901760
      %6306 = vmatmul.mubr.f32.gmra.mrb[0].mxu0 %v6305
      %v6307 = vpop.f32.mrb[0].mxu0
      %v6308 = vadd.f32 %v5471, %v6307
      %v6309 = vpop.f32.mrb[0].mxu0
      %6310 = vmatprep.mubr.f32.mxu0 0.0
      %v6311 = vand.u32 %v546, 4294901760
      %6312 = vmatmul.mubr.f32.gmra.mrb[0].mxu0 %v6311
      %v6313 = vpop.f32.mrb[0].mxu0
      %v6314 = vadd.f32 %v5477, %v6313
      %v6315 = vpop.f32.mrb[0].mxu0
      %6316 = vmatprep.mubr.f32.mxu0 0.0
      %v6317 = vand.u32 %v549, 4294901760
      %6318 = vmatmul.mubr.f32.gmra.mrb[0].mxu0 %v6317
      %v6319 = vpop.f32.mrb[0].mxu0
      %v6320 = vadd.f32 %v5483, %v6319
      %v6321 = vpop.f32.mrb[0].mxu0
      %6322 = vmatprep.mubr.f32.mxu0 0.0
      %v6323 = vand.u32 %v552, 4294901760
      %6324 = vmatmul.mubr.f32.gmra.mrb[0].mxu0 %v6323
      %v6325 = vpop.f32.mrb[0].mxu0
      %v6326 = vadd.f32 %v5489, %v6325
      %v6327 = vpop.f32.mrb[0].mxu0
      %6328 = vmatprep.mubr.f32.mxu0 0.0
      %v6329 = vand.u32 %v555, 4294901760
      %6330 = vmatmul.mubr.f32.gmra.mrb[0].mxu0 %v6329
      %v6331 = vpop.f32.mrb[0].mxu0
      %v6332 = vadd.f32 %v5495, %v6331
      %v6333 = vpop.f32.mrb[0].mxu0
      %6334 = vmatprep.mubr.f32.mxu0 0.0
      %v6335 = vand.u32 %v558, 4294901760
      %6336 = vmatmul.mubr.f32.gmra.mrb[0].mxu0 %v6335
      %v6337 = vpop.f32.mrb[0].mxu0
      %v6338 = vadd.f32 %v5501, %v6337
      %v6339 = vpop.f32.mrb[0].mxu0
      %6340 = vmatprep.mubr.f32.mxu0 0.0
      %v6341 = vand.u32 %v561, 4294901760
      %6342 = vmatmul.mubr.f32.gmra.mrb[0].mxu0 %v6341
      %v6343 = vpop.f32.mrb[0].mxu0
      %v6344 = vadd.f32 %v5507, %v6343
      %v6345 = vpop.f32.mrb[0].mxu0
      %6346 = vmatprep.mubr.f32.mxu0 0.0
      %v6347 = vand.u32 %v564, 4294901760
      %6348 = vmatmul.mubr.f32.gmra.mrb[0].mxu0 %v6347
      %v6349 = vpop.f32.mrb[0].mxu0
      %v6350 = vadd.f32 %v5513, %v6349
      %v6351 = vpop.f32.mrb[0].mxu0
      %6352 = vmatprep.mubr.f32.mxu0 0.0
      %v6353 = vand.u32 %v567, 4294901760
      %6354 = vmatmul.mubr.f32.gmra.mrb[0].mxu0 %v6353
      %v6355 = vpop.f32.mrb[0].mxu0
      %v6356 = vadd.f32 %v5519, %v6355
      %v6357 = vpop.f32.mrb[0].mxu0
      %6358 = vmatprep.mubr.f32.mxu0 0.0
      %v6359 = vand.u32 %v570, 4294901760
      %6360 = vmatmul.mubr.f32.gmra.mrb[0].mxu0 %v6359
      %v6361 = vpop.f32.mrb[0].mxu0
      %v6362 = vadd.f32 %v5525, %v6361
      %v6363 = vpop.f32.mrb[0].mxu0
      %6364 = vmatprep.mubr.f32.mxu0 0.0
      %v6365 = vand.u32 %v573, 4294901760
      %6366 = vmatmul.mubr.f32.gmra.mrb[0].mxu0 %v6365
      %v6367 = vpop.f32.mrb[0].mxu0
      %v6368 = vadd.f32 %v5531, %v6367
      %v6369 = vpop.f32.mrb[0].mxu0
      %6370 = vmatprep.mubr.f32.mxu0 0.0
      %v6371 = vand.u32 %v576, 4294901760
      %6372 = vmatmul.mubr.f32.gmra.mrb[0].mxu0 %v6371
      %v6373 = vpop.f32.mrb[0].mxu0
      %v6374 = vadd.f32 %v5537, %v6373
      %v6375 = vpop.f32.mrb[0].mxu0
      %6376 = vmatprep.mubr.f32.mxu0 0.0
      %v6377 = vand.u32 %v579, 4294901760
      %6378 = vmatmul.mubr.f32.gmra.mrb[0].mxu0 %v6377
      %v6379 = vpop.f32.mrb[0].mxu0
      %v6380 = vadd.f32 %v5543, %v6379
      %v6381 = vpop.f32.mrb[0].mxu0
      %6382 = vmatprep.mubr.f32.mxu0 0.0
      %v6383 = vand.u32 %v582, 4294901760
      %6384 = vmatmul.mubr.f32.gmra.mrb[0].mxu0 %v6383
      %v6385 = vpop.f32.mrb[0].mxu0
      %v6386 = vadd.f32 %v5549, %v6385
      %v6387 = vpop.f32.mrb[0].mxu0
      %6388 = vmatprep.mubr.f32.mxu0 0.0
      %v6389 = vand.u32 %v585, 4294901760
      %6390 = vmatmul.mubr.f32.gmra.mrb[0].mxu0 %v6389
      %v6391 = vpop.f32.mrb[0].mxu0
      %v6392 = vadd.f32 %v5555, %v6391
      %v6393 = vpop.f32.mrb[0].mxu0
      %6394 = vmatprep.mubr.f32.mxu0 0.0
      %v6395 = vand.u32 %v588, 4294901760
      %6396 = vmatmul.mubr.f32.gmra.mrb[0].mxu0 %v6395
      %v6397 = vpop.f32.mrb[0].mxu0
      %v6398 = vadd.f32 %v5561, %v6397
      %v6399 = vpop.f32.mrb[0].mxu0
      %6400 = vmatprep.mubr.f32.mxu0 0.0
      %v6401 = vand.u32 %v591, 4294901760
      %6402 = vmatmul.mubr.f32.gmra.mrb[0].mxu0 %v6401
      %v6403 = vpop.f32.mrb[0].mxu0
      %v6404 = vadd.f32 %v5567, %v6403
      %v6405 = vpop.f32.mrb[0].mxu0
      %6406 = vmatprep.mubr.f32.mxu0 0.0
      %v6407 = vand.u32 %v594, 4294901760
      %6408 = vmatmul.mubr.f32.gmra.mrb[0].mxu0 %v6407
      %v6409 = vpop.f32.mrb[0].mxu0
      %v6410 = vadd.f32 %v5573, %v6409
      %v6411 = vpop.f32.mrb[0].mxu0
      %6412 = vmatprep.mubr.f32.mxu0 0.0
      %v6413 = vand.u32 %v597, 4294901760
      %6414 = vmatmul.mubr.f32.gmra.mrb[0].mxu0 %v6413
      %v6415 = vpop.f32.mrb[0].mxu0
      %v6416 = vadd.f32 %v5579, %v6415
      %v6417 = vpop.f32.mrb[0].mxu0
      %6418 = vmatprep.mubr.f32.mxu0 0.0
      %v6419 = vand.u32 %v600, 4294901760
      %6420 = vmatmul.mubr.f32.gmra.mrb[0].mxu0 %v6419
      %v6421 = vpop.f32.mrb[0].mxu0
      %v6422 = vadd.f32 %v5585, %v6421
      %v6423 = vpop.f32.mrb[0].mxu0
      %6424 = vmatprep.mubr.f32.mxu0 0.0
      %v6425 = vand.u32 %v603, 4294901760
      %6426 = vmatmul.mubr.f32.gmra.mrb[0].mxu0 %v6425
      %v6427 = vpop.f32.mrb[0].mxu0
      %v6428 = vadd.f32 %v5591, %v6427
      %v6429 = vpop.f32.mrb[0].mxu0
      %6430 = vmatprep.mubr.f32.mxu0 0.0
      %v6431 = vand.u32 %v606, 4294901760
      %6432 = vmatmul.mubr.f32.gmra.mrb[0].mxu0 %v6431
      %v6433 = vpop.f32.mrb[0].mxu0
      %v6434 = vadd.f32 %v5597, %v6433
      %v6435 = vpop.f32.mrb[0].mxu0
      %6436 = vmatprep.mubr.f32.mxu0 0.0
      %v6437 = vand.u32 %v609, 4294901760
      %6438 = vmatmul.mubr.f32.gmra.mrb[0].mxu0 %v6437
      %v6439 = vpop.f32.mrb[0].mxu0
      %v6440 = vadd.f32 %v5603, %v6439
      %v6441 = vpop.f32.mrb[0].mxu0
      %6442 = vmatprep.mubr.f32.mxu0 0.0
      %v6443 = vand.u32 %v612, 4294901760
      %6444 = vmatmul.mubr.f32.gmra.mrb[0].mxu0 %v6443
      %v6445 = vpop.f32.mrb[0].mxu0
      %v6446 = vadd.f32 %v5609, %v6445
      %v6447 = vpop.f32.mrb[0].mxu0
      %6448 = vmatprep.mubr.f32.mxu0 0.0
      %v6449 = vand.u32 %v615, 4294901760
      %6450 = vmatmul.mubr.f32.gmra.mrb[0].mxu0 %v6449
      %v6451 = vpop.f32.mrb[0].mxu0
      %v6452 = vadd.f32 %v5615, %v6451
      %v6453 = vpop.f32.mrb[0].mxu0
      %6454 = vmatprep.mubr.f32.mxu0 0.0
      %v6455 = vand.u32 %v618, 4294901760
      %6456 = vmatmul.mubr.f32.gmra.mrb[0].mxu0 %v6455
      %v6457 = vpop.f32.mrb[0].mxu0
      %v6458 = vadd.f32 %v5621, %v6457
      %v6459 = vpop.f32.mrb[0].mxu0
      %6460 = vmatprep.mubr.f32.mxu0 0.0
      %v6461 = vand.u32 %v621, 4294901760
      %6462 = vmatmul.mubr.f32.gmra.mrb[0].mxu0 %v6461
      %v6463 = vpop.f32.mrb[0].mxu0
      %v6464 = vadd.f32 %v5627, %v6463
      %v6465 = vpop.f32.mrb[0].mxu0
      %6466 = vmatprep.mubr.f32.mxu0 0.0
      %v6467 = vand.u32 %v624, 4294901760
      %6468 = vmatmul.mubr.f32.gmra.mrb[0].mxu0 %v6467
      %v6469 = vpop.f32.mrb[0].mxu0
      %v6470 = vadd.f32 %v5633, %v6469
      %v6471 = vpop.f32.mrb[0].mxu0
      %6472 = vmatprep.mubr.f32.mxu0 0.0
      %v6473 = vand.u32 %v627, 4294901760
      %6474 = vmatmul.mubr.f32.gmra.mrb[0].mxu0 %v6473
      %v6475 = vpop.f32.mrb[0].mxu0
      %v6476 = vadd.f32 %v5639, %v6475
      %v6477 = vpop.f32.mrb[0].mxu0
      %6478 = vmatprep.mubr.f32.mxu0 0.0
      %v6479 = vand.u32 %v630, 4294901760
      %6480 = vmatmul.mubr.f32.gmra.mrb[0].mxu0 %v6479
      %v6481 = vpop.f32.mrb[0].mxu0
      %v6482 = vadd.f32 %v5645, %v6481
      %v6483 = vpop.f32.mrb[0].mxu0
      %6484 = vmatprep.mubr.f32.mxu0 0.0
      %v6485 = vand.u32 %v633, 4294901760
      %6486 = vmatmul.mubr.f32.gmra.mrb[0].mxu0 %v6485
      %v6487 = vpop.f32.mrb[0].mxu0
      %v6488 = vadd.f32 %v5651, %v6487
      %v6489 = vpop.f32.mrb[0].mxu0
      %6490 = vmatprep.mubr.f32.mxu0 0.0
      %v6491 = vand.u32 %v636, 4294901760
      %6492 = vmatmul.mubr.f32.gmra.mrb[0].mxu0 %v6491
      %v6493 = vpop.f32.mrb[0].mxu0
      %v6494 = vadd.f32 %v5657, %v6493
      %v6495 = vpop.f32.mrb[0].mxu0
      %6496 = vmatprep.mubr.f32.mxu0 0.0
      %v6497 = vand.u32 %v639, 4294901760
      %6498 = vmatmul.mubr.f32.gmra.mrb[0].mxu0 %v6497
      %v6499 = vpop.f32.mrb[0].mxu0
      %v6500 = vadd.f32 %v5663, %v6499
      %v6501 = vpop.f32.mrb[0].mxu0
      %6502 = vmatprep.mubr.f32.mxu0 0.0
      %v6503 = vand.u32 %v642, 4294901760
      %6504 = vmatmul.mubr.f32.gmra.mrb[0].mxu0 %v6503
      %v6505 = vpop.f32.mrb[0].mxu0
      %v6506 = vadd.f32 %v5669, %v6505
      %v6507 = vpop.f32.mrb[0].mxu0
      %6508 = vmatprep.mubr.f32.mxu0 0.0
      %v6509 = vand.u32 %v645, 4294901760
      %6510 = vmatmul.mubr.f32.gmra.mrb[0].mxu0 %v6509
      %v6511 = vpop.f32.mrb[0].mxu0
      %v6512 = vadd.f32 %v5675, %v6511
      %v6513 = vpop.f32.mrb[0].mxu0
      %6514 = vmatprep.mubr.f32.mxu0 0.0
      %v6515 = vand.u32 %v648, 4294901760
      %6516 = vmatmul.mubr.f32.gmra.mrb[0].mxu0 %v6515
      %v6517 = vpop.f32.mrb[0].mxu0
      %v6518 = vadd.f32 %v5681, %v6517
      %v6519 = vpop.f32.mrb[0].mxu0
      %6520 = vmatprep.mubr.f32.mxu0 0.0
      %v6521 = vand.u32 %v651, 4294901760
      %6522 = vmatmul.mubr.f32.gmra.mrb[0].mxu0 %v6521
      %v6523 = vpop.f32.mrb[0].mxu0
      %v6524 = vadd.f32 %v5687, %v6523
      %v6525 = vpop.f32.mrb[0].mxu0
      %6526 = vmatprep.mubr.f32.mxu0 0.0
      %v6527 = vand.u32 %v654, 4294901760
      %6528 = vmatmul.mubr.f32.gmra.mrb[0].mxu0 %v6527
      %v6529 = vpop.f32.mrb[0].mxu0
      %v6530 = vadd.f32 %v5693, %v6529
      %v6531 = vpop.f32.mrb[0].mxu0
      %6532 = vmatprep.mubr.f32.mxu0 0.0
      %v6533 = vand.u32 %v657, 4294901760
      %6534 = vmatmul.mubr.f32.gmra.mrb[0].mxu0 %v6533
      %v6535 = vpop.f32.mrb[0].mxu0
      %v6536 = vadd.f32 %v5699, %v6535
      %v6537 = vpop.f32.mrb[0].mxu0
      %6538 = vmatprep.mubr.f32.mxu0 0.0
      %v6539 = vand.u32 %v660, 4294901760
      %6540 = vmatmul.mubr.f32.gmra.mrb[0].mxu0 %v6539
      %v6541 = vpop.f32.mrb[0].mxu0
      %v6542 = vadd.f32 %v5705, %v6541
      %v6543 = vpop.f32.mrb[0].mxu0
      %6544 = vmatprep.mubr.f32.mxu0 0.0
      %v6545 = vand.u32 %v663, 4294901760
      %6546 = vmatmul.mubr.f32.gmra.mrb[0].mxu0 %v6545
      %v6547 = vpop.f32.mrb[0].mxu0
      %v6548 = vadd.f32 %v5711, %v6547
      %v6549 = vpop.f32.mrb[0].mxu0
      %6550 = vmatprep.mubr.f32.mxu0 0.0
      %v6551 = vand.u32 %v666, 4294901760
      %6552 = vmatmul.mubr.f32.gmra.mrb[0].mxu0 %v6551
      %v6553 = vpop.f32.mrb[0].mxu0
      %v6554 = vadd.f32 %v5717, %v6553
      %v6555 = vpop.f32.mrb[0].mxu0
      %6556 = vmatprep.mubr.f32.mxu0 0.0
      %v6557 = vand.u32 %v669, 4294901760
      %6558 = vmatmul.mubr.f32.gmra.mrb[0].mxu0 %v6557
      %v6559 = vpop.f32.mrb[0].mxu0
      %v6560 = vadd.f32 %v5723, %v6559
      %v6561 = vpop.f32.mrb[0].mxu0
      %6562 = vmatprep.mubr.f32.mxu0 0.0
      %v6563 = vand.u32 %v672, 4294901760
      %6564 = vmatmul.mubr.f32.gmra.mrb[0].mxu0 %v6563
      %v6565 = vpop.f32.mrb[0].mxu0
      %v6566 = vadd.f32 %v5729, %v6565
      %v6567 = vpop.f32.mrb[0].mxu0
      %6568 = vmatprep.mubr.f32.mxu0 0.0
      %v6569 = vand.u32 %v675, 4294901760
      %6570 = vmatmul.mubr.f32.gmra.mrb[0].mxu0 %v6569
      %v6571 = vpop.f32.mrb[0].mxu0
      %v6572 = vadd.f32 %v5735, %v6571
      %v6573 = vpop.f32.mrb[0].mxu0
      %6574 = vmatprep.mubr.f32.mxu0 0.0
      %v6575 = vand.u32 %v678, 4294901760
      %6576 = vmatmul.mubr.f32.gmra.mrb[0].mxu0 %v6575
      %v6577 = vpop.f32.mrb[0].mxu0
      %v6578 = vadd.f32 %v5741, %v6577
      %v6579 = vpop.f32.mrb[0].mxu0
      %6580 = vmatprep.mubr.f32.mxu0 0.0
      %v6581 = vand.u32 %v681, 4294901760
      %6582 = vmatmul.mubr.f32.gmra.mrb[0].mxu0 %v6581
      %v6583 = vpop.f32.mrb[0].mxu0
      %v6584 = vadd.f32 %v5747, %v6583
      %v6585 = vpop.f32.mrb[0].mxu0
      %6586 = vmatprep.mubr.f32.mxu0 0.0
      %v6587 = vand.u32 %v684, 4294901760
      %6588 = vmatmul.mubr.f32.gmra.mrb[0].mxu0 %v6587
      %v6589 = vpop.f32.mrb[0].mxu0
      %v6590 = vadd.f32 %v5753, %v6589
      %v6591 = vpop.f32.mrb[0].mxu0
      %6592 = vmatprep.mubr.f32.mxu0 0.0
      %v6593 = vand.u32 %v687, 4294901760
      %6594 = vmatmul.mubr.f32.gmra.mrb[0].mxu0 %v6593
      %v6595 = vpop.f32.mrb[0].mxu0
      %v6596 = vadd.f32 %v5759, %v6595
      %v6597 = vpop.f32.mrb[0].mxu0
      %6598 = vmatprep.mubr.f32.mxu0 0.0
      %v6599 = vand.u32 %v690, 4294901760
      %6600 = vmatmul.mubr.f32.gmra.mrb[0].mxu0 %v6599
      %v6601 = vpop.f32.mrb[0].mxu0
      %v6602 = vadd.f32 %v5765, %v6601
      %v6603 = vpop.f32.mrb[0].mxu0
      %6604 = vmatprep.mubr.f32.mxu0 0.0
      %v6605 = vand.u32 %v693, 4294901760
      %6606 = vmatmul.mubr.f32.gmra.mrb[0].mxu0 %v6605
      %v6607 = vpop.f32.mrb[0].mxu0
      %v6608 = vadd.f32 %v5771, %v6607
      %v6609 = vpop.f32.mrb[0].mxu0
      %6610 = vmatprep.mubr.f32.mxu0 0.0
      %v6611 = vand.u32 %v696, 4294901760
      %6612 = vmatmul.mubr.f32.gmra.mrb[0].mxu0 %v6611
      %v6613 = vpop.f32.mrb[0].mxu0
      %v6614 = vadd.f32 %v5777, %v6613
      %v6615 = vpop.f32.mrb[0].mxu0
      %6616 = vmatprep.mubr.f32.mxu0 0.0
      %v6617 = vand.u32 %v699, 4294901760
      %6618 = vmatmul.mubr.f32.gmra.mrb[0].mxu0 %v6617
      %v6619 = vpop.f32.mrb[0].mxu0
      %v6620 = vadd.f32 %v5783, %v6619
      %v6621 = vpop.f32.mrb[0].mxu0
      %6622 = vmatprep.mubr.f32.mxu0 0.0
      %v6623 = vand.u32 %v702, 4294901760
      %6624 = vmatmul.mubr.f32.gmra.mrb[0].mxu0 %v6623
      %v6625 = vpop.f32.mrb[0].mxu0
      %v6626 = vadd.f32 %v5789, %v6625
      %v6627 = vpop.f32.mrb[0].mxu0
      %6628 = vmatprep.mubr.f32.mxu0 0.0
      %v6629 = vand.u32 %v705, 4294901760
      %6630 = vmatmul.mubr.f32.gmra.mrb[0].mxu0 %v6629
      %v6631 = vpop.f32.mrb[0].mxu0
      %v6632 = vadd.f32 %v5795, %v6631
      %v6633 = vpop.f32.mrb[0].mxu0
      %6634 = vmatprep.mubr.f32.mxu0 0.0
      %v6635 = vand.u32 %v708, 4294901760
      %6636 = vmatmul.mubr.f32.gmra.mrb[0].mxu0 %v6635
      %v6637 = vpop.f32.mrb[0].mxu0
      %v6638 = vadd.f32 %v5801, %v6637
      %v6639 = vpop.f32.mrb[0].mxu0
      %6640 = vmatprep.mubr.f32.mxu0 0.0
      %v6641 = vand.u32 %v711, 4294901760
      %6642 = vmatmul.mubr.f32.gmra.mrb[0].mxu0 %v6641
      %v6643 = vpop.f32.mrb[0].mxu0
      %v6644 = vadd.f32 %v5807, %v6643
      %v6645 = vpop.f32.mrb[0].mxu0
      %6646 = vmatprep.mubr.f32.mxu0 0.0
      %v6647 = vand.u32 %v714, 4294901760
      %6648 = vmatmul.mubr.f32.gmra.mrb[0].mxu0 %v6647
      %v6649 = vpop.f32.mrb[0].mxu0
      %v6650 = vadd.f32 %v5813, %v6649
      %v6651 = vpop.f32.mrb[0].mxu0
      %6652 = vmatprep.mubr.f32.mxu0 0.0
      %v6653 = vand.u32 %v717, 4294901760
      %6654 = vmatmul.mubr.f32.gmra.mrb[0].mxu0 %v6653
      %v6655 = vpop.f32.mrb[0].mxu0
      %v6656 = vadd.f32 %v5819, %v6655
      %v6657 = vpop.f32.mrb[0].mxu0
      %6658 = vmatprep.mubr.f32.mxu0 0.0
      %v6659 = vand.u32 %v720, 4294901760
      %6660 = vmatmul.mubr.f32.gmra.mrb[0].mxu0 %v6659
      %v6661 = vpop.f32.mrb[0].mxu0
      %v6662 = vadd.f32 %v5825, %v6661
      %v6663 = vpop.f32.mrb[0].mxu0
      %6664 = vmatprep.mubr.f32.mxu0 0.0
      %v6665 = vand.u32 %v723, 4294901760
      %6666 = vmatmul.mubr.f32.gmra.mrb[0].mxu0 %v6665
      %v6667 = vpop.f32.mrb[0].mxu0
      %v6668 = vadd.f32 %v5831, %v6667
      %v6669 = vpop.f32.mrb[0].mxu0
      %6670 = vdwg.mxu0
      %v6671 = vtanh.pop %v5906
      %v6672 = vtanh.pop %v5912
      %v6673 = vtanh.pop %v5918
      %v6674 = vtanh.pop %v5924
      %v6675 = vtanh.pop %v5930
      %v6676 = vtanh.pop %v5936
      %v6677 = vtanh.pop %v5942
      %v6678 = vtanh.pop %v5948
      %v6679 = vtanh.pop %v5954
      %v6680 = vtanh.pop %v5960
      %v6681 = vtanh.pop %v5966
      %v6682 = vtanh.pop %v5972
      %v6683 = vtanh.pop %v5978
      %v6684 = vtanh.pop %v5984
      %v6685 = vtanh.pop %v5990
      %v6686 = vtanh.pop %v5996
      %v6687 = vtanh.pop %v6002
      %v6688 = vtanh.pop %v6008
      %v6689 = vtanh.pop %v6014
      %v6690 = vtanh.pop %v6020
      %v6691 = vtanh.pop %v6026
      %v6692 = vtanh.pop %v6032
      %v6693 = vtanh.pop %v6038
      %v6694 = vtanh.pop %v6044
      %v6695 = vtanh.pop %v6050
      %v6696 = vtanh.pop %v6056
      %v6697 = vtanh.pop %v6062
      %v6698 = vtanh.pop %v6068
      %v6699 = vtanh.pop %v6074
      %v6700 = vtanh.pop %v6080
      %v6701 = vtanh.pop %v6086
      %v6702 = vtanh.pop %v6092
      %v6703 = vtanh.pop %v6098
      %v6704 = vtanh.pop %v6104
      %v6705 = vtanh.pop %v6110
      %v6706 = vtanh.pop %v6116
      %v6707 = vtanh.pop %v6122
      %v6708 = vtanh.pop %v6128
      %v6709 = vtanh.pop %v6134
      %v6710 = vtanh.pop %v6140
      %v6711 = vtanh.pop %v6146
      %v6712 = vtanh.pop %v6152
      %v6713 = vtanh.pop %v6158
      %v6714 = vtanh.pop %v6164
      %v6715 = vtanh.pop %v6170
      %v6716 = vtanh.pop %v6176
      %v6717 = vtanh.pop %v6182
      %v6718 = vtanh.pop %v6188
      %v6719 = vtanh.pop %v6194
      %v6720 = vtanh.pop %v6200
      %v6721 = vtanh.pop %v6206
      %v6722 = vtanh.pop %v6212
      %v6723 = vtanh.pop %v6218
      %v6724 = vtanh.pop %v6224
      %v6725 = vtanh.pop %v6230
      %v6726 = vtanh.pop %v6236
      %v6727 = vtanh.pop %v6242
      %v6728 = vtanh.pop %v6248
      %v6729 = vtanh.pop %v6254
      %v6730 = vtanh.pop %v6260
      %v6731 = vtanh.pop %v6266
      %v6732 = vtanh.pop %v6272
      %v6733 = vtanh.pop %v6278
      %v6734 = vtanh.pop %v6284
      %v6735 = vtanh.pop %v6290
      %v6736 = vtanh.pop %v6296
      %v6737 = vtanh.pop %v6302
      %v6738 = vtanh.pop %v6308
      %v6739 = vtanh.pop %v6314
      %v6740 = vtanh.pop %v6320
      %v6741 = vtanh.pop %v6326
      %v6742 = vtanh.pop %v6332
      %v6743 = vtanh.pop %v6338
      %v6744 = vtanh.pop %v6344
      %v6745 = vtanh.pop %v6350
      %v6746 = vtanh.pop %v6356
      %v6747 = vtanh.pop %v6362
      %v6748 = vtanh.pop %v6368
      %v6749 = vtanh.pop %v6374
      %v6750 = vtanh.pop %v6380
      %v6751 = vtanh.pop %v6386
      %v6752 = vtanh.pop %v6392
      %v6753 = vtanh.pop %v6398
      %v6754 = vtanh.pop %v6404
      %v6755 = vtanh.pop %v6410
      %v6756 = vtanh.pop %v6416
      %v6757 = vtanh.pop %v6422
      %v6758 = vtanh.pop %v6428
      %v6759 = vtanh.pop %v6434
      %v6760 = vtanh.pop %v6440
      %v6761 = vtanh.pop %v6446
      %v6762 = vtanh.pop %v6452
      %v6763 = vtanh.pop %v6458
      %v6764 = vtanh.pop %v6464
      %v6765 = vtanh.pop %v6470
      %v6766 = vtanh.pop %v6476
      %v6767 = vtanh.pop %v6482
      %v6768 = vtanh.pop %v6488
      %v6769 = vtanh.pop %v6494
      %v6770 = vtanh.pop %v6500
      %v6771 = vtanh.pop %v6506
      %v6772 = vtanh.pop %v6512
      %v6773 = vtanh.pop %v6518
      %v6774 = vtanh.pop %v6524
      %v6775 = vtanh.pop %v6530
      %v6776 = vtanh.pop %v6536
      %v6777 = vtanh.pop %v6542
      %v6778 = vtanh.pop %v6548
      %v6779 = vtanh.pop %v6554
      %v6780 = vtanh.pop %v6560
      %v6781 = vtanh.pop %v6566
      %v6782 = vtanh.pop %v6572
      %v6783 = vtanh.pop %v6578
      %v6784 = vtanh.pop %v6584
      %v6785 = vtanh.pop %v6590
      %v6786 = vtanh.pop %v6596
      %v6787 = vtanh.pop %v6602
      %v6788 = vtanh.pop %v6608
      %v6789 = vtanh.pop %v6614
      %v6790 = vtanh.pop %v6620
      %v6791 = vtanh.pop %v6626
      %v6792 = vtanh.pop %v6632
      %v6793 = vtanh.pop %v6638
      %v6794 = vtanh.pop %v6644
      %v6795 = vtanh.pop %v6650
      %v6796 = vtanh.pop %v6656
      %v6797 = vtanh.pop %v6662
      %v6798 = vtanh.pop %v6668
      %v6799 = vld [vmem:[%s3 + $0x3] sm:$0x1]
      %v6800 = vld [vmem:[%s3] sm:$0x1]
      %6802 = vset.pattern.permute.xlu0 0
      %6803 = vperm.xlu0 %6802, %v6671
      %v6804 = vpop.permute.xlu0 %6803
      %6807 = vset.pattern.permute.xlu0 0
      %6808 = vperm.xlu0 %6807, %v6672
      %v6809 = vpop.permute.xlu0 %6808
      %6812 = vset.pattern.permute.xlu0 0
      %6813 = vperm.xlu0 %6812, %v6673
      %v6814 = vpop.permute.xlu0 %6813
      %6817 = vset.pattern.permute.xlu0 0
      %6818 = vperm.xlu0 %6817, %v6674
      %v6819 = vpop.permute.xlu0 %6818
      %6822 = vset.pattern.permute.xlu0 0
      %6823 = vperm.xlu0 %6822, %v6675
      %v6824 = vpop.permute.xlu0 %6823
      %6827 = vset.pattern.permute.xlu0 0
      %6828 = vperm.xlu0 %6827, %v6676
      %v6829 = vpop.permute.xlu0 %6828
      %6832 = vset.pattern.permute.xlu0 0
      %6833 = vperm.xlu0 %6832, %v6677
      %v6834 = vpop.permute.xlu0 %6833
      %6837 = vset.pattern.permute.xlu0 0
      %6838 = vperm.xlu0 %6837, %v6678
      %v6839 = vpop.permute.xlu0 %6838
      %6842 = vset.pattern.permute.xlu0 0
      %6843 = vperm.xlu0 %6842, %v6679
      %v6844 = vpop.permute.xlu0 %6843
      %6847 = vset.pattern.permute.xlu0 0
      %6848 = vperm.xlu0 %6847, %v6680
      %v6849 = vpop.permute.xlu0 %6848
      %6852 = vset.pattern.permute.xlu0 0
      %6853 = vperm.xlu0 %6852, %v6681
      %v6854 = vpop.permute.xlu0 %6853
      %6857 = vset.pattern.permute.xlu0 0
      %6858 = vperm.xlu0 %6857, %v6682
      %v6859 = vpop.permute.xlu0 %6858
      %6862 = vset.pattern.permute.xlu0 0
      %6863 = vperm.xlu0 %6862, %v6683
      %v6864 = vpop.permute.xlu0 %6863
      %6867 = vset.pattern.permute.xlu0 0
      %6868 = vperm.xlu0 %6867, %v6684
      %v6869 = vpop.permute.xlu0 %6868
      %6872 = vset.pattern.permute.xlu0 0
      %6873 = vperm.xlu0 %6872, %v6685
      %v6874 = vpop.permute.xlu0 %6873
      %6877 = vset.pattern.permute.xlu0 0
      %6878 = vperm.xlu0 %6877, %v6686
      %v6879 = vpop.permute.xlu0 %6878
      %6882 = vset.pattern.permute.xlu0 0
      %6883 = vperm.xlu0 %6882, %v6687
      %v6884 = vpop.permute.xlu0 %6883
      %6887 = vset.pattern.permute.xlu0 0
      %6888 = vperm.xlu0 %6887, %v6688
      %v6889 = vpop.permute.xlu0 %6888
      %6892 = vset.pattern.permute.xlu0 0
      %6893 = vperm.xlu0 %6892, %v6689
      %v6894 = vpop.permute.xlu0 %6893
      %6897 = vset.pattern.permute.xlu0 0
      %6898 = vperm.xlu0 %6897, %v6690
      %v6899 = vpop.permute.xlu0 %6898
      %6902 = vset.pattern.permute.xlu0 0
      %6903 = vperm.xlu0 %6902, %v6691
      %v6904 = vpop.permute.xlu0 %6903
      %6907 = vset.pattern.permute.xlu0 0
      %6908 = vperm.xlu0 %6907, %v6692
      %v6909 = vpop.permute.xlu0 %6908
      %6912 = vset.pattern.permute.xlu0 0
      %6913 = vperm.xlu0 %6912, %v6693
      %v6914 = vpop.permute.xlu0 %6913
      %6917 = vset.pattern.permute.xlu0 0
      %6918 = vperm.xlu0 %6917, %v6694
      %v6919 = vpop.permute.xlu0 %6918
      %6922 = vset.pattern.permute.xlu0 0
      %6923 = vperm.xlu0 %6922, %v6695
      %v6924 = vpop.permute.xlu0 %6923
      %6927 = vset.pattern.permute.xlu0 0
      %6928 = vperm.xlu0 %6927, %v6696
      %v6929 = vpop.permute.xlu0 %6928
      %6932 = vset.pattern.permute.xlu0 0
      %6933 = vperm.xlu0 %6932, %v6697
      %v6934 = vpop.permute.xlu0 %6933
      %6937 = vset.pattern.permute.xlu0 0
      %6938 = vperm.xlu0 %6937, %v6698
      %v6939 = vpop.permute.xlu0 %6938
      %6942 = vset.pattern.permute.xlu0 0
      %6943 = vperm.xlu0 %6942, %v6699
      %v6944 = vpop.permute.xlu0 %6943
      %6947 = vset.pattern.permute.xlu0 0
      %6948 = vperm.xlu0 %6947, %v6700
      %v6949 = vpop.permute.xlu0 %6948
      %6952 = vset.pattern.permute.xlu0 0
      %6953 = vperm.xlu0 %6952, %v6701
      %v6954 = vpop.permute.xlu0 %6953
      %6957 = vset.pattern.permute.xlu0 0
      %6958 = vperm.xlu0 %6957, %v6702
      %v6959 = vpop.permute.xlu0 %6958
      %6962 = vset.pattern.permute.xlu0 0
      %6963 = vperm.xlu0 %6962, %v6703
      %v6964 = vpop.permute.xlu0 %6963
      %6967 = vset.pattern.permute.xlu0 0
      %6968 = vperm.xlu0 %6967, %v6704
      %v6969 = vpop.permute.xlu0 %6968
      %6972 = vset.pattern.permute.xlu0 0
      %6973 = vperm.xlu0 %6972, %v6705
      %v6974 = vpop.permute.xlu0 %6973
      %6977 = vset.pattern.permute.xlu0 0
      %6978 = vperm.xlu0 %6977, %v6706
      %v6979 = vpop.permute.xlu0 %6978
      %6982 = vset.pattern.permute.xlu0 0
      %6983 = vperm.xlu0 %6982, %v6707
      %v6984 = vpop.permute.xlu0 %6983
      %6987 = vset.pattern.permute.xlu0 0
      %6988 = vperm.xlu0 %6987, %v6708
      %v6989 = vpop.permute.xlu0 %6988
      %6992 = vset.pattern.permute.xlu0 0
      %6993 = vperm.xlu0 %6992, %v6709
      %v6994 = vpop.permute.xlu0 %6993
      %6997 = vset.pattern.permute.xlu0 0
      %6998 = vperm.xlu0 %6997, %v6710
      %v6999 = vpop.permute.xlu0 %6998
      %7002 = vset.pattern.permute.xlu0 0
      %7003 = vperm.xlu0 %7002, %v6711
      %v7004 = vpop.permute.xlu0 %7003
      %7007 = vset.pattern.permute.xlu0 0
      %7008 = vperm.xlu0 %7007, %v6712
      %v7009 = vpop.permute.xlu0 %7008
      %7012 = vset.pattern.permute.xlu0 0
      %7013 = vperm.xlu0 %7012, %v6713
      %v7014 = vpop.permute.xlu0 %7013
      %7017 = vset.pattern.permute.xlu0 0
      %7018 = vperm.xlu0 %7017, %v6714
      %v7019 = vpop.permute.xlu0 %7018
      %7022 = vset.pattern.permute.xlu0 0
      %7023 = vperm.xlu0 %7022, %v6715
      %v7024 = vpop.permute.xlu0 %7023
      %7027 = vset.pattern.permute.xlu0 0
      %7028 = vperm.xlu0 %7027, %v6716
      %v7029 = vpop.permute.xlu0 %7028
      %7032 = vset.pattern.permute.xlu0 0
      %7033 = vperm.xlu0 %7032, %v6717
      %v7034 = vpop.permute.xlu0 %7033
      %7037 = vset.pattern.permute.xlu0 0
      %7038 = vperm.xlu0 %7037, %v6718
      %v7039 = vpop.permute.xlu0 %7038
      %7042 = vset.pattern.permute.xlu0 0
      %7043 = vperm.xlu0 %7042, %v6719
      %v7044 = vpop.permute.xlu0 %7043
      %7047 = vset.pattern.permute.xlu0 0
      %7048 = vperm.xlu0 %7047, %v6720
      %v7049 = vpop.permute.xlu0 %7048
      %7052 = vset.pattern.permute.xlu0 0
      %7053 = vperm.xlu0 %7052, %v6721
      %v7054 = vpop.permute.xlu0 %7053
      %7057 = vset.pattern.permute.xlu0 0
      %7058 = vperm.xlu0 %7057, %v6722
      %v7059 = vpop.permute.xlu0 %7058
      %7062 = vset.pattern.permute.xlu0 0
      %7063 = vperm.xlu0 %7062, %v6723
      %v7064 = vpop.permute.xlu0 %7063
      %7067 = vset.pattern.permute.xlu0 0
      %7068 = vperm.xlu0 %7067, %v6724
      %v7069 = vpop.permute.xlu0 %7068
      %7072 = vset.pattern.permute.xlu0 0
      %7073 = vperm.xlu0 %7072, %v6725
      %v7074 = vpop.permute.xlu0 %7073
      %7077 = vset.pattern.permute.xlu0 0
      %7078 = vperm.xlu0 %7077, %v6726
      %v7079 = vpop.permute.xlu0 %7078
      %7082 = vset.pattern.permute.xlu0 0
      %7083 = vperm.xlu0 %7082, %v6727
      %v7084 = vpop.permute.xlu0 %7083
      %7087 = vset.pattern.permute.xlu0 0
      %7088 = vperm.xlu0 %7087, %v6728
      %v7089 = vpop.permute.xlu0 %7088
      %7092 = vset.pattern.permute.xlu0 0
      %7093 = vperm.xlu0 %7092, %v6729
      %v7094 = vpop.permute.xlu0 %7093
      %7097 = vset.pattern.permute.xlu0 0
      %7098 = vperm.xlu0 %7097, %v6730
      %v7099 = vpop.permute.xlu0 %7098
      %7102 = vset.pattern.permute.xlu0 0
      %7103 = vperm.xlu0 %7102, %v6731
      %v7104 = vpop.permute.xlu0 %7103
      %7107 = vset.pattern.permute.xlu0 0
      %7108 = vperm.xlu0 %7107, %v6732
      %v7109 = vpop.permute.xlu0 %7108
      %7112 = vset.pattern.permute.xlu0 0
      %7113 = vperm.xlu0 %7112, %v6733
      %v7114 = vpop.permute.xlu0 %7113
      %7117 = vset.pattern.permute.xlu0 0
      %7118 = vperm.xlu0 %7117, %v6734
      %v7119 = vpop.permute.xlu0 %7118
      %7122 = vset.pattern.permute.xlu0 0
      %7123 = vperm.xlu0 %7122, %v6735
      %v7124 = vpop.permute.xlu0 %7123
      %7127 = vset.pattern.permute.xlu0 0
      %7128 = vperm.xlu0 %7127, %v6736
      %v7129 = vpop.permute.xlu0 %7128
      %7132 = vset.pattern.permute.xlu0 0
      %7133 = vperm.xlu0 %7132, %v6737
      %v7134 = vpop.permute.xlu0 %7133
      %7137 = vset.pattern.permute.xlu0 0
      %7138 = vperm.xlu0 %7137, %v6738
      %v7139 = vpop.permute.xlu0 %7138
      %7142 = vset.pattern.permute.xlu0 0
      %7143 = vperm.xlu0 %7142, %v6739
      %v7144 = vpop.permute.xlu0 %7143
      %7147 = vset.pattern.permute.xlu0 0
      %7148 = vperm.xlu0 %7147, %v6740
      %v7149 = vpop.permute.xlu0 %7148
      %7152 = vset.pattern.permute.xlu0 0
      %7153 = vperm.xlu0 %7152, %v6741
      %v7154 = vpop.permute.xlu0 %7153
      %7157 = vset.pattern.permute.xlu0 0
      %7158 = vperm.xlu0 %7157, %v6742
      %v7159 = vpop.permute.xlu0 %7158
      %7162 = vset.pattern.permute.xlu0 0
      %7163 = vperm.xlu0 %7162, %v6743
      %v7164 = vpop.permute.xlu0 %7163
      %7167 = vset.pattern.permute.xlu0 0
      %7168 = vperm.xlu0 %7167, %v6744
      %v7169 = vpop.permute.xlu0 %7168
      %7172 = vset.pattern.permute.xlu0 0
      %7173 = vperm.xlu0 %7172, %v6745
      %v7174 = vpop.permute.xlu0 %7173
      %7177 = vset.pattern.permute.xlu0 0
      %7178 = vperm.xlu0 %7177, %v6746
      %v7179 = vpop.permute.xlu0 %7178
      %7182 = vset.pattern.permute.xlu0 0
      %7183 = vperm.xlu0 %7182, %v6747
      %v7184 = vpop.permute.xlu0 %7183
      %7187 = vset.pattern.permute.xlu0 0
      %7188 = vperm.xlu0 %7187, %v6748
      %v7189 = vpop.permute.xlu0 %7188
      %7192 = vset.pattern.permute.xlu0 0
      %7193 = vperm.xlu0 %7192, %v6749
      %v7194 = vpop.permute.xlu0 %7193
      %7197 = vset.pattern.permute.xlu0 0
      %7198 = vperm.xlu0 %7197, %v6750
      %v7199 = vpop.permute.xlu0 %7198
      %7202 = vset.pattern.permute.xlu0 0
      %7203 = vperm.xlu0 %7202, %v6751
      %v7204 = vpop.permute.xlu0 %7203
      %7207 = vset.pattern.permute.xlu0 0
      %7208 = vperm.xlu0 %7207, %v6752
      %v7209 = vpop.permute.xlu0 %7208
      %7212 = vset.pattern.permute.xlu0 0
      %7213 = vperm.xlu0 %7212, %v6753
      %v7214 = vpop.permute.xlu0 %7213
      %7217 = vset.pattern.permute.xlu0 0
      %7218 = vperm.xlu0 %7217, %v6754
      %v7219 = vpop.permute.xlu0 %7218
      %7222 = vset.pattern.permute.xlu0 0
      %7223 = vperm.xlu0 %7222, %v6755
      %v7224 = vpop.permute.xlu0 %7223
      %7227 = vset.pattern.permute.xlu0 0
      %7228 = vperm.xlu0 %7227, %v6756
      %v7229 = vpop.permute.xlu0 %7228
      %7232 = vset.pattern.permute.xlu0 0
      %7233 = vperm.xlu0 %7232, %v6757
      %v7234 = vpop.permute.xlu0 %7233
      %7237 = vset.pattern.permute.xlu0 0
      %7238 = vperm.xlu0 %7237, %v6758
      %v7239 = vpop.permute.xlu0 %7238
      %7242 = vset.pattern.permute.xlu0 0
      %7243 = vperm.xlu0 %7242, %v6759
      %v7244 = vpop.permute.xlu0 %7243
      %7247 = vset.pattern.permute.xlu0 0
      %7248 = vperm.xlu0 %7247, %v6760
      %v7249 = vpop.permute.xlu0 %7248
      %7252 = vset.pattern.permute.xlu0 0
      %7253 = vperm.xlu0 %7252, %v6761
      %v7254 = vpop.permute.xlu0 %7253
      %7257 = vset.pattern.permute.xlu0 0
      %7258 = vperm.xlu0 %7257, %v6762
      %v7259 = vpop.permute.xlu0 %7258
      %7262 = vset.pattern.permute.xlu0 0
      %7263 = vperm.xlu0 %7262, %v6763
      %v7264 = vpop.permute.xlu0 %7263
      %7267 = vset.pattern.permute.xlu0 0
      %7268 = vperm.xlu0 %7267, %v6764
      %v7269 = vpop.permute.xlu0 %7268
      %7272 = vset.pattern.permute.xlu0 0
      %7273 = vperm.xlu0 %7272, %v6765
      %v7274 = vpop.permute.xlu0 %7273
      %7277 = vset.pattern.permute.xlu0 0
      %7278 = vperm.xlu0 %7277, %v6766
      %v7279 = vpop.permute.xlu0 %7278
      %7282 = vset.pattern.permute.xlu0 0
      %7283 = vperm.xlu0 %7282, %v6767
      %v7284 = vpop.permute.xlu0 %7283
      %7287 = vset.pattern.permute.xlu0 0
      %7288 = vperm.xlu0 %7287, %v6768
      %v7289 = vpop.permute.xlu0 %7288
      %7292 = vset.pattern.permute.xlu0 0
      %7293 = vperm.xlu0 %7292, %v6769
      %v7294 = vpop.permute.xlu0 %7293
      %7297 = vset.pattern.permute.xlu0 0
      %7298 = vperm.xlu0 %7297, %v6770
      %v7299 = vpop.permute.xlu0 %7298
      %7302 = vset.pattern.permute.xlu0 0
      %7303 = vperm.xlu0 %7302, %v6771
      %v7304 = vpop.permute.xlu0 %7303
      %7307 = vset.pattern.permute.xlu0 0
      %7308 = vperm.xlu0 %7307, %v6772
      %v7309 = vpop.permute.xlu0 %7308
      %7312 = vset.pattern.permute.xlu0 0
      %7313 = vperm.xlu0 %7312, %v6773
      %v7314 = vpop.permute.xlu0 %7313
      %7317 = vset.pattern.permute.xlu0 0
      %7318 = vperm.xlu0 %7317, %v6774
      %v7319 = vpop.permute.xlu0 %7318
      %7322 = vset.pattern.permute.xlu0 0
      %7323 = vperm.xlu0 %7322, %v6775
      %v7324 = vpop.permute.xlu0 %7323
      %7327 = vset.pattern.permute.xlu0 0
      %7328 = vperm.xlu0 %7327, %v6776
      %v7329 = vpop.permute.xlu0 %7328
      %7332 = vset.pattern.permute.xlu0 0
      %7333 = vperm.xlu0 %7332, %v6777
      %v7334 = vpop.permute.xlu0 %7333
      %7337 = vset.pattern.permute.xlu0 0
      %7338 = vperm.xlu0 %7337, %v6778
      %v7339 = vpop.permute.xlu0 %7338
      %7342 = vset.pattern.permute.xlu0 0
      %7343 = vperm.xlu0 %7342, %v6779
      %v7344 = vpop.permute.xlu0 %7343
      %7347 = vset.pattern.permute.xlu0 0
      %7348 = vperm.xlu0 %7347, %v6780
      %v7349 = vpop.permute.xlu0 %7348
      %7352 = vset.pattern.permute.xlu0 0
      %7353 = vperm.xlu0 %7352, %v6781
      %v7354 = vpop.permute.xlu0 %7353
      %7357 = vset.pattern.permute.xlu0 0
      %7358 = vperm.xlu0 %7357, %v6782
      %v7359 = vpop.permute.xlu0 %7358
      %7362 = vset.pattern.permute.xlu0 0
      %7363 = vperm.xlu0 %7362, %v6783
      %v7364 = vpop.permute.xlu0 %7363
      %7367 = vset.pattern.permute.xlu0 0
      %7368 = vperm.xlu0 %7367, %v6784
      %v7369 = vpop.permute.xlu0 %7368
      %7372 = vset.pattern.permute.xlu0 0
      %7373 = vperm.xlu0 %7372, %v6785
      %v7374 = vpop.permute.xlu0 %7373
      %7377 = vset.pattern.permute.xlu0 0
      %7378 = vperm.xlu0 %7377, %v6786
      %v7379 = vpop.permute.xlu0 %7378
      %7382 = vset.pattern.permute.xlu0 0
      %7383 = vperm.xlu0 %7382, %v6787
      %v7384 = vpop.permute.xlu0 %7383
      %7387 = vset.pattern.permute.xlu0 0
      %7388 = vperm.xlu0 %7387, %v6788
      %v7389 = vpop.permute.xlu0 %7388
      %7392 = vset.pattern.permute.xlu0 0
      %7393 = vperm.xlu0 %7392, %v6789
      %v7394 = vpop.permute.xlu0 %7393
      %7397 = vset.pattern.permute.xlu0 0
      %7398 = vperm.xlu0 %7397, %v6790
      %v7399 = vpop.permute.xlu0 %7398
      %7402 = vset.pattern.permute.xlu0 0
      %7403 = vperm.xlu0 %7402, %v6791
      %v7404 = vpop.permute.xlu0 %7403
      %7407 = vset.pattern.permute.xlu0 0
      %7408 = vperm.xlu0 %7407, %v6792
      %v7409 = vpop.permute.xlu0 %7408
      %7412 = vset.pattern.permute.xlu0 0
      %7413 = vperm.xlu0 %7412, %v6793
      %v7414 = vpop.permute.xlu0 %7413
      %7417 = vset.pattern.permute.xlu0 0
      %7418 = vperm.xlu0 %7417, %v6794
      %v7419 = vpop.permute.xlu0 %7418
      %7422 = vset.pattern.permute.xlu0 0
      %7423 = vperm.xlu0 %7422, %v6795
      %v7424 = vpop.permute.xlu0 %7423
      %7427 = vset.pattern.permute.xlu0 0
      %7428 = vperm.xlu0 %7427, %v6796
      %v7429 = vpop.permute.xlu0 %7428
      %7432 = vset.pattern.permute.xlu0 0
      %7433 = vperm.xlu0 %7432, %v6797
      %v7434 = vpop.permute.xlu0 %7433
      %7437 = vset.pattern.permute.xlu0 0
      %7438 = vperm.xlu0 %7437, %v6798
      %v7439 = vpop.permute.xlu0 %7438
      %v7441 = vlaneseq
      %v7442 = vshrl.u32 %v7441, 7
      %v7443 = vsub.s32 0, %v7442
      %v7444 = vrot.slane %v6800, %v7443
      %v7445 = vmul.f32 %v6804, %v7444
      %v7446 = vmul.f32 %v6809, %v7444
      %v7447 = vmul.f32 %v6814, %v7444
      %v7448 = vmul.f32 %v6819, %v7444
      %v7449 = vmul.f32 %v6824, %v7444
      %v7450 = vmul.f32 %v6829, %v7444
      %v7451 = vmul.f32 %v6834, %v7444
      %v7452 = vmul.f32 %v6839, %v7444
      %v7453 = vmul.f32 %v6844, %v7444
      %v7454 = vmul.f32 %v6849, %v7444
      %v7455 = vmul.f32 %v6854, %v7444
      %v7456 = vmul.f32 %v6859, %v7444
      %v7457 = vmul.f32 %v6864, %v7444
      %v7458 = vmul.f32 %v6869, %v7444
      %v7459 = vmul.f32 %v6874, %v7444
      %v7460 = vmul.f32 %v6879, %v7444
      %v7461 = vmul.f32 %v6884, %v7444
      %v7462 = vmul.f32 %v6889, %v7444
      %v7463 = vmul.f32 %v6894, %v7444
      %v7464 = vmul.f32 %v6899, %v7444
      %v7465 = vmul.f32 %v6904, %v7444
      %v7466 = vmul.f32 %v6909, %v7444
      %v7467 = vmul.f32 %v6914, %v7444
      %v7468 = vmul.f32 %v6919, %v7444
      %v7469 = vmul.f32 %v6924, %v7444
      %v7470 = vmul.f32 %v6929, %v7444
      %v7471 = vmul.f32 %v6934, %v7444
      %v7472 = vmul.f32 %v6939, %v7444
      %v7473 = vmul.f32 %v6944, %v7444
      %v7474 = vmul.f32 %v6949, %v7444
      %v7475 = vmul.f32 %v6954, %v7444
      %v7476 = vmul.f32 %v6959, %v7444
      %v7477 = vmul.f32 %v6964, %v7444
      %v7478 = vmul.f32 %v6969, %v7444
      %v7479 = vmul.f32 %v6974, %v7444
      %v7480 = vmul.f32 %v6979, %v7444
      %v7481 = vmul.f32 %v6984, %v7444
      %v7482 = vmul.f32 %v6989, %v7444
      %v7483 = vmul.f32 %v6994, %v7444
      %v7484 = vmul.f32 %v6999, %v7444
      %v7485 = vmul.f32 %v7004, %v7444
      %v7486 = vmul.f32 %v7009, %v7444
      %v7487 = vmul.f32 %v7014, %v7444
      %v7488 = vmul.f32 %v7019, %v7444
      %v7489 = vmul.f32 %v7024, %v7444
      %v7490 = vmul.f32 %v7029, %v7444
      %v7491 = vmul.f32 %v7034, %v7444
      %v7492 = vmul.f32 %v7039, %v7444
      %v7493 = vmul.f32 %v7044, %v7444
      %v7494 = vmul.f32 %v7049, %v7444
      %v7495 = vmul.f32 %v7054, %v7444
      %v7496 = vmul.f32 %v7059, %v7444
      %v7497 = vmul.f32 %v7064, %v7444
      %v7498 = vmul.f32 %v7069, %v7444
      %v7499 = vmul.f32 %v7074, %v7444
      %v7500 = vmul.f32 %v7079, %v7444
      %v7501 = vmul.f32 %v7084, %v7444
      %v7502 = vmul.f32 %v7089, %v7444
      %v7503 = vmul.f32 %v7094, %v7444
      %v7504 = vmul.f32 %v7099, %v7444
      %v7505 = vmul.f32 %v7104, %v7444
      %v7506 = vmul.f32 %v7109, %v7444
      %v7507 = vmul.f32 %v7114, %v7444
      %v7508 = vmul.f32 %v7119, %v7444
      %v7509 = vmul.f32 %v7124, %v7444
      %v7510 = vmul.f32 %v7129, %v7444
      %v7511 = vmul.f32 %v7134, %v7444
      %v7512 = vmul.f32 %v7139, %v7444
      %v7513 = vmul.f32 %v7144, %v7444
      %v7514 = vmul.f32 %v7149, %v7444
      %v7515 = vmul.f32 %v7154, %v7444
      %v7516 = vmul.f32 %v7159, %v7444
      %v7517 = vmul.f32 %v7164, %v7444
      %v7518 = vmul.f32 %v7169, %v7444
      %v7519 = vmul.f32 %v7174, %v7444
      %v7520 = vmul.f32 %v7179, %v7444
      %v7521 = vmul.f32 %v7184, %v7444
      %v7522 = vmul.f32 %v7189, %v7444
      %v7523 = vmul.f32 %v7194, %v7444
      %v7524 = vmul.f32 %v7199, %v7444
      %v7525 = vmul.f32 %v7204, %v7444
      %v7526 = vmul.f32 %v7209, %v7444
      %v7527 = vmul.f32 %v7214, %v7444
      %v7528 = vmul.f32 %v7219, %v7444
      %v7529 = vmul.f32 %v7224, %v7444
      %v7530 = vmul.f32 %v7229, %v7444
      %v7531 = vmul.f32 %v7234, %v7444
      %v7532 = vmul.f32 %v7239, %v7444
      %v7533 = vmul.f32 %v7244, %v7444
      %v7534 = vmul.f32 %v7249, %v7444
      %v7535 = vmul.f32 %v7254, %v7444
      %v7536 = vmul.f32 %v7259, %v7444
      %v7537 = vmul.f32 %v7264, %v7444
      %v7538 = vmul.f32 %v7269, %v7444
      %v7539 = vmul.f32 %v7274, %v7444
      %v7540 = vmul.f32 %v7279, %v7444
      %v7541 = vmul.f32 %v7284, %v7444
      %v7542 = vmul.f32 %v7289, %v7444
      %v7543 = vmul.f32 %v7294, %v7444
      %v7544 = vmul.f32 %v7299, %v7444
      %v7545 = vmul.f32 %v7304, %v7444
      %v7546 = vmul.f32 %v7309, %v7444
      %v7547 = vmul.f32 %v7314, %v7444
      %v7548 = vmul.f32 %v7319, %v7444
      %v7549 = vmul.f32 %v7324, %v7444
      %v7550 = vmul.f32 %v7329, %v7444
      %v7551 = vmul.f32 %v7334, %v7444
      %v7552 = vmul.f32 %v7339, %v7444
      %v7553 = vmul.f32 %v7344, %v7444
      %v7554 = vmul.f32 %v7349, %v7444
      %v7555 = vmul.f32 %v7354, %v7444
      %v7556 = vmul.f32 %v7359, %v7444
      %v7557 = vmul.f32 %v7364, %v7444
      %v7558 = vmul.f32 %v7369, %v7444
      %v7559 = vmul.f32 %v7374, %v7444
      %v7560 = vmul.f32 %v7379, %v7444
      %v7561 = vmul.f32 %v7384, %v7444
      %v7562 = vmul.f32 %v7389, %v7444
      %v7563 = vmul.f32 %v7394, %v7444
      %v7564 = vmul.f32 %v7399, %v7444
      %v7565 = vmul.f32 %v7404, %v7444
      %v7566 = vmul.f32 %v7409, %v7444
      %v7567 = vmul.f32 %v7414, %v7444
      %v7568 = vmul.f32 %v7419, %v7444
      %v7569 = vmul.f32 %v7424, %v7444
      %v7570 = vmul.f32 %v7429, %v7444
      %v7571 = vmul.f32 %v7434, %v7444
      %v7572 = vmul.f32 %v7439, %v7444
      %v7573 = vlaneseq
      %v7574 = vshrl.u32 %v7573, 7
      %v7575 = vsub.s32 0, %v7574
      %v7576 = vrot.slane %v6799, %v7575
      %v7577 = vadd.f32 %v7576, %v7445
      %v7578 = vadd.f32 %v7576, %v7446
      %v7579 = vadd.f32 %v7576, %v7447
      %v7580 = vadd.f32 %v7576, %v7448
      %v7581 = vadd.f32 %v7576, %v7449
      %v7582 = vadd.f32 %v7576, %v7450
      %v7583 = vadd.f32 %v7576, %v7451
      %v7584 = vadd.f32 %v7576, %v7452
      %v7585 = vadd.f32 %v7576, %v7453
      %v7586 = vadd.f32 %v7576, %v7454
      %v7587 = vadd.f32 %v7576, %v7455
      %v7588 = vadd.f32 %v7576, %v7456
      %v7589 = vadd.f32 %v7576, %v7457
      %v7590 = vadd.f32 %v7576, %v7458
      %v7591 = vadd.f32 %v7576, %v7459
      %v7592 = vadd.f32 %v7576, %v7460
      %v7593 = vadd.f32 %v7576, %v7461
      %v7594 = vadd.f32 %v7576, %v7462
      %v7595 = vadd.f32 %v7576, %v7463
      %v7596 = vadd.f32 %v7576, %v7464
      %v7597 = vadd.f32 %v7576, %v7465
      %v7598 = vadd.f32 %v7576, %v7466
      %v7599 = vadd.f32 %v7576, %v7467
      %v7600 = vadd.f32 %v7576, %v7468
      %v7601 = vadd.f32 %v7576, %v7469
      %v7602 = vadd.f32 %v7576, %v7470
      %v7603 = vadd.f32 %v7576, %v7471
      %v7604 = vadd.f32 %v7576, %v7472
      %v7605 = vadd.f32 %v7576, %v7473
      %v7606 = vadd.f32 %v7576, %v7474
      %v7607 = vadd.f32 %v7576, %v7475
      %v7608 = vadd.f32 %v7576, %v7476
      %v7609 = vadd.f32 %v7576, %v7477
      %v7610 = vadd.f32 %v7576, %v7478
      %v7611 = vadd.f32 %v7576, %v7479
      %v7612 = vadd.f32 %v7576, %v7480
      %v7613 = vadd.f32 %v7576, %v7481
      %v7614 = vadd.f32 %v7576, %v7482
      %v7615 = vadd.f32 %v7576, %v7483
      %v7616 = vadd.f32 %v7576, %v7484
      %v7617 = vadd.f32 %v7576, %v7485
      %v7618 = vadd.f32 %v7576, %v7486
      %v7619 = vadd.f32 %v7576, %v7487
      %v7620 = vadd.f32 %v7576, %v7488
      %v7621 = vadd.f32 %v7576, %v7489
      %v7622 = vadd.f32 %v7576, %v7490
      %v7623 = vadd.f32 %v7576, %v7491
      %v7624 = vadd.f32 %v7576, %v7492
      %v7625 = vadd.f32 %v7576, %v7493
      %v7626 = vadd.f32 %v7576, %v7494
      %v7627 = vadd.f32 %v7576, %v7495
      %v7628 = vadd.f32 %v7576, %v7496
      %v7629 = vadd.f32 %v7576, %v7497
      %v7630 = vadd.f32 %v7576, %v7498
      %v7631 = vadd.f32 %v7576, %v7499
      %v7632 = vadd.f32 %v7576, %v7500
      %v7633 = vadd.f32 %v7576, %v7501
      %v7634 = vadd.f32 %v7576, %v7502
      %v7635 = vadd.f32 %v7576, %v7503
      %v7636 = vadd.f32 %v7576, %v7504
      %v7637 = vadd.f32 %v7576, %v7505
      %v7638 = vadd.f32 %v7576, %v7506
      %v7639 = vadd.f32 %v7576, %v7507
      %v7640 = vadd.f32 %v7576, %v7508
      %v7641 = vadd.f32 %v7576, %v7509
      %v7642 = vadd.f32 %v7576, %v7510
      %v7643 = vadd.f32 %v7576, %v7511
      %v7644 = vadd.f32 %v7576, %v7512
      %v7645 = vadd.f32 %v7576, %v7513
      %v7646 = vadd.f32 %v7576, %v7514
      %v7647 = vadd.f32 %v7576, %v7515
      %v7648 = vadd.f32 %v7576, %v7516
      %v7649 = vadd.f32 %v7576, %v7517
      %v7650 = vadd.f32 %v7576, %v7518
      %v7651 = vadd.f32 %v7576, %v7519
      %v7652 = vadd.f32 %v7576, %v7520
      %v7653 = vadd.f32 %v7576, %v7521
      %v7654 = vadd.f32 %v7576, %v7522
      %v7655 = vadd.f32 %v7576, %v7523
      %v7656 = vadd.f32 %v7576, %v7524
      %v7657 = vadd.f32 %v7576, %v7525
      %v7658 = vadd.f32 %v7576, %v7526
      %v7659 = vadd.f32 %v7576, %v7527
      %v7660 = vadd.f32 %v7576, %v7528
      %v7661 = vadd.f32 %v7576, %v7529
      %v7662 = vadd.f32 %v7576, %v7530
      %v7663 = vadd.f32 %v7576, %v7531
      %v7664 = vadd.f32 %v7576, %v7532
      %v7665 = vadd.f32 %v7576, %v7533
      %v7666 = vadd.f32 %v7576, %v7534
      %v7667 = vadd.f32 %v7576, %v7535
      %v7668 = vadd.f32 %v7576, %v7536
      %v7669 = vadd.f32 %v7576, %v7537
      %v7670 = vadd.f32 %v7576, %v7538
      %v7671 = vadd.f32 %v7576, %v7539
      %v7672 = vadd.f32 %v7576, %v7540
      %v7673 = vadd.f32 %v7576, %v7541
      %v7674 = vadd.f32 %v7576, %v7542
      %v7675 = vadd.f32 %v7576, %v7543
      %v7676 = vadd.f32 %v7576, %v7544
      %v7677 = vadd.f32 %v7576, %v7545
      %v7678 = vadd.f32 %v7576, %v7546
      %v7679 = vadd.f32 %v7576, %v7547
      %v7680 = vadd.f32 %v7576, %v7548
      %v7681 = vadd.f32 %v7576, %v7549
      %v7682 = vadd.f32 %v7576, %v7550
      %v7683 = vadd.f32 %v7576, %v7551
      %v7684 = vadd.f32 %v7576, %v7552
      %v7685 = vadd.f32 %v7576, %v7553
      %v7686 = vadd.f32 %v7576, %v7554
      %v7687 = vadd.f32 %v7576, %v7555
      %v7688 = vadd.f32 %v7576, %v7556
      %v7689 = vadd.f32 %v7576, %v7557
      %v7690 = vadd.f32 %v7576, %v7558
      %v7691 = vadd.f32 %v7576, %v7559
      %v7692 = vadd.f32 %v7576, %v7560
      %v7693 = vadd.f32 %v7576, %v7561
      %v7694 = vadd.f32 %v7576, %v7562
      %v7695 = vadd.f32 %v7576, %v7563
      %v7696 = vadd.f32 %v7576, %v7564
      %v7697 = vadd.f32 %v7576, %v7565
      %v7698 = vadd.f32 %v7576, %v7566
      %v7699 = vadd.f32 %v7576, %v7567
      %v7700 = vadd.f32 %v7576, %v7568
      %v7701 = vadd.f32 %v7576, %v7569
      %v7702 = vadd.f32 %v7576, %v7570
      %v7703 = vadd.f32 %v7576, %v7571
      %v7704 = vadd.f32 %v7576, %v7572
      %v7705 = vld [vmem:[%s3 + $0x1] sm:$0x1]
      %7706 = vset.pattern.permute.xlu0 1
      %7707 = vperm.xlu0 %7706, %v6671
      %v7708 = vpop.permute.xlu0 %7707
      %7710 = vset.pattern.permute.xlu0 1
      %7711 = vperm.xlu0 %7710, %v6672
      %v7712 = vpop.permute.xlu0 %7711
      %7714 = vset.pattern.permute.xlu0 1
      %7715 = vperm.xlu0 %7714, %v6673
      %v7716 = vpop.permute.xlu0 %7715
      %7718 = vset.pattern.permute.xlu0 1
      %7719 = vperm.xlu0 %7718, %v6674
      %v7720 = vpop.permute.xlu0 %7719
      %7722 = vset.pattern.permute.xlu0 1
      %7723 = vperm.xlu0 %7722, %v6675
      %v7724 = vpop.permute.xlu0 %7723
      %7726 = vset.pattern.permute.xlu0 1
      %7727 = vperm.xlu0 %7726, %v6676
      %v7728 = vpop.permute.xlu0 %7727
      %7730 = vset.pattern.permute.xlu0 1
      %7731 = vperm.xlu0 %7730, %v6677
      %v7732 = vpop.permute.xlu0 %7731
      %7734 = vset.pattern.permute.xlu0 1
      %7735 = vperm.xlu0 %7734, %v6678
      %v7736 = vpop.permute.xlu0 %7735
      %7738 = vset.pattern.permute.xlu0 1
      %7739 = vperm.xlu0 %7738, %v6679
      %v7740 = vpop.permute.xlu0 %7739
      %7742 = vset.pattern.permute.xlu0 1
      %7743 = vperm.xlu0 %7742, %v6680
      %v7744 = vpop.permute.xlu0 %7743
      %7746 = vset.pattern.permute.xlu0 1
      %7747 = vperm.xlu0 %7746, %v6681
      %v7748 = vpop.permute.xlu0 %7747
      %7750 = vset.pattern.permute.xlu0 1
      %7751 = vperm.xlu0 %7750, %v6682
      %v7752 = vpop.permute.xlu0 %7751
      %7754 = vset.pattern.permute.xlu0 1
      %7755 = vperm.xlu0 %7754, %v6683
      %v7756 = vpop.permute.xlu0 %7755
      %7758 = vset.pattern.permute.xlu0 1
      %7759 = vperm.xlu0 %7758, %v6684
      %v7760 = vpop.permute.xlu0 %7759
      %7762 = vset.pattern.permute.xlu0 1
      %7763 = vperm.xlu0 %7762, %v6685
      %v7764 = vpop.permute.xlu0 %7763
      %7766 = vset.pattern.permute.xlu0 1
      %7767 = vperm.xlu0 %7766, %v6686
      %v7768 = vpop.permute.xlu0 %7767
      %7770 = vset.pattern.permute.xlu0 1
      %7771 = vperm.xlu0 %7770, %v6687
      %v7772 = vpop.permute.xlu0 %7771
      %7774 = vset.pattern.permute.xlu0 1
      %7775 = vperm.xlu0 %7774, %v6688
      %v7776 = vpop.permute.xlu0 %7775
      %7778 = vset.pattern.permute.xlu0 1
      %7779 = vperm.xlu0 %7778, %v6689
      %v7780 = vpop.permute.xlu0 %7779
      %7782 = vset.pattern.permute.xlu0 1
      %7783 = vperm.xlu0 %7782, %v6690
      %v7784 = vpop.permute.xlu0 %7783
      %7786 = vset.pattern.permute.xlu0 1
      %7787 = vperm.xlu0 %7786, %v6691
      %v7788 = vpop.permute.xlu0 %7787
      %7790 = vset.pattern.permute.xlu0 1
      %7791 = vperm.xlu0 %7790, %v6692
      %v7792 = vpop.permute.xlu0 %7791
      %7794 = vset.pattern.permute.xlu0 1
      %7795 = vperm.xlu0 %7794, %v6693
      %v7796 = vpop.permute.xlu0 %7795
      %7798 = vset.pattern.permute.xlu0 1
      %7799 = vperm.xlu0 %7798, %v6694
      %v7800 = vpop.permute.xlu0 %7799
      %7802 = vset.pattern.permute.xlu0 1
      %7803 = vperm.xlu0 %7802, %v6695
      %v7804 = vpop.permute.xlu0 %7803
      %7806 = vset.pattern.permute.xlu0 1
      %7807 = vperm.xlu0 %7806, %v6696
      %v7808 = vpop.permute.xlu0 %7807
      %7810 = vset.pattern.permute.xlu0 1
      %7811 = vperm.xlu0 %7810, %v6697
      %v7812 = vpop.permute.xlu0 %7811
      %7814 = vset.pattern.permute.xlu0 1
      %7815 = vperm.xlu0 %7814, %v6698
      %v7816 = vpop.permute.xlu0 %7815
      %7818 = vset.pattern.permute.xlu0 1
      %7819 = vperm.xlu0 %7818, %v6699
      %v7820 = vpop.permute.xlu0 %7819
      %7822 = vset.pattern.permute.xlu0 1
      %7823 = vperm.xlu0 %7822, %v6700
      %v7824 = vpop.permute.xlu0 %7823
      %7826 = vset.pattern.permute.xlu0 1
      %7827 = vperm.xlu0 %7826, %v6701
      %v7828 = vpop.permute.xlu0 %7827
      %7830 = vset.pattern.permute.xlu0 1
      %7831 = vperm.xlu0 %7830, %v6702
      %v7832 = vpop.permute.xlu0 %7831
      %7834 = vset.pattern.permute.xlu0 1
      %7835 = vperm.xlu0 %7834, %v6703
      %v7836 = vpop.permute.xlu0 %7835
      %7838 = vset.pattern.permute.xlu0 1
      %7839 = vperm.xlu0 %7838, %v6704
      %v7840 = vpop.permute.xlu0 %7839
      %7842 = vset.pattern.permute.xlu0 1
      %7843 = vperm.xlu0 %7842, %v6705
      %v7844 = vpop.permute.xlu0 %7843
      %7846 = vset.pattern.permute.xlu0 1
      %7847 = vperm.xlu0 %7846, %v6706
      %v7848 = vpop.permute.xlu0 %7847
      %7850 = vset.pattern.permute.xlu0 1
      %7851 = vperm.xlu0 %7850, %v6707
      %v7852 = vpop.permute.xlu0 %7851
      %7854 = vset.pattern.permute.xlu0 1
      %7855 = vperm.xlu0 %7854, %v6708
      %v7856 = vpop.permute.xlu0 %7855
      %7858 = vset.pattern.permute.xlu0 1
      %7859 = vperm.xlu0 %7858, %v6709
      %v7860 = vpop.permute.xlu0 %7859
      %7862 = vset.pattern.permute.xlu0 1
      %7863 = vperm.xlu0 %7862, %v6710
      %v7864 = vpop.permute.xlu0 %7863
      %7866 = vset.pattern.permute.xlu0 1
      %7867 = vperm.xlu0 %7866, %v6711
      %v7868 = vpop.permute.xlu0 %7867
      %7870 = vset.pattern.permute.xlu0 1
      %7871 = vperm.xlu0 %7870, %v6712
      %v7872 = vpop.permute.xlu0 %7871
      %7874 = vset.pattern.permute.xlu0 1
      %7875 = vperm.xlu0 %7874, %v6713
      %v7876 = vpop.permute.xlu0 %7875
      %7878 = vset.pattern.permute.xlu0 1
      %7879 = vperm.xlu0 %7878, %v6714
      %v7880 = vpop.permute.xlu0 %7879
      %7882 = vset.pattern.permute.xlu0 1
      %7883 = vperm.xlu0 %7882, %v6715
      %v7884 = vpop.permute.xlu0 %7883
      %7886 = vset.pattern.permute.xlu0 1
      %7887 = vperm.xlu0 %7886, %v6716
      %v7888 = vpop.permute.xlu0 %7887
      %7890 = vset.pattern.permute.xlu0 1
      %7891 = vperm.xlu0 %7890, %v6717
      %v7892 = vpop.permute.xlu0 %7891
      %7894 = vset.pattern.permute.xlu0 1
      %7895 = vperm.xlu0 %7894, %v6718
      %v7896 = vpop.permute.xlu0 %7895
      %7898 = vset.pattern.permute.xlu0 1
      %7899 = vperm.xlu0 %7898, %v6719
      %v7900 = vpop.permute.xlu0 %7899
      %7902 = vset.pattern.permute.xlu0 1
      %7903 = vperm.xlu0 %7902, %v6720
      %v7904 = vpop.permute.xlu0 %7903
      %7906 = vset.pattern.permute.xlu0 1
      %7907 = vperm.xlu0 %7906, %v6721
      %v7908 = vpop.permute.xlu0 %7907
      %7910 = vset.pattern.permute.xlu0 1
      %7911 = vperm.xlu0 %7910, %v6722
      %v7912 = vpop.permute.xlu0 %7911
      %7914 = vset.pattern.permute.xlu0 1
      %7915 = vperm.xlu0 %7914, %v6723
      %v7916 = vpop.permute.xlu0 %7915
      %7918 = vset.pattern.permute.xlu0 1
      %7919 = vperm.xlu0 %7918, %v6724
      %v7920 = vpop.permute.xlu0 %7919
      %7922 = vset.pattern.permute.xlu0 1
      %7923 = vperm.xlu0 %7922, %v6725
      %v7924 = vpop.permute.xlu0 %7923
      %7926 = vset.pattern.permute.xlu0 1
      %7927 = vperm.xlu0 %7926, %v6726
      %v7928 = vpop.permute.xlu0 %7927
      %7930 = vset.pattern.permute.xlu0 1
      %7931 = vperm.xlu0 %7930, %v6727
      %v7932 = vpop.permute.xlu0 %7931
      %7934 = vset.pattern.permute.xlu0 1
      %7935 = vperm.xlu0 %7934, %v6728
      %v7936 = vpop.permute.xlu0 %7935
      %7938 = vset.pattern.permute.xlu0 1
      %7939 = vperm.xlu0 %7938, %v6729
      %v7940 = vpop.permute.xlu0 %7939
      %7942 = vset.pattern.permute.xlu0 1
      %7943 = vperm.xlu0 %7942, %v6730
      %v7944 = vpop.permute.xlu0 %7943
      %7946 = vset.pattern.permute.xlu0 1
      %7947 = vperm.xlu0 %7946, %v6731
      %v7948 = vpop.permute.xlu0 %7947
      %7950 = vset.pattern.permute.xlu0 1
      %7951 = vperm.xlu0 %7950, %v6732
      %v7952 = vpop.permute.xlu0 %7951
      %7954 = vset.pattern.permute.xlu0 1
      %7955 = vperm.xlu0 %7954, %v6733
      %v7956 = vpop.permute.xlu0 %7955
      %7958 = vset.pattern.permute.xlu0 1
      %7959 = vperm.xlu0 %7958, %v6734
      %v7960 = vpop.permute.xlu0 %7959
      %7962 = vset.pattern.permute.xlu0 1
      %7963 = vperm.xlu0 %7962, %v6735
      %v7964 = vpop.permute.xlu0 %7963
      %7966 = vset.pattern.permute.xlu0 1
      %7967 = vperm.xlu0 %7966, %v6736
      %v7968 = vpop.permute.xlu0 %7967
      %7970 = vset.pattern.permute.xlu0 1
      %7971 = vperm.xlu0 %7970, %v6737
      %v7972 = vpop.permute.xlu0 %7971
      %7974 = vset.pattern.permute.xlu0 1
      %7975 = vperm.xlu0 %7974, %v6738
      %v7976 = vpop.permute.xlu0 %7975
      %7978 = vset.pattern.permute.xlu0 1
      %7979 = vperm.xlu0 %7978, %v6739
      %v7980 = vpop.permute.xlu0 %7979
      %7982 = vset.pattern.permute.xlu0 1
      %7983 = vperm.xlu0 %7982, %v6740
      %v7984 = vpop.permute.xlu0 %7983
      %7986 = vset.pattern.permute.xlu0 1
      %7987 = vperm.xlu0 %7986, %v6741
      %v7988 = vpop.permute.xlu0 %7987
      %7990 = vset.pattern.permute.xlu0 1
      %7991 = vperm.xlu0 %7990, %v6742
      %v7992 = vpop.permute.xlu0 %7991
      %7994 = vset.pattern.permute.xlu0 1
      %7995 = vperm.xlu0 %7994, %v6743
      %v7996 = vpop.permute.xlu0 %7995
      %7998 = vset.pattern.permute.xlu0 1
      %7999 = vperm.xlu0 %7998, %v6744
      %v8000 = vpop.permute.xlu0 %7999
      %8002 = vset.pattern.permute.xlu0 1
      %8003 = vperm.xlu0 %8002, %v6745
      %v8004 = vpop.permute.xlu0 %8003
      %8006 = vset.pattern.permute.xlu0 1
      %8007 = vperm.xlu0 %8006, %v6746
      %v8008 = vpop.permute.xlu0 %8007
      %8010 = vset.pattern.permute.xlu0 1
      %8011 = vperm.xlu0 %8010, %v6747
      %v8012 = vpop.permute.xlu0 %8011
      %8014 = vset.pattern.permute.xlu0 1
      %8015 = vperm.xlu0 %8014, %v6748
      %v8016 = vpop.permute.xlu0 %8015
      %8018 = vset.pattern.permute.xlu0 1
      %8019 = vperm.xlu0 %8018, %v6749
      %v8020 = vpop.permute.xlu0 %8019
      %8022 = vset.pattern.permute.xlu0 1
      %8023 = vperm.xlu0 %8022, %v6750
      %v8024 = vpop.permute.xlu0 %8023
      %8026 = vset.pattern.permute.xlu0 1
      %8027 = vperm.xlu0 %8026, %v6751
      %v8028 = vpop.permute.xlu0 %8027
      %8030 = vset.pattern.permute.xlu0 1
      %8031 = vperm.xlu0 %8030, %v6752
      %v8032 = vpop.permute.xlu0 %8031
      %8034 = vset.pattern.permute.xlu0 1
      %8035 = vperm.xlu0 %8034, %v6753
      %v8036 = vpop.permute.xlu0 %8035
      %8038 = vset.pattern.permute.xlu0 1
      %8039 = vperm.xlu0 %8038, %v6754
      %v8040 = vpop.permute.xlu0 %8039
      %8042 = vset.pattern.permute.xlu0 1
      %8043 = vperm.xlu0 %8042, %v6755
      %v8044 = vpop.permute.xlu0 %8043
      %8046 = vset.pattern.permute.xlu0 1
      %8047 = vperm.xlu0 %8046, %v6756
      %v8048 = vpop.permute.xlu0 %8047
      %8050 = vset.pattern.permute.xlu0 1
      %8051 = vperm.xlu0 %8050, %v6757
      %v8052 = vpop.permute.xlu0 %8051
      %8054 = vset.pattern.permute.xlu0 1
      %8055 = vperm.xlu0 %8054, %v6758
      %v8056 = vpop.permute.xlu0 %8055
      %8058 = vset.pattern.permute.xlu0 1
      %8059 = vperm.xlu0 %8058, %v6759
      %v8060 = vpop.permute.xlu0 %8059
      %8062 = vset.pattern.permute.xlu0 1
      %8063 = vperm.xlu0 %8062, %v6760
      %v8064 = vpop.permute.xlu0 %8063
      %8066 = vset.pattern.permute.xlu0 1
      %8067 = vperm.xlu0 %8066, %v6761
      %v8068 = vpop.permute.xlu0 %8067
      %8070 = vset.pattern.permute.xlu0 1
      %8071 = vperm.xlu0 %8070, %v6762
      %v8072 = vpop.permute.xlu0 %8071
      %8074 = vset.pattern.permute.xlu0 1
      %8075 = vperm.xlu0 %8074, %v6763
      %v8076 = vpop.permute.xlu0 %8075
      %8078 = vset.pattern.permute.xlu0 1
      %8079 = vperm.xlu0 %8078, %v6764
      %v8080 = vpop.permute.xlu0 %8079
      %8082 = vset.pattern.permute.xlu0 1
      %8083 = vperm.xlu0 %8082, %v6765
      %v8084 = vpop.permute.xlu0 %8083
      %8086 = vset.pattern.permute.xlu0 1
      %8087 = vperm.xlu0 %8086, %v6766
      %v8088 = vpop.permute.xlu0 %8087
      %8090 = vset.pattern.permute.xlu0 1
      %8091 = vperm.xlu0 %8090, %v6767
      %v8092 = vpop.permute.xlu0 %8091
      %8094 = vset.pattern.permute.xlu0 1
      %8095 = vperm.xlu0 %8094, %v6768
      %v8096 = vpop.permute.xlu0 %8095
      %8098 = vset.pattern.permute.xlu0 1
      %8099 = vperm.xlu0 %8098, %v6769
      %v8100 = vpop.permute.xlu0 %8099
      %8102 = vset.pattern.permute.xlu0 1
      %8103 = vperm.xlu0 %8102, %v6770
      %v8104 = vpop.permute.xlu0 %8103
      %8106 = vset.pattern.permute.xlu0 1
      %8107 = vperm.xlu0 %8106, %v6771
      %v8108 = vpop.permute.xlu0 %8107
      %8110 = vset.pattern.permute.xlu0 1
      %8111 = vperm.xlu0 %8110, %v6772
      %v8112 = vpop.permute.xlu0 %8111
      %8114 = vset.pattern.permute.xlu0 1
      %8115 = vperm.xlu0 %8114, %v6773
      %v8116 = vpop.permute.xlu0 %8115
      %8118 = vset.pattern.permute.xlu0 1
      %8119 = vperm.xlu0 %8118, %v6774
      %v8120 = vpop.permute.xlu0 %8119
      %8122 = vset.pattern.permute.xlu0 1
      %8123 = vperm.xlu0 %8122, %v6775
      %v8124 = vpop.permute.xlu0 %8123
      %8126 = vset.pattern.permute.xlu0 1
      %8127 = vperm.xlu0 %8126, %v6776
      %v8128 = vpop.permute.xlu0 %8127
      %8130 = vset.pattern.permute.xlu0 1
      %8131 = vperm.xlu0 %8130, %v6777
      %v8132 = vpop.permute.xlu0 %8131
      %8134 = vset.pattern.permute.xlu0 1
      %8135 = vperm.xlu0 %8134, %v6778
      %v8136 = vpop.permute.xlu0 %8135
      %8138 = vset.pattern.permute.xlu0 1
      %8139 = vperm.xlu0 %8138, %v6779
      %v8140 = vpop.permute.xlu0 %8139
      %8142 = vset.pattern.permute.xlu0 1
      %8143 = vperm.xlu0 %8142, %v6780
      %v8144 = vpop.permute.xlu0 %8143
      %8146 = vset.pattern.permute.xlu0 1
      %8147 = vperm.xlu0 %8146, %v6781
      %v8148 = vpop.permute.xlu0 %8147
      %8150 = vset.pattern.permute.xlu0 1
      %8151 = vperm.xlu0 %8150, %v6782
      %v8152 = vpop.permute.xlu0 %8151
      %8154 = vset.pattern.permute.xlu0 1
      %8155 = vperm.xlu0 %8154, %v6783
      %v8156 = vpop.permute.xlu0 %8155
      %8158 = vset.pattern.permute.xlu0 1
      %8159 = vperm.xlu0 %8158, %v6784
      %v8160 = vpop.permute.xlu0 %8159
      %8162 = vset.pattern.permute.xlu0 1
      %8163 = vperm.xlu0 %8162, %v6785
      %v8164 = vpop.permute.xlu0 %8163
      %8166 = vset.pattern.permute.xlu0 1
      %8167 = vperm.xlu0 %8166, %v6786
      %v8168 = vpop.permute.xlu0 %8167
      %8170 = vset.pattern.permute.xlu0 1
      %8171 = vperm.xlu0 %8170, %v6787
      %v8172 = vpop.permute.xlu0 %8171
      %8174 = vset.pattern.permute.xlu0 1
      %8175 = vperm.xlu0 %8174, %v6788
      %v8176 = vpop.permute.xlu0 %8175
      %8178 = vset.pattern.permute.xlu0 1
      %8179 = vperm.xlu0 %8178, %v6789
      %v8180 = vpop.permute.xlu0 %8179
      %8182 = vset.pattern.permute.xlu0 1
      %8183 = vperm.xlu0 %8182, %v6790
      %v8184 = vpop.permute.xlu0 %8183
      %8186 = vset.pattern.permute.xlu0 1
      %8187 = vperm.xlu0 %8186, %v6791
      %v8188 = vpop.permute.xlu0 %8187
      %8190 = vset.pattern.permute.xlu0 1
      %8191 = vperm.xlu0 %8190, %v6792
      %v8192 = vpop.permute.xlu0 %8191
      %8194 = vset.pattern.permute.xlu0 1
      %8195 = vperm.xlu0 %8194, %v6793
      %v8196 = vpop.permute.xlu0 %8195
      %8198 = vset.pattern.permute.xlu0 1
      %8199 = vperm.xlu0 %8198, %v6794
      %v8200 = vpop.permute.xlu0 %8199
      %8202 = vset.pattern.permute.xlu0 1
      %8203 = vperm.xlu0 %8202, %v6795
      %v8204 = vpop.permute.xlu0 %8203
      %8206 = vset.pattern.permute.xlu0 1
      %8207 = vperm.xlu0 %8206, %v6796
      %v8208 = vpop.permute.xlu0 %8207
      %8210 = vset.pattern.permute.xlu0 1
      %8211 = vperm.xlu0 %8210, %v6797
      %v8212 = vpop.permute.xlu0 %8211
      %8214 = vset.pattern.permute.xlu0 1
      %8215 = vperm.xlu0 %8214, %v6798
      %v8216 = vpop.permute.xlu0 %8215
      %v8218 = vlaneseq
      %v8219 = vshrl.u32 %v8218, 7
      %v8220 = vsub.s32 0, %v8219
      %v8221 = vrot.slane %v7705, %v8220
      %v8222 = vmul.f32 %v7708, %v8221
      %v8223 = vmul.f32 %v7712, %v8221
      %v8224 = vmul.f32 %v7716, %v8221
      %v8225 = vmul.f32 %v7720, %v8221
      %v8226 = vmul.f32 %v7724, %v8221
      %v8227 = vmul.f32 %v7728, %v8221
      %v8228 = vmul.f32 %v7732, %v8221
      %v8229 = vmul.f32 %v7736, %v8221
      %v8230 = vmul.f32 %v7740, %v8221
      %v8231 = vmul.f32 %v7744, %v8221
      %v8232 = vmul.f32 %v7748, %v8221
      %v8233 = vmul.f32 %v7752, %v8221
      %v8234 = vmul.f32 %v7756, %v8221
      %v8235 = vmul.f32 %v7760, %v8221
      %v8236 = vmul.f32 %v7764, %v8221
      %v8237 = vmul.f32 %v7768, %v8221
      %v8238 = vmul.f32 %v7772, %v8221
      %v8239 = vmul.f32 %v7776, %v8221
      %v8240 = vmul.f32 %v7780, %v8221
      %v8241 = vmul.f32 %v7784, %v8221
      %v8242 = vmul.f32 %v7788, %v8221
      %v8243 = vmul.f32 %v7792, %v8221
      %v8244 = vmul.f32 %v7796, %v8221
      %v8245 = vmul.f32 %v7800, %v8221
      %v8246 = vmul.f32 %v7804, %v8221
      %v8247 = vmul.f32 %v7808, %v8221
      %v8248 = vmul.f32 %v7812, %v8221
      %v8249 = vmul.f32 %v7816, %v8221
      %v8250 = vmul.f32 %v7820, %v8221
      %v8251 = vmul.f32 %v7824, %v8221
      %v8252 = vmul.f32 %v7828, %v8221
      %v8253 = vmul.f32 %v7832, %v8221
      %v8254 = vmul.f32 %v7836, %v8221
      %v8255 = vmul.f32 %v7840, %v8221
      %v8256 = vmul.f32 %v7844, %v8221
      %v8257 = vmul.f32 %v7848, %v8221
      %v8258 = vmul.f32 %v7852, %v8221
      %v8259 = vmul.f32 %v7856, %v8221
      %v8260 = vmul.f32 %v7860, %v8221
      %v8261 = vmul.f32 %v7864, %v8221
      %v8262 = vmul.f32 %v7868, %v8221
      %v8263 = vmul.f32 %v7872, %v8221
      %v8264 = vmul.f32 %v7876, %v8221
      %v8265 = vmul.f32 %v7880, %v8221
      %v8266 = vmul.f32 %v7884, %v8221
      %v8267 = vmul.f32 %v7888, %v8221
      %v8268 = vmul.f32 %v7892, %v8221
      %v8269 = vmul.f32 %v7896, %v8221
      %v8270 = vmul.f32 %v7900, %v8221
      %v8271 = vmul.f32 %v7904, %v8221
      %v8272 = vmul.f32 %v7908, %v8221
      %v8273 = vmul.f32 %v7912, %v8221
      %v8274 = vmul.f32 %v7916, %v8221
      %v8275 = vmul.f32 %v7920, %v8221
      %v8276 = vmul.f32 %v7924, %v8221
      %v8277 = vmul.f32 %v7928, %v8221
      %v8278 = vmul.f32 %v7932, %v8221
      %v8279 = vmul.f32 %v7936, %v8221
      %v8280 = vmul.f32 %v7940, %v8221
      %v8281 = vmul.f32 %v7944, %v8221
      %v8282 = vmul.f32 %v7948, %v8221
      %v8283 = vmul.f32 %v7952, %v8221
      %v8284 = vmul.f32 %v7956, %v8221
      %v8285 = vmul.f32 %v7960, %v8221
      %v8286 = vmul.f32 %v7964, %v8221
      %v8287 = vmul.f32 %v7968, %v8221
      %v8288 = vmul.f32 %v7972, %v8221
      %v8289 = vmul.f32 %v7976, %v8221
      %v8290 = vmul.f32 %v7980, %v8221
      %v8291 = vmul.f32 %v7984, %v8221
      %v8292 = vmul.f32 %v7988, %v8221
      %v8293 = vmul.f32 %v7992, %v8221
      %v8294 = vmul.f32 %v7996, %v8221
      %v8295 = vmul.f32 %v8000, %v8221
      %v8296 = vmul.f32 %v8004, %v8221
      %v8297 = vmul.f32 %v8008, %v8221
      %v8298 = vmul.f32 %v8012, %v8221
      %v8299 = vmul.f32 %v8016, %v8221
      %v8300 = vmul.f32 %v8020, %v8221
      %v8301 = vmul.f32 %v8024, %v8221
      %v8302 = vmul.f32 %v8028, %v8221
      %v8303 = vmul.f32 %v8032, %v8221
      %v8304 = vmul.f32 %v8036, %v8221
      %v8305 = vmul.f32 %v8040, %v8221
      %v8306 = vmul.f32 %v8044, %v8221
      %v8307 = vmul.f32 %v8048, %v8221
      %v8308 = vmul.f32 %v8052, %v8221
      %v8309 = vmul.f32 %v8056, %v8221
      %v8310 = vmul.f32 %v8060, %v8221
      %v8311 = vmul.f32 %v8064, %v8221
      %v8312 = vmul.f32 %v8068, %v8221
      %v8313 = vmul.f32 %v8072, %v8221
      %v8314 = vmul.f32 %v8076, %v8221
      %v8315 = vmul.f32 %v8080, %v8221
      %v8316 = vmul.f32 %v8084, %v8221
      %v8317 = vmul.f32 %v8088, %v8221
      %v8318 = vmul.f32 %v8092, %v8221
      %v8319 = vmul.f32 %v8096, %v8221
      %v8320 = vmul.f32 %v8100, %v8221
      %v8321 = vmul.f32 %v8104, %v8221
      %v8322 = vmul.f32 %v8108, %v8221
      %v8323 = vmul.f32 %v8112, %v8221
      %v8324 = vmul.f32 %v8116, %v8221
      %v8325 = vmul.f32 %v8120, %v8221
      %v8326 = vmul.f32 %v8124, %v8221
      %v8327 = vmul.f32 %v8128, %v8221
      %v8328 = vmul.f32 %v8132, %v8221
      %v8329 = vmul.f32 %v8136, %v8221
      %v8330 = vmul.f32 %v8140, %v8221
      %v8331 = vmul.f32 %v8144, %v8221
      %v8332 = vmul.f32 %v8148, %v8221
      %v8333 = vmul.f32 %v8152, %v8221
      %v8334 = vmul.f32 %v8156, %v8221
      %v8335 = vmul.f32 %v8160, %v8221
      %v8336 = vmul.f32 %v8164, %v8221
      %v8337 = vmul.f32 %v8168, %v8221
      %v8338 = vmul.f32 %v8172, %v8221
      %v8339 = vmul.f32 %v8176, %v8221
      %v8340 = vmul.f32 %v8180, %v8221
      %v8341 = vmul.f32 %v8184, %v8221
      %v8342 = vmul.f32 %v8188, %v8221
      %v8343 = vmul.f32 %v8192, %v8221
      %v8344 = vmul.f32 %v8196, %v8221
      %v8345 = vmul.f32 %v8200, %v8221
      %v8346 = vmul.f32 %v8204, %v8221
      %v8347 = vmul.f32 %v8208, %v8221
      %v8348 = vmul.f32 %v8212, %v8221
      %v8349 = vmul.f32 %v8216, %v8221
      %v8350 = vadd.f32 %v7577, %v8222
      %v8351 = vadd.f32 %v7578, %v8223
      %v8352 = vadd.f32 %v7579, %v8224
      %v8353 = vadd.f32 %v7580, %v8225
      %v8354 = vadd.f32 %v7581, %v8226
      %v8355 = vadd.f32 %v7582, %v8227
      %v8356 = vadd.f32 %v7583, %v8228
      %v8357 = vadd.f32 %v7584, %v8229
      %v8358 = vadd.f32 %v7585, %v8230
      %v8359 = vadd.f32 %v7586, %v8231
      %v8360 = vadd.f32 %v7587, %v8232
      %v8361 = vadd.f32 %v7588, %v8233
      %v8362 = vadd.f32 %v7589, %v8234
      %v8363 = vadd.f32 %v7590, %v8235
      %v8364 = vadd.f32 %v7591, %v8236
      %v8365 = vadd.f32 %v7592, %v8237
      %v8366 = vadd.f32 %v7593, %v8238
      %v8367 = vadd.f32 %v7594, %v8239
      %v8368 = vadd.f32 %v7595, %v8240
      %v8369 = vadd.f32 %v7596, %v8241
      %v8370 = vadd.f32 %v7597, %v8242
      %v8371 = vadd.f32 %v7598, %v8243
      %v8372 = vadd.f32 %v7599, %v8244
      %v8373 = vadd.f32 %v7600, %v8245
      %v8374 = vadd.f32 %v7601, %v8246
      %v8375 = vadd.f32 %v7602, %v8247
      %v8376 = vadd.f32 %v7603, %v8248
      %v8377 = vadd.f32 %v7604, %v8249
      %v8378 = vadd.f32 %v7605, %v8250
      %v8379 = vadd.f32 %v7606, %v8251
      %v8380 = vadd.f32 %v7607, %v8252
      %v8381 = vadd.f32 %v7608, %v8253
      %v8382 = vadd.f32 %v7609, %v8254
      %v8383 = vadd.f32 %v7610, %v8255
      %v8384 = vadd.f32 %v7611, %v8256
      %v8385 = vadd.f32 %v7612, %v8257
      %v8386 = vadd.f32 %v7613, %v8258
      %v8387 = vadd.f32 %v7614, %v8259
      %v8388 = vadd.f32 %v7615, %v8260
      %v8389 = vadd.f32 %v7616, %v8261
      %v8390 = vadd.f32 %v7617, %v8262
      %v8391 = vadd.f32 %v7618, %v8263
      %v8392 = vadd.f32 %v7619, %v8264
      %v8393 = vadd.f32 %v7620, %v8265
      %v8394 = vadd.f32 %v7621, %v8266
      %v8395 = vadd.f32 %v7622, %v8267
      %v8396 = vadd.f32 %v7623, %v8268
      %v8397 = vadd.f32 %v7624, %v8269
      %v8398 = vadd.f32 %v7625, %v8270
      %v8399 = vadd.f32 %v7626, %v8271
      %v8400 = vadd.f32 %v7627, %v8272
      %v8401 = vadd.f32 %v7628, %v8273
      %v8402 = vadd.f32 %v7629, %v8274
      %v8403 = vadd.f32 %v7630, %v8275
      %v8404 = vadd.f32 %v7631, %v8276
      %v8405 = vadd.f32 %v7632, %v8277
      %v8406 = vadd.f32 %v7633, %v8278
      %v8407 = vadd.f32 %v7634, %v8279
      %v8408 = vadd.f32 %v7635, %v8280
      %v8409 = vadd.f32 %v7636, %v8281
      %v8410 = vadd.f32 %v7637, %v8282
      %v8411 = vadd.f32 %v7638, %v8283
      %v8412 = vadd.f32 %v7639, %v8284
      %v8413 = vadd.f32 %v7640, %v8285
      %v8414 = vadd.f32 %v7641, %v8286
      %v8415 = vadd.f32 %v7642, %v8287
      %v8416 = vadd.f32 %v7643, %v8288
      %v8417 = vadd.f32 %v7644, %v8289
      %v8418 = vadd.f32 %v7645, %v8290
      %v8419 = vadd.f32 %v7646, %v8291
      %v8420 = vadd.f32 %v7647, %v8292
      %v8421 = vadd.f32 %v7648, %v8293
      %v8422 = vadd.f32 %v7649, %v8294
      %v8423 = vadd.f32 %v7650, %v8295
      %v8424 = vadd.f32 %v7651, %v8296
      %v8425 = vadd.f32 %v7652, %v8297
      %v8426 = vadd.f32 %v7653, %v8298
      %v8427 = vadd.f32 %v7654, %v8299
      %v8428 = vadd.f32 %v7655, %v8300
      %v8429 = vadd.f32 %v7656, %v8301
      %v8430 = vadd.f32 %v7657, %v8302
      %v8431 = vadd.f32 %v7658, %v8303
      %v8432 = vadd.f32 %v7659, %v8304
      %v8433 = vadd.f32 %v7660, %v8305
      %v8434 = vadd.f32 %v7661, %v8306
      %v8435 = vadd.f32 %v7662, %v8307
      %v8436 = vadd.f32 %v7663, %v8308
      %v8437 = vadd.f32 %v7664, %v8309
      %v8438 = vadd.f32 %v7665, %v8310
      %v8439 = vadd.f32 %v7666, %v8311
      %v8440 = vadd.f32 %v7667, %v8312
      %v8441 = vadd.f32 %v7668, %v8313
      %v8442 = vadd.f32 %v7669, %v8314
      %v8443 = vadd.f32 %v7670, %v8315
      %v8444 = vadd.f32 %v7671, %v8316
      %v8445 = vadd.f32 %v7672, %v8317
      %v8446 = vadd.f32 %v7673, %v8318
      %v8447 = vadd.f32 %v7674, %v8319
      %v8448 = vadd.f32 %v7675, %v8320
      %v8449 = vadd.f32 %v7676, %v8321
      %v8450 = vadd.f32 %v7677, %v8322
      %v8451 = vadd.f32 %v7678, %v8323
      %v8452 = vadd.f32 %v7679, %v8324
      %v8453 = vadd.f32 %v7680, %v8325
      %v8454 = vadd.f32 %v7681, %v8326
      %v8455 = vadd.f32 %v7682, %v8327
      %v8456 = vadd.f32 %v7683, %v8328
      %v8457 = vadd.f32 %v7684, %v8329
      %v8458 = vadd.f32 %v7685, %v8330
      %v8459 = vadd.f32 %v7686, %v8331
      %v8460 = vadd.f32 %v7687, %v8332
      %v8461 = vadd.f32 %v7688, %v8333
      %v8462 = vadd.f32 %v7689, %v8334
      %v8463 = vadd.f32 %v7690, %v8335
      %v8464 = vadd.f32 %v7691, %v8336
      %v8465 = vadd.f32 %v7692, %v8337
      %v8466 = vadd.f32 %v7693, %v8338
      %v8467 = vadd.f32 %v7694, %v8339
      %v8468 = vadd.f32 %v7695, %v8340
      %v8469 = vadd.f32 %v7696, %v8341
      %v8470 = vadd.f32 %v7697, %v8342
      %v8471 = vadd.f32 %v7698, %v8343
      %v8472 = vadd.f32 %v7699, %v8344
      %v8473 = vadd.f32 %v7700, %v8345
      %v8474 = vadd.f32 %v7701, %v8346
      %v8475 = vadd.f32 %v7702, %v8347
      %v8476 = vadd.f32 %v7703, %v8348
      %v8477 = vadd.f32 %v7704, %v8349
      %v8478 = vld [vmem:[%s3 + $0x2] sm:$0x1]
      %8479 = vset.pattern.permute.xlu0 2
      %8480 = vperm.xlu0 %8479, %v6671
      %v8481 = vpop.permute.xlu0 %8480
      %8483 = vset.pattern.permute.xlu0 2
      %8484 = vperm.xlu0 %8483, %v6672
      %v8485 = vpop.permute.xlu0 %8484
      %8487 = vset.pattern.permute.xlu0 2
      %8488 = vperm.xlu0 %8487, %v6673
      %v8489 = vpop.permute.xlu0 %8488
      %8491 = vset.pattern.permute.xlu0 2
      %8492 = vperm.xlu0 %8491, %v6674
      %v8493 = vpop.permute.xlu0 %8492
      %8495 = vset.pattern.permute.xlu0 2
      %8496 = vperm.xlu0 %8495, %v6675
      %v8497 = vpop.permute.xlu0 %8496
      %8499 = vset.pattern.permute.xlu0 2
      %8500 = vperm.xlu0 %8499, %v6676
      %v8501 = vpop.permute.xlu0 %8500
      %8503 = vset.pattern.permute.xlu0 2
      %8504 = vperm.xlu0 %8503, %v6677
      %v8505 = vpop.permute.xlu0 %8504
      %8507 = vset.pattern.permute.xlu0 2
      %8508 = vperm.xlu0 %8507, %v6678
      %v8509 = vpop.permute.xlu0 %8508
      %8511 = vset.pattern.permute.xlu0 2
      %8512 = vperm.xlu0 %8511, %v6679
      %v8513 = vpop.permute.xlu0 %8512
      %8515 = vset.pattern.permute.xlu0 2
      %8516 = vperm.xlu0 %8515, %v6680
      %v8517 = vpop.permute.xlu0 %8516
      %8519 = vset.pattern.permute.xlu0 2
      %8520 = vperm.xlu0 %8519, %v6681
      %v8521 = vpop.permute.xlu0 %8520
      %8523 = vset.pattern.permute.xlu0 2
      %8524 = vperm.xlu0 %8523, %v6682
      %v8525 = vpop.permute.xlu0 %8524
      %8527 = vset.pattern.permute.xlu0 2
      %8528 = vperm.xlu0 %8527, %v6683
      %v8529 = vpop.permute.xlu0 %8528
      %8531 = vset.pattern.permute.xlu0 2
      %8532 = vperm.xlu0 %8531, %v6684
      %v8533 = vpop.permute.xlu0 %8532
      %8535 = vset.pattern.permute.xlu0 2
      %8536 = vperm.xlu0 %8535, %v6685
      %v8537 = vpop.permute.xlu0 %8536
      %8539 = vset.pattern.permute.xlu0 2
      %8540 = vperm.xlu0 %8539, %v6686
      %v8541 = vpop.permute.xlu0 %8540
      %8543 = vset.pattern.permute.xlu0 2
      %8544 = vperm.xlu0 %8543, %v6687
      %v8545 = vpop.permute.xlu0 %8544
      %8547 = vset.pattern.permute.xlu0 2
      %8548 = vperm.xlu0 %8547, %v6688
      %v8549 = vpop.permute.xlu0 %8548
      %8551 = vset.pattern.permute.xlu0 2
      %8552 = vperm.xlu0 %8551, %v6689
      %v8553 = vpop.permute.xlu0 %8552
      %8555 = vset.pattern.permute.xlu0 2
      %8556 = vperm.xlu0 %8555, %v6690
      %v8557 = vpop.permute.xlu0 %8556
      %8559 = vset.pattern.permute.xlu0 2
      %8560 = vperm.xlu0 %8559, %v6691
      %v8561 = vpop.permute.xlu0 %8560
      %8563 = vset.pattern.permute.xlu0 2
      %8564 = vperm.xlu0 %8563, %v6692
      %v8565 = vpop.permute.xlu0 %8564
      %8567 = vset.pattern.permute.xlu0 2
      %8568 = vperm.xlu0 %8567, %v6693
      %v8569 = vpop.permute.xlu0 %8568
      %8571 = vset.pattern.permute.xlu0 2
      %8572 = vperm.xlu0 %8571, %v6694
      %v8573 = vpop.permute.xlu0 %8572
      %8575 = vset.pattern.permute.xlu0 2
      %8576 = vperm.xlu0 %8575, %v6695
      %v8577 = vpop.permute.xlu0 %8576
      %8579 = vset.pattern.permute.xlu0 2
      %8580 = vperm.xlu0 %8579, %v6696
      %v8581 = vpop.permute.xlu0 %8580
      %8583 = vset.pattern.permute.xlu0 2
      %8584 = vperm.xlu0 %8583, %v6697
      %v8585 = vpop.permute.xlu0 %8584
      %8587 = vset.pattern.permute.xlu0 2
      %8588 = vperm.xlu0 %8587, %v6698
      %v8589 = vpop.permute.xlu0 %8588
      %8591 = vset.pattern.permute.xlu0 2
      %8592 = vperm.xlu0 %8591, %v6699
      %v8593 = vpop.permute.xlu0 %8592
      %8595 = vset.pattern.permute.xlu0 2
      %8596 = vperm.xlu0 %8595, %v6700
      %v8597 = vpop.permute.xlu0 %8596
      %8599 = vset.pattern.permute.xlu0 2
      %8600 = vperm.xlu0 %8599, %v6701
      %v8601 = vpop.permute.xlu0 %8600
      %8603 = vset.pattern.permute.xlu0 2
      %8604 = vperm.xlu0 %8603, %v6702
      %v8605 = vpop.permute.xlu0 %8604
      %8607 = vset.pattern.permute.xlu0 2
      %8608 = vperm.xlu0 %8607, %v6703
      %v8609 = vpop.permute.xlu0 %8608
      %8611 = vset.pattern.permute.xlu0 2
      %8612 = vperm.xlu0 %8611, %v6704
      %v8613 = vpop.permute.xlu0 %8612
      %8615 = vset.pattern.permute.xlu0 2
      %8616 = vperm.xlu0 %8615, %v6705
      %v8617 = vpop.permute.xlu0 %8616
      %8619 = vset.pattern.permute.xlu0 2
      %8620 = vperm.xlu0 %8619, %v6706
      %v8621 = vpop.permute.xlu0 %8620
      %8623 = vset.pattern.permute.xlu0 2
      %8624 = vperm.xlu0 %8623, %v6707
      %v8625 = vpop.permute.xlu0 %8624
      %8627 = vset.pattern.permute.xlu0 2
      %8628 = vperm.xlu0 %8627, %v6708
      %v8629 = vpop.permute.xlu0 %8628
      %8631 = vset.pattern.permute.xlu0 2
      %8632 = vperm.xlu0 %8631, %v6709
      %v8633 = vpop.permute.xlu0 %8632
      %8635 = vset.pattern.permute.xlu0 2
      %8636 = vperm.xlu0 %8635, %v6710
      %v8637 = vpop.permute.xlu0 %8636
      %8639 = vset.pattern.permute.xlu0 2
      %8640 = vperm.xlu0 %8639, %v6711
      %v8641 = vpop.permute.xlu0 %8640
      %8643 = vset.pattern.permute.xlu0 2
      %8644 = vperm.xlu0 %8643, %v6712
      %v8645 = vpop.permute.xlu0 %8644
      %8647 = vset.pattern.permute.xlu0 2
      %8648 = vperm.xlu0 %8647, %v6713
      %v8649 = vpop.permute.xlu0 %8648
      %8651 = vset.pattern.permute.xlu0 2
      %8652 = vperm.xlu0 %8651, %v6714
      %v8653 = vpop.permute.xlu0 %8652
      %8655 = vset.pattern.permute.xlu0 2
      %8656 = vperm.xlu0 %8655, %v6715
      %v8657 = vpop.permute.xlu0 %8656
      %8659 = vset.pattern.permute.xlu0 2
      %8660 = vperm.xlu0 %8659, %v6716
      %v8661 = vpop.permute.xlu0 %8660
      %8663 = vset.pattern.permute.xlu0 2
      %8664 = vperm.xlu0 %8663, %v6717
      %v8665 = vpop.permute.xlu0 %8664
      %8667 = vset.pattern.permute.xlu0 2
      %8668 = vperm.xlu0 %8667, %v6718
      %v8669 = vpop.permute.xlu0 %8668
      %8671 = vset.pattern.permute.xlu0 2
      %8672 = vperm.xlu0 %8671, %v6719
      %v8673 = vpop.permute.xlu0 %8672
      %8675 = vset.pattern.permute.xlu0 2
      %8676 = vperm.xlu0 %8675, %v6720
      %v8677 = vpop.permute.xlu0 %8676
      %8679 = vset.pattern.permute.xlu0 2
      %8680 = vperm.xlu0 %8679, %v6721
      %v8681 = vpop.permute.xlu0 %8680
      %8683 = vset.pattern.permute.xlu0 2
      %8684 = vperm.xlu0 %8683, %v6722
      %v8685 = vpop.permute.xlu0 %8684
      %8687 = vset.pattern.permute.xlu0 2
      %8688 = vperm.xlu0 %8687, %v6723
      %v8689 = vpop.permute.xlu0 %8688
      %8691 = vset.pattern.permute.xlu0 2
      %8692 = vperm.xlu0 %8691, %v6724
      %v8693 = vpop.permute.xlu0 %8692
      %8695 = vset.pattern.permute.xlu0 2
      %8696 = vperm.xlu0 %8695, %v6725
      %v8697 = vpop.permute.xlu0 %8696
      %8699 = vset.pattern.permute.xlu0 2
      %8700 = vperm.xlu0 %8699, %v6726
      %v8701 = vpop.permute.xlu0 %8700
      %8703 = vset.pattern.permute.xlu0 2
      %8704 = vperm.xlu0 %8703, %v6727
      %v8705 = vpop.permute.xlu0 %8704
      %8707 = vset.pattern.permute.xlu0 2
      %8708 = vperm.xlu0 %8707, %v6728
      %v8709 = vpop.permute.xlu0 %8708
      %8711 = vset.pattern.permute.xlu0 2
      %8712 = vperm.xlu0 %8711, %v6729
      %v8713 = vpop.permute.xlu0 %8712
      %8715 = vset.pattern.permute.xlu0 2
      %8716 = vperm.xlu0 %8715, %v6730
      %v8717 = vpop.permute.xlu0 %8716
      %8719 = vset.pattern.permute.xlu0 2
      %8720 = vperm.xlu0 %8719, %v6731
      %v8721 = vpop.permute.xlu0 %8720
      %8723 = vset.pattern.permute.xlu0 2
      %8724 = vperm.xlu0 %8723, %v6732
      %v8725 = vpop.permute.xlu0 %8724
      %8727 = vset.pattern.permute.xlu0 2
      %8728 = vperm.xlu0 %8727, %v6733
      %v8729 = vpop.permute.xlu0 %8728
      %8731 = vset.pattern.permute.xlu0 2
      %8732 = vperm.xlu0 %8731, %v6734
      %v8733 = vpop.permute.xlu0 %8732
      %8735 = vset.pattern.permute.xlu0 2
      %8736 = vperm.xlu0 %8735, %v6735
      %v8737 = vpop.permute.xlu0 %8736
      %8739 = vset.pattern.permute.xlu0 2
      %8740 = vperm.xlu0 %8739, %v6736
      %v8741 = vpop.permute.xlu0 %8740
      %8743 = vset.pattern.permute.xlu0 2
      %8744 = vperm.xlu0 %8743, %v6737
      %v8745 = vpop.permute.xlu0 %8744
      %8747 = vset.pattern.permute.xlu0 2
      %8748 = vperm.xlu0 %8747, %v6738
      %v8749 = vpop.permute.xlu0 %8748
      %8751 = vset.pattern.permute.xlu0 2
      %8752 = vperm.xlu0 %8751, %v6739
      %v8753 = vpop.permute.xlu0 %8752
      %8755 = vset.pattern.permute.xlu0 2
      %8756 = vperm.xlu0 %8755, %v6740
      %v8757 = vpop.permute.xlu0 %8756
      %8759 = vset.pattern.permute.xlu0 2
      %8760 = vperm.xlu0 %8759, %v6741
      %v8761 = vpop.permute.xlu0 %8760
      %8763 = vset.pattern.permute.xlu0 2
      %8764 = vperm.xlu0 %8763, %v6742
      %v8765 = vpop.permute.xlu0 %8764
      %8767 = vset.pattern.permute.xlu0 2
      %8768 = vperm.xlu0 %8767, %v6743
      %v8769 = vpop.permute.xlu0 %8768
      %8771 = vset.pattern.permute.xlu0 2
      %8772 = vperm.xlu0 %8771, %v6744
      %v8773 = vpop.permute.xlu0 %8772
      %8775 = vset.pattern.permute.xlu0 2
      %8776 = vperm.xlu0 %8775, %v6745
      %v8777 = vpop.permute.xlu0 %8776
      %8779 = vset.pattern.permute.xlu0 2
      %8780 = vperm.xlu0 %8779, %v6746
      %v8781 = vpop.permute.xlu0 %8780
      %8783 = vset.pattern.permute.xlu0 2
      %8784 = vperm.xlu0 %8783, %v6747
      %v8785 = vpop.permute.xlu0 %8784
      %8787 = vset.pattern.permute.xlu0 2
      %8788 = vperm.xlu0 %8787, %v6748
      %v8789 = vpop.permute.xlu0 %8788
      %8791 = vset.pattern.permute.xlu0 2
      %8792 = vperm.xlu0 %8791, %v6749
      %v8793 = vpop.permute.xlu0 %8792
      %8795 = vset.pattern.permute.xlu0 2
      %8796 = vperm.xlu0 %8795, %v6750
      %v8797 = vpop.permute.xlu0 %8796
      %8799 = vset.pattern.permute.xlu0 2
      %8800 = vperm.xlu0 %8799, %v6751
      %v8801 = vpop.permute.xlu0 %8800
      %8803 = vset.pattern.permute.xlu0 2
      %8804 = vperm.xlu0 %8803, %v6752
      %v8805 = vpop.permute.xlu0 %8804
      %8807 = vset.pattern.permute.xlu0 2
      %8808 = vperm.xlu0 %8807, %v6753
      %v8809 = vpop.permute.xlu0 %8808
      %8811 = vset.pattern.permute.xlu0 2
      %8812 = vperm.xlu0 %8811, %v6754
      %v8813 = vpop.permute.xlu0 %8812
      %8815 = vset.pattern.permute.xlu0 2
      %8816 = vperm.xlu0 %8815, %v6755
      %v8817 = vpop.permute.xlu0 %8816
      %8819 = vset.pattern.permute.xlu0 2
      %8820 = vperm.xlu0 %8819, %v6756
      %v8821 = vpop.permute.xlu0 %8820
      %8823 = vset.pattern.permute.xlu0 2
      %8824 = vperm.xlu0 %8823, %v6757
      %v8825 = vpop.permute.xlu0 %8824
      %8827 = vset.pattern.permute.xlu0 2
      %8828 = vperm.xlu0 %8827, %v6758
      %v8829 = vpop.permute.xlu0 %8828
      %8831 = vset.pattern.permute.xlu0 2
      %8832 = vperm.xlu0 %8831, %v6759
      %v8833 = vpop.permute.xlu0 %8832
      %8835 = vset.pattern.permute.xlu0 2
      %8836 = vperm.xlu0 %8835, %v6760
      %v8837 = vpop.permute.xlu0 %8836
      %8839 = vset.pattern.permute.xlu0 2
      %8840 = vperm.xlu0 %8839, %v6761
      %v8841 = vpop.permute.xlu0 %8840
      %8843 = vset.pattern.permute.xlu0 2
      %8844 = vperm.xlu0 %8843, %v6762
      %v8845 = vpop.permute.xlu0 %8844
      %8847 = vset.pattern.permute.xlu0 2
      %8848 = vperm.xlu0 %8847, %v6763
      %v8849 = vpop.permute.xlu0 %8848
      %8851 = vset.pattern.permute.xlu0 2
      %8852 = vperm.xlu0 %8851, %v6764
      %v8853 = vpop.permute.xlu0 %8852
      %8855 = vset.pattern.permute.xlu0 2
      %8856 = vperm.xlu0 %8855, %v6765
      %v8857 = vpop.permute.xlu0 %8856
      %8859 = vset.pattern.permute.xlu0 2
      %8860 = vperm.xlu0 %8859, %v6766
      %v8861 = vpop.permute.xlu0 %8860
      %8863 = vset.pattern.permute.xlu0 2
      %8864 = vperm.xlu0 %8863, %v6767
      %v8865 = vpop.permute.xlu0 %8864
      %8867 = vset.pattern.permute.xlu0 2
      %8868 = vperm.xlu0 %8867, %v6768
      %v8869 = vpop.permute.xlu0 %8868
      %8871 = vset.pattern.permute.xlu0 2
      %8872 = vperm.xlu0 %8871, %v6769
      %v8873 = vpop.permute.xlu0 %8872
      %8875 = vset.pattern.permute.xlu0 2
      %8876 = vperm.xlu0 %8875, %v6770
      %v8877 = vpop.permute.xlu0 %8876
      %8879 = vset.pattern.permute.xlu0 2
      %8880 = vperm.xlu0 %8879, %v6771
      %v8881 = vpop.permute.xlu0 %8880
      %8883 = vset.pattern.permute.xlu0 2
      %8884 = vperm.xlu0 %8883, %v6772
      %v8885 = vpop.permute.xlu0 %8884
      %8887 = vset.pattern.permute.xlu0 2
      %8888 = vperm.xlu0 %8887, %v6773
      %v8889 = vpop.permute.xlu0 %8888
      %8891 = vset.pattern.permute.xlu0 2
      %8892 = vperm.xlu0 %8891, %v6774
      %v8893 = vpop.permute.xlu0 %8892
      %8895 = vset.pattern.permute.xlu0 2
      %8896 = vperm.xlu0 %8895, %v6775
      %v8897 = vpop.permute.xlu0 %8896
      %8899 = vset.pattern.permute.xlu0 2
      %8900 = vperm.xlu0 %8899, %v6776
      %v8901 = vpop.permute.xlu0 %8900
      %8903 = vset.pattern.permute.xlu0 2
      %8904 = vperm.xlu0 %8903, %v6777
      %v8905 = vpop.permute.xlu0 %8904
      %8907 = vset.pattern.permute.xlu0 2
      %8908 = vperm.xlu0 %8907, %v6778
      %v8909 = vpop.permute.xlu0 %8908
      %8911 = vset.pattern.permute.xlu0 2
      %8912 = vperm.xlu0 %8911, %v6779
      %v8913 = vpop.permute.xlu0 %8912
      %8915 = vset.pattern.permute.xlu0 2
      %8916 = vperm.xlu0 %8915, %v6780
      %v8917 = vpop.permute.xlu0 %8916
      %8919 = vset.pattern.permute.xlu0 2
      %8920 = vperm.xlu0 %8919, %v6781
      %v8921 = vpop.permute.xlu0 %8920
      %8923 = vset.pattern.permute.xlu0 2
      %8924 = vperm.xlu0 %8923, %v6782
      %v8925 = vpop.permute.xlu0 %8924
      %8927 = vset.pattern.permute.xlu0 2
      %8928 = vperm.xlu0 %8927, %v6783
      %v8929 = vpop.permute.xlu0 %8928
      %8931 = vset.pattern.permute.xlu0 2
      %8932 = vperm.xlu0 %8931, %v6784
      %v8933 = vpop.permute.xlu0 %8932
      %8935 = vset.pattern.permute.xlu0 2
      %8936 = vperm.xlu0 %8935, %v6785
      %v8937 = vpop.permute.xlu0 %8936
      %8939 = vset.pattern.permute.xlu0 2
      %8940 = vperm.xlu0 %8939, %v6786
      %v8941 = vpop.permute.xlu0 %8940
      %8943 = vset.pattern.permute.xlu0 2
      %8944 = vperm.xlu0 %8943, %v6787
      %v8945 = vpop.permute.xlu0 %8944
      %8947 = vset.pattern.permute.xlu0 2
      %8948 = vperm.xlu0 %8947, %v6788
      %v8949 = vpop.permute.xlu0 %8948
      %8951 = vset.pattern.permute.xlu0 2
      %8952 = vperm.xlu0 %8951, %v6789
      %v8953 = vpop.permute.xlu0 %8952
      %8955 = vset.pattern.permute.xlu0 2
      %8956 = vperm.xlu0 %8955, %v6790
      %v8957 = vpop.permute.xlu0 %8956
      %8959 = vset.pattern.permute.xlu0 2
      %8960 = vperm.xlu0 %8959, %v6791
      %v8961 = vpop.permute.xlu0 %8960
      %8963 = vset.pattern.permute.xlu0 2
      %8964 = vperm.xlu0 %8963, %v6792
      %v8965 = vpop.permute.xlu0 %8964
      %8967 = vset.pattern.permute.xlu0 2
      %8968 = vperm.xlu0 %8967, %v6793
      %v8969 = vpop.permute.xlu0 %8968
      %8971 = vset.pattern.permute.xlu0 2
      %8972 = vperm.xlu0 %8971, %v6794
      %v8973 = vpop.permute.xlu0 %8972
      %8975 = vset.pattern.permute.xlu0 2
      %8976 = vperm.xlu0 %8975, %v6795
      %v8977 = vpop.permute.xlu0 %8976
      %8979 = vset.pattern.permute.xlu0 2
      %8980 = vperm.xlu0 %8979, %v6796
      %v8981 = vpop.permute.xlu0 %8980
      %8983 = vset.pattern.permute.xlu0 2
      %8984 = vperm.xlu0 %8983, %v6797
      %v8985 = vpop.permute.xlu0 %8984
      %8987 = vset.pattern.permute.xlu0 2
      %8988 = vperm.xlu0 %8987, %v6798
      %v8989 = vpop.permute.xlu0 %8988
      %v8991 = vlaneseq
      %v8992 = vshrl.u32 %v8991, 7
      %v8993 = vsub.s32 0, %v8992
      %v8994 = vrot.slane %v8478, %v8993
      %v8995 = vmul.f32 %v8481, %v8994
      %v8996 = vmul.f32 %v8485, %v8994
      %v8997 = vmul.f32 %v8489, %v8994
      %v8998 = vmul.f32 %v8493, %v8994
      %v8999 = vmul.f32 %v8497, %v8994
      %v9000 = vmul.f32 %v8501, %v8994
      %v9001 = vmul.f32 %v8505, %v8994
      %v9002 = vmul.f32 %v8509, %v8994
      %v9003 = vmul.f32 %v8513, %v8994
      %v9004 = vmul.f32 %v8517, %v8994
      %v9005 = vmul.f32 %v8521, %v8994
      %v9006 = vmul.f32 %v8525, %v8994
      %v9007 = vmul.f32 %v8529, %v8994
      %v9008 = vmul.f32 %v8533, %v8994
      %v9009 = vmul.f32 %v8537, %v8994
      %v9010 = vmul.f32 %v8541, %v8994
      %v9011 = vmul.f32 %v8545, %v8994
      %v9012 = vmul.f32 %v8549, %v8994
      %v9013 = vmul.f32 %v8553, %v8994
      %v9014 = vmul.f32 %v8557, %v8994
      %v9015 = vmul.f32 %v8561, %v8994
      %v9016 = vmul.f32 %v8565, %v8994
      %v9017 = vmul.f32 %v8569, %v8994
      %v9018 = vmul.f32 %v8573, %v8994
      %v9019 = vmul.f32 %v8577, %v8994
      %v9020 = vmul.f32 %v8581, %v8994
      %v9021 = vmul.f32 %v8585, %v8994
      %v9022 = vmul.f32 %v8589, %v8994
      %v9023 = vmul.f32 %v8593, %v8994
      %v9024 = vmul.f32 %v8597, %v8994
      %v9025 = vmul.f32 %v8601, %v8994
      %v9026 = vmul.f32 %v8605, %v8994
      %v9027 = vmul.f32 %v8609, %v8994
      %v9028 = vmul.f32 %v8613, %v8994
      %v9029 = vmul.f32 %v8617, %v8994
      %v9030 = vmul.f32 %v8621, %v8994
      %v9031 = vmul.f32 %v8625, %v8994
      %v9032 = vmul.f32 %v8629, %v8994
      %v9033 = vmul.f32 %v8633, %v8994
      %v9034 = vmul.f32 %v8637, %v8994
      %v9035 = vmul.f32 %v8641, %v8994
      %v9036 = vmul.f32 %v8645, %v8994
      %v9037 = vmul.f32 %v8649, %v8994
      %v9038 = vmul.f32 %v8653, %v8994
      %v9039 = vmul.f32 %v8657, %v8994
      %v9040 = vmul.f32 %v8661, %v8994
      %v9041 = vmul.f32 %v8665, %v8994
      %v9042 = vmul.f32 %v8669, %v8994
      %v9043 = vmul.f32 %v8673, %v8994
      %v9044 = vmul.f32 %v8677, %v8994
      %v9045 = vmul.f32 %v8681, %v8994
      %v9046 = vmul.f32 %v8685, %v8994
      %v9047 = vmul.f32 %v8689, %v8994
      %v9048 = vmul.f32 %v8693, %v8994
      %v9049 = vmul.f32 %v8697, %v8994
      %v9050 = vmul.f32 %v8701, %v8994
      %v9051 = vmul.f32 %v8705, %v8994
      %v9052 = vmul.f32 %v8709, %v8994
      %v9053 = vmul.f32 %v8713, %v8994
      %v9054 = vmul.f32 %v8717, %v8994
      %v9055 = vmul.f32 %v8721, %v8994
      %v9056 = vmul.f32 %v8725, %v8994
      %v9057 = vmul.f32 %v8729, %v8994
      %v9058 = vmul.f32 %v8733, %v8994
      %v9059 = vmul.f32 %v8737, %v8994
      %v9060 = vmul.f32 %v8741, %v8994
      %v9061 = vmul.f32 %v8745, %v8994
      %v9062 = vmul.f32 %v8749, %v8994
      %v9063 = vmul.f32 %v8753, %v8994
      %v9064 = vmul.f32 %v8757, %v8994
      %v9065 = vmul.f32 %v8761, %v8994
      %v9066 = vmul.f32 %v8765, %v8994
      %v9067 = vmul.f32 %v8769, %v8994
      %v9068 = vmul.f32 %v8773, %v8994
      %v9069 = vmul.f32 %v8777, %v8994
      %v9070 = vmul.f32 %v8781, %v8994
      %v9071 = vmul.f32 %v8785, %v8994
      %v9072 = vmul.f32 %v8789, %v8994
      %v9073 = vmul.f32 %v8793, %v8994
      %v9074 = vmul.f32 %v8797, %v8994
      %v9075 = vmul.f32 %v8801, %v8994
      %v9076 = vmul.f32 %v8805, %v8994
      %v9077 = vmul.f32 %v8809, %v8994
      %v9078 = vmul.f32 %v8813, %v8994
      %v9079 = vmul.f32 %v8817, %v8994
      %v9080 = vmul.f32 %v8821, %v8994
      %v9081 = vmul.f32 %v8825, %v8994
      %v9082 = vmul.f32 %v8829, %v8994
      %v9083 = vmul.f32 %v8833, %v8994
      %v9084 = vmul.f32 %v8837, %v8994
      %v9085 = vmul.f32 %v8841, %v8994
      %v9086 = vmul.f32 %v8845, %v8994
      %v9087 = vmul.f32 %v8849, %v8994
      %v9088 = vmul.f32 %v8853, %v8994
      %v9089 = vmul.f32 %v8857, %v8994
      %v9090 = vmul.f32 %v8861, %v8994
      %v9091 = vmul.f32 %v8865, %v8994
      %v9092 = vmul.f32 %v8869, %v8994
      %v9093 = vmul.f32 %v8873, %v8994
      %v9094 = vmul.f32 %v8877, %v8994
      %v9095 = vmul.f32 %v8881, %v8994
      %v9096 = vmul.f32 %v8885, %v8994
      %v9097 = vmul.f32 %v8889, %v8994
      %v9098 = vmul.f32 %v8893, %v8994
      %v9099 = vmul.f32 %v8897, %v8994
      %v9100 = vmul.f32 %v8901, %v8994
      %v9101 = vmul.f32 %v8905, %v8994
      %v9102 = vmul.f32 %v8909, %v8994
      %v9103 = vmul.f32 %v8913, %v8994
      %v9104 = vmul.f32 %v8917, %v8994
      %v9105 = vmul.f32 %v8921, %v8994
      %v9106 = vmul.f32 %v8925, %v8994
      %v9107 = vmul.f32 %v8929, %v8994
      %v9108 = vmul.f32 %v8933, %v8994
      %v9109 = vmul.f32 %v8937, %v8994
      %v9110 = vmul.f32 %v8941, %v8994
      %v9111 = vmul.f32 %v8945, %v8994
      %v9112 = vmul.f32 %v8949, %v8994
      %v9113 = vmul.f32 %v8953, %v8994
      %v9114 = vmul.f32 %v8957, %v8994
      %v9115 = vmul.f32 %v8961, %v8994
      %v9116 = vmul.f32 %v8965, %v8994
      %v9117 = vmul.f32 %v8969, %v8994
      %v9118 = vmul.f32 %v8973, %v8994
      %v9119 = vmul.f32 %v8977, %v8994
      %v9120 = vmul.f32 %v8981, %v8994
      %v9121 = vmul.f32 %v8985, %v8994
      %v9122 = vmul.f32 %v8989, %v8994
      %v9123 = vadd.f32 %v8350, %v8995
      %v9124 = vadd.f32 %v8351, %v8996
      %v9125 = vadd.f32 %v8352, %v8997
      %v9126 = vadd.f32 %v8353, %v8998
      %v9127 = vadd.f32 %v8354, %v8999
      %v9128 = vadd.f32 %v8355, %v9000
      %v9129 = vadd.f32 %v8356, %v9001
      %v9130 = vadd.f32 %v8357, %v9002
      %v9131 = vadd.f32 %v8358, %v9003
      %v9132 = vadd.f32 %v8359, %v9004
      %v9133 = vadd.f32 %v8360, %v9005
      %v9134 = vadd.f32 %v8361, %v9006
      %v9135 = vadd.f32 %v8362, %v9007
      %v9136 = vadd.f32 %v8363, %v9008
      %v9137 = vadd.f32 %v8364, %v9009
      %v9138 = vadd.f32 %v8365, %v9010
      %v9139 = vadd.f32 %v8366, %v9011
      %v9140 = vadd.f32 %v8367, %v9012
      %v9141 = vadd.f32 %v8368, %v9013
      %v9142 = vadd.f32 %v8369, %v9014
      %v9143 = vadd.f32 %v8370, %v9015
      %v9144 = vadd.f32 %v8371, %v9016
      %v9145 = vadd.f32 %v8372, %v9017
      %v9146 = vadd.f32 %v8373, %v9018
      %v9147 = vadd.f32 %v8374, %v9019
      %v9148 = vadd.f32 %v8375, %v9020
      %v9149 = vadd.f32 %v8376, %v9021
      %v9150 = vadd.f32 %v8377, %v9022
      %v9151 = vadd.f32 %v8378, %v9023
      %v9152 = vadd.f32 %v8379, %v9024
      %v9153 = vadd.f32 %v8380, %v9025
      %v9154 = vadd.f32 %v8381, %v9026
      %v9155 = vadd.f32 %v8382, %v9027
      %v9156 = vadd.f32 %v8383, %v9028
      %v9157 = vadd.f32 %v8384, %v9029
      %v9158 = vadd.f32 %v8385, %v9030
      %v9159 = vadd.f32 %v8386, %v9031
      %v9160 = vadd.f32 %v8387, %v9032
      %v9161 = vadd.f32 %v8388, %v9033
      %v9162 = vadd.f32 %v8389, %v9034
      %v9163 = vadd.f32 %v8390, %v9035
      %v9164 = vadd.f32 %v8391, %v9036
      %v9165 = vadd.f32 %v8392, %v9037
      %v9166 = vadd.f32 %v8393, %v9038
      %v9167 = vadd.f32 %v8394, %v9039
      %v9168 = vadd.f32 %v8395, %v9040
      %v9169 = vadd.f32 %v8396, %v9041
      %v9170 = vadd.f32 %v8397, %v9042
      %v9171 = vadd.f32 %v8398, %v9043
      %v9172 = vadd.f32 %v8399, %v9044
      %v9173 = vadd.f32 %v8400, %v9045
      %v9174 = vadd.f32 %v8401, %v9046
      %v9175 = vadd.f32 %v8402, %v9047
      %v9176 = vadd.f32 %v8403, %v9048
      %v9177 = vadd.f32 %v8404, %v9049
      %v9178 = vadd.f32 %v8405, %v9050
      %v9179 = vadd.f32 %v8406, %v9051
      %v9180 = vadd.f32 %v8407, %v9052
      %v9181 = vadd.f32 %v8408, %v9053
      %v9182 = vadd.f32 %v8409, %v9054
      %v9183 = vadd.f32 %v8410, %v9055
      %v9184 = vadd.f32 %v8411, %v9056
      %v9185 = vadd.f32 %v8412, %v9057
      %v9186 = vadd.f32 %v8413, %v9058
      %v9187 = vadd.f32 %v8414, %v9059
      %v9188 = vadd.f32 %v8415, %v9060
      %v9189 = vadd.f32 %v8416, %v9061
      %v9190 = vadd.f32 %v8417, %v9062
      %v9191 = vadd.f32 %v8418, %v9063
      %v9192 = vadd.f32 %v8419, %v9064
      %v9193 = vadd.f32 %v8420, %v9065
      %v9194 = vadd.f32 %v8421, %v9066
      %v9195 = vadd.f32 %v8422, %v9067
      %v9196 = vadd.f32 %v8423, %v9068
      %v9197 = vadd.f32 %v8424, %v9069
      %v9198 = vadd.f32 %v8425, %v9070
      %v9199 = vadd.f32 %v8426, %v9071
      %v9200 = vadd.f32 %v8427, %v9072
      %v9201 = vadd.f32 %v8428, %v9073
      %v9202 = vadd.f32 %v8429, %v9074
      %v9203 = vadd.f32 %v8430, %v9075
      %v9204 = vadd.f32 %v8431, %v9076
      %v9205 = vadd.f32 %v8432, %v9077
      %v9206 = vadd.f32 %v8433, %v9078
      %v9207 = vadd.f32 %v8434, %v9079
      %v9208 = vadd.f32 %v8435, %v9080
      %v9209 = vadd.f32 %v8436, %v9081
      %v9210 = vadd.f32 %v8437, %v9082
      %v9211 = vadd.f32 %v8438, %v9083
      %v9212 = vadd.f32 %v8439, %v9084
      %v9213 = vadd.f32 %v8440, %v9085
      %v9214 = vadd.f32 %v8441, %v9086
      %v9215 = vadd.f32 %v8442, %v9087
      %v9216 = vadd.f32 %v8443, %v9088
      %v9217 = vadd.f32 %v8444, %v9089
      %v9218 = vadd.f32 %v8445, %v9090
      %v9219 = vadd.f32 %v8446, %v9091
      %v9220 = vadd.f32 %v8447, %v9092
      %v9221 = vadd.f32 %v8448, %v9093
      %v9222 = vadd.f32 %v8449, %v9094
      %v9223 = vadd.f32 %v8450, %v9095
      %v9224 = vadd.f32 %v8451, %v9096
      %v9225 = vadd.f32 %v8452, %v9097
      %v9226 = vadd.f32 %v8453, %v9098
      %v9227 = vadd.f32 %v8454, %v9099
      %v9228 = vadd.f32 %v8455, %v9100
      %v9229 = vadd.f32 %v8456, %v9101
      %v9230 = vadd.f32 %v8457, %v9102
      %v9231 = vadd.f32 %v8458, %v9103
      %v9232 = vadd.f32 %v8459, %v9104
      %v9233 = vadd.f32 %v8460, %v9105
      %v9234 = vadd.f32 %v8461, %v9106
      %v9235 = vadd.f32 %v8462, %v9107
      %v9236 = vadd.f32 %v8463, %v9108
      %v9237 = vadd.f32 %v8464, %v9109
      %v9238 = vadd.f32 %v8465, %v9110
      %v9239 = vadd.f32 %v8466, %v9111
      %v9240 = vadd.f32 %v8467, %v9112
      %v9241 = vadd.f32 %v8468, %v9113
      %v9242 = vadd.f32 %v8469, %v9114
      %v9243 = vadd.f32 %v8470, %v9115
      %v9244 = vadd.f32 %v8471, %v9116
      %v9245 = vadd.f32 %v8472, %v9117
      %v9246 = vadd.f32 %v8473, %v9118
      %v9247 = vadd.f32 %v8474, %v9119
      %v9248 = vadd.f32 %v8475, %v9120
      %v9249 = vadd.f32 %v8476, %v9121
      %v9250 = vadd.f32 %v8477, %v9122
      %v9251 = vtanh.pop %v9123
      %v9252 = vtanh.pop %v9124
      %v9253 = vtanh.pop %v9125
      %v9254 = vtanh.pop %v9126
      %v9255 = vtanh.pop %v9127
      %v9256 = vtanh.pop %v9128
      %v9257 = vtanh.pop %v9129
      %v9258 = vtanh.pop %v9130
      %v9259 = vtanh.pop %v9131
      %v9260 = vtanh.pop %v9132
      %v9261 = vtanh.pop %v9133
      %v9262 = vtanh.pop %v9134
      %v9263 = vtanh.pop %v9135
      %v9264 = vtanh.pop %v9136
      %v9265 = vtanh.pop %v9137
      %v9266 = vtanh.pop %v9138
      %v9267 = vtanh.pop %v9139
      %v9268 = vtanh.pop %v9140
      %v9269 = vtanh.pop %v9141
      %v9270 = vtanh.pop %v9142
      %v9271 = vtanh.pop %v9143
      %v9272 = vtanh.pop %v9144
      %v9273 = vtanh.pop %v9145
      %v9274 = vtanh.pop %v9146
      %v9275 = vtanh.pop %v9147
      %v9276 = vtanh.pop %v9148
      %v9277 = vtanh.pop %v9149
      %v9278 = vtanh.pop %v9150
      %v9279 = vtanh.pop %v9151
      %v9280 = vtanh.pop %v9152
      %v9281 = vtanh.pop %v9153
      %v9282 = vtanh.pop %v9154
      %v9283 = vtanh.pop %v9155
      %v9284 = vtanh.pop %v9156
      %v9285 = vtanh.pop %v9157
      %v9286 = vtanh.pop %v9158
      %v9287 = vtanh.pop %v9159
      %v9288 = vtanh.pop %v9160
      %v9289 = vtanh.pop %v9161
      %v9290 = vtanh.pop %v9162
      %v9291 = vtanh.pop %v9163
      %v9292 = vtanh.pop %v9164
      %v9293 = vtanh.pop %v9165
      %v9294 = vtanh.pop %v9166
      %v9295 = vtanh.pop %v9167
      %v9296 = vtanh.pop %v9168
      %v9297 = vtanh.pop %v9169
      %v9298 = vtanh.pop %v9170
      %v9299 = vtanh.pop %v9171
      %v9300 = vtanh.pop %v9172
      %v9301 = vtanh.pop %v9173
      %v9302 = vtanh.pop %v9174
      %v9303 = vtanh.pop %v9175
      %v9304 = vtanh.pop %v9176
      %v9305 = vtanh.pop %v9177
      %v9306 = vtanh.pop %v9178
      %v9307 = vtanh.pop %v9179
      %v9308 = vtanh.pop %v9180
      %v9309 = vtanh.pop %v9181
      %v9310 = vtanh.pop %v9182
      %v9311 = vtanh.pop %v9183
      %v9312 = vtanh.pop %v9184
      %v9313 = vtanh.pop %v9185
      %v9314 = vtanh.pop %v9186
      %v9315 = vtanh.pop %v9187
      %v9316 = vtanh.pop %v9188
      %v9317 = vtanh.pop %v9189
      %v9318 = vtanh.pop %v9190
      %v9319 = vtanh.pop %v9191
      %v9320 = vtanh.pop %v9192
      %v9321 = vtanh.pop %v9193
      %v9322 = vtanh.pop %v9194
      %v9323 = vtanh.pop %v9195
      %v9324 = vtanh.pop %v9196
      %v9325 = vtanh.pop %v9197
      %v9326 = vtanh.pop %v9198
      %v9327 = vtanh.pop %v9199
      %v9328 = vtanh.pop %v9200
      %v9329 = vtanh.pop %v9201
      %v9330 = vtanh.pop %v9202
      %v9331 = vtanh.pop %v9203
      %v9332 = vtanh.pop %v9204
      %v9333 = vtanh.pop %v9205
      %v9334 = vtanh.pop %v9206
      %v9335 = vtanh.pop %v9207
      %v9336 = vtanh.pop %v9208
      %v9337 = vtanh.pop %v9209
      %v9338 = vtanh.pop %v9210
      %v9339 = vtanh.pop %v9211
      %v9340 = vtanh.pop %v9212
      %v9341 = vtanh.pop %v9213
      %v9342 = vtanh.pop %v9214
      %v9343 = vtanh.pop %v9215
      %v9344 = vtanh.pop %v9216
      %v9345 = vtanh.pop %v9217
      %v9346 = vtanh.pop %v9218
      %v9347 = vtanh.pop %v9219
      %v9348 = vtanh.pop %v9220
      %v9349 = vtanh.pop %v9221
      %v9350 = vtanh.pop %v9222
      %v9351 = vtanh.pop %v9223
      %v9352 = vtanh.pop %v9224
      %v9353 = vtanh.pop %v9225
      %v9354 = vtanh.pop %v9226
      %v9355 = vtanh.pop %v9227
      %v9356 = vtanh.pop %v9228
      %v9357 = vtanh.pop %v9229
      %v9358 = vtanh.pop %v9230
      %v9359 = vtanh.pop %v9231
      %v9360 = vtanh.pop %v9232
      %v9361 = vtanh.pop %v9233
      %v9362 = vtanh.pop %v9234
      %v9363 = vtanh.pop %v9235
      %v9364 = vtanh.pop %v9236
      %v9365 = vtanh.pop %v9237
      %v9366 = vtanh.pop %v9238
      %v9367 = vtanh.pop %v9239
      %v9368 = vtanh.pop %v9240
      %v9369 = vtanh.pop %v9241
      %v9370 = vtanh.pop %v9242
      %v9371 = vtanh.pop %v9243
      %v9372 = vtanh.pop %v9244
      %v9373 = vtanh.pop %v9245
      %v9374 = vtanh.pop %v9246
      %v9375 = vtanh.pop %v9247
      %v9376 = vtanh.pop %v9248
      %v9377 = vtanh.pop %v9249
      %v9378 = vtanh.pop %v9250
      %vm9379 = vcmask 15360
      %9380 = vst.msk [vmem:[%s199] sm:$0xff] %vm9379, %v9251
      %9381 = vst.msk [vmem:[%s199 + $0x8] sm:$0xff] %vm9379, %v9252
      %9382 = vst.msk [vmem:[%s199 + $0x10] sm:$0xff] %vm9379, %v9253
      %9383 = vst.msk [vmem:[%s199 + $0x18] sm:$0xff] %vm9379, %v9254
      %9384 = vst.msk [vmem:[%s199 + $0x20] sm:$0xff] %vm9379, %v9255
      %9385 = vst.msk [vmem:[%s199 + $0x28] sm:$0xff] %vm9379, %v9256
      %9386 = vst.msk [vmem:[%s199 + $0x30] sm:$0xff] %vm9379, %v9257
      %9387 = vst.msk [vmem:[%s199 + $0x38] sm:$0xff] %vm9379, %v9258
      %9388 = vst.msk [vmem:[%s199 + $0x40] sm:$0xff] %vm9379, %v9259
      %9389 = vst.msk [vmem:[%s199 + $0x48] sm:$0xff] %vm9379, %v9260
      %9390 = vst.msk [vmem:[%s199 + $0x50] sm:$0xff] %vm9379, %v9261
      %9391 = vst.msk [vmem:[%s199 + $0x58] sm:$0xff] %vm9379, %v9262
      %9392 = vst.msk [vmem:[%s199 + $0x60] sm:$0xff] %vm9379, %v9263
      %9393 = vst.msk [vmem:[%s199 + $0x68] sm:$0xff] %vm9379, %v9264
      %9394 = vst.msk [vmem:[%s199 + $0x70] sm:$0xff] %vm9379, %v9265
      %9395 = vst.msk [vmem:[%s199 + $0x78] sm:$0xff] %vm9379, %v9266
      %9396 = vst.msk [vmem:[%s199 + $0x80] sm:$0xff] %vm9379, %v9267
      %9397 = vst.msk [vmem:[%s199 + $0x88] sm:$0xff] %vm9379, %v9268
      %9398 = vst.msk [vmem:[%s199 + $0x90] sm:$0xff] %vm9379, %v9269
      %9399 = vst.msk [vmem:[%s199 + $0x98] sm:$0xff] %vm9379, %v9270
      %9400 = vst.msk [vmem:[%s199 + $0xa0] sm:$0xff] %vm9379, %v9271
      %9401 = vst.msk [vmem:[%s199 + $0xa8] sm:$0xff] %vm9379, %v9272
      %9402 = vst.msk [vmem:[%s199 + $0xb0] sm:$0xff] %vm9379, %v9273
      %9403 = vst.msk [vmem:[%s199 + $0xb8] sm:$0xff] %vm9379, %v9274
      %9404 = vst.msk [vmem:[%s199 + $0xc0] sm:$0xff] %vm9379, %v9275
      %9405 = vst.msk [vmem:[%s199 + $0xc8] sm:$0xff] %vm9379, %v9276
      %9406 = vst.msk [vmem:[%s199 + $0xd0] sm:$0xff] %vm9379, %v9277
      %9407 = vst.msk [vmem:[%s199 + $0xd8] sm:$0xff] %vm9379, %v9278
      %9408 = vst.msk [vmem:[%s199 + $0xe0] sm:$0xff] %vm9379, %v9279
      %9409 = vst.msk [vmem:[%s199 + $0xe8] sm:$0xff] %vm9379, %v9280
      %9410 = vst.msk [vmem:[%s199 + $0xf0] sm:$0xff] %vm9379, %v9281
      %9411 = vst.msk [vmem:[%s199 + $0xf8] sm:$0xff] %vm9379, %v9282
      %9412 = vst.msk [vmem:[%s199 + $0x100] sm:$0xff] %vm9379, %v9283
      %9413 = vst.msk [vmem:[%s199 + $0x108] sm:$0xff] %vm9379, %v9284
      %9414 = vst.msk [vmem:[%s199 + $0x110] sm:$0xff] %vm9379, %v9285
      %9415 = vst.msk [vmem:[%s199 + $0x118] sm:$0xff] %vm9379, %v9286
      %9416 = vst.msk [vmem:[%s199 + $0x120] sm:$0xff] %vm9379, %v9287
      %9417 = vst.msk [vmem:[%s199 + $0x128] sm:$0xff] %vm9379, %v9288
      %9418 = vst.msk [vmem:[%s199 + $0x130] sm:$0xff] %vm9379, %v9289
      %9419 = vst.msk [vmem:[%s199 + $0x138] sm:$0xff] %vm9379, %v9290
      %9420 = vst.msk [vmem:[%s199 + $0x140] sm:$0xff] %vm9379, %v9291
      %9421 = vst.msk [vmem:[%s199 + $0x148] sm:$0xff] %vm9379, %v9292
      %9422 = vst.msk [vmem:[%s199 + $0x150] sm:$0xff] %vm9379, %v9293
      %9423 = vst.msk [vmem:[%s199 + $0x158] sm:$0xff] %vm9379, %v9294
      %9424 = vst.msk [vmem:[%s199 + $0x160] sm:$0xff] %vm9379, %v9295
      %9425 = vst.msk [vmem:[%s199 + $0x168] sm:$0xff] %vm9379, %v9296
      %9426 = vst.msk [vmem:[%s199 + $0x170] sm:$0xff] %vm9379, %v9297
      %9427 = vst.msk [vmem:[%s199 + $0x178] sm:$0xff] %vm9379, %v9298
      %9428 = vst.msk [vmem:[%s199 + $0x180] sm:$0xff] %vm9379, %v9299
      %9429 = vst.msk [vmem:[%s199 + $0x188] sm:$0xff] %vm9379, %v9300
      %9430 = vst.msk [vmem:[%s199 + $0x190] sm:$0xff] %vm9379, %v9301
      %9431 = vst.msk [vmem:[%s199 + $0x198] sm:$0xff] %vm9379, %v9302
      %9432 = vst.msk [vmem:[%s199 + $0x1a0] sm:$0xff] %vm9379, %v9303
      %9433 = vst.msk [vmem:[%s199 + $0x1a8] sm:$0xff] %vm9379, %v9304
      %9434 = vst.msk [vmem:[%s199 + $0x1b0] sm:$0xff] %vm9379, %v9305
      %9435 = vst.msk [vmem:[%s199 + $0x1b8] sm:$0xff] %vm9379, %v9306
      %9436 = vst.msk [vmem:[%s199 + $0x1c0] sm:$0xff] %vm9379, %v9307
      %9437 = vst.msk [vmem:[%s199 + $0x1c8] sm:$0xff] %vm9379, %v9308
      %9438 = vst.msk [vmem:[%s199 + $0x1d0] sm:$0xff] %vm9379, %v9309
      %9439 = vst.msk [vmem:[%s199 + $0x1d8] sm:$0xff] %vm9379, %v9310
      %9440 = vst.msk [vmem:[%s199 + $0x1e0] sm:$0xff] %vm9379, %v9311
      %9441 = vst.msk [vmem:[%s199 + $0x1e8] sm:$0xff] %vm9379, %v9312
      %9442 = vst.msk [vmem:[%s199 + $0x1f0] sm:$0xff] %vm9379, %v9313
      %9443 = vst.msk [vmem:[%s199 + $0x1f8] sm:$0xff] %vm9379, %v9314
      %9444 = vst.msk [vmem:[%s199 + $0x200] sm:$0xff] %vm9379, %v9315
      %9445 = vst.msk [vmem:[%s199 + $0x208] sm:$0xff] %vm9379, %v9316
      %9446 = vst.msk [vmem:[%s199 + $0x210] sm:$0xff] %vm9379, %v9317
      %9447 = vst.msk [vmem:[%s199 + $0x218] sm:$0xff] %vm9379, %v9318
      %9448 = vst.msk [vmem:[%s199 + $0x220] sm:$0xff] %vm9379, %v9319
      %9449 = vst.msk [vmem:[%s199 + $0x228] sm:$0xff] %vm9379, %v9320
      %9450 = vst.msk [vmem:[%s199 + $0x230] sm:$0xff] %vm9379, %v9321
      %9451 = vst.msk [vmem:[%s199 + $0x238] sm:$0xff] %vm9379, %v9322
      %9452 = vst.msk [vmem:[%s199 + $0x240] sm:$0xff] %vm9379, %v9323
      %9453 = vst.msk [vmem:[%s199 + $0x248] sm:$0xff] %vm9379, %v9324
      %9454 = vst.msk [vmem:[%s199 + $0x250] sm:$0xff] %vm9379, %v9325
      %9455 = vst.msk [vmem:[%s199 + $0x258] sm:$0xff] %vm9379, %v9326
      %9456 = vst.msk [vmem:[%s199 + $0x260] sm:$0xff] %vm9379, %v9327
      %9457 = vst.msk [vmem:[%s199 + $0x268] sm:$0xff] %vm9379, %v9328
      %9458 = vst.msk [vmem:[%s199 + $0x270] sm:$0xff] %vm9379, %v9329
      %9459 = vst.msk [vmem:[%s199 + $0x278] sm:$0xff] %vm9379, %v9330
      %9460 = vst.msk [vmem:[%s199 + $0x280] sm:$0xff] %vm9379, %v9331
      %9461 = vst.msk [vmem:[%s199 + $0x288] sm:$0xff] %vm9379, %v9332
      %9462 = vst.msk [vmem:[%s199 + $0x290] sm:$0xff] %vm9379, %v9333
      %9463 = vst.msk [vmem:[%s199 + $0x298] sm:$0xff] %vm9379, %v9334
      %9464 = vst.msk [vmem:[%s199 + $0x2a0] sm:$0xff] %vm9379, %v9335
      %9465 = vst.msk [vmem:[%s199 + $0x2a8] sm:$0xff] %vm9379, %v9336
      %9466 = vst.msk [vmem:[%s199 + $0x2b0] sm:$0xff] %vm9379, %v9337
      %9467 = vst.msk [vmem:[%s199 + $0x2b8] sm:$0xff] %vm9379, %v9338
      %9468 = vst.msk [vmem:[%s199 + $0x2c0] sm:$0xff] %vm9379, %v9339
      %9469 = vst.msk [vmem:[%s199 + $0x2c8] sm:$0xff] %vm9379, %v9340
      %9470 = vst.msk [vmem:[%s199 + $0x2d0] sm:$0xff] %vm9379, %v9341
      %9471 = vst.msk [vmem:[%s199 + $0x2d8] sm:$0xff] %vm9379, %v9342
      %9472 = vst.msk [vmem:[%s199 + $0x2e0] sm:$0xff] %vm9379, %v9343
      %9473 = vst.msk [vmem:[%s199 + $0x2e8] sm:$0xff] %vm9379, %v9344
      %9474 = vst.msk [vmem:[%s199 + $0x2f0] sm:$0xff] %vm9379, %v9345
      %9475 = vst.msk [vmem:[%s199 + $0x2f8] sm:$0xff] %vm9379, %v9346
      %9476 = vst.msk [vmem:[%s199 + $0x300] sm:$0xff] %vm9379, %v9347
      %9477 = vst.msk [vmem:[%s199 + $0x308] sm:$0xff] %vm9379, %v9348
      %9478 = vst.msk [vmem:[%s199 + $0x310] sm:$0xff] %vm9379, %v9349
      %9479 = vst.msk [vmem:[%s199 + $0x318] sm:$0xff] %vm9379, %v9350
      %9480 = vst.msk [vmem:[%s199 + $0x320] sm:$0xff] %vm9379, %v9351
      %9481 = vst.msk [vmem:[%s199 + $0x328] sm:$0xff] %vm9379, %v9352
      %9482 = vst.msk [vmem:[%s199 + $0x330] sm:$0xff] %vm9379, %v9353
      %9483 = vst.msk [vmem:[%s199 + $0x338] sm:$0xff] %vm9379, %v9354
      %9484 = vst.msk [vmem:[%s199 + $0x340] sm:$0xff] %vm9379, %v9355
      %9485 = vst.msk [vmem:[%s199 + $0x348] sm:$0xff] %vm9379, %v9356
      %9486 = vst.msk [vmem:[%s199 + $0x350] sm:$0xff] %vm9379, %v9357
      %9487 = vst.msk [vmem:[%s199 + $0x358] sm:$0xff] %vm9379, %v9358
      %9488 = vst.msk [vmem:[%s199 + $0x360] sm:$0xff] %vm9379, %v9359
      %9489 = vst.msk [vmem:[%s199 + $0x368] sm:$0xff] %vm9379, %v9360
      %9490 = vst.msk [vmem:[%s199 + $0x370] sm:$0xff] %vm9379, %v9361
      %9491 = vst.msk [vmem:[%s199 + $0x378] sm:$0xff] %vm9379, %v9362
      %9492 = vst.msk [vmem:[%s199 + $0x380] sm:$0xff] %vm9379, %v9363
      %9493 = vst.msk [vmem:[%s199 + $0x388] sm:$0xff] %vm9379, %v9364
      %9494 = vst.msk [vmem:[%s199 + $0x390] sm:$0xff] %vm9379, %v9365
      %9495 = vst.msk [vmem:[%s199 + $0x398] sm:$0xff] %vm9379, %v9366
      %9496 = vst.msk [vmem:[%s199 + $0x3a0] sm:$0xff] %vm9379, %v9367
      %9497 = vst.msk [vmem:[%s199 + $0x3a8] sm:$0xff] %vm9379, %v9368
      %9498 = vst.msk [vmem:[%s199 + $0x3b0] sm:$0xff] %vm9379, %v9369
      %9499 = vst.msk [vmem:[%s199 + $0x3b8] sm:$0xff] %vm9379, %v9370
      %9500 = vst.msk [vmem:[%s199 + $0x3c0] sm:$0xff] %vm9379, %v9371
      %9501 = vst.msk [vmem:[%s199 + $0x3c8] sm:$0xff] %vm9379, %v9372
      %9502 = vst.msk [vmem:[%s199 + $0x3d0] sm:$0xff] %vm9379, %v9373
      %9503 = vst.msk [vmem:[%s199 + $0x3d8] sm:$0xff] %vm9379, %v9374
      %9504 = vst.msk [vmem:[%s199 + $0x3e0] sm:$0xff] %vm9379, %v9375
      %9505 = vst.msk [vmem:[%s199 + $0x3e8] sm:$0xff] %vm9379, %v9376
      %9506 = vst.msk [vmem:[%s199 + $0x3f0] sm:$0xff] %vm9379, %v9377
      %9507 = vst.msk [vmem:[%s199 + $0x3f8] sm:$0xff] %vm9379, %v9378
      %s9508 = smul.u32 128, %s15
      %p9509 = scmp.lt.s32.totalorder %s9508, 255
      %s9510 = scalar_select %p9509, %s9508, 255
      %s9511 = smul.addr %s9510, 8
      %s9512 = scalar_lea.vmem %s4, %s9511
      // Predicated region
      $region37: #{model1_forward_batched.1} parent=35 // pred_check
        %p9513 = pneg %p122
      $region38: #{model1_forward_batched.1} parent=35 // pred_check_branch
        %9515 = sbr.rel (%p9513) target = $region40
      $region39: #{model1_forward_batched.1} parent=35 // pred_region
        %s9516 = smul.u32 128, %s15
      $region40: #{model1_forward_batched.1} parent=35 // pred_fallthru
        _
    $region36: #{model1_forward_batched.1} parent=5 // pred_fallthru
      _
    %p9517 = scmp.le.s32.totalorder 2, %s10
    // Predicated region
    $region41: #{model1_forward_batched.1} parent=5 // pred_check
      %p9518 = pneg %p9517
    $region42: #{model1_forward_batched.1} parent=5 // pred_check_branch
      %9520 = sbr.rel (%p9518) target = $region44
    $region43: #{model1_forward_batched.1} parent=5 // pred_region
      %s9521 = ssub.s32 %s10, 2
      // Predicated region
      $region45: #{model1_forward_batched.1} parent=43 // pred_check
        %p9522 = pneg %p128
      $region46: #{model1_forward_batched.1} parent=43 // pred_check_branch
        %9524 = sbr.rel (%p9522) target = $region48
      $region47: #{model1_forward_batched.1} parent=43 // pred_region
        %s9525 = smul.u32 128, %s16
        %p9526 = scmp.lt.s32.totalorder %s9525, 255
        %s9527 = scalar_select %p9526, %s9525, 255
        %s9528 = smul.addr %s9527, 8
        %s9529 = scalar_lea.vmem %s4, %s9528
      $region48: #{model1_forward_batched.1} parent=43 // pred_fallthru
        _
    $region44: #{model1_forward_batched.1} parent=5 // pred_fallthru
      _
  $region6: #{model1_forward_batched.1} parent=0 // loop_footer
    %s14 = sadd.s32 1, %s10
  $region7: #{model1_forward_batched.1} parent=0 // loop_footer_branch
    %9 = sbr.rel target = $region3
  $region8: #{model1_forward_batched.1} parent=0 // loop_exit
    _

</llo_original>
